<compile_context>
chip_gen: v5e
topology: v5e:2x2
jax: 0.10.0
libtpu: 0.0.40
codegen_flags: <defaults>
</compile_context>

<pallas_src>
import functools

import jax
import jax.numpy as jnp
from jax.experimental import pallas as pl
from jax.experimental.pallas import tpu as pltpu


def _round_up(x, m):
    return ((x + m - 1) // m) * m


# ----------------------------------------------------------------------------
# Hardware / feature queries (safe fallbacks everywhere).
# ----------------------------------------------------------------------------
@functools.lru_cache(maxsize=None)
def _vmem_capacity_bytes():
    try:
        info = pltpu.get_tpu_info()
        for name in ("vmem_capacity_bytes", "vmem_size_bytes", "vmem_bytes"):
            v = getattr(info, name, None)
            if v:
                return int(v)
    except Exception:
        pass
    return 64 * 1024 * 1024          # conservative default (v7x per-core VMEM)


@functools.lru_cache(maxsize=None)
def _single_buffered_outputs_supported():
    """Probe whether out_specs accept pipeline_mode=pl.Buffered(1)."""
    try:
        with jax.ensure_compile_time_eval():
            def _copy(x_ref, o_ref):
                o_ref[...] = x_ref[...] + 1.0

            f = pl.pallas_call(
                _copy,
                out_shape=jax.ShapeDtypeStruct((8, 128), jnp.float32),
                grid=(2,),
                in_specs=[pl.BlockSpec((8, 128), lambda i: (0, 0))],
                out_specs=pl.BlockSpec((8, 128), lambda i: (0, 0),
                                       pipeline_mode=pl.Buffered(1)),
            )
            out = f(jnp.zeros((8, 128), jnp.float32))
            return bool(jnp.all(out == 1.0))
    except Exception:
        return False


def _out_block_spec(shape, index_map, out_bufs):
    if out_bufs == 1:
        return pl.BlockSpec(shape, index_map, pipeline_mode=pl.Buffered(1))
    return pl.BlockSpec(shape, index_map)


def _pick_tiling(k_p, p_rows, r_rows, hw_p, c_out, ncls_p, out_bufs):
    """Largest K tile (multiple of 128 dividing k_p) whose working set fits the
    per-generation VMEM budget; also returns the scoped-VMEM limit to request."""
    cap = _vmem_capacity_bytes()
    usable = min(cap, 128 * 1024 * 1024)
    budget = int(usable * 0.7)
    # v5e/v6e (128 MiB VMEM) can afford bigger K tiles than v7x (64 MiB).
    tk_cap = 1024 if cap >= 100 * 1024 * 1024 else 512

    def working_set(tk):
        lhs = 2 * p_rows * tk * 2                    # double-buffered bf16 lhs
        wgt = 2 * 3 * tk * 3 * c_out * 2             # double-buffered bf16 weight
        outs = out_bufs * (hw_p * c_out + hw_p * ncls_p) * 4
        cls = 2 * (c_out * ncls_p * 2 + ncls_p * 4 + 2 * c_out * 4)
        tmp = r_rows * 3 * c_out * 4 + 2 * hw_p * c_out * 4   # y + epilogue slack
        return lhs + wgt + outs + cls + tmp

    cands = [t for t in range(128, min(k_p, tk_cap) + 1, 128) if k_p % t == 0]
    if not cands:
        cands = [128]
    tk = cands[0]
    for t in sorted(cands, reverse=True):
        if working_set(t) <= budget:
            tk = t
            break
    vlim = int(working_set(tk) * 1.5) + (8 << 20)
    vlim = max(32 * 1024 * 1024, min(vlim, int(usable * 0.9)))
    return tk, vlim


# ----------------------------------------------------------------------------
# Fused kernel.
#   b_ref      : (1, P, tk)          bf16  zero-padded activation K-block,
#                P = (H+3)*Wp flat pixels (1 top / 2 bottom halo rows).
#   w_ref      : (1, 3, tk, 3*Cout)  bf16  conv weight K-block, [dy][cin][dx*Cout+c]
#   scale/bias : (1, Cout)           f32   folded BatchNorm affine
#   wcls/bcls  : (Cout, ncls_p) bf16 / (1, ncls_p) f32   classifier (lane-dense)
#   feat_ref   : (1, H*Wp, Cout)     f32   feature output == conv accumulator
#   logits_ref : (1, H*Wp, ncls_p)   f32   classifier logits
# Grid: (batch "parallel", K-blocks "arbitrary" innermost).
# ----------------------------------------------------------------------------
def _fused_block_cls_kernel(b_ref, w_ref, scale_ref, bias_ref, wcls_ref,
                            bcls_ref, feat_ref, logits_ref,
                            *, hw_p, w_p, c_out, r_rows):
    k = pl.program_id(1)

    @pl.when(k == 0)
    def _init():
        feat_ref[...] = jnp.zeros(feat_ref.shape, feat_ref.dtype)

    for dy in range(3):
        # Vertical tap: Wp-aligned row offset of the flat lhs (aligned slice,
        # the lhs is read from HBM exactly once per K-block).
        opnd = b_ref[0, pl.ds(dy * w_p, r_rows), :]               # (R, tk) bf16
        # Horizontal taps folded into the matmul N dim: one MXU pass covers
        # dx = 0, 1, 2 with 3*Cout output columns.
        y = jnp.dot(opnd, w_ref[0, dy],
                    preferred_element_type=jnp.float32)           # (R, 3*Cout)
        # De-interleave dx: three f32 slabs (row offsets 0/1/2, lane-block
        # aligned columns), summed on the VPU -> one accumulator update per dy
        # straight into the resident output block (no scratch accumulator).
        contrib = (y[0:hw_p, 0:c_out]
                   + y[1:1 + hw_p, c_out:2 * c_out]
                   + y[2:2 + hw_p, 2 * c_out:3 * c_out])
        feat_ref[0] = feat_ref[0] + contrib

    @pl.when(k == pl.num_programs(1) - 1)
    def _finalize():
        # Folded-BN affine + ReLU epilogue in f32, written back in place.
        y = jnp.maximum(feat_ref[0] * scale_ref[...] + bias_ref[...], 0.0)
        feat_ref[0] = y
        # TODO(synk): nn.Dropout(0.1) between block and classifier -> identity.
        # Fused 1x1 classifier while the feature is still resident in VMEM.
        logits = jnp.dot(y.astype(jnp.bfloat16), wcls_ref[...],
                         preferred_element_type=jnp.float32) + bcls_ref[...]
        logits_ref[0] = logits.astype(logits_ref.dtype)


def fused_block_classifier(x_cat, block_p, cls_p):
    """x_cat: (N, H, W, Cin) bf16 -> (logits (N,H,W,nclass) f32, feature f32)."""
    N, H, W, C = x_cat.shape
    Cout = block_p["w"].shape[-1]
    nclass = cls_p["w"].shape[-1]

    Wp = _round_up(W + 2, 16)        # >= W+2 so the dx=+/-1 taps hit zero padding
    Hp = H + 3                       # 1 top + 2 bottom zero halo rows
    HWp = H * Wp
    P = Hp * Wp
    R = HWp + 16                     # matmul rows: output rows + dx slab slack
    Kp = _round_up(C, 128)
    ncls_p = _round_up(max(nclass, 128), 128)

    out_bufs = 1 if _single_buffered_outputs_supported() else 2
    tk, vlim = _pick_tiling(Kp, P, R, HWp, Cout, ncls_p, out_bufs)
    nk = Kp // tk

    # Single zero-pad pass (spatial halo + channel pad to the K-tile multiple).
    xp = jnp.pad(x_cat, ((0, 0), (1, 2), (1, Wp - W - 1), (0, Kp - C)))
    b = xp.reshape(N, P, Kp)                                     # bf16 lhs

    # Conv weight (dy, dx, cin, cout) -> (k-block, dy, cin_tile, dx*Cout + cout).
    w = block_p["w"].astype(jnp.bfloat16)
    if Kp != C:
        w = jnp.pad(w, ((0, 0), (0, 0), (0, Kp - C), (0, 0)))
    w = jnp.transpose(w, (0, 2, 1, 3)).reshape(3, Kp, 3 * Cout)
    w = w.reshape(3, nk, tk, 3 * Cout).transpose(1, 0, 2, 3)

    scale = block_p["scale"].reshape(1, Cout).astype(jnp.float32)
    bias = block_p["bias"].reshape(1, Cout).astype(jnp.float32)

    # Lane-dense classifier weights: pad nclass up to 128 lanes.
    wc = jnp.zeros((Cout, ncls_p), jnp.bfloat16).at[:, :nclass].set(
        cls_p["w"].astype(jnp.bfloat16))
    bc = jnp.zeros((1, ncls_p), jnp.float32).at[0, :nclass].set(
        cls_p["b"].astype(jnp.float32))

    kern = functools.partial(_fused_block_cls_kernel,
                             hw_p=HWp, w_p=Wp, c_out=Cout, r_rows=R)
    feat_flat, logits_flat = pl.pallas_call(
        kern,
        out_shape=(jax.ShapeDtypeStruct((N, HWp, Cout), jnp.float32),
                   jax.ShapeDtypeStruct((N, HWp, ncls_p), jnp.float32)),
        grid=(N, nk),
        in_specs=[
            pl.BlockSpec((1, P, tk), lambda n, k: (n, 0, k)),
            pl.BlockSpec((1, 3, tk, 3 * Cout), lambda n, k: (k, 0, 0, 0)),
            pl.BlockSpec((1, Cout), lambda n, k: (0, 0)),
            pl.BlockSpec((1, Cout), lambda n, k: (0, 0)),
            pl.BlockSpec((Cout, ncls_p), lambda n, k: (0, 0)),
            pl.BlockSpec((1, ncls_p), lambda n, k: (0, 0)),
        ],
        out_specs=(
            _out_block_spec((1, HWp, Cout), lambda n, k: (n, 0, 0), out_bufs),
            _out_block_spec((1, HWp, ncls_p), lambda n, k: (n, 0, 0), out_bufs),
        ),
        compiler_params=pltpu.CompilerParams(
            dimension_semantics=("parallel", "arbitrary"),
            vmem_limit_bytes=vlim),
    )(b, w, scale, bias, wc, bc)

    # The padded-column / padded-class slice fuses with the consumer transpose
    # under jit (single pass), so no extra HBM round trip is materialized here.
    feature = feat_flat.reshape(N, H, Wp, Cout)[:, :, :W, :]
    logits = logits_flat.reshape(N, H, Wp, ncls_p)[:, :, :W, :nclass]
    return logits, feature


# ----------------------------------------------------------------------------
# Plain-JAX glue: adaptive avg pool matrices (PyTorch bin rule), bilinear
# align_corners=True matrices, folded BN, pyramid pooling.
# ----------------------------------------------------------------------------
def adaptive_pool_matrix(out_size, in_size):
    i = jnp.arange(out_size)
    start = (i * in_size) // out_size
    end = -((-(i + 1) * in_size) // out_size)            # ceil
    j = jnp.arange(in_size)[None, :]
    mask = (j >= start[:, None]) & (j < end[:, None])
    return mask.astype(jnp.float32) / (end - start)[:, None].astype(jnp.float32)


def bilinear_matrix(out_size, in_size):
    if in_size == 1:
        return jnp.ones((out_size, 1), jnp.float32)
    src = jnp.arange(out_size, dtype=jnp.float32) * (in_size - 1) / (out_size - 1)
    i0 = jnp.clip(jnp.floor(src).astype(jnp.int32), 0, in_size - 1)
    i1 = jnp.clip(i0 + 1, 0, in_size - 1)
    w1 = src - i0.astype(jnp.float32)
    w0 = 1.0 - w1
    j = jnp.arange(in_size)[None, :]
    return w0[:, None] * (j == i0[:, None]) + w1[:, None] * (j == i1[:, None])


def fold_bn(gamma, beta, mean, var, eps=1e-5):
    scale = gamma / jnp.sqrt(var + eps)
    bias = beta - mean * scale
    return scale, bias


def _pyramid_concat(x_nhwc, params):
    """_PyramidPooling: [x, up(conv(pool_s(x))) for s in 1,2,3,6] -> bf16."""
    N, H, W, C = x_nhwc.shape
    feats = [x_nhwc.astype(jnp.bfloat16)]
    for k, s in enumerate((1, 2, 3, 6)):
        p = params["psp"][k]
        # Tiny GEMMs (<= 36 pixels): kept in plain JAX per the perf review.
        Mh = adaptive_pool_matrix(s, H)
        Mw = adaptive_pool_matrix(s, W)
        pooled = jnp.einsum("sh,tw,nhwc->nstc", Mh, Mw, x_nhwc)
        y = jnp.einsum("nstc,cd->nstd", pooled, p["w"]) * p["scale"] + p["bias"]
        y = jnp.maximum(y, 0.0)                           # 1x1 conv + BN + ReLU
        Uh = bilinear_matrix(H, s)
        Uw = bilinear_matrix(W, s)
        up = jnp.einsum("hs,wt,nstd->nhwd", Uh, Uw, y)    # bilinear, align_corners
        feats.append(up.astype(jnp.bfloat16))
    return jnp.concatenate(feats, axis=-1)                # (N, H, W, 2C) bf16


# ----------------------------------------------------------------------------
# _PSPHead forward (Pallas path) and a plain-JAX/XLA reference for validation.
# ----------------------------------------------------------------------------
def psp_head_forward(x_nchw, params):
    x = jnp.transpose(x_nchw, (0, 2, 3, 1)).astype(jnp.float32)   # NCHW -> NHWC
    x_cat = _pyramid_concat(x, params)
    logits, feature = fused_block_classifier(x_cat, params["block"], params["cls"])
    return (jnp.transpose(logits, (0, 3, 1, 2)),
            jnp.transpose(feature, (0, 3, 1, 2)))


def _reference_block_classifier(x_cat, block_p, cls_p):
    x32 = x_cat.astype(jnp.float32)
    w32 = block_p["w"].astype(jnp.bfloat16).astype(jnp.float32)
    y = jax.lax.conv_general_dilated(
        x32, w32, window_strides=(1, 1), padding="SAME",
        dimension_numbers=("NHWC", "HWIO", "NHWC"),
        precision=jax.lax.Precision.HIGHEST)
    feature = jnp.maximum(y * block_p["scale"] + block_p["bias"], 0.0)
    wc32 = cls_p["w"].astype(jnp.bfloat16).astype(jnp.float32)
    logits = jnp.einsum("nhwc,cd->nhwd",
                        feature.astype(jnp.bfloat16).astype(jnp.float32), wc32,
                        precision=jax.lax.Precision.HIGHEST) + cls_p["b"]
    return logits, feature


def psp_head_reference(x_nchw, params):
    x = jnp.transpose(x_nchw, (0, 2, 3, 1)).astype(jnp.float32)
    x_cat = _pyramid_concat(x, params)
    logits, feature = _reference_block_classifier(x_cat, params["block"], params["cls"])
    return (jnp.transpose(logits, (0, 3, 1, 2)),
            jnp.transpose(feature, (0, 3, 1, 2)))


# ----------------------------------------------------------------------------
# Deterministic parameter construction (synthetic, matches module shapes).
# ----------------------------------------------------------------------------
def make_params(key, in_channels, nclass):
    assert in_channels in (320, 512, 2048)
    block_out = 128 if in_channels in (320, 512) else 512
    psp_out = in_channels // 4

    keys = jax.random.split(key, 16)
    ki = iter(keys)

    def bn_params(k, c):
        k1, k2, k3, k4 = jax.random.split(k, 4)
        gamma = 1.0 + 0.1 * jax.random.normal(k1, (c,), jnp.float32)
        beta = 0.1 * jax.random.normal(k2, (c,), jnp.float32)
        mean = 0.1 * jax.random.normal(k3, (c,), jnp.float32)
        var = jnp.abs(1.0 + 0.1 * jax.random.normal(k4, (c,), jnp.float32))
        return fold_bn(gamma, beta, mean, var)

    psp = []
    for _ in range(4):
        w = 0.05 * jax.random.normal(next(ki), (in_channels, psp_out), jnp.float32)
        scale, bias = bn_params(next(ki), psp_out)
        psp.append({"w": w, "scale": scale, "bias": bias})

    wb = 0.02 * jax.random.normal(next(ki), (3, 3, 2 * in_channels, block_out),
                                  jnp.float32)
    bscale, bbias = bn_params(next(ki), block_out)

    wc = 0.05 * jax.random.normal(next(ki), (block_out, nclass), jnp.float32)
    bc = 0.05 * jax.random.normal(next(ki), (nclass,), jnp.float32)

    return {
        "psp": psp,
        "block": {"w": wb, "scale": bscale, "bias": bbias},
        "cls": {"w": wc, "b": bc},
    }


if __name__ == "__main__":
    key = jax.random.PRNGKey(0)

    # Warm the feature probe eagerly (result is cached for use under jit trace).
    _single_buffered_outputs_supported()

    # Config 1: mobile backbone (in_channels=320 -> block out 128), 16x16 map.
    # Config 2: ResNet backbone (in_channels=2048 -> block out 512), 8x8 map,
    #           explicitly exercising the multi-step K reduction (K = 4096).
    configs = [(2, 320, 16, 16, 8), (1, 2048, 8, 8, 5)]
    for cfg_i, (n, c, h, w, nclass) in enumerate(configs):
        kx, kp, key = jax.random.split(key, 3)
        x = jax.random.normal(kx, (n, c, h, w), jnp.float32)   # NCHW like PyTorch
        params = make_params(kp, c, nclass)

        logits, feature = jax.jit(lambda a, p=params: psp_head_forward(a, p))(x)
        jax.block_until_ready((logits, feature))

        cout = 128 if c in (320, 512) else 512
        assert logits.shape == (n, nclass, h, w), logits.shape
        assert feature.shape == (n, cout, h, w), feature.shape
        assert bool(jnp.all(jnp.isfinite(logits)))
        assert bool(jnp.all(jnp.isfinite(feature)))

        # Validate the fused Pallas kernel against a plain-JAX/XLA reference.
        ref_logits, ref_feature = jax.jit(
            lambda a, p=params: psp_head_reference(a, p))(x)
        jax.block_until_ready((ref_logits, ref_feature))
        tol = 1e-2 if cfg_i == 0 else 2e-2
        assert jnp.allclose(logits, ref_logits, atol=tol, rtol=tol), (
            cfg_i, float(jnp.max(jnp.abs(logits - ref_logits))))
        assert jnp.allclose(feature, ref_feature, atol=tol, rtol=tol), (
            cfg_i, float(jnp.max(jnp.abs(feature - ref_feature))))

    print("KERNEL_OK")
</pallas_src>

<mosaic_0001>
module attributes {stable_mosaic.version = 11 : i64} {
  func.func @_copy(%arg0: i32, %arg1: memref<8x128xf32, #tpu.memory_space<vmem>>, %arg2: memref<8x128xf32, #tpu.memory_space<vmem>>) attributes {dimension_semantics = [#tpu.dimension_semantics<arbitrary>], iteration_bounds = array<i64: 2>, scalar_prefetch = 0 : i64, scratch_operands = 0 : i64, tpu.core_type = #tpu.core_type<tc>, window_params = [{pipeline_mode = #tpu.pipeline_mode<synchronous>, transform_indices = @transform_0, window_bounds = array<i64: 8, 128>}, {pipeline_mode = #tpu.pipeline_mode<synchronous>, transform_indices = @transform_1, window_bounds = array<i64: 8, 128>}]} {
    %c0 = arith.constant 0 : index
    %c0_0 = arith.constant 0 : index
    %0 = vector.load %arg1[%c0, %c0_0] : memref<8x128xf32, #tpu.memory_space<vmem>>, vector<8x128xf32>
    %cst = arith.constant 1.000000e+00 : f32
    %1 = vector.broadcast %cst : f32 to vector<8x128xf32>
    %2 = arith.addf %0, %1 : vector<8x128xf32>
    %c0_1 = arith.constant 0 : index
    %c0_2 = arith.constant 0 : index
    %3 = vector.load %arg2[%c0_1, %c0_2] : memref<8x128xf32, #tpu.memory_space<vmem>>, vector<8x128xf32>
    tpu.vector_store %arg2[%c0_1, %c0_2], %2 {strides = array<i32>} : memref<8x128xf32, #tpu.memory_space<vmem>>, vector<8x128xf32>,
    return
  }
  func.func @transform_0(%arg0: i32) -> (i32, i32) {
    %c0_i32 = arith.constant 0 : i32
    %c0_i32_0 = arith.constant 0 : i32
    %c0_i32_1 = arith.constant 0 : i32
    return %c0_i32, %c0_i32_0 : i32, i32
  }
  func.func @transform_1(%arg0: i32) -> (i32, i32) {
    %c0_i32 = arith.constant 0 : i32
    %c0_i32_0 = arith.constant 0 : i32
    %c0_i32_1 = arith.constant 0 : i32
    return %c0_i32, %c0_i32_0 : i32, i32
  }
}

module attributes {stable_mosaic.version = 11 : i64} {
  func.func @_fused_block_cls_kernel(%arg0: i32, %arg1: i32, %arg2: memref<1x608x128xbf16, #tpu.memory_space<vmem>>, %arg3: memref<1x3x128x384xbf16, #tpu.memory_space<vmem>>, %arg4: memref<1x128xf32, #tpu.memory_space<vmem>>, %arg5: memref<1x128xf32, #tpu.memory_space<vmem>>, %arg6: memref<128x128xbf16, #tpu.memory_space<vmem>>, %arg7: memref<1x128xf32, #tpu.memory_space<vmem>>, %arg8: memref<1x512x128xf32, #tpu.memory_space<vmem>>, %arg9: memref<1x512x128xf32, #tpu.memory_space<vmem>>) attributes {dimension_semantics = [#tpu.dimension_semantics<parallel>, #tpu.dimension_semantics<arbitrary>], iteration_bounds = array<i64: 2, 5>, scalar_prefetch = 0 : i64, scratch_operands = 0 : i64, tpu.core_type = #tpu.core_type<tc>, window_params = [{transform_indices = @transform_0, window_bounds = array<i64: 1, 608, 128>}, {transform_indices = @transform_1, window_bounds = array<i64: 1, 3, 128, 384>}, {pipeline_mode = #tpu.pipeline_mode<synchronous>, transform_indices = @transform_2, window_bounds = array<i64: 1, 128>}, {pipeline_mode = #tpu.pipeline_mode<synchronous>, transform_indices = @transform_3, window_bounds = array<i64: 1, 128>}, {pipeline_mode = #tpu.pipeline_mode<synchronous>, transform_indices = @transform_4, window_bounds = array<i64: 128, 128>}, {pipeline_mode = #tpu.pipeline_mode<synchronous>, transform_indices = @transform_5, window_bounds = array<i64: 1, 128>}, {transform_indices = @transform_6, window_bounds = array<i64: 1, 512, 128>}, {transform_indices = @transform_7, window_bounds = array<i64: 1, 512, 128>}]} {
    %c0_i32 = arith.constant 0 : i32
    %0 = arith.cmpi eq, %arg1, %c0_i32 : i32
    %1 = arith.extui %0 : i1 to i32
    %c0_i32_0 = arith.constant 0 : i32
    %2 = arith.cmpi ne, %1, %c0_i32_0 : i32
    scf.if %2 {
      %cst_38 = arith.constant 0.000000e+00 : f32
      %54 = vector.broadcast %cst_38 : f32 to vector<1x512x128xf32>
      %c0_39 = arith.constant 0 : index
      %c0_40 = arith.constant 0 : index
      %c0_41 = arith.constant 0 : index
      %55 = vector.load %arg8[%c0_39, %c0_40, %c0_41] : memref<1x512x128xf32, #tpu.memory_space<vmem>>, vector<1x512x128xf32>
      tpu.vector_store %arg8[%c0_39, %c0_40, %c0_41], %54 {strides = array<i32>} : memref<1x512x128xf32, #tpu.memory_space<vmem>>, vector<1x512x128xf32>,
    } else {
    }
    %c0 = arith.constant 0 : index
    %c0_1 = arith.constant 0 : index
    %c0_2 = arith.constant 0 : index
    %3 = vector.load %arg2[%c0, %c0_1, %c0_2] : memref<1x608x128xbf16, #tpu.memory_space<vmem>>, vector<1x528x128xbf16>
    %4 = vector.shape_cast %3 : vector<1x528x128xbf16> to vector<528x128xbf16>
    %c0_3 = arith.constant 0 : index
    %c0_4 = arith.constant 0 : index
    %c0_5 = arith.constant 0 : index
    %c0_6 = arith.constant 0 : index
    %5 = vector.load %arg3[%c0_3, %c0_4, %c0_5, %c0_6] : memref<1x3x128x384xbf16, #tpu.memory_space<vmem>>, vector<1x1x128x384xbf16>
    %6 = vector.shape_cast %5 : vector<1x1x128x384xbf16> to vector<128x384xbf16>
    %cst = arith.constant dense<0.000000e+00> : vector<528x384xf32>
    %7 = tpu.matmul %4, %6, %cst {dimension_numbers = #tpu.dot_dimension_numbers<[1], [0], [0], [1], [0, 0, 1, 1], [], []>} : vector<528x128xbf16>, vector<128x384xbf16>, vector<528x384xf32> -> vector<528x384xf32>
    %8 = vector.extract_strided_slice %7 {offsets = [0, 0], sizes = [512, 128], strides = [1, 1]} : vector<528x384xf32> to vector<512x128xf32>
    %9 = vector.extract_strided_slice %7 {offsets = [1, 128], sizes = [512, 128], strides = [1, 1]} : vector<528x384xf32> to vector<512x128xf32>
    %10 = arith.addf %8, %9 : vector<512x128xf32>
    %11 = vector.extract_strided_slice %7 {offsets = [2, 256], sizes = [512, 128], strides = [1, 1]} : vector<528x384xf32> to vector<512x128xf32>
    %12 = arith.addf %10, %11 : vector<512x128xf32>
    %c0_7 = arith.constant 0 : index
    %c0_8 = arith.constant 0 : index
    %c0_9 = arith.constant 0 : index
    %13 = vector.load %arg8[%c0_7, %c0_8, %c0_9] : memref<1x512x128xf32, #tpu.memory_space<vmem>>, vector<1x512x128xf32>
    %14 = vector.shape_cast %13 : vector<1x512x128xf32> to vector<512x128xf32>
    %15 = arith.addf %14, %12 : vector<512x128xf32>
    %c0_10 = arith.constant 0 : index
    %c0_11 = arith.constant 0 : index
    %c0_12 = arith.constant 0 : index
    %16 = vector.load %arg8[%c0_10, %c0_11, %c0_12] : memref<1x512x128xf32, #tpu.memory_space<vmem>>, vector<1x512x128xf32>
    %17 = vector.shape_cast %16 : vector<1x512x128xf32> to vector<512x128xf32>
    %18 = vector.shape_cast %15 : vector<512x128xf32> to vector<1x512x128xf32>
    tpu.vector_store %arg8[%c0_10, %c0_11, %c0_12], %18 {strides = array<i32>} : memref<1x512x128xf32, #tpu.memory_space<vmem>>, vector<1x512x128xf32>,
    %c0_13 = arith.constant 0 : index
    %c32 = arith.constant 32 : index
    %c0_14 = arith.constant 0 : index
    %19 = vector.load %arg2[%c0_13, %c32, %c0_14] : memref<1x608x128xbf16, #tpu.memory_space<vmem>>, vector<1x528x128xbf16>
    %20 = vector.shape_cast %19 : vector<1x528x128xbf16> to vector<528x128xbf16>
    %c0_15 = arith.constant 0 : index
    %c1 = arith.constant 1 : index
    %c0_16 = arith.constant 0 : index
    %c0_17 = arith.constant 0 : index
    %21 = vector.load %arg3[%c0_15, %c1, %c0_16, %c0_17] : memref<1x3x128x384xbf16, #tpu.memory_space<vmem>>, vector<1x1x128x384xbf16>
    %22 = vector.shape_cast %21 : vector<1x1x128x384xbf16> to vector<128x384xbf16>
    %cst_18 = arith.constant dense<0.000000e+00> : vector<528x384xf32>
    %23 = tpu.matmul %20, %22, %cst_18 {dimension_numbers = #tpu.dot_dimension_numbers<[1], [0], [0], [1], [0, 0, 1, 1], [], []>} : vector<528x128xbf16>, vector<128x384xbf16>, vector<528x384xf32> -> vector<528x384xf32>
    %24 = vector.extract_strided_slice %23 {offsets = [0, 0], sizes = [512, 128], strides = [1, 1]} : vector<528x384xf32> to vector<512x128xf32>
    %25 = vector.extract_strided_slice %23 {offsets = [1, 128], sizes = [512, 128], strides = [1, 1]} : vector<528x384xf32> to vector<512x128xf32>
    %26 = arith.addf %24, %25 : vector<512x128xf32>
    %27 = vector.extract_strided_slice %23 {offsets = [2, 256], sizes = [512, 128], strides = [1, 1]} : vector<528x384xf32> to vector<512x128xf32>
    %28 = arith.addf %26, %27 : vector<512x128xf32>
    %c0_19 = arith.constant 0 : index
    %c0_20 = arith.constant 0 : index
    %c0_21 = arith.constant 0 : index
    %29 = vector.load %arg8[%c0_19, %c0_20, %c0_21] : memref<1x512x128xf32, #tpu.memory_space<vmem>>, vector<1x512x128xf32>
    %30 = vector.shape_cast %29 : vector<1x512x128xf32> to vector<512x128xf32>
    %31 = arith.addf %30, %28 : vector<512x128xf32>
    %c0_22 = arith.constant 0 : index
    %c0_23 = arith.constant 0 : index
    %c0_24 = arith.constant 0 : index
    %32 = vector.load %arg8[%c0_22, %c0_23, %c0_24] : memref<1x512x128xf32, #tpu.memory_space<vmem>>, vector<1x512x128xf32>
    %33 = vector.shape_cast %32 : vector<1x512x128xf32> to vector<512x128xf32>
    %34 = vector.shape_cast %31 : vector<512x128xf32> to vector<1x512x128xf32>
    tpu.vector_store %arg8[%c0_22, %c0_23, %c0_24], %34 {strides = array<i32>} : memref<1x512x128xf32, #tpu.memory_space<vmem>>, vector<1x512x128xf32>,
    %c0_25 = arith.constant 0 : index
    %c64 = arith.constant 64 : index
    %c0_26 = arith.constant 0 : index
    %35 = vector.load %arg2[%c0_25, %c64, %c0_26] : memref<1x608x128xbf16, #tpu.memory_space<vmem>>, vector<1x528x128xbf16>
    %36 = vector.shape_cast %35 : vector<1x528x128xbf16> to vector<528x128xbf16>
    %c0_27 = arith.constant 0 : index
    %c2 = arith.constant 2 : index
    %c0_28 = arith.constant 0 : index
    %c0_29 = arith.constant 0 : index
    %37 = vector.load %arg3[%c0_27, %c2, %c0_28, %c0_29] : memref<1x3x128x384xbf16, #tpu.memory_space<vmem>>, vector<1x1x128x384xbf16>
    %38 = vector.shape_cast %37 : vector<1x1x128x384xbf16> to vector<128x384xbf16>
    %cst_30 = arith.constant dense<0.000000e+00> : vector<528x384xf32>
    %39 = tpu.matmul %36, %38, %cst_30 {dimension_numbers = #tpu.dot_dimension_numbers<[1], [0], [0], [1], [0, 0, 1, 1], [], []>} : vector<528x128xbf16>, vector<128x384xbf16>, vector<528x384xf32> -> vector<528x384xf32>
    %40 = vector.extract_strided_slice %39 {offsets = [0, 0], sizes = [512, 128], strides = [1, 1]} : vector<528x384xf32> to vector<512x128xf32>
    %41 = vector.extract_strided_slice %39 {offsets = [1, 128], sizes = [512, 128], strides = [1, 1]} : vector<528x384xf32> to vector<512x128xf32>
    %42 = arith.addf %40, %41 : vector<512x128xf32>
    %43 = vector.extract_strided_slice %39 {offsets = [2, 256], sizes = [512, 128], strides = [1, 1]} : vector<528x384xf32> to vector<512x128xf32>
    %44 = arith.addf %42, %43 : vector<512x128xf32>
    %c0_31 = arith.constant 0 : index
    %c0_32 = arith.constant 0 : index
    %c0_33 = arith.constant 0 : index
    %45 = vector.load %arg8[%c0_31, %c0_32, %c0_33] : memref<1x512x128xf32, #tpu.memory_space<vmem>>, vector<1x512x128xf32>
    %46 = vector.shape_cast %45 : vector<1x512x128xf32> to vector<512x128xf32>
    %47 = arith.addf %46, %44 : vector<512x128xf32>
    %c0_34 = arith.constant 0 : index
    %c0_35 = arith.constant 0 : index
    %c0_36 = arith.constant 0 : index
    %48 = vector.load %arg8[%c0_34, %c0_35, %c0_36] : memref<1x512x128xf32, #tpu.memory_space<vmem>>, vector<1x512x128xf32>
    %49 = vector.shape_cast %48 : vector<1x512x128xf32> to vector<512x128xf32>
    %50 = vector.shape_cast %47 : vector<512x128xf32> to vector<1x512x128xf32>
    tpu.vector_store %arg8[%c0_34, %c0_35, %c0_36], %50 {strides = array<i32>} : memref<1x512x128xf32, #tpu.memory_space<vmem>>, vector<1x512x128xf32>,
    %c4_i32 = arith.constant 4 : i32
    %51 = arith.cmpi eq, %arg1, %c4_i32 : i32
    %52 = arith.extui %51 : i1 to i32
    %c0_i32_37 = arith.constant 0 : i32
    %53 = arith.cmpi ne, %52, %c0_i32_37 : i32
    scf.if %53 {
      %c0_38 = arith.constant 0 : index
      %c0_39 = arith.constant 0 : index
      %c0_40 = arith.constant 0 : index
      %54 = vector.load %arg8[%c0_38, %c0_39, %c0_40] : memref<1x512x128xf32, #tpu.memory_space<vmem>>, vector<1x512x128xf32>
      %55 = vector.shape_cast %54 : vector<1x512x128xf32> to vector<512x128xf32>
      %c0_41 = arith.constant 0 : index
      %c0_42 = arith.constant 0 : index
      %56 = vector.load %arg4[%c0_41, %c0_42] : memref<1x128xf32, #tpu.memory_space<vmem>>, vector<1x128xf32>
      %57 = vector.broadcast %56 : vector<1x128xf32> to vector<512x128xf32>
      %58 = arith.mulf %55, %57 : vector<512x128xf32>
      %c0_43 = arith.constant 0 : index
      %c0_44 = arith.constant 0 : index
      %59 = vector.load %arg5[%c0_43, %c0_44] : memref<1x128xf32, #tpu.memory_space<vmem>>, vector<1x128xf32>
      %60 = vector.broadcast %59 : vector<1x128xf32> to vector<512x128xf32>
      %61 = arith.addf %58, %60 : vector<512x128xf32>
      %cst_45 = arith.constant 0.000000e+00 : f32
      %62 = vector.broadcast %cst_45 : f32 to vector<512x128xf32>
      %63 = arith.maximumf %61, %62 : vector<512x128xf32>
      %c0_46 = arith.constant 0 : index
      %c0_47 = arith.constant 0 : index
      %c0_48 = arith.constant 0 : index
      %64 = vector.load %arg8[%c0_46, %c0_47, %c0_48] : memref<1x512x128xf32, #tpu.memory_space<vmem>>, vector<1x512x128xf32>
      %65 = vector.shape_cast %64 : vector<1x512x128xf32> to vector<512x128xf32>
      %66 = vector.shape_cast %63 : vector<512x128xf32> to vector<1x512x128xf32>
      tpu.vector_store %arg8[%c0_46, %c0_47, %c0_48], %66 {strides = array<i32>} : memref<1x512x128xf32, #tpu.memory_space<vmem>>, vector<1x512x128xf32>,
      %67 = arith.truncf %63 : vector<512x128xf32> to vector<512x128xbf16>
      %c0_49 = arith.constant 0 : index
      %c0_50 = arith.constant 0 : index
      %68 = vector.load %arg6[%c0_49, %c0_50] : memref<128x128xbf16, #tpu.memory_space<vmem>>, vector<128x128xbf16>
      %cst_51 = arith.constant dense<0.000000e+00> : vector<512x128xf32>
      %69 = tpu.matmul %67, %68, %cst_51 {dimension_numbers = #tpu.dot_dimension_numbers<[1], [0], [0], [1], [0, 0, 1, 1], [], []>} : vector<512x128xbf16>, vector<128x128xbf16>, vector<512x128xf32> -> vector<512x128xf32>
      %c0_52 = arith.constant 0 : index
      %c0_53 = arith.constant 0 : index
      %70 = vector.load %arg7[%c0_52, %c0_53] : memref<1x128xf32, #tpu.memory_space<vmem>>, vector<1x128xf32>
      %71 = vector.broadcast %70 : vector<1x128xf32> to vector<512x128xf32>
      %72 = arith.addf %69, %71 : vector<512x128xf32>
      %c0_54 = arith.constant 0 : index
      %c0_55 = arith.constant 0 : index
      %c0_56 = arith.constant 0 : index
      %73 = vector.load %arg9[%c0_54, %c0_55, %c0_56] : memref<1x512x128xf32, #tpu.memory_space<vmem>>, vector<1x512x128xf32>
      %74 = vector.shape_cast %73 : vector<1x512x128xf32> to vector<512x128xf32>
      %75 = vector.shape_cast %72 : vector<512x128xf32> to vector<1x512x128xf32>
      tpu.vector_store %arg9[%c0_54, %c0_55, %c0_56], %75 {strides = array<i32>} : memref<1x512x128xf32, #tpu.memory_space<vmem>>, vector<1x512x128xf32>,
    } else {
    }
    return
  }
  func.func @transform_0(%arg0: i32, %arg1: i32) -> (i32, i32, i32) {
    %c0_i32 = arith.constant 0 : i32
    %c0_i32_0 = arith.constant 0 : i32
    return %arg0, %c0_i32, %arg1 : i32, i32, i32
  }
  func.func @transform_1(%arg0: i32, %arg1: i32) -> (i32, i32, i32, i32) {
    %c0_i32 = arith.constant 0 : i32
    %c0_i32_0 = arith.constant 0 : i32
    %c0_i32_1 = arith.constant 0 : i32
    %c0_i32_2 = arith.constant 0 : i32
    return %arg1, %c0_i32, %c0_i32_0, %c0_i32_1 : i32, i32, i32, i32
  }
  func.func @transform_2(%arg0: i32, %arg1: i32) -> (i32, i32) {
    %c0_i32 = arith.constant 0 : i32
    %c0_i32_0 = arith.constant 0 : i32
    %c0_i32_1 = arith.constant 0 : i32
    return %c0_i32, %c0_i32_0 : i32, i32
  }
  func.func @transform_3(%arg0: i32, %arg1: i32) -> (i32, i32) {
    %c0_i32 = arith.constant 0 : i32
    %c0_i32_0 = arith.constant 0 : i32
    %c0_i32_1 = arith.constant 0 : i32
    return %c0_i32, %c0_i32_0 : i32, i32
  }
  func.func @transform_4(%arg0: i32, %arg1: i32) -> (i32, i32) {
    %c0_i32 = arith.constant 0 : i32
    %c0_i32_0 = arith.constant 0 : i32
    %c0_i32_1 = arith.constant 0 : i32
    return %c0_i32, %c0_i32_0 : i32, i32
  }
  func.func @transform_5(%arg0: i32, %arg1: i32) -> (i32, i32) {
    %c0_i32 = arith.constant 0 : i32
    %c0_i32_0 = arith.constant 0 : i32
    %c0_i32_1 = arith.constant 0 : i32
    return %c0_i32, %c0_i32_0 : i32, i32
  }
  func.func @transform_6(%arg0: i32, %arg1: i32) -> (i32, i32, i32) {
    %c0_i32 = arith.constant 0 : i32
    %c0_i32_0 = arith.constant 0 : i32
    %c0_i32_1 = arith.constant 0 : i32
    return %arg0, %c0_i32, %c0_i32_0 : i32, i32, i32
  }
  func.func @transform_7(%arg0: i32, %arg1: i32) -> (i32, i32, i32) {
    %c0_i32 = arith.constant 0 : i32
    %c0_i32_0 = arith.constant 0 : i32
    %c0_i32_1 = arith.constant 0 : i32
    return %arg0, %c0_i32, %c0_i32_0 : i32, i32, i32
  }
}

</mosaic_0001>

<llo_original>
// kernel: tpu_custom_call.1
$region0: #{tpu_custom_call.1}
  #allocation0 [shape = 'u32[]', space=smem, size = 0x4, offset = 0x4, fixed_abs, tag = 'smem constant byte address 0x4 - core index']
  #allocation1 [shape = 'u32[72,128]{1,0:T(1,128)}', space=vmem, size = 0x9000, scoped, tag = 'internal scratch']
  %s0 = inlined_call_operand.hbm [shape: f32[8,128], index: 0, kind: input, shape index: {}]
  %s1 = inlined_call_operand.hbm [shape: f32[8,128], index: 1, kind: output, shape index: {}]
  %s2 = sld [smem:[#allocation0]]
  $region41: #{tpu_custom_call.1} parent=0
    _
  %s4 = ssub.s32 1, %s2
  %s5 = scalar_select 0, %s4, %s2
  $region1: #{tpu_custom_call.1} parent=0
    #allocation2 [shape = 'u8[4096]{0}', space=vmem, size = 0x1000, scoped, tag = 'input window, operand 0, single buffered']
    #allocation3 [shape = 's32[2]{0}', space=sflag, size = 0x8, scoped, tag = 'scoped memory for tpu_custom_call.1']
    #allocation4 [shape = 's32[2]{0}', space=sflag, size = 0x8, scoped, tag = 'scoped memory for tpu_custom_call.1']
    #allocation5 [shape = 'u8[4096]{0}', space=vmem, size = 0x1000, scoped, tag = 'output window, operand 0, single buffered']
    %6 = vsyncpa [#allocation3], 0
    %7 = vsyncpa [#allocation4], 0
    loop: start=0, step=1, limit=4
    $region2: #{tpu_custom_call.1} parent=1 // loop_pre_header
      _
    $region3: #{tpu_custom_call.1} parent=1 // loop_header
      %s9 = sphi 0, %s13
      %p10 = scmp.ge.s32.totalorder %s9, 4
      %s17 = sphi 0, %s17
      %s19 = sphi 0, %s17
      %s20 = sphi 0, %s19
      %s34 = sphi 0, %s20
      %s38 = sphi 0, %s38
      %s40 = sphi 0, %s38
      %s41 = sphi 0, %s40
      %s55 = sphi 0, %s41
    $region4: #{tpu_custom_call.1} parent=1 // loop_header_branch
      %12 = sbr.rel (%p10) target = $region8
    $region5: #{tpu_custom_call.1} parent=1 // loop_body
      %s14 = ssub.s32 %s9, 1
      %s15 = ssub.s32 %s9, 2
      %s16 = sadd.s32 %s9, 1
      %s18 = sadd.s32 %s17, 1
      %p21 = scmp.eq.s32.totalorder %s9, 1
      %p22 = scmp.ne.s32.totalorder %s17, %s19
      %p23 = scmp.eq.s32.totalorder %s9, 0
      %p24 = por %p22, %p23
      %p25 = scmp.ne.s32.totalorder %s17, %s19
      %p26 = scmp.eq.s32.totalorder %s14, 1
      %p27 = por %p25, %p26
      %p28 = scmp.ne.s32.totalorder %s19, %s20
      %p29 = scmp.eq.s32.totalorder %s14, 0
      %p30 = por %p28, %p29
      %p31 = scmp.ne.s32.totalorder %s19, %s20
      %p32 = scmp.eq.s32.totalorder %s15, 1
      %p33 = por %p31, %p32
      %p35 = scmp.ne.s32.totalorder %s20, %s34
      %p36 = scmp.eq.s32.totalorder %s15, 0
      %p37 = por %p35, %p36
      %s39 = sadd.s32 %s38, 1
      %p42 = scmp.eq.s32.totalorder %s9, 1
      %p43 = scmp.ne.s32.totalorder %s38, %s40
      %p44 = scmp.eq.s32.totalorder %s9, 0
      %p45 = por %p43, %p44
      %p46 = scmp.ne.s32.totalorder %s38, %s40
      %p47 = scmp.eq.s32.totalorder %s14, 1
      %p48 = por %p46, %p47
      %p49 = scmp.ne.s32.totalorder %s40, %s41
      %p50 = scmp.eq.s32.totalorder %s14, 0
      %p51 = por %p49, %p50
      %p52 = scmp.ne.s32.totalorder %s40, %s41
      %p53 = scmp.eq.s32.totalorder %s15, 1
      %p54 = por %p52, %p53
      %p56 = scmp.ne.s32.totalorder %s41, %s55
      %p57 = scmp.eq.s32.totalorder %s15, 0
      %p58 = por %p56, %p57
      %p59 = scmp.le.s32.totalorder 1, %s9
      %p60 = scmp.lt.s32.totalorder %s9, 3
      %p61 = pnand %p59, %p60
      %p62 = pneg %p61
      // Predicated region
      $region9: #{tpu_custom_call.1} parent=5 // pred_check
        _
      $region10: #{tpu_custom_call.1} parent=5 // pred_check_branch
        %64 = sbr.rel (%p61) target = $region12
      $region11: #{tpu_custom_call.1} parent=5 // pred_region
        %s65 = ssub.s32 %s9, 1
        // Predicated region
        $region13: #{tpu_custom_call.1} parent=11 // pred_check
          %p66 = pneg %p30
        $region14: #{tpu_custom_call.1} parent=11 // pred_check_branch
          %68 = sbr.rel (%p66) target = $region16
        $region15: #{tpu_custom_call.1} parent=11 // pred_region
          %70 = vsyncadd [#allocation3], 0
          %s72 = sshll.u32 %s0, 4
          %s73 = int_to_ptr.hbm [resolvable:$true] %s72
          %s74 = sshll.u32 [#allocation2], 4
          %s75 = int_to_ptr.vmem [resolvable:$true] %s74
          %77 = dma.hbm_to_vmem [thread:$0]  %s73, 128, %s75, [#allocation3]
        $region16: #{tpu_custom_call.1} parent=11 // pred_fallthru
          _
      $region12: #{tpu_custom_call.1} parent=5 // pred_fallthru
        _
      %p78 = scmp.lt.s32.totalorder %s9, 2
      // Predicated region
      $region17: #{tpu_custom_call.1} parent=5 // pred_check
        %p79 = pneg %p78
      $region18: #{tpu_custom_call.1} parent=5 // pred_check_branch
        %81 = sbr.rel (%p79) target = $region20
      $region19: #{tpu_custom_call.1} parent=5 // pred_region
        _
      $region20: #{tpu_custom_call.1} parent=5 // pred_fallthru
        _
      %p82 = scmp.le.s32.totalorder 1, %s9
      %p83 = scmp.lt.s32.totalorder %s9, 3
      %p84 = pnand %p82, %p83
      %p85 = pneg %p84
      // Predicated region
      $region21: #{tpu_custom_call.1} parent=5 // pred_check
        _
      $region22: #{tpu_custom_call.1} parent=5 // pred_check_branch
        %87 = sbr.rel (%p84) target = $region24
      $region23: #{tpu_custom_call.1} parent=5 // pred_region
        %s88 = ssub.s32 %s9, 1
        // Predicated region
        $region25: #{tpu_custom_call.1} parent=23 // pred_check
          %p89 = pneg %p30
        $region26: #{tpu_custom_call.1} parent=23 // pred_check_branch
          %91 = sbr.rel (%p89) target = $region28
        $region27: #{tpu_custom_call.1} parent=23 // pred_region
          %93 = dma.done [#allocation3], 128
        $region28: #{tpu_custom_call.1} parent=23 // pred_fallthru
          _
        %p94 = pneg %p30
        %p95 = pneg %p27
        %p96 = pneg %p51
        %p97 = pneg %p48
        %v98 = vld [vmem:[#allocation2] sm:$0xff]
        %v99 = vadd.f32 %v98, 1.0
        %100 = vst [vmem:[#allocation5] sm:$0xff] %v99
        // Predicated region
        $region29: #{tpu_custom_call.1} parent=23 // pred_check
          %p101 = pneg %p48
        $region30: #{tpu_custom_call.1} parent=23 // pred_check_branch
          %103 = sbr.rel (%p101) target = $region32
        $region31: #{tpu_custom_call.1} parent=23 // pred_region
          %105 = vsyncadd [#allocation4], 0
          %s107 = sshll.u32 [#allocation5], 4
          %s108 = int_to_ptr.vmem [resolvable:$true] %s107
          %s109 = sshll.u32 %s1, 4
          %s110 = int_to_ptr.hbm [resolvable:$true] %s109
          %112 = dma.vmem_to_hbm [thread:$0]  %s108, 128, %s110, [#allocation4]
        $region32: #{tpu_custom_call.1} parent=23 // pred_fallthru
          _
        // Predicated region
        $region33: #{tpu_custom_call.1} parent=23 // pred_check
          %p113 = pneg %p48
        $region34: #{tpu_custom_call.1} parent=23 // pred_check_branch
          %115 = sbr.rel (%p113) target = $region36
        $region35: #{tpu_custom_call.1} parent=23 // pred_region
          %117 = dma.done [#allocation4], 128
        $region36: #{tpu_custom_call.1} parent=23 // pred_fallthru
          _
      $region24: #{tpu_custom_call.1} parent=5 // pred_fallthru
        _
      %p118 = scmp.le.s32.totalorder 2, %s9
      // Predicated region
      $region37: #{tpu_custom_call.1} parent=5 // pred_check
        %p119 = pneg %p118
      $region38: #{tpu_custom_call.1} parent=5 // pred_check_branch
        %121 = sbr.rel (%p119) target = $region40
      $region39: #{tpu_custom_call.1} parent=5 // pred_region
        %s122 = ssub.s32 %s9, 2
      $region40: #{tpu_custom_call.1} parent=5 // pred_fallthru
        _
    $region6: #{tpu_custom_call.1} parent=1 // loop_footer
      %s13 = sadd.s32 1, %s9
    $region7: #{tpu_custom_call.1} parent=1 // loop_footer_branch
      %8 = sbr.rel target = $region3
    $region8: #{tpu_custom_call.1} parent=1 // loop_exit
      _
    %123 = vsyncpa [#allocation3], 1
    %s124 = scalar_lea.sflag [#allocation3], 1
    %125 = vsyncpa %s124, 1
    %126 = vsyncpa [#allocation4], 1
    %s127 = scalar_lea.sflag [#allocation4], 1
    %128 = vsyncpa %s127, 1

// kernel: _lambda_.1
$region0: #{_lambda_.1}
  #allocation0 [shape = 'u32[]', space=smem, size = 0x4, offset = 0x4, fixed_abs, tag = 'smem constant byte address 0x4 - core index']
  #allocation1 [shape = 'u32[72,128]{1,0:T(1,128)}', space=vmem, size = 0x9000, scoped, tag = 'internal scratch']
  %s0 = inlined_call_operand.vmem [shape: bf16[2,608,640], index: 0, kind: input, shape index: {}]
  %s1 = inlined_call_operand.vmem [shape: bf16[5,3,128,384], index: 1, kind: input, shape index: {}]
  %s2 = inlined_call_operand.vmem [shape: f32[1,128], index: 2, kind: input, shape index: {}]
  %s3 = inlined_call_operand.vmem [shape: f32[1,128], index: 3, kind: input, shape index: {}]
  %s4 = inlined_call_operand.vmem [shape: bf16[128,128], index: 4, kind: input, shape index: {}]
  %s5 = inlined_call_operand.vmem [shape: f32[1,128], index: 5, kind: input, shape index: {}]
  %s6 = inlined_call_operand.vmem [shape: f32[2,512,128], index: 6, kind: output, shape index: {0}]
  %s7 = inlined_call_operand.vmem [shape: f32[2,512,128], index: 7, kind: output, shape index: {1}]
  %8 = xla_tuple %s6, %s7
  %s9 = sld [smem:[#allocation0]]
  $region114: #{_lambda_.1} parent=0
    _
  %s11 = ssub.s32 1, %s9
  %s12 = scalar_select 0, %s11, %s9
  $region1: #{_lambda_.1} parent=0
    #allocation2 [shape = 'u8[311296]{0}', space=vmem, size = 0x4c000, scoped, tag = 'input window, operand 0']
    loop: start=0, step=1, limit=12
    $region2: #{_lambda_.1} parent=1 // loop_pre_header
      _
    $region3: #{_lambda_.1} parent=1 // loop_header
      %s14 = sphi 0, %s18
      %p15 = scmp.ge.s32.totalorder %s14, 12
      %s21 = sphi 0, %s33
      %s22 = sphi 0, %s29
      %s23 = sphi 0, %s21
      %s24 = sphi 0, %s22
      %s25 = sphi 0, %s23
      %s26 = sphi 0, %s24
      %s38 = sphi 0, %s40
      %s41 = sphi 0, %s38
      %s42 = sphi 0, %s41
      %s58 = sphi 0, %s42
      %s64 = sphi 0, %s66
      %s67 = sphi 0, %s64
      %s68 = sphi 0, %s67
      %s84 = sphi 0, %s68
      %s88 = sphi 0, %s88
      %s90 = sphi 0, %s88
      %s91 = sphi 0, %s90
      %s105 = sphi 0, %s91
      %s109 = sphi 0, %s109
      %s111 = sphi 0, %s109
      %s112 = sphi 0, %s111
      %s126 = sphi 0, %s112
      %s130 = sphi 0, %s130
      %s132 = sphi 0, %s130
      %s133 = sphi 0, %s132
      %s147 = sphi 0, %s133
      %s151 = sphi 0, %s151
      %s153 = sphi 0, %s151
      %s154 = sphi 0, %s153
      %s168 = sphi 0, %s154
      %s174 = sphi 0, %s176
      %s177 = sphi 0, %s174
      %s178 = sphi 0, %s177
      %s194 = sphi 0, %s178
      %s200 = sphi 0, %s202
      %s203 = sphi 0, %s200
      %s204 = sphi 0, %s203
      %s220 = sphi 0, %s204
    $region4: #{_lambda_.1} parent=1 // loop_header_branch
      %17 = sbr.rel (%p15) target = $region8
    $region5: #{_lambda_.1} parent=1 // loop_body
      %s19 = ssub.s32 %s14, 1
      %s20 = ssub.s32 %s14, 2
      %s27 = sadd.s32 1, %s22
      %p28 = scmp.ge.s32.totalorder %s27, 5
      %s29 = scalar_select %p28, 0, %s27
      %s30 = sadd.s32 1, %s21
      %s31 = scalar_select %p28, %s30, %s21
      %p32 = scmp.ge.s32.totalorder %s31, 2
      %s33 = scalar_select %p32, 0, %s31
      %s34 = ssub.s32 %s21, %s33
      %s35 = ssub.s32 %s22, %s29
      %s36 = sor.u32 %s34, %s35
      %p37 = scmp.eq.s32.totalorder %s36, 0
      %s39 = sadd.s32 %s38, 1
      %s40 = scalar_select %p37, %s38, %s39
      %p43 = pneg %p37
      %p44 = scmp.eq.s32.totalorder %s14, 9
      %p45 = por %p43, %p44
      %p46 = scmp.ne.s32.totalorder %s38, %s41
      %p47 = scmp.eq.s32.totalorder %s14, 0
      %p48 = por %p46, %p47
      %p49 = scmp.ne.s32.totalorder %s38, %s41
      %p50 = scmp.eq.s32.totalorder %s19, 9
      %p51 = por %p49, %p50
      %p52 = scmp.ne.s32.totalorder %s41, %s42
      %p53 = scmp.eq.s32.totalorder %s19, 0
      %p54 = por %p52, %p53
      %p55 = scmp.ne.s32.totalorder %s41, %s42
      %p56 = scmp.eq.s32.totalorder %s20, 9
      %p57 = por %p55, %p56
      %p59 = scmp.ne.s32.totalorder %s42, %s58
      %p60 = scmp.eq.s32.totalorder %s20, 0
      %p61 = por %p59, %p60
      %s62 = ssub.s32 %s22, %s29
      %p63 = scmp.eq.s32.totalorder %s62, 0
      %s65 = sadd.s32 %s64, 1
      %s66 = scalar_select %p63, %s64, %s65
      %p69 = pneg %p63
      %p70 = scmp.eq.s32.totalorder %s14, 9
      %p71 = por %p69, %p70
      %p72 = scmp.ne.s32.totalorder %s64, %s67
      %p73 = scmp.eq.s32.totalorder %s14, 0
      %p74 = por %p72, %p73
      %p75 = scmp.ne.s32.totalorder %s64, %s67
      %p76 = scmp.eq.s32.totalorder %s19, 9
      %p77 = por %p75, %p76
      %p78 = scmp.ne.s32.totalorder %s67, %s68
      %p79 = scmp.eq.s32.totalorder %s19, 0
      %p80 = por %p78, %p79
      %p81 = scmp.ne.s32.totalorder %s67, %s68
      %p82 = scmp.eq.s32.totalorder %s20, 9
      %p83 = por %p81, %p82
      %p85 = scmp.ne.s32.totalorder %s68, %s84
      %p86 = scmp.eq.s32.totalorder %s20, 0
      %p87 = por %p85, %p86
      %s89 = sadd.s32 %s88, 1
      %p92 = scmp.eq.s32.totalorder %s14, 9
      %p93 = scmp.ne.s32.totalorder %s88, %s90
      %p94 = scmp.eq.s32.totalorder %s14, 0
      %p95 = por %p93, %p94
      %p96 = scmp.ne.s32.totalorder %s88, %s90
      %p97 = scmp.eq.s32.totalorder %s19, 9
      %p98 = por %p96, %p97
      %p99 = scmp.ne.s32.totalorder %s90, %s91
      %p100 = scmp.eq.s32.totalorder %s19, 0
      %p101 = por %p99, %p100
      %p102 = scmp.ne.s32.totalorder %s90, %s91
      %p103 = scmp.eq.s32.totalorder %s20, 9
      %p104 = por %p102, %p103
      %p106 = scmp.ne.s32.totalorder %s91, %s105
      %p107 = scmp.eq.s32.totalorder %s20, 0
      %p108 = por %p106, %p107
      %s110 = sadd.s32 %s109, 1
      %p113 = scmp.eq.s32.totalorder %s14, 9
      %p114 = scmp.ne.s32.totalorder %s109, %s111
      %p115 = scmp.eq.s32.totalorder %s14, 0
      %p116 = por %p114, %p115
      %p117 = scmp.ne.s32.totalorder %s109, %s111
      %p118 = scmp.eq.s32.totalorder %s19, 9
      %p119 = por %p117, %p118
      %p120 = scmp.ne.s32.totalorder %s111, %s112
      %p121 = scmp.eq.s32.totalorder %s19, 0
      %p122 = por %p120, %p121
      %p123 = scmp.ne.s32.totalorder %s111, %s112
      %p124 = scmp.eq.s32.totalorder %s20, 9
      %p125 = por %p123, %p124
      %p127 = scmp.ne.s32.totalorder %s112, %s126
      %p128 = scmp.eq.s32.totalorder %s20, 0
      %p129 = por %p127, %p128
      %s131 = sadd.s32 %s130, 1
      %p134 = scmp.eq.s32.totalorder %s14, 9
      %p135 = scmp.ne.s32.totalorder %s130, %s132
      %p136 = scmp.eq.s32.totalorder %s14, 0
      %p137 = por %p135, %p136
      %p138 = scmp.ne.s32.totalorder %s130, %s132
      %p139 = scmp.eq.s32.totalorder %s19, 9
      %p140 = por %p138, %p139
      %p141 = scmp.ne.s32.totalorder %s132, %s133
      %p142 = scmp.eq.s32.totalorder %s19, 0
      %p143 = por %p141, %p142
      %p144 = scmp.ne.s32.totalorder %s132, %s133
      %p145 = scmp.eq.s32.totalorder %s20, 9
      %p146 = por %p144, %p145
      %p148 = scmp.ne.s32.totalorder %s133, %s147
      %p149 = scmp.eq.s32.totalorder %s20, 0
      %p150 = por %p148, %p149
      %s152 = sadd.s32 %s151, 1
      %p155 = scmp.eq.s32.totalorder %s14, 9
      %p156 = scmp.ne.s32.totalorder %s151, %s153
      %p157 = scmp.eq.s32.totalorder %s14, 0
      %p158 = por %p156, %p157
      %p159 = scmp.ne.s32.totalorder %s151, %s153
      %p160 = scmp.eq.s32.totalorder %s19, 9
      %p161 = por %p159, %p160
      %p162 = scmp.ne.s32.totalorder %s153, %s154
      %p163 = scmp.eq.s32.totalorder %s19, 0
      %p164 = por %p162, %p163
      %p165 = scmp.ne.s32.totalorder %s153, %s154
      %p166 = scmp.eq.s32.totalorder %s20, 9
      %p167 = por %p165, %p166
      %p169 = scmp.ne.s32.totalorder %s154, %s168
      %p170 = scmp.eq.s32.totalorder %s20, 0
      %p171 = por %p169, %p170
      %s172 = ssub.s32 %s21, %s33
      %p173 = scmp.eq.s32.totalorder %s172, 0
      %s175 = sadd.s32 %s174, 1
      %s176 = scalar_select %p173, %s174, %s175
      %p179 = pneg %p173
      %p180 = scmp.eq.s32.totalorder %s14, 9
      %p181 = por %p179, %p180
      %p182 = scmp.ne.s32.totalorder %s174, %s177
      %p183 = scmp.eq.s32.totalorder %s14, 0
      %p184 = por %p182, %p183
      %p185 = scmp.ne.s32.totalorder %s174, %s177
      %p186 = scmp.eq.s32.totalorder %s19, 9
      %p187 = por %p185, %p186
      %p188 = scmp.ne.s32.totalorder %s177, %s178
      %p189 = scmp.eq.s32.totalorder %s19, 0
      %p190 = por %p188, %p189
      %p191 = scmp.ne.s32.totalorder %s177, %s178
      %p192 = scmp.eq.s32.totalorder %s20, 9
      %p193 = por %p191, %p192
      %p195 = scmp.ne.s32.totalorder %s178, %s194
      %p196 = scmp.eq.s32.totalorder %s20, 0
      %p197 = por %p195, %p196
      %s198 = ssub.s32 %s21, %s33
      %p199 = scmp.eq.s32.totalorder %s198, 0
      %s201 = sadd.s32 %s200, 1
      %s202 = scalar_select %p199, %s200, %s201
      %p205 = pneg %p199
      %p206 = scmp.eq.s32.totalorder %s14, 9
      %p207 = por %p205, %p206
      %p208 = scmp.ne.s32.totalorder %s200, %s203
      %p209 = scmp.eq.s32.totalorder %s14, 0
      %p210 = por %p208, %p209
      %p211 = scmp.ne.s32.totalorder %s200, %s203
      %p212 = scmp.eq.s32.totalorder %s19, 9
      %p213 = por %p211, %p212
      %p214 = scmp.ne.s32.totalorder %s203, %s204
      %p215 = scmp.eq.s32.totalorder %s19, 0
      %p216 = por %p214, %p215
      %p217 = scmp.ne.s32.totalorder %s203, %s204
      %p218 = scmp.eq.s32.totalorder %s20, 9
      %p219 = por %p217, %p218
      %p221 = scmp.ne.s32.totalorder %s204, %s220
      %p222 = scmp.eq.s32.totalorder %s20, 0
      %p223 = por %p221, %p222
      %p224 = scmp.le.s32.totalorder 1, %s14
      %p225 = scmp.lt.s32.totalorder %s14, 11
      %p226 = pnand %p224, %p225
      %p227 = pneg %p226
      // Predicated region
      $region9: #{_lambda_.1} parent=5 // pred_check
        _
      $region10: #{_lambda_.1} parent=5 // pred_check_branch
        %229 = sbr.rel (%p226) target = $region12
      $region11: #{_lambda_.1} parent=5 // pred_region
        %s230 = ssub.s32 %s14, 1
        // Predicated region
        $region13: #{_lambda_.1} parent=11 // pred_check
          %p231 = pneg %p101
        $region14: #{_lambda_.1} parent=11 // pred_check_branch
          %233 = sbr.rel (%p231) target = $region16
        $region15: #{_lambda_.1} parent=11 // pred_region
          _
        $region16: #{_lambda_.1} parent=11 // pred_fallthru
          _
        // Predicated region
        $region17: #{_lambda_.1} parent=11 // pred_check
          %p234 = pneg %p122
        $region18: #{_lambda_.1} parent=11 // pred_check_branch
          %236 = sbr.rel (%p234) target = $region20
        $region19: #{_lambda_.1} parent=11 // pred_region
          _
        $region20: #{_lambda_.1} parent=11 // pred_fallthru
          _
        // Predicated region
        $region21: #{_lambda_.1} parent=11 // pred_check
          %p237 = pneg %p143
        $region22: #{_lambda_.1} parent=11 // pred_check_branch
          %239 = sbr.rel (%p237) target = $region24
        $region23: #{_lambda_.1} parent=11 // pred_region
          _
        $region24: #{_lambda_.1} parent=11 // pred_fallthru
          _
        // Predicated region
        $region25: #{_lambda_.1} parent=11 // pred_check
          %p240 = pneg %p164
        $region26: #{_lambda_.1} parent=11 // pred_check_branch
          %242 = sbr.rel (%p240) target = $region28
        $region27: #{_lambda_.1} parent=11 // pred_region
          _
        $region28: #{_lambda_.1} parent=11 // pred_fallthru
          _
      $region12: #{_lambda_.1} parent=5 // pred_fallthru
        _
      %p243 = scmp.lt.s32.totalorder %s14, 10
      // Predicated region
      $region29: #{_lambda_.1} parent=5 // pred_check
        %p244 = pneg %p243
      $region30: #{_lambda_.1} parent=5 // pred_check_branch
        %246 = sbr.rel (%p244) target = $region32
      $region31: #{_lambda_.1} parent=5 // pred_region
        // Predicated region
        $region33: #{_lambda_.1} parent=31 // pred_check
          %p247 = pneg %p48
        $region34: #{_lambda_.1} parent=31 // pred_check_branch
          %249 = sbr.rel (%p247) target = $region36
        $region35: #{_lambda_.1} parent=31 // pred_region
          %s250 = sand.u32 %s38, 1
          %s251 = sand.u32 %s38, 1
          %s252 = smul.addr %s251, 304
          %s253 = scalar_lea.vmem [#allocation2], %s252
          %s254 = smul.addr %s21, 380
          %s255 = sadd.s32 %s22, %s254
          %s256 = smul.addr %s255, 4
          %s257 = scalar_lea.vmem %s0, %s256
          // Predicated region
          $region37: #{_lambda_.1} parent=35 // pred_check
            _
          $region38: #{_lambda_.1} parent=35 // pred_check_branch
            %259 = sbr.rel (0) target = $region40
          $region39: #{_lambda_.1} parent=35 // pred_region
            // Predicated region
            $region41: #{_lambda_.1} parent=39 // pred_check
              _
            $region42: #{_lambda_.1} parent=39 // pred_check_branch
              %261 = sbr.rel target = $region44
            $region43: #{_lambda_.1} parent=39 // pred_region
              // Predicated region
              $region56: #{_lambda_.1} parent=43 // pred_check
                _
              $region57: #{_lambda_.1} parent=43 // pred_check_branch
                %427 = sbr.rel (0) target = $region59
              $region58: #{_lambda_.1} parent=43 // pred_region
                loop: start=0, step=1, limit=1
                $region60: #{_lambda_.1} parent=58 // loop_pre_header
                  _
                $region61: #{_lambda_.1} parent=58 // loop_header
                  %s429 = sphi 0, %s433
                  %p430 = scmp.ge.s32.totalorder %s429, 1
                  %s434 = sphi %s257, %s257
                  %s435 = sphi %s253, %s253
                $region62: #{_lambda_.1} parent=58 // loop_header_branch
                  %432 = sbr.rel (%p430) target = $region66
                $region63: #{_lambda_.1} parent=58 // loop_body
                  _
                $region64: #{_lambda_.1} parent=58 // loop_footer
                  %s433 = sadd.s32 1, %s429
                $region65: #{_lambda_.1} parent=58 // loop_footer_branch
                  %428 = sbr.rel target = $region61
                $region66: #{_lambda_.1} parent=58 // loop_exit
                  _
                %s437 = ssub.s32 16, 1
                loop: start=0, step=1, limit=1
                $region67: #{_lambda_.1} parent=58 // loop_pre_header
                  _
                $region68: #{_lambda_.1} parent=58 // loop_header
                  %s439 = sphi 0, %s443
                  %p440 = scmp.ge.s32.totalorder %s439, 1
                  %s444 = sphi %s257, %s257
                  %s445 = sphi %s253, %s253
                $region69: #{_lambda_.1} parent=58 // loop_header_branch
                  %442 = sbr.rel (%p440) target = $region73
                $region70: #{_lambda_.1} parent=58 // loop_body
                  %v446 = vld [vmem:[%s444] sm:%s437]
                  %447 = vst [vmem:[%s445] sm:%s437] %v446
                  %v448 = vld [vmem:[%s444 + $0x14] sm:%s437]
                  %449 = vst [vmem:[%s445 + $0x4] sm:%s437] %v448
                  %v450 = vld [vmem:[%s444 + $0x28] sm:%s437]
                  %451 = vst [vmem:[%s445 + $0x8] sm:%s437] %v450
                  %v452 = vld [vmem:[%s444 + $0x3c] sm:%s437]
                  %453 = vst [vmem:[%s445 + $0xc] sm:%s437] %v452
                  %v454 = vld [vmem:[%s444 + $0x50] sm:%s437]
                  %455 = vst [vmem:[%s445 + $0x10] sm:%s437] %v454
                  %v456 = vld [vmem:[%s444 + $0x64] sm:%s437]
                  %457 = vst [vmem:[%s445 + $0x14] sm:%s437] %v456
                  %v458 = vld [vmem:[%s444 + $0x78] sm:%s437]
                  %459 = vst [vmem:[%s445 + $0x18] sm:%s437] %v458
                  %v460 = vld [vmem:[%s444 + $0x8c] sm:%s437]
                  %461 = vst [vmem:[%s445 + $0x1c] sm:%s437] %v460
                  %v462 = vld [vmem:[%s444 + $0xa0] sm:%s437]
                  %463 = vst [vmem:[%s445 + $0x20] sm:%s437] %v462
                  %v464 = vld [vmem:[%s444 + $0xb4] sm:%s437]
                  %465 = vst [vmem:[%s445 + $0x24] sm:%s437] %v464
                  %v466 = vld [vmem:[%s444 + $0xc8] sm:%s437]
                  %467 = vst [vmem:[%s445 + $0x28] sm:%s437] %v466
                  %v468 = vld [vmem:[%s444 + $0xdc] sm:%s437]
                  %469 = vst [vmem:[%s445 + $0x2c] sm:%s437] %v468
                  %v470 = vld [vmem:[%s444 + $0xf0] sm:%s437]
                  %471 = vst [vmem:[%s445 + $0x30] sm:%s437] %v470
                  %v472 = vld [vmem:[%s444 + $0x104] sm:%s437]
                  %473 = vst [vmem:[%s445 + $0x34] sm:%s437] %v472
                  %v474 = vld [vmem:[%s444 + $0x118] sm:%s437]
                  %475 = vst [vmem:[%s445 + $0x38] sm:%s437] %v474
                  %v476 = vld [vmem:[%s444 + $0x12c] sm:%s437]
                  %477 = vst [vmem:[%s445 + $0x3c] sm:%s437] %v476
                  %v478 = vld [vmem:[%s444 + $0x140] sm:%s437]
                  %479 = vst [vmem:[%s445 + $0x40] sm:%s437] %v478
                  %v480 = vld [vmem:[%s444 + $0x154] sm:%s437]
                  %481 = vst [vmem:[%s445 + $0x44] sm:%s437] %v480
                  %v482 = vld [vmem:[%s444 + $0x168] sm:%s437]
                  %483 = vst [vmem:[%s445 + $0x48] sm:%s437] %v482
                  %v484 = vld [vmem:[%s444 + $0x17c] sm:%s437]
                  %485 = vst [vmem:[%s445 + $0x4c] sm:%s437] %v484
                  %v486 = vld [vmem:[%s444 + $0x190] sm:%s437]
                  %487 = vst [vmem:[%s445 + $0x50] sm:%s437] %v486
                  %v488 = vld [vmem:[%s444 + $0x1a4] sm:%s437]
                  %489 = vst [vmem:[%s445 + $0x54] sm:%s437] %v488
                  %v490 = vld [vmem:[%s444 + $0x1b8] sm:%s437]
                  %491 = vst [vmem:[%s445 + $0x58] sm:%s437] %v490
                  %v492 = vld [vmem:[%s444 + $0x1cc] sm:%s437]
                  %493 = vst [vmem:[%s445 + $0x5c] sm:%s437] %v492
                  %v494 = vld [vmem:[%s444 + $0x1e0] sm:%s437]
                  %495 = vst [vmem:[%s445 + $0x60] sm:%s437] %v494
                  %v496 = vld [vmem:[%s444 + $0x1f4] sm:%s437]
                  %497 = vst [vmem:[%s445 + $0x64] sm:%s437] %v496
                  %v498 = vld [vmem:[%s444 + $0x208] sm:%s437]
                  %499 = vst [vmem:[%s445 + $0x68] sm:%s437] %v498
                  %v500 = vld [vmem:[%s444 + $0x21c] sm:%s437]
                  %501 = vst [vmem:[%s445 + $0x6c] sm:%s437] %v500
                  %v502 = vld [vmem:[%s444 + $0x230] sm:%s437]
                  %503 = vst [vmem:[%s445 + $0x70] sm:%s437] %v502
                  %v504 = vld [vmem:[%s444 + $0x244] sm:%s437]
                  %505 = vst [vmem:[%s445 + $0x74] sm:%s437] %v504
                  %v506 = vld [vmem:[%s444 + $0x258] sm:%s437]
                  %507 = vst [vmem:[%s445 + $0x78] sm:%s437] %v506
                  %v508 = vld [vmem:[%s444 + $0x26c] sm:%s437]
                  %509 = vst [vmem:[%s445 + $0x7c] sm:%s437] %v508
                  %v510 = vld [vmem:[%s444 + $0x280] sm:%s437]
                  %511 = vst [vmem:[%s445 + $0x80] sm:%s437] %v510
                  %v512 = vld [vmem:[%s444 + $0x294] sm:%s437]
                  %513 = vst [vmem:[%s445 + $0x84] sm:%s437] %v512
                  %v514 = vld [vmem:[%s444 + $0x2a8] sm:%s437]
                  %515 = vst [vmem:[%s445 + $0x88] sm:%s437] %v514
                  %v516 = vld [vmem:[%s444 + $0x2bc] sm:%s437]
                  %517 = vst [vmem:[%s445 + $0x8c] sm:%s437] %v516
                  %v518 = vld [vmem:[%s444 + $0x2d0] sm:%s437]
                  %519 = vst [vmem:[%s445 + $0x90] sm:%s437] %v518
                  %v520 = vld [vmem:[%s444 + $0x2e4] sm:%s437]
                  %521 = vst [vmem:[%s445 + $0x94] sm:%s437] %v520
                  %v522 = vld [vmem:[%s444 + $0x2f8] sm:%s437]
                  %523 = vst [vmem:[%s445 + $0x98] sm:%s437] %v522
                  %v524 = vld [vmem:[%s444 + $0x30c] sm:%s437]
                  %525 = vst [vmem:[%s445 + $0x9c] sm:%s437] %v524
                  %v526 = vld [vmem:[%s444 + $0x320] sm:%s437]
                  %527 = vst [vmem:[%s445 + $0xa0] sm:%s437] %v526
                  %v528 = vld [vmem:[%s444 + $0x334] sm:%s437]
                  %529 = vst [vmem:[%s445 + $0xa4] sm:%s437] %v528
                  %v530 = vld [vmem:[%s444 + $0x348] sm:%s437]
                  %531 = vst [vmem:[%s445 + $0xa8] sm:%s437] %v530
                  %v532 = vld [vmem:[%s444 + $0x35c] sm:%s437]
                  %533 = vst [vmem:[%s445 + $0xac] sm:%s437] %v532
                  %v534 = vld [vmem:[%s444 + $0x370] sm:%s437]
                  %535 = vst [vmem:[%s445 + $0xb0] sm:%s437] %v534
                  %v536 = vld [vmem:[%s444 + $0x384] sm:%s437]
                  %537 = vst [vmem:[%s445 + $0xb4] sm:%s437] %v536
                  %v538 = vld [vmem:[%s444 + $0x398] sm:%s437]
                  %539 = vst [vmem:[%s445 + $0xb8] sm:%s437] %v538
                  %v540 = vld [vmem:[%s444 + $0x3ac] sm:%s437]
                  %541 = vst [vmem:[%s445 + $0xbc] sm:%s437] %v540
                  %v542 = vld [vmem:[%s444 + $0x3c0] sm:%s437]
                  %543 = vst [vmem:[%s445 + $0xc0] sm:%s437] %v542
                  %v544 = vld [vmem:[%s444 + $0x3d4] sm:%s437]
                  %545 = vst [vmem:[%s445 + $0xc4] sm:%s437] %v544
                  %v546 = vld [vmem:[%s444 + $0x3e8] sm:%s437]
                  %547 = vst [vmem:[%s445 + $0xc8] sm:%s437] %v546
                  %v548 = vld [vmem:[%s444 + $0x3fc] sm:%s437]
                  %549 = vst [vmem:[%s445 + $0xcc] sm:%s437] %v548
                  %v550 = vld [vmem:[%s444 + $0x410] sm:%s437]
                  %551 = vst [vmem:[%s445 + $0xd0] sm:%s437] %v550
                  %v552 = vld [vmem:[%s444 + $0x424] sm:%s437]
                  %553 = vst [vmem:[%s445 + $0xd4] sm:%s437] %v552
                  %v554 = vld [vmem:[%s444 + $0x438] sm:%s437]
                  %555 = vst [vmem:[%s445 + $0xd8] sm:%s437] %v554
                  %v556 = vld [vmem:[%s444 + $0x44c] sm:%s437]
                  %557 = vst [vmem:[%s445 + $0xdc] sm:%s437] %v556
                  %v558 = vld [vmem:[%s444 + $0x460] sm:%s437]
                  %559 = vst [vmem:[%s445 + $0xe0] sm:%s437] %v558
                  %v560 = vld [vmem:[%s444 + $0x474] sm:%s437]
                  %561 = vst [vmem:[%s445 + $0xe4] sm:%s437] %v560
                  %v562 = vld [vmem:[%s444 + $0x488] sm:%s437]
                  %563 = vst [vmem:[%s445 + $0xe8] sm:%s437] %v562
                  %v564 = vld [vmem:[%s444 + $0x49c] sm:%s437]
                  %565 = vst [vmem:[%s445 + $0xec] sm:%s437] %v564
                  %v566 = vld [vmem:[%s444 + $0x4b0] sm:%s437]
                  %567 = vst [vmem:[%s445 + $0xf0] sm:%s437] %v566
                  %v568 = vld [vmem:[%s444 + $0x4c4] sm:%s437]
                  %569 = vst [vmem:[%s445 + $0xf4] sm:%s437] %v568
                  %v570 = vld [vmem:[%s444 + $0x4d8] sm:%s437]
                  %571 = vst [vmem:[%s445 + $0xf8] sm:%s437] %v570
                  %v572 = vld [vmem:[%s444 + $0x4ec] sm:%s437]
                  %573 = vst [vmem:[%s445 + $0xfc] sm:%s437] %v572
                  %v574 = vld [vmem:[%s444 + $0x500] sm:%s437]
                  %575 = vst [vmem:[%s445 + $0x100] sm:%s437] %v574
                  %v576 = vld [vmem:[%s444 + $0x514] sm:%s437]
                  %577 = vst [vmem:[%s445 + $0x104] sm:%s437] %v576
                  %v578 = vld [vmem:[%s444 + $0x528] sm:%s437]
                  %579 = vst [vmem:[%s445 + $0x108] sm:%s437] %v578
                  %v580 = vld [vmem:[%s444 + $0x53c] sm:%s437]
                  %581 = vst [vmem:[%s445 + $0x10c] sm:%s437] %v580
                  %v582 = vld [vmem:[%s444 + $0x550] sm:%s437]
                  %583 = vst [vmem:[%s445 + $0x110] sm:%s437] %v582
                  %v584 = vld [vmem:[%s444 + $0x564] sm:%s437]
                  %585 = vst [vmem:[%s445 + $0x114] sm:%s437] %v584
                  %v586 = vld [vmem:[%s444 + $0x578] sm:%s437]
                  %587 = vst [vmem:[%s445 + $0x118] sm:%s437] %v586
                  %v588 = vld [vmem:[%s444 + $0x58c] sm:%s437]
                  %589 = vst [vmem:[%s445 + $0x11c] sm:%s437] %v588
                  %v590 = vld [vmem:[%s444 + $0x5a0] sm:%s437]
                  %591 = vst [vmem:[%s445 + $0x120] sm:%s437] %v590
                  %v592 = vld [vmem:[%s444 + $0x5b4] sm:%s437]
                  %593 = vst [vmem:[%s445 + $0x124] sm:%s437] %v592
                  %v594 = vld [vmem:[%s444 + $0x5c8] sm:%s437]
                  %595 = vst [vmem:[%s445 + $0x128] sm:%s437] %v594
                  %v596 = vld [vmem:[%s444 + $0x5dc] sm:%s437]
                  %597 = vst [vmem:[%s445 + $0x12c] sm:%s437] %v596
                $region71: #{_lambda_.1} parent=58 // loop_footer
                  %s443 = sadd.s32 1, %s439
                $region72: #{_lambda_.1} parent=58 // loop_footer_branch
                  %438 = sbr.rel target = $region68
                $region73: #{_lambda_.1} parent=58 // loop_exit
                  _
              $region59: #{_lambda_.1} parent=43 // pred_fallthru
                _
            $region44: #{_lambda_.1} parent=39 // pred_fallthru
              _
            // Predicated region
            $region45: #{_lambda_.1} parent=39 // pred_check
              _
            $region46: #{_lambda_.1} parent=39 // pred_check_branch
              %263 = sbr.rel (0) target = $region48
            $region47: #{_lambda_.1} parent=39 // pred_region
              %s265 = ssub.s32 16, 1
              loop: start=0, step=1, limit=1
              $region49: #{_lambda_.1} parent=47 // loop_pre_header
                _
              $region50: #{_lambda_.1} parent=47 // loop_header
                %s267 = sphi 0, %s271
                %p268 = scmp.ge.s32.totalorder %s267, 1
                %s272 = sphi %s257, %s257
                %s273 = sphi %s253, %s253
              $region51: #{_lambda_.1} parent=47 // loop_header_branch
                %270 = sbr.rel (%p268) target = $region55
              $region52: #{_lambda_.1} parent=47 // loop_body
                %v274 = vld [vmem:[%s272] sm:%s265]
                %275 = vst [vmem:[%s273] sm:%s265] %v274
                %v276 = vld [vmem:[%s272 + $0x14] sm:%s265]
                %277 = vst [vmem:[%s273 + $0x4] sm:%s265] %v276
                %v278 = vld [vmem:[%s272 + $0x28] sm:%s265]
                %279 = vst [vmem:[%s273 + $0x8] sm:%s265] %v278
                %v280 = vld [vmem:[%s272 + $0x3c] sm:%s265]
                %281 = vst [vmem:[%s273 + $0xc] sm:%s265] %v280
                %v282 = vld [vmem:[%s272 + $0x50] sm:%s265]
                %283 = vst [vmem:[%s273 + $0x10] sm:%s265] %v282
                %v284 = vld [vmem:[%s272 + $0x64] sm:%s265]
                %285 = vst [vmem:[%s273 + $0x14] sm:%s265] %v284
                %v286 = vld [vmem:[%s272 + $0x78] sm:%s265]
                %287 = vst [vmem:[%s273 + $0x18] sm:%s265] %v286
                %v288 = vld [vmem:[%s272 + $0x8c] sm:%s265]
                %289 = vst [vmem:[%s273 + $0x1c] sm:%s265] %v288
                %v290 = vld [vmem:[%s272 + $0xa0] sm:%s265]
                %291 = vst [vmem:[%s273 + $0x20] sm:%s265] %v290
                %v292 = vld [vmem:[%s272 + $0xb4] sm:%s265]
                %293 = vst [vmem:[%s273 + $0x24] sm:%s265] %v292
                %v294 = vld [vmem:[%s272 + $0xc8] sm:%s265]
                %295 = vst [vmem:[%s273 + $0x28] sm:%s265] %v294
                %v296 = vld [vmem:[%s272 + $0xdc] sm:%s265]
                %297 = vst [vmem:[%s273 + $0x2c] sm:%s265] %v296
                %v298 = vld [vmem:[%s272 + $0xf0] sm:%s265]
                %299 = vst [vmem:[%s273 + $0x30] sm:%s265] %v298
                %v300 = vld [vmem:[%s272 + $0x104] sm:%s265]
                %301 = vst [vmem:[%s273 + $0x34] sm:%s265] %v300
                %v302 = vld [vmem:[%s272 + $0x118] sm:%s265]
                %303 = vst [vmem:[%s273 + $0x38] sm:%s265] %v302
                %v304 = vld [vmem:[%s272 + $0x12c] sm:%s265]
                %305 = vst [vmem:[%s273 + $0x3c] sm:%s265] %v304
                %v306 = vld [vmem:[%s272 + $0x140] sm:%s265]
                %307 = vst [vmem:[%s273 + $0x40] sm:%s265] %v306
                %v308 = vld [vmem:[%s272 + $0x154] sm:%s265]
                %309 = vst [vmem:[%s273 + $0x44] sm:%s265] %v308
                %v310 = vld [vmem:[%s272 + $0x168] sm:%s265]
                %311 = vst [vmem:[%s273 + $0x48] sm:%s265] %v310
                %v312 = vld [vmem:[%s272 + $0x17c] sm:%s265]
                %313 = vst [vmem:[%s273 + $0x4c] sm:%s265] %v312
                %v314 = vld [vmem:[%s272 + $0x190] sm:%s265]
                %315 = vst [vmem:[%s273 + $0x50] sm:%s265] %v314
                %v316 = vld [vmem:[%s272 + $0x1a4] sm:%s265]
                %317 = vst [vmem:[%s273 + $0x54] sm:%s265] %v316
                %v318 = vld [vmem:[%s272 + $0x1b8] sm:%s265]
                %319 = vst [vmem:[%s273 + $0x58] sm:%s265] %v318
                %v320 = vld [vmem:[%s272 + $0x1cc] sm:%s265]
                %321 = vst [vmem:[%s273 + $0x5c] sm:%s265] %v320
                %v322 = vld [vmem:[%s272 + $0x1e0] sm:%s265]
                %323 = vst [vmem:[%s273 + $0x60] sm:%s265] %v322
                %v324 = vld [vmem:[%s272 + $0x1f4] sm:%s265]
                %325 = vst [vmem:[%s273 + $0x64] sm:%s265] %v324
                %v326 = vld [vmem:[%s272 + $0x208] sm:%s265]
                %327 = vst [vmem:[%s273 + $0x68] sm:%s265] %v326
                %v328 = vld [vmem:[%s272 + $0x21c] sm:%s265]
                %329 = vst [vmem:[%s273 + $0x6c] sm:%s265] %v328
                %v330 = vld [vmem:[%s272 + $0x230] sm:%s265]
                %331 = vst [vmem:[%s273 + $0x70] sm:%s265] %v330
                %v332 = vld [vmem:[%s272 + $0x244] sm:%s265]
                %333 = vst [vmem:[%s273 + $0x74] sm:%s265] %v332
                %v334 = vld [vmem:[%s272 + $0x258] sm:%s265]
                %335 = vst [vmem:[%s273 + $0x78] sm:%s265] %v334
                %v336 = vld [vmem:[%s272 + $0x26c] sm:%s265]
                %337 = vst [vmem:[%s273 + $0x7c] sm:%s265] %v336
                %v338 = vld [vmem:[%s272 + $0x280] sm:%s265]
                %339 = vst [vmem:[%s273 + $0x80] sm:%s265] %v338
                %v340 = vld [vmem:[%s272 + $0x294] sm:%s265]
                %341 = vst [vmem:[%s273 + $0x84] sm:%s265] %v340
                %v342 = vld [vmem:[%s272 + $0x2a8] sm:%s265]
                %343 = vst [vmem:[%s273 + $0x88] sm:%s265] %v342
                %v344 = vld [vmem:[%s272 + $0x2bc] sm:%s265]
                %345 = vst [vmem:[%s273 + $0x8c] sm:%s265] %v344
                %v346 = vld [vmem:[%s272 + $0x2d0] sm:%s265]
                %347 = vst [vmem:[%s273 + $0x90] sm:%s265] %v346
                %v348 = vld [vmem:[%s272 + $0x2e4] sm:%s265]
                %349 = vst [vmem:[%s273 + $0x94] sm:%s265] %v348
                %v350 = vld [vmem:[%s272 + $0x2f8] sm:%s265]
                %351 = vst [vmem:[%s273 + $0x98] sm:%s265] %v350
                %v352 = vld [vmem:[%s272 + $0x30c] sm:%s265]
                %353 = vst [vmem:[%s273 + $0x9c] sm:%s265] %v352
                %v354 = vld [vmem:[%s272 + $0x320] sm:%s265]
                %355 = vst [vmem:[%s273 + $0xa0] sm:%s265] %v354
                %v356 = vld [vmem:[%s272 + $0x334] sm:%s265]
                %357 = vst [vmem:[%s273 + $0xa4] sm:%s265] %v356
                %v358 = vld [vmem:[%s272 + $0x348] sm:%s265]
                %359 = vst [vmem:[%s273 + $0xa8] sm:%s265] %v358
                %v360 = vld [vmem:[%s272 + $0x35c] sm:%s265]
                %361 = vst [vmem:[%s273 + $0xac] sm:%s265] %v360
                %v362 = vld [vmem:[%s272 + $0x370] sm:%s265]
                %363 = vst [vmem:[%s273 + $0xb0] sm:%s265] %v362
                %v364 = vld [vmem:[%s272 + $0x384] sm:%s265]
                %365 = vst [vmem:[%s273 + $0xb4] sm:%s265] %v364
                %v366 = vld [vmem:[%s272 + $0x398] sm:%s265]
                %367 = vst [vmem:[%s273 + $0xb8] sm:%s265] %v366
                %v368 = vld [vmem:[%s272 + $0x3ac] sm:%s265]
                %369 = vst [vmem:[%s273 + $0xbc] sm:%s265] %v368
                %v370 = vld [vmem:[%s272 + $0x3c0] sm:%s265]
                %371 = vst [vmem:[%s273 + $0xc0] sm:%s265] %v370
                %v372 = vld [vmem:[%s272 + $0x3d4] sm:%s265]
                %373 = vst [vmem:[%s273 + $0xc4] sm:%s265] %v372
                %v374 = vld [vmem:[%s272 + $0x3e8] sm:%s265]
                %375 = vst [vmem:[%s273 + $0xc8] sm:%s265] %v374
                %v376 = vld [vmem:[%s272 + $0x3fc] sm:%s265]
                %377 = vst [vmem:[%s273 + $0xcc] sm:%s265] %v376
                %v378 = vld [vmem:[%s272 + $0x410] sm:%s265]
                %379 = vst [vmem:[%s273 + $0xd0] sm:%s265] %v378
                %v380 = vld [vmem:[%s272 + $0x424] sm:%s265]
                %381 = vst [vmem:[%s273 + $0xd4] sm:%s265] %v380
                %v382 = vld [vmem:[%s272 + $0x438] sm:%s265]
                %383 = vst [vmem:[%s273 + $0xd8] sm:%s265] %v382
                %v384 = vld [vmem:[%s272 + $0x44c] sm:%s265]
                %385 = vst [vmem:[%s273 + $0xdc] sm:%s265] %v384
                %v386 = vld [vmem:[%s272 + $0x460] sm:%s265]
                %387 = vst [vmem:[%s273 + $0xe0] sm:%s265] %v386
                %v388 = vld [vmem:[%s272 + $0x474] sm:%s265]
                %389 = vst [vmem:[%s273 + $0xe4] sm:%s265] %v388
                %v390 = vld [vmem:[%s272 + $0x488] sm:%s265]
                %391 = vst [vmem:[%s273 + $0xe8] sm:%s265] %v390
                %v392 = vld [vmem:[%s272 + $0x49c] sm:%s265]
                %393 = vst [vmem:[%s273 + $0xec] sm:%s265] %v392
                %v394 = vld [vmem:[%s272 + $0x4b0] sm:%s265]
                %395 = vst [vmem:[%s273 + $0xf0] sm:%s265] %v394
                %v396 = vld [vmem:[%s272 + $0x4c4] sm:%s265]
                %397 = vst [vmem:[%s273 + $0xf4] sm:%s265] %v396
                %v398 = vld [vmem:[%s272 + $0x4d8] sm:%s265]
                %399 = vst [vmem:[%s273 + $0xf8] sm:%s265] %v398
                %v400 = vld [vmem:[%s272 + $0x4ec] sm:%s265]
                %401 = vst [vmem:[%s273 + $0xfc] sm:%s265] %v400
                %v402 = vld [vmem:[%s272 + $0x500] sm:%s265]
                %403 = vst [vmem:[%s273 + $0x100] sm:%s265] %v402
                %v404 = vld [vmem:[%s272 + $0x514] sm:%s265]
                %405 = vst [vmem:[%s273 + $0x104] sm:%s265] %v404
                %v406 = vld [vmem:[%s272 + $0x528] sm:%s265]
                %407 = vst [vmem:[%s273 + $0x108] sm:%s265] %v406
                %v408 = vld [vmem:[%s272 + $0x53c] sm:%s265]
                %409 = vst [vmem:[%s273 + $0x10c] sm:%s265] %v408
                %v410 = vld [vmem:[%s272 + $0x550] sm:%s265]
                %411 = vst [vmem:[%s273 + $0x110] sm:%s265] %v410
                %v412 = vld [vmem:[%s272 + $0x564] sm:%s265]
                %413 = vst [vmem:[%s273 + $0x114] sm:%s265] %v412
                %v414 = vld [vmem:[%s272 + $0x578] sm:%s265]
                %415 = vst [vmem:[%s273 + $0x118] sm:%s265] %v414
                %v416 = vld [vmem:[%s272 + $0x58c] sm:%s265]
                %417 = vst [vmem:[%s273 + $0x11c] sm:%s265] %v416
                %v418 = vld [vmem:[%s272 + $0x5a0] sm:%s265]
                %419 = vst [vmem:[%s273 + $0x120] sm:%s265] %v418
                %v420 = vld [vmem:[%s272 + $0x5b4] sm:%s265]
                %421 = vst [vmem:[%s273 + $0x124] sm:%s265] %v420
                %v422 = vld [vmem:[%s272 + $0x5c8] sm:%s265]
                %423 = vst [vmem:[%s273 + $0x128] sm:%s265] %v422
                %v424 = vld [vmem:[%s272 + $0x5dc] sm:%s265]
                %425 = vst [vmem:[%s273 + $0x12c] sm:%s265] %v424
              $region53: #{_lambda_.1} parent=47 // loop_footer
                %s271 = sadd.s32 1, %s267
              $region54: #{_lambda_.1} parent=47 // loop_footer_branch
                %266 = sbr.rel target = $region50
              $region55: #{_lambda_.1} parent=47 // loop_exit
                _
            $region48: #{_lambda_.1} parent=39 // pred_fallthru
              _
          $region40: #{_lambda_.1} parent=35 // pred_fallthru
            _
          %598 = vnop
        $region36: #{_lambda_.1} parent=31 // pred_fallthru
          _
        // Predicated region
        $region74: #{_lambda_.1} parent=31 // pred_check
          %p599 = pneg %p74
        $region75: #{_lambda_.1} parent=31 // pred_check_branch
          %601 = sbr.rel (%p599) target = $region77
        $region76: #{_lambda_.1} parent=31 // pred_region
          %p602 = scmp.lt.s32.totalorder %s22, 4
          %s603 = scalar_select %p602, %s22, 4
          %s604 = smul.addr %s603, 144
          %s605 = smul.addr %s604, 4
          %s606 = scalar_lea.vmem %s1, %s605
        $region77: #{_lambda_.1} parent=31 // pred_fallthru
          _
      $region32: #{_lambda_.1} parent=5 // pred_fallthru
        _
      %p607 = scmp.le.s32.totalorder 1, %s14
      %p608 = scmp.lt.s32.totalorder %s14, 11
      %p609 = pnand %p607, %p608
      %p610 = pneg %p609
      // Predicated region
      $region78: #{_lambda_.1} parent=5 // pred_check
        _
      $region79: #{_lambda_.1} parent=5 // pred_check_branch
        %612 = sbr.rel (%p609) target = $region81
      $region80: #{_lambda_.1} parent=5 // pred_region
        %s613 = ssub.s32 %s14, 1
        %s614 = sand.u32 %s41, 1
        %s615 = sand.u32 %s41, 1
        %s616 = smul.addr %s615, 304
        %s617 = scalar_lea.vmem [#allocation2], %s616
        // Predicated region
        $region82: #{_lambda_.1} parent=80 // pred_check
          %p618 = pneg %p54
        $region83: #{_lambda_.1} parent=80 // pred_check_branch
          %620 = sbr.rel (%p618) target = $region85
        $region84: #{_lambda_.1} parent=80 // pred_region
          _
        $region85: #{_lambda_.1} parent=80 // pred_fallthru
          _
        %s621 = sand.u32 %s41, 1
        %s622 = sand.u32 %s41, 1
        %s623 = smul.addr %s622, 304
        %s624 = scalar_lea.vmem [#allocation2], %s623
        %p625 = pneg %p54
        %p626 = pneg %p51
        %p627 = scmp.lt.s32.totalorder %s24, 4
        %s628 = scalar_select %p627, %s24, 4
        %s629 = smul.addr %s628, 144
        %s630 = smul.addr %s629, 4
        %s631 = scalar_lea.vmem %s1, %s630
        %p632 = pneg %p80
        %p633 = pneg %p77
        %p634 = pneg %p101
        %p635 = pneg %p98
        %p636 = pneg %p122
        %p637 = pneg %p119
        %p638 = pneg %p143
        %p639 = pneg %p140
        %p640 = pneg %p164
        %p641 = pneg %p161
        %p642 = pneg %p190
        %p643 = pneg %p187
        %p644 = scmp.lt.s32.totalorder %s23, 1
        %s645 = scalar_select %p644, %s23, 1
        %s646 = smul.addr %s645, 64
        %s647 = smul.addr %s646, 8
        %s648 = scalar_lea.vmem %s6, %s647
        %p649 = pneg %p216
        %p650 = pneg %p213
        %p651 = scmp.lt.s32.totalorder %s23, 1
        %s652 = scalar_select %p651, %s23, 1
        %s653 = smul.addr %s652, 64
        %s654 = smul.addr %s653, 8
        %s655 = scalar_lea.vmem %s7, %s654
        %p656 = scmp.lt.s32.totalorder %s24, 4
        %s657 = scalar_select %p656, %s24, 4
        %s658 = smul.addr %s657, 144
        %s659 = smul.addr %s658, 4
        %s660 = scalar_lea.vmem %s1, %s659
        %p661 = scmp.lt.s32.totalorder %s23, 1
        %s662 = scalar_select %p661, %s23, 1
        %s663 = smul.addr %s662, 64
        %s664 = smul.addr %s663, 8
        %s665 = scalar_lea.vmem %s6, %s664
        %p666 = scmp.lt.s32.totalorder %s23, 1
        %s667 = scalar_select %p666, %s23, 1
        %s668 = smul.addr %s667, 64
        %s669 = smul.addr %s668, 8
        %s670 = scalar_lea.vmem %s7, %s669
        %p671 = scmp.eq.s32.totalorder %s24, 0
        // Predicated region
        $region86: #{_lambda_.1} parent=80 // pred_check
          %p672 = pneg %p671
        $region87: #{_lambda_.1} parent=80 // pred_check_branch
          %674 = sbr.rel (%p672) target = $region89
        $region88: #{_lambda_.1} parent=80 // pred_region
          %675 = vst [vmem:[%s665] sm:$0xff] 0.0
          %676 = vst [vmem:[%s665 + $0x8] sm:$0xff] 0.0
          %677 = vst [vmem:[%s665 + $0x10] sm:$0xff] 0.0
          %678 = vst [vmem:[%s665 + $0x18] sm:$0xff] 0.0
          %679 = vst [vmem:[%s665 + $0x20] sm:$0xff] 0.0
          %680 = vst [vmem:[%s665 + $0x28] sm:$0xff] 0.0
          %681 = vst [vmem:[%s665 + $0x30] sm:$0xff] 0.0
          %682 = vst [vmem:[%s665 + $0x38] sm:$0xff] 0.0
          %683 = vst [vmem:[%s665 + $0x40] sm:$0xff] 0.0
          %684 = vst [vmem:[%s665 + $0x48] sm:$0xff] 0.0
          %685 = vst [vmem:[%s665 + $0x50] sm:$0xff] 0.0
          %686 = vst [vmem:[%s665 + $0x58] sm:$0xff] 0.0
          %687 = vst [vmem:[%s665 + $0x60] sm:$0xff] 0.0
          %688 = vst [vmem:[%s665 + $0x68] sm:$0xff] 0.0
          %689 = vst [vmem:[%s665 + $0x70] sm:$0xff] 0.0
          %690 = vst [vmem:[%s665 + $0x78] sm:$0xff] 0.0
          %691 = vst [vmem:[%s665 + $0x80] sm:$0xff] 0.0
          %692 = vst [vmem:[%s665 + $0x88] sm:$0xff] 0.0
          %693 = vst [vmem:[%s665 + $0x90] sm:$0xff] 0.0
          %694 = vst [vmem:[%s665 + $0x98] sm:$0xff] 0.0
          %695 = vst [vmem:[%s665 + $0xa0] sm:$0xff] 0.0
          %696 = vst [vmem:[%s665 + $0xa8] sm:$0xff] 0.0
          %697 = vst [vmem:[%s665 + $0xb0] sm:$0xff] 0.0
          %698 = vst [vmem:[%s665 + $0xb8] sm:$0xff] 0.0
          %699 = vst [vmem:[%s665 + $0xc0] sm:$0xff] 0.0
          %700 = vst [vmem:[%s665 + $0xc8] sm:$0xff] 0.0
          %701 = vst [vmem:[%s665 + $0xd0] sm:$0xff] 0.0
          %702 = vst [vmem:[%s665 + $0xd8] sm:$0xff] 0.0
          %703 = vst [vmem:[%s665 + $0xe0] sm:$0xff] 0.0
          %704 = vst [vmem:[%s665 + $0xe8] sm:$0xff] 0.0
          %705 = vst [vmem:[%s665 + $0xf0] sm:$0xff] 0.0
          %706 = vst [vmem:[%s665 + $0xf8] sm:$0xff] 0.0
          %707 = vst [vmem:[%s665 + $0x100] sm:$0xff] 0.0
          %708 = vst [vmem:[%s665 + $0x108] sm:$0xff] 0.0
          %709 = vst [vmem:[%s665 + $0x110] sm:$0xff] 0.0
          %710 = vst [vmem:[%s665 + $0x118] sm:$0xff] 0.0
          %711 = vst [vmem:[%s665 + $0x120] sm:$0xff] 0.0
          %712 = vst [vmem:[%s665 + $0x128] sm:$0xff] 0.0
          %713 = vst [vmem:[%s665 + $0x130] sm:$0xff] 0.0
          %714 = vst [vmem:[%s665 + $0x138] sm:$0xff] 0.0
          %715 = vst [vmem:[%s665 + $0x140] sm:$0xff] 0.0
          %716 = vst [vmem:[%s665 + $0x148] sm:$0xff] 0.0
          %717 = vst [vmem:[%s665 + $0x150] sm:$0xff] 0.0
          %718 = vst [vmem:[%s665 + $0x158] sm:$0xff] 0.0
          %719 = vst [vmem:[%s665 + $0x160] sm:$0xff] 0.0
          %720 = vst [vmem:[%s665 + $0x168] sm:$0xff] 0.0
          %721 = vst [vmem:[%s665 + $0x170] sm:$0xff] 0.0
          %722 = vst [vmem:[%s665 + $0x178] sm:$0xff] 0.0
          %723 = vst [vmem:[%s665 + $0x180] sm:$0xff] 0.0
          %724 = vst [vmem:[%s665 + $0x188] sm:$0xff] 0.0
          %725 = vst [vmem:[%s665 + $0x190] sm:$0xff] 0.0
          %726 = vst [vmem:[%s665 + $0x198] sm:$0xff] 0.0
          %727 = vst [vmem:[%s665 + $0x1a0] sm:$0xff] 0.0
          %728 = vst [vmem:[%s665 + $0x1a8] sm:$0xff] 0.0
          %729 = vst [vmem:[%s665 + $0x1b0] sm:$0xff] 0.0
          %730 = vst [vmem:[%s665 + $0x1b8] sm:$0xff] 0.0
          %731 = vst [vmem:[%s665 + $0x1c0] sm:$0xff] 0.0
          %732 = vst [vmem:[%s665 + $0x1c8] sm:$0xff] 0.0
          %733 = vst [vmem:[%s665 + $0x1d0] sm:$0xff] 0.0
          %734 = vst [vmem:[%s665 + $0x1d8] sm:$0xff] 0.0
          %735 = vst [vmem:[%s665 + $0x1e0] sm:$0xff] 0.0
          %736 = vst [vmem:[%s665 + $0x1e8] sm:$0xff] 0.0
          %737 = vst [vmem:[%s665 + $0x1f0] sm:$0xff] 0.0
          %738 = vst [vmem:[%s665 + $0x1f8] sm:$0xff] 0.0
        $region89: #{_lambda_.1} parent=80 // pred_fallthru
          _
        %v739 = vld [vmem:[%s617] sm:$0xf]
        %v740 = vld [vmem:[%s617 + $0x4] sm:$0xf]
        %v741 = vld [vmem:[%s617 + $0x8] sm:$0xf]
        %v742 = vld [vmem:[%s617 + $0xc] sm:$0xf]
        %v743 = vld [vmem:[%s617 + $0x10] sm:$0xf]
        %v744 = vld [vmem:[%s617 + $0x14] sm:$0xf]
        %v745 = vld [vmem:[%s617 + $0x18] sm:$0xf]
        %v746 = vld [vmem:[%s617 + $0x1c] sm:$0xf]
        %v747 = vld [vmem:[%s617 + $0x20] sm:$0xf]
        %v748 = vld [vmem:[%s617 + $0x24] sm:$0xf]
        %v749 = vld [vmem:[%s617 + $0x28] sm:$0xf]
        %v750 = vld [vmem:[%s617 + $0x2c] sm:$0xf]
        %v751 = vld [vmem:[%s617 + $0x30] sm:$0xf]
        %v752 = vld [vmem:[%s617 + $0x34] sm:$0xf]
        %v753 = vld [vmem:[%s617 + $0x38] sm:$0xf]
        %v754 = vld [vmem:[%s617 + $0x3c] sm:$0xf]
        %v755 = vld [vmem:[%s617 + $0x40] sm:$0xf]
        %v756 = vld [vmem:[%s617 + $0x44] sm:$0xf]
        %v757 = vld [vmem:[%s617 + $0x48] sm:$0xf]
        %v758 = vld [vmem:[%s617 + $0x4c] sm:$0xf]
        %v759 = vld [vmem:[%s617 + $0x50] sm:$0xf]
        %v760 = vld [vmem:[%s617 + $0x54] sm:$0xf]
        %v761 = vld [vmem:[%s617 + $0x58] sm:$0xf]
        %v762 = vld [vmem:[%s617 + $0x5c] sm:$0xf]
        %v763 = vld [vmem:[%s617 + $0x60] sm:$0xf]
        %v764 = vld [vmem:[%s617 + $0x64] sm:$0xf]
        %v765 = vld [vmem:[%s617 + $0x68] sm:$0xf]
        %v766 = vld [vmem:[%s617 + $0x6c] sm:$0xf]
        %v767 = vld [vmem:[%s617 + $0x70] sm:$0xf]
        %v768 = vld [vmem:[%s617 + $0x74] sm:$0xf]
        %v769 = vld [vmem:[%s617 + $0x78] sm:$0xf]
        %v770 = vld [vmem:[%s617 + $0x7c] sm:$0xf]
        %v771 = vld [vmem:[%s617 + $0x80] sm:$0xf]
        %v772 = vld [vmem:[%s617 + $0x84] sm:$0xf]
        %v773 = vld [vmem:[%s617 + $0x88] sm:$0xf]
        %v774 = vld [vmem:[%s617 + $0x8c] sm:$0xf]
        %v775 = vld [vmem:[%s617 + $0x90] sm:$0xf]
        %v776 = vld [vmem:[%s617 + $0x94] sm:$0xf]
        %v777 = vld [vmem:[%s617 + $0x98] sm:$0xf]
        %v778 = vld [vmem:[%s617 + $0x9c] sm:$0xf]
        %v779 = vld [vmem:[%s617 + $0xa0] sm:$0xf]
        %v780 = vld [vmem:[%s617 + $0xa4] sm:$0xf]
        %v781 = vld [vmem:[%s617 + $0xa8] sm:$0xf]
        %v782 = vld [vmem:[%s617 + $0xac] sm:$0xf]
        %v783 = vld [vmem:[%s617 + $0xb0] sm:$0xf]
        %v784 = vld [vmem:[%s617 + $0xb4] sm:$0xf]
        %v785 = vld [vmem:[%s617 + $0xb8] sm:$0xf]
        %v786 = vld [vmem:[%s617 + $0xbc] sm:$0xf]
        %v787 = vld [vmem:[%s617 + $0xc0] sm:$0xf]
        %v788 = vld [vmem:[%s617 + $0xc4] sm:$0xf]
        %v789 = vld [vmem:[%s617 + $0xc8] sm:$0xf]
        %v790 = vld [vmem:[%s617 + $0xcc] sm:$0xf]
        %v791 = vld [vmem:[%s617 + $0xd0] sm:$0xf]
        %v792 = vld [vmem:[%s617 + $0xd4] sm:$0xf]
        %v793 = vld [vmem:[%s617 + $0xd8] sm:$0xf]
        %v794 = vld [vmem:[%s617 + $0xdc] sm:$0xf]
        %v795 = vld [vmem:[%s617 + $0xe0] sm:$0xf]
        %v796 = vld [vmem:[%s617 + $0xe4] sm:$0xf]
        %v797 = vld [vmem:[%s617 + $0xe8] sm:$0xf]
        %v798 = vld [vmem:[%s617 + $0xec] sm:$0xf]
        %v799 = vld [vmem:[%s617 + $0xf0] sm:$0xf]
        %v800 = vld [vmem:[%s617 + $0xf4] sm:$0xf]
        %v801 = vld [vmem:[%s617 + $0xf8] sm:$0xf]
        %v802 = vld [vmem:[%s617 + $0xfc] sm:$0xf]
        %v803 = vld [vmem:[%s617 + $0x100] sm:$0xf]
        %v804 = vld [vmem:[%s617 + $0x104] sm:$0xf]
        %v805 = vld [vmem:[%s660] sm:$0xff]
        %v806 = vld [vmem:[%s660 + $0x8] sm:$0xf]
        %v807 = vld [vmem:[%s660 + $0xc] sm:$0xff]
        %v808 = vld [vmem:[%s660 + $0x14] sm:$0xf]
        %v809 = vld [vmem:[%s660 + $0x18] sm:$0xff]
        %v810 = vld [vmem:[%s660 + $0x20] sm:$0xf]
        %v811 = vld [vmem:[%s660 + $0x24] sm:$0xff]
        %v812 = vld [vmem:[%s660 + $0x2c] sm:$0xf]
        %v813 = vld [vmem:[%s660 + $0x30] sm:$0xff]
        %v814 = vld [vmem:[%s660 + $0x38] sm:$0xf]
        %v815 = vld [vmem:[%s660 + $0x3c] sm:$0xff]
        %v816 = vld [vmem:[%s660 + $0x44] sm:$0xf]
        %v817 = vld [vmem:[%s660 + $0x48] sm:$0xff]
        %v818 = vld [vmem:[%s660 + $0x50] sm:$0xf]
        %v819 = vld [vmem:[%s660 + $0x54] sm:$0xff]
        %v820 = vld [vmem:[%s660 + $0x5c] sm:$0xf]
        %v821 = vld [vmem:[%s660 + $0x60] sm:$0xff]
        %v822 = vld [vmem:[%s660 + $0x68] sm:$0xf]
        %v823 = vld [vmem:[%s660 + $0x6c] sm:$0xff]
        %v824 = vld [vmem:[%s660 + $0x74] sm:$0xf]
        %v825 = vld [vmem:[%s660 + $0x78] sm:$0xff]
        %v826 = vld [vmem:[%s660 + $0x80] sm:$0xf]
        %v827 = vld [vmem:[%s660 + $0x84] sm:$0xff]
        %v828 = vld [vmem:[%s660 + $0x8c] sm:$0xf]
        %v829 = vld [vmem:[%s660 + $0x90] sm:$0xff]
        %v830 = vld [vmem:[%s660 + $0x98] sm:$0xf]
        %v831 = vld [vmem:[%s660 + $0x9c] sm:$0xff]
        %v832 = vld [vmem:[%s660 + $0xa4] sm:$0xf]
        %v833 = vld [vmem:[%s660 + $0xa8] sm:$0xff]
        %v834 = vld [vmem:[%s660 + $0xb0] sm:$0xf]
        %v835 = vld [vmem:[%s660 + $0xb4] sm:$0xff]
        %v836 = vld [vmem:[%s660 + $0xbc] sm:$0xf]
        %v903 = vunpack.c.l.b16 %v739
        %v904 = vunpack.c.l.b16 %v740
        %v905 = vunpack.c.l.b16 %v741
        %v906 = vunpack.c.l.b16 %v742
        %v907 = vunpack.c.l.b16 %v743
        %v908 = vunpack.c.l.b16 %v744
        %v909 = vunpack.c.l.b16 %v745
        %v910 = vunpack.c.l.b16 %v746
        %v911 = vunpack.c.l.b16 %v747
        %v912 = vunpack.c.l.b16 %v748
        %v913 = vunpack.c.l.b16 %v749
        %v914 = vunpack.c.l.b16 %v750
        %v915 = vunpack.c.l.b16 %v751
        %v916 = vunpack.c.l.b16 %v752
        %v917 = vunpack.c.l.b16 %v753
        %v918 = vunpack.c.l.b16 %v754
        %v919 = vunpack.c.l.b16 %v755
        %v920 = vunpack.c.l.b16 %v756
        %v921 = vunpack.c.l.b16 %v757
        %v922 = vunpack.c.l.b16 %v758
        %v923 = vunpack.c.l.b16 %v759
        %v924 = vunpack.c.l.b16 %v760
        %v925 = vunpack.c.l.b16 %v761
        %v926 = vunpack.c.l.b16 %v762
        %v927 = vunpack.c.l.b16 %v763
        %v928 = vunpack.c.l.b16 %v764
        %v929 = vunpack.c.l.b16 %v765
        %v930 = vunpack.c.l.b16 %v766
        %v931 = vunpack.c.l.b16 %v767
        %v932 = vunpack.c.l.b16 %v768
        %v933 = vunpack.c.l.b16 %v769
        %v934 = vunpack.c.l.b16 %v770
        %v935 = vunpack.c.l.b16 %v771
        %v936 = vunpack.c.l.b16 %v772
        %v937 = vunpack.c.l.b16 %v773
        %v938 = vunpack.c.l.b16 %v774
        %v939 = vunpack.c.l.b16 %v775
        %v940 = vunpack.c.l.b16 %v776
        %v941 = vunpack.c.l.b16 %v777
        %v942 = vunpack.c.l.b16 %v778
        %v943 = vunpack.c.l.b16 %v779
        %v944 = vunpack.c.l.b16 %v780
        %v945 = vunpack.c.l.b16 %v781
        %v946 = vunpack.c.l.b16 %v782
        %v947 = vunpack.c.l.b16 %v783
        %v948 = vunpack.c.l.b16 %v784
        %v949 = vunpack.c.l.b16 %v785
        %v950 = vunpack.c.l.b16 %v786
        %v951 = vunpack.c.l.b16 %v787
        %v952 = vunpack.c.l.b16 %v788
        %v953 = vunpack.c.l.b16 %v789
        %v954 = vunpack.c.l.b16 %v790
        %v955 = vunpack.c.l.b16 %v791
        %v956 = vunpack.c.l.b16 %v792
        %v957 = vunpack.c.l.b16 %v793
        %v958 = vunpack.c.l.b16 %v794
        %v959 = vunpack.c.l.b16 %v795
        %v960 = vunpack.c.l.b16 %v796
        %v961 = vunpack.c.l.b16 %v797
        %v962 = vunpack.c.l.b16 %v798
        %v963 = vunpack.c.l.b16 %v799
        %v964 = vunpack.c.l.b16 %v800
        %v965 = vunpack.c.l.b16 %v801
        %v966 = vunpack.c.l.b16 %v802
        %v967 = vunpack.c.l.b16 %v803
        %v968 = vunpack.c.l.b16 %v804
        %v969 = vpack.c.b16 %v904, %v903
        %v970 = vpack.c.b16 %v906, %v905
        %v971 = vpack.c.b16 %v908, %v907
        %v972 = vpack.c.b16 %v910, %v909
        %v973 = vpack.c.b16 %v912, %v911
        %v974 = vpack.c.b16 %v914, %v913
        %v975 = vpack.c.b16 %v916, %v915
        %v976 = vpack.c.b16 %v918, %v917
        %v977 = vpack.c.b16 %v920, %v919
        %v978 = vpack.c.b16 %v922, %v921
        %v979 = vpack.c.b16 %v924, %v923
        %v980 = vpack.c.b16 %v926, %v925
        %v981 = vpack.c.b16 %v928, %v927
        %v982 = vpack.c.b16 %v930, %v929
        %v983 = vpack.c.b16 %v932, %v931
        %v984 = vpack.c.b16 %v934, %v933
        %v985 = vpack.c.b16 %v936, %v935
        %v986 = vpack.c.b16 %v938, %v937
        %v987 = vpack.c.b16 %v940, %v939
        %v988 = vpack.c.b16 %v942, %v941
        %v989 = vpack.c.b16 %v944, %v943
        %v990 = vpack.c.b16 %v946, %v945
        %v991 = vpack.c.b16 %v948, %v947
        %v992 = vpack.c.b16 %v950, %v949
        %v993 = vpack.c.b16 %v952, %v951
        %v994 = vpack.c.b16 %v954, %v953
        %v995 = vpack.c.b16 %v956, %v955
        %v996 = vpack.c.b16 %v958, %v957
        %v997 = vpack.c.b16 %v960, %v959
        %v998 = vpack.c.b16 %v962, %v961
        %v999 = vpack.c.b16 %v964, %v963
        %v1000 = vpack.c.b16 %v966, %v965
        %v1001 = vpack.c.b16 %v968, %v967
        %v1067 = vunpack.c.l.b16 %v805
        %v1068 = vunpack.c.h.b16 %v805
        %v1069 = vunpack.c.l.b16 %v806
        %v1070 = vunpack.c.l.b16 %v807
        %v1071 = vunpack.c.h.b16 %v807
        %v1072 = vunpack.c.l.b16 %v808
        %v1073 = vunpack.c.l.b16 %v809
        %v1074 = vunpack.c.h.b16 %v809
        %v1075 = vunpack.c.l.b16 %v810
        %v1076 = vunpack.c.l.b16 %v811
        %v1077 = vunpack.c.h.b16 %v811
        %v1078 = vunpack.c.l.b16 %v812
        %v1079 = vunpack.c.l.b16 %v813
        %v1080 = vunpack.c.h.b16 %v813
        %v1081 = vunpack.c.l.b16 %v814
        %v1082 = vunpack.c.l.b16 %v815
        %v1083 = vunpack.c.h.b16 %v815
        %v1084 = vunpack.c.l.b16 %v816
        %v1085 = vunpack.c.l.b16 %v817
        %v1086 = vunpack.c.h.b16 %v817
        %v1087 = vunpack.c.l.b16 %v818
        %v1088 = vunpack.c.l.b16 %v819
        %v1089 = vunpack.c.h.b16 %v819
        %v1090 = vunpack.c.l.b16 %v820
        %v1091 = vunpack.c.l.b16 %v821
        %v1092 = vunpack.c.h.b16 %v821
        %v1093 = vunpack.c.l.b16 %v822
        %v1094 = vunpack.c.l.b16 %v823
        %v1095 = vunpack.c.h.b16 %v823
        %v1096 = vunpack.c.l.b16 %v824
        %v1097 = vunpack.c.l.b16 %v825
        %v1098 = vunpack.c.h.b16 %v825
        %v1099 = vunpack.c.l.b16 %v826
        %v1100 = vunpack.c.l.b16 %v827
        %v1101 = vunpack.c.h.b16 %v827
        %v1102 = vunpack.c.l.b16 %v828
        %v1103 = vunpack.c.l.b16 %v829
        %v1104 = vunpack.c.h.b16 %v829
        %v1105 = vunpack.c.l.b16 %v830
        %v1106 = vunpack.c.l.b16 %v831
        %v1107 = vunpack.c.h.b16 %v831
        %v1108 = vunpack.c.l.b16 %v832
        %v1109 = vunpack.c.l.b16 %v833
        %v1110 = vunpack.c.h.b16 %v833
        %v1111 = vunpack.c.l.b16 %v834
        %v1112 = vunpack.c.l.b16 %v835
        %v1113 = vunpack.c.h.b16 %v835
        %v1114 = vunpack.c.l.b16 %v836
        %v1115 = vpack.c.b16 %v1070, %v1067
        %v1116 = vpack.c.b16 %v1071, %v1068
        %v1117 = vpack.c.b16 %v1072, %v1069
        %v1118 = vpack.c.b16 %v1076, %v1073
        %v1119 = vpack.c.b16 %v1077, %v1074
        %v1120 = vpack.c.b16 %v1078, %v1075
        %v1121 = vpack.c.b16 %v1082, %v1079
        %v1122 = vpack.c.b16 %v1083, %v1080
        %v1123 = vpack.c.b16 %v1084, %v1081
        %v1124 = vpack.c.b16 %v1088, %v1085
        %v1125 = vpack.c.b16 %v1089, %v1086
        %v1126 = vpack.c.b16 %v1090, %v1087
        %v1127 = vpack.c.b16 %v1094, %v1091
        %v1128 = vpack.c.b16 %v1095, %v1092
        %v1129 = vpack.c.b16 %v1096, %v1093
        %v1130 = vpack.c.b16 %v1100, %v1097
        %v1131 = vpack.c.b16 %v1101, %v1098
        %v1132 = vpack.c.b16 %v1102, %v1099
        %v1133 = vpack.c.b16 %v1106, %v1103
        %v1134 = vpack.c.b16 %v1107, %v1104
        %v1135 = vpack.c.b16 %v1108, %v1105
        %v1136 = vpack.c.b16 %v1112, %v1109
        %v1137 = vpack.c.b16 %v1113, %v1110
        %v1138 = vpack.c.b16 %v1114, %v1111
        %1163 = vmatpush.bf16.msra.mxu0 %v1136
        %1164 = vmatpush.bf16.msra.mxu0 %v1133
        %1165 = vmatpush.bf16.msra.mxu0 %v1130
        %1166 = vmatpush.bf16.msra.mxu0 %v1127
        %1167 = vmatpush.bf16.msra.mxu0 %v1124
        %1168 = vmatpush.bf16.msra.mxu0 %v1121
        %1169 = vmatpush.bf16.msra.mxu0 %v1118
        %1170 = vmatpush.bf16.msra.mxu0 %v1115
        %1171 = vmatmul.bf16.gmra.mxu0 %v969
        %v1172 = vpop.f32.mrf.mxu0
        %v1173 = vadd.f32 0.0, %v1172
        %v1174 = vpop.f32.mrf.mxu0
        %v1175 = vadd.f32 0.0, %v1174
        %1176 = vmatmul.bf16.gmra.mxu0 %v970
        %v1177 = vpop.f32.mrf.mxu0
        %v1178 = vadd.f32 0.0, %v1177
        %v1179 = vpop.f32.mrf.mxu0
        %v1180 = vadd.f32 0.0, %v1179
        %1181 = vmatmul.bf16.gmra.mxu0 %v971
        %v1182 = vpop.f32.mrf.mxu0
        %v1183 = vadd.f32 0.0, %v1182
        %v1184 = vpop.f32.mrf.mxu0
        %v1185 = vadd.f32 0.0, %v1184
        %1186 = vmatmul.bf16.gmra.mxu0 %v972
        %v1187 = vpop.f32.mrf.mxu0
        %v1188 = vadd.f32 0.0, %v1187
        %v1189 = vpop.f32.mrf.mxu0
        %v1190 = vadd.f32 0.0, %v1189
        %1191 = vmatmul.bf16.gmra.mxu0 %v973
        %v1192 = vpop.f32.mrf.mxu0
        %v1193 = vadd.f32 0.0, %v1192
        %v1194 = vpop.f32.mrf.mxu0
        %v1195 = vadd.f32 0.0, %v1194
        %1196 = vmatmul.bf16.gmra.mxu0 %v974
        %v1197 = vpop.f32.mrf.mxu0
        %v1198 = vadd.f32 0.0, %v1197
        %v1199 = vpop.f32.mrf.mxu0
        %v1200 = vadd.f32 0.0, %v1199
        %1201 = vmatmul.bf16.gmra.mxu0 %v975
        %v1202 = vpop.f32.mrf.mxu0
        %v1203 = vadd.f32 0.0, %v1202
        %v1204 = vpop.f32.mrf.mxu0
        %v1205 = vadd.f32 0.0, %v1204
        %1206 = vmatmul.bf16.gmra.mxu0 %v976
        %v1207 = vpop.f32.mrf.mxu0
        %v1208 = vadd.f32 0.0, %v1207
        %v1209 = vpop.f32.mrf.mxu0
        %v1210 = vadd.f32 0.0, %v1209
        %1211 = vmatmul.bf16.gmra.mxu0 %v977
        %v1212 = vpop.f32.mrf.mxu0
        %v1213 = vadd.f32 0.0, %v1212
        %v1214 = vpop.f32.mrf.mxu0
        %v1215 = vadd.f32 0.0, %v1214
        %1216 = vmatmul.bf16.gmra.mxu0 %v978
        %v1217 = vpop.f32.mrf.mxu0
        %v1218 = vadd.f32 0.0, %v1217
        %v1219 = vpop.f32.mrf.mxu0
        %v1220 = vadd.f32 0.0, %v1219
        %1221 = vmatmul.bf16.gmra.mxu0 %v979
        %v1222 = vpop.f32.mrf.mxu0
        %v1223 = vadd.f32 0.0, %v1222
        %v1224 = vpop.f32.mrf.mxu0
        %v1225 = vadd.f32 0.0, %v1224
        %1226 = vmatmul.bf16.gmra.mxu0 %v980
        %v1227 = vpop.f32.mrf.mxu0
        %v1228 = vadd.f32 0.0, %v1227
        %v1229 = vpop.f32.mrf.mxu0
        %v1230 = vadd.f32 0.0, %v1229
        %1231 = vmatmul.bf16.gmra.mxu0 %v981
        %v1232 = vpop.f32.mrf.mxu0
        %v1233 = vadd.f32 0.0, %v1232
        %v1234 = vpop.f32.mrf.mxu0
        %v1235 = vadd.f32 0.0, %v1234
        %1236 = vmatmul.bf16.gmra.mxu0 %v982
        %v1237 = vpop.f32.mrf.mxu0
        %v1238 = vadd.f32 0.0, %v1237
        %v1239 = vpop.f32.mrf.mxu0
        %v1240 = vadd.f32 0.0, %v1239
        %1241 = vmatmul.bf16.gmra.mxu0 %v983
        %v1242 = vpop.f32.mrf.mxu0
        %v1243 = vadd.f32 0.0, %v1242
        %v1244 = vpop.f32.mrf.mxu0
        %v1245 = vadd.f32 0.0, %v1244
        %1246 = vmatmul.bf16.gmra.mxu0 %v984
        %v1247 = vpop.f32.mrf.mxu0
        %v1248 = vadd.f32 0.0, %v1247
        %v1249 = vpop.f32.mrf.mxu0
        %v1250 = vadd.f32 0.0, %v1249
        %1251 = vmatmul.bf16.gmra.mxu0 %v985
        %v1252 = vpop.f32.mrf.mxu0
        %v1253 = vadd.f32 0.0, %v1252
        %v1254 = vpop.f32.mrf.mxu0
        %v1255 = vadd.f32 0.0, %v1254
        %1256 = vmatmul.bf16.gmra.mxu0 %v986
        %v1257 = vpop.f32.mrf.mxu0
        %v1258 = vadd.f32 0.0, %v1257
        %v1259 = vpop.f32.mrf.mxu0
        %v1260 = vadd.f32 0.0, %v1259
        %1261 = vmatmul.bf16.gmra.mxu0 %v987
        %v1262 = vpop.f32.mrf.mxu0
        %v1263 = vadd.f32 0.0, %v1262
        %v1264 = vpop.f32.mrf.mxu0
        %v1265 = vadd.f32 0.0, %v1264
        %1266 = vmatmul.bf16.gmra.mxu0 %v988
        %v1267 = vpop.f32.mrf.mxu0
        %v1268 = vadd.f32 0.0, %v1267
        %v1269 = vpop.f32.mrf.mxu0
        %v1270 = vadd.f32 0.0, %v1269
        %1271 = vmatmul.bf16.gmra.mxu0 %v989
        %v1272 = vpop.f32.mrf.mxu0
        %v1273 = vadd.f32 0.0, %v1272
        %v1274 = vpop.f32.mrf.mxu0
        %v1275 = vadd.f32 0.0, %v1274
        %1276 = vmatmul.bf16.gmra.mxu0 %v990
        %v1277 = vpop.f32.mrf.mxu0
        %v1278 = vadd.f32 0.0, %v1277
        %v1279 = vpop.f32.mrf.mxu0
        %v1280 = vadd.f32 0.0, %v1279
        %1281 = vmatmul.bf16.gmra.mxu0 %v991
        %v1282 = vpop.f32.mrf.mxu0
        %v1283 = vadd.f32 0.0, %v1282
        %v1284 = vpop.f32.mrf.mxu0
        %v1285 = vadd.f32 0.0, %v1284
        %1286 = vmatmul.bf16.gmra.mxu0 %v992
        %v1287 = vpop.f32.mrf.mxu0
        %v1288 = vadd.f32 0.0, %v1287
        %v1289 = vpop.f32.mrf.mxu0
        %v1290 = vadd.f32 0.0, %v1289
        %1291 = vmatmul.bf16.gmra.mxu0 %v993
        %v1292 = vpop.f32.mrf.mxu0
        %v1293 = vadd.f32 0.0, %v1292
        %v1294 = vpop.f32.mrf.mxu0
        %v1295 = vadd.f32 0.0, %v1294
        %1296 = vmatmul.bf16.gmra.mxu0 %v994
        %v1297 = vpop.f32.mrf.mxu0
        %v1298 = vadd.f32 0.0, %v1297
        %v1299 = vpop.f32.mrf.mxu0
        %v1300 = vadd.f32 0.0, %v1299
        %1301 = vmatmul.bf16.gmra.mxu0 %v995
        %v1302 = vpop.f32.mrf.mxu0
        %v1303 = vadd.f32 0.0, %v1302
        %v1304 = vpop.f32.mrf.mxu0
        %v1305 = vadd.f32 0.0, %v1304
        %1306 = vmatmul.bf16.gmra.mxu0 %v996
        %v1307 = vpop.f32.mrf.mxu0
        %v1308 = vadd.f32 0.0, %v1307
        %v1309 = vpop.f32.mrf.mxu0
        %v1310 = vadd.f32 0.0, %v1309
        %1311 = vmatmul.bf16.gmra.mxu0 %v997
        %v1312 = vpop.f32.mrf.mxu0
        %v1313 = vadd.f32 0.0, %v1312
        %v1314 = vpop.f32.mrf.mxu0
        %v1315 = vadd.f32 0.0, %v1314
        %1316 = vmatmul.bf16.gmra.mxu0 %v998
        %v1317 = vpop.f32.mrf.mxu0
        %v1318 = vadd.f32 0.0, %v1317
        %v1319 = vpop.f32.mrf.mxu0
        %v1320 = vadd.f32 0.0, %v1319
        %1321 = vmatmul.bf16.gmra.mxu0 %v999
        %v1322 = vpop.f32.mrf.mxu0
        %v1323 = vadd.f32 0.0, %v1322
        %v1324 = vpop.f32.mrf.mxu0
        %v1325 = vadd.f32 0.0, %v1324
        %1326 = vmatmul.bf16.gmra.mxu0 %v1000
        %v1327 = vpop.f32.mrf.mxu0
        %v1328 = vadd.f32 0.0, %v1327
        %v1329 = vpop.f32.mrf.mxu0
        %v1330 = vadd.f32 0.0, %v1329
        %1331 = vmatmul.bf16.gmra.mxu0 %v1001
        %v1332 = vpop.f32.mrf.mxu0
        %v1333 = vpop.f32.mrf.mxu0
        %1334 = vdwg.mxu0
        %1335 = vmatpush.bf16.msra.mxu0 %v1137
        %1336 = vmatpush.bf16.msra.mxu0 %v1134
        %1337 = vmatpush.bf16.msra.mxu0 %v1131
        %1338 = vmatpush.bf16.msra.mxu0 %v1128
        %1339 = vmatpush.bf16.msra.mxu0 %v1125
        %1340 = vmatpush.bf16.msra.mxu0 %v1122
        %1341 = vmatpush.bf16.msra.mxu0 %v1119
        %1342 = vmatpush.bf16.msra.mxu0 %v1116
        %1343 = vmatmul.bf16.gmra.mxu0 %v969
        %v1344 = vpop.f32.mrf.mxu0
        %v1345 = vadd.f32 0.0, %v1344
        %v1346 = vpop.f32.mrf.mxu0
        %v1347 = vadd.f32 0.0, %v1346
        %1348 = vmatmul.bf16.gmra.mxu0 %v970
        %v1349 = vpop.f32.mrf.mxu0
        %v1350 = vadd.f32 0.0, %v1349
        %v1351 = vpop.f32.mrf.mxu0
        %v1352 = vadd.f32 0.0, %v1351
        %1353 = vmatmul.bf16.gmra.mxu0 %v971
        %v1354 = vpop.f32.mrf.mxu0
        %v1355 = vadd.f32 0.0, %v1354
        %v1356 = vpop.f32.mrf.mxu0
        %v1357 = vadd.f32 0.0, %v1356
        %1358 = vmatmul.bf16.gmra.mxu0 %v972
        %v1359 = vpop.f32.mrf.mxu0
        %v1360 = vadd.f32 0.0, %v1359
        %v1361 = vpop.f32.mrf.mxu0
        %v1362 = vadd.f32 0.0, %v1361
        %1363 = vmatmul.bf16.gmra.mxu0 %v973
        %v1364 = vpop.f32.mrf.mxu0
        %v1365 = vadd.f32 0.0, %v1364
        %v1366 = vpop.f32.mrf.mxu0
        %v1367 = vadd.f32 0.0, %v1366
        %1368 = vmatmul.bf16.gmra.mxu0 %v974
        %v1369 = vpop.f32.mrf.mxu0
        %v1370 = vadd.f32 0.0, %v1369
        %v1371 = vpop.f32.mrf.mxu0
        %v1372 = vadd.f32 0.0, %v1371
        %1373 = vmatmul.bf16.gmra.mxu0 %v975
        %v1374 = vpop.f32.mrf.mxu0
        %v1375 = vadd.f32 0.0, %v1374
        %v1376 = vpop.f32.mrf.mxu0
        %v1377 = vadd.f32 0.0, %v1376
        %1378 = vmatmul.bf16.gmra.mxu0 %v976
        %v1379 = vpop.f32.mrf.mxu0
        %v1380 = vadd.f32 0.0, %v1379
        %v1381 = vpop.f32.mrf.mxu0
        %v1382 = vadd.f32 0.0, %v1381
        %1383 = vmatmul.bf16.gmra.mxu0 %v977
        %v1384 = vpop.f32.mrf.mxu0
        %v1385 = vadd.f32 0.0, %v1384
        %v1386 = vpop.f32.mrf.mxu0
        %v1387 = vadd.f32 0.0, %v1386
        %1388 = vmatmul.bf16.gmra.mxu0 %v978
        %v1389 = vpop.f32.mrf.mxu0
        %v1390 = vadd.f32 0.0, %v1389
        %v1391 = vpop.f32.mrf.mxu0
        %v1392 = vadd.f32 0.0, %v1391
        %1393 = vmatmul.bf16.gmra.mxu0 %v979
        %v1394 = vpop.f32.mrf.mxu0
        %v1395 = vadd.f32 0.0, %v1394
        %v1396 = vpop.f32.mrf.mxu0
        %v1397 = vadd.f32 0.0, %v1396
        %1398 = vmatmul.bf16.gmra.mxu0 %v980
        %v1399 = vpop.f32.mrf.mxu0
        %v1400 = vadd.f32 0.0, %v1399
        %v1401 = vpop.f32.mrf.mxu0
        %v1402 = vadd.f32 0.0, %v1401
        %1403 = vmatmul.bf16.gmra.mxu0 %v981
        %v1404 = vpop.f32.mrf.mxu0
        %v1405 = vadd.f32 0.0, %v1404
        %v1406 = vpop.f32.mrf.mxu0
        %v1407 = vadd.f32 0.0, %v1406
        %1408 = vmatmul.bf16.gmra.mxu0 %v982
        %v1409 = vpop.f32.mrf.mxu0
        %v1410 = vadd.f32 0.0, %v1409
        %v1411 = vpop.f32.mrf.mxu0
        %v1412 = vadd.f32 0.0, %v1411
        %1413 = vmatmul.bf16.gmra.mxu0 %v983
        %v1414 = vpop.f32.mrf.mxu0
        %v1415 = vadd.f32 0.0, %v1414
        %v1416 = vpop.f32.mrf.mxu0
        %v1417 = vadd.f32 0.0, %v1416
        %1418 = vmatmul.bf16.gmra.mxu0 %v984
        %v1419 = vpop.f32.mrf.mxu0
        %v1420 = vadd.f32 0.0, %v1419
        %v1421 = vpop.f32.mrf.mxu0
        %v1422 = vadd.f32 0.0, %v1421
        %1423 = vmatmul.bf16.gmra.mxu0 %v985
        %v1424 = vpop.f32.mrf.mxu0
        %v1425 = vadd.f32 0.0, %v1424
        %v1426 = vpop.f32.mrf.mxu0
        %v1427 = vadd.f32 0.0, %v1426
        %1428 = vmatmul.bf16.gmra.mxu0 %v986
        %v1429 = vpop.f32.mrf.mxu0
        %v1430 = vadd.f32 0.0, %v1429
        %v1431 = vpop.f32.mrf.mxu0
        %v1432 = vadd.f32 0.0, %v1431
        %1433 = vmatmul.bf16.gmra.mxu0 %v987
        %v1434 = vpop.f32.mrf.mxu0
        %v1435 = vadd.f32 0.0, %v1434
        %v1436 = vpop.f32.mrf.mxu0
        %v1437 = vadd.f32 0.0, %v1436
        %1438 = vmatmul.bf16.gmra.mxu0 %v988
        %v1439 = vpop.f32.mrf.mxu0
        %v1440 = vadd.f32 0.0, %v1439
        %v1441 = vpop.f32.mrf.mxu0
        %v1442 = vadd.f32 0.0, %v1441
        %1443 = vmatmul.bf16.gmra.mxu0 %v989
        %v1444 = vpop.f32.mrf.mxu0
        %v1445 = vadd.f32 0.0, %v1444
        %v1446 = vpop.f32.mrf.mxu0
        %v1447 = vadd.f32 0.0, %v1446
        %1448 = vmatmul.bf16.gmra.mxu0 %v990
        %v1449 = vpop.f32.mrf.mxu0
        %v1450 = vadd.f32 0.0, %v1449
        %v1451 = vpop.f32.mrf.mxu0
        %v1452 = vadd.f32 0.0, %v1451
        %1453 = vmatmul.bf16.gmra.mxu0 %v991
        %v1454 = vpop.f32.mrf.mxu0
        %v1455 = vadd.f32 0.0, %v1454
        %v1456 = vpop.f32.mrf.mxu0
        %v1457 = vadd.f32 0.0, %v1456
        %1458 = vmatmul.bf16.gmra.mxu0 %v992
        %v1459 = vpop.f32.mrf.mxu0
        %v1460 = vadd.f32 0.0, %v1459
        %v1461 = vpop.f32.mrf.mxu0
        %v1462 = vadd.f32 0.0, %v1461
        %1463 = vmatmul.bf16.gmra.mxu0 %v993
        %v1464 = vpop.f32.mrf.mxu0
        %v1465 = vadd.f32 0.0, %v1464
        %v1466 = vpop.f32.mrf.mxu0
        %v1467 = vadd.f32 0.0, %v1466
        %1468 = vmatmul.bf16.gmra.mxu0 %v994
        %v1469 = vpop.f32.mrf.mxu0
        %v1470 = vadd.f32 0.0, %v1469
        %v1471 = vpop.f32.mrf.mxu0
        %v1472 = vadd.f32 0.0, %v1471
        %1473 = vmatmul.bf16.gmra.mxu0 %v995
        %v1474 = vpop.f32.mrf.mxu0
        %v1475 = vadd.f32 0.0, %v1474
        %v1476 = vpop.f32.mrf.mxu0
        %v1477 = vadd.f32 0.0, %v1476
        %1478 = vmatmul.bf16.gmra.mxu0 %v996
        %v1479 = vpop.f32.mrf.mxu0
        %v1480 = vadd.f32 0.0, %v1479
        %v1481 = vpop.f32.mrf.mxu0
        %v1482 = vadd.f32 0.0, %v1481
        %1483 = vmatmul.bf16.gmra.mxu0 %v997
        %v1484 = vpop.f32.mrf.mxu0
        %v1485 = vadd.f32 0.0, %v1484
        %v1486 = vpop.f32.mrf.mxu0
        %v1487 = vadd.f32 0.0, %v1486
        %1488 = vmatmul.bf16.gmra.mxu0 %v998
        %v1489 = vpop.f32.mrf.mxu0
        %v1490 = vadd.f32 0.0, %v1489
        %v1491 = vpop.f32.mrf.mxu0
        %v1492 = vadd.f32 0.0, %v1491
        %1493 = vmatmul.bf16.gmra.mxu0 %v999
        %v1494 = vpop.f32.mrf.mxu0
        %v1495 = vadd.f32 0.0, %v1494
        %v1496 = vpop.f32.mrf.mxu0
        %v1497 = vadd.f32 0.0, %v1496
        %1498 = vmatmul.bf16.gmra.mxu0 %v1000
        %v1499 = vpop.f32.mrf.mxu0
        %v1500 = vadd.f32 0.0, %v1499
        %v1501 = vpop.f32.mrf.mxu0
        %v1502 = vadd.f32 0.0, %v1501
        %1503 = vmatmul.bf16.gmra.mxu0 %v1001
        %v1504 = vpop.f32.mrf.mxu0
        %v1505 = vadd.f32 0.0, %v1504
        %v1506 = vpop.f32.mrf.mxu0
        %1507 = vdwg.mxu0
        %1508 = vmatpush.bf16.msra.mxu0 %v1138
        %1509 = vmatpush.bf16.msra.mxu0 %v1135
        %1510 = vmatpush.bf16.msra.mxu0 %v1132
        %1511 = vmatpush.bf16.msra.mxu0 %v1129
        %1512 = vmatpush.bf16.msra.mxu0 %v1126
        %1513 = vmatpush.bf16.msra.mxu0 %v1123
        %1514 = vmatpush.bf16.msra.mxu0 %v1120
        %1515 = vmatpush.bf16.msra.mxu0 %v1117
        %1516 = vmatmul.bf16.gmra.mxu0 %v969
        %v1517 = vpop.f32.mrf.mxu0
        %v1518 = vadd.f32 0.0, %v1517
        %v1519 = vpop.f32.mrf.mxu0
        %v1520 = vadd.f32 0.0, %v1519
        %1521 = vmatmul.bf16.gmra.mxu0 %v970
        %v1522 = vpop.f32.mrf.mxu0
        %v1523 = vadd.f32 0.0, %v1522
        %v1524 = vpop.f32.mrf.mxu0
        %v1525 = vadd.f32 0.0, %v1524
        %1526 = vmatmul.bf16.gmra.mxu0 %v971
        %v1527 = vpop.f32.mrf.mxu0
        %v1528 = vadd.f32 0.0, %v1527
        %v1529 = vpop.f32.mrf.mxu0
        %v1530 = vadd.f32 0.0, %v1529
        %1531 = vmatmul.bf16.gmra.mxu0 %v972
        %v1532 = vpop.f32.mrf.mxu0
        %v1533 = vadd.f32 0.0, %v1532
        %v1534 = vpop.f32.mrf.mxu0
        %v1535 = vadd.f32 0.0, %v1534
        %1536 = vmatmul.bf16.gmra.mxu0 %v973
        %v1537 = vpop.f32.mrf.mxu0
        %v1538 = vadd.f32 0.0, %v1537
        %v1539 = vpop.f32.mrf.mxu0
        %v1540 = vadd.f32 0.0, %v1539
        %1541 = vmatmul.bf16.gmra.mxu0 %v974
        %v1542 = vpop.f32.mrf.mxu0
        %v1543 = vadd.f32 0.0, %v1542
        %v1544 = vpop.f32.mrf.mxu0
        %v1545 = vadd.f32 0.0, %v1544
        %1546 = vmatmul.bf16.gmra.mxu0 %v975
        %v1547 = vpop.f32.mrf.mxu0
        %v1548 = vadd.f32 0.0, %v1547
        %v1549 = vpop.f32.mrf.mxu0
        %v1550 = vadd.f32 0.0, %v1549
        %1551 = vmatmul.bf16.gmra.mxu0 %v976
        %v1552 = vpop.f32.mrf.mxu0
        %v1553 = vadd.f32 0.0, %v1552
        %v1554 = vpop.f32.mrf.mxu0
        %v1555 = vadd.f32 0.0, %v1554
        %1556 = vmatmul.bf16.gmra.mxu0 %v977
        %v1557 = vpop.f32.mrf.mxu0
        %v1558 = vadd.f32 0.0, %v1557
        %v1559 = vpop.f32.mrf.mxu0
        %v1560 = vadd.f32 0.0, %v1559
        %1561 = vmatmul.bf16.gmra.mxu0 %v978
        %v1562 = vpop.f32.mrf.mxu0
        %v1563 = vadd.f32 0.0, %v1562
        %v1564 = vpop.f32.mrf.mxu0
        %v1565 = vadd.f32 0.0, %v1564
        %1566 = vmatmul.bf16.gmra.mxu0 %v979
        %v1567 = vpop.f32.mrf.mxu0
        %v1568 = vadd.f32 0.0, %v1567
        %v1569 = vpop.f32.mrf.mxu0
        %v1570 = vadd.f32 0.0, %v1569
        %1571 = vmatmul.bf16.gmra.mxu0 %v980
        %v1572 = vpop.f32.mrf.mxu0
        %v1573 = vadd.f32 0.0, %v1572
        %v1574 = vpop.f32.mrf.mxu0
        %v1575 = vadd.f32 0.0, %v1574
        %1576 = vmatmul.bf16.gmra.mxu0 %v981
        %v1577 = vpop.f32.mrf.mxu0
        %v1578 = vadd.f32 0.0, %v1577
        %v1579 = vpop.f32.mrf.mxu0
        %v1580 = vadd.f32 0.0, %v1579
        %1581 = vmatmul.bf16.gmra.mxu0 %v982
        %v1582 = vpop.f32.mrf.mxu0
        %v1583 = vadd.f32 0.0, %v1582
        %v1584 = vpop.f32.mrf.mxu0
        %v1585 = vadd.f32 0.0, %v1584
        %1586 = vmatmul.bf16.gmra.mxu0 %v983
        %v1587 = vpop.f32.mrf.mxu0
        %v1588 = vadd.f32 0.0, %v1587
        %v1589 = vpop.f32.mrf.mxu0
        %v1590 = vadd.f32 0.0, %v1589
        %1591 = vmatmul.bf16.gmra.mxu0 %v984
        %v1592 = vpop.f32.mrf.mxu0
        %v1593 = vadd.f32 0.0, %v1592
        %v1594 = vpop.f32.mrf.mxu0
        %v1595 = vadd.f32 0.0, %v1594
        %1596 = vmatmul.bf16.gmra.mxu0 %v985
        %v1597 = vpop.f32.mrf.mxu0
        %v1598 = vadd.f32 0.0, %v1597
        %v1599 = vpop.f32.mrf.mxu0
        %v1600 = vadd.f32 0.0, %v1599
        %1601 = vmatmul.bf16.gmra.mxu0 %v986
        %v1602 = vpop.f32.mrf.mxu0
        %v1603 = vadd.f32 0.0, %v1602
        %v1604 = vpop.f32.mrf.mxu0
        %v1605 = vadd.f32 0.0, %v1604
        %1606 = vmatmul.bf16.gmra.mxu0 %v987
        %v1607 = vpop.f32.mrf.mxu0
        %v1608 = vadd.f32 0.0, %v1607
        %v1609 = vpop.f32.mrf.mxu0
        %v1610 = vadd.f32 0.0, %v1609
        %1611 = vmatmul.bf16.gmra.mxu0 %v988
        %v1612 = vpop.f32.mrf.mxu0
        %v1613 = vadd.f32 0.0, %v1612
        %v1614 = vpop.f32.mrf.mxu0
        %v1615 = vadd.f32 0.0, %v1614
        %1616 = vmatmul.bf16.gmra.mxu0 %v989
        %v1617 = vpop.f32.mrf.mxu0
        %v1618 = vadd.f32 0.0, %v1617
        %v1619 = vpop.f32.mrf.mxu0
        %v1620 = vadd.f32 0.0, %v1619
        %1621 = vmatmul.bf16.gmra.mxu0 %v990
        %v1622 = vpop.f32.mrf.mxu0
        %v1623 = vadd.f32 0.0, %v1622
        %v1624 = vpop.f32.mrf.mxu0
        %v1625 = vadd.f32 0.0, %v1624
        %1626 = vmatmul.bf16.gmra.mxu0 %v991
        %v1627 = vpop.f32.mrf.mxu0
        %v1628 = vadd.f32 0.0, %v1627
        %v1629 = vpop.f32.mrf.mxu0
        %v1630 = vadd.f32 0.0, %v1629
        %1631 = vmatmul.bf16.gmra.mxu0 %v992
        %v1632 = vpop.f32.mrf.mxu0
        %v1633 = vadd.f32 0.0, %v1632
        %v1634 = vpop.f32.mrf.mxu0
        %v1635 = vadd.f32 0.0, %v1634
        %1636 = vmatmul.bf16.gmra.mxu0 %v993
        %v1637 = vpop.f32.mrf.mxu0
        %v1638 = vadd.f32 0.0, %v1637
        %v1639 = vpop.f32.mrf.mxu0
        %v1640 = vadd.f32 0.0, %v1639
        %1641 = vmatmul.bf16.gmra.mxu0 %v994
        %v1642 = vpop.f32.mrf.mxu0
        %v1643 = vadd.f32 0.0, %v1642
        %v1644 = vpop.f32.mrf.mxu0
        %v1645 = vadd.f32 0.0, %v1644
        %1646 = vmatmul.bf16.gmra.mxu0 %v995
        %v1647 = vpop.f32.mrf.mxu0
        %v1648 = vadd.f32 0.0, %v1647
        %v1649 = vpop.f32.mrf.mxu0
        %v1650 = vadd.f32 0.0, %v1649
        %1651 = vmatmul.bf16.gmra.mxu0 %v996
        %v1652 = vpop.f32.mrf.mxu0
        %v1653 = vadd.f32 0.0, %v1652
        %v1654 = vpop.f32.mrf.mxu0
        %v1655 = vadd.f32 0.0, %v1654
        %1656 = vmatmul.bf16.gmra.mxu0 %v997
        %v1657 = vpop.f32.mrf.mxu0
        %v1658 = vadd.f32 0.0, %v1657
        %v1659 = vpop.f32.mrf.mxu0
        %v1660 = vadd.f32 0.0, %v1659
        %1661 = vmatmul.bf16.gmra.mxu0 %v998
        %v1662 = vpop.f32.mrf.mxu0
        %v1663 = vadd.f32 0.0, %v1662
        %v1664 = vpop.f32.mrf.mxu0
        %v1665 = vadd.f32 0.0, %v1664
        %1666 = vmatmul.bf16.gmra.mxu0 %v999
        %v1667 = vpop.f32.mrf.mxu0
        %v1668 = vadd.f32 0.0, %v1667
        %v1669 = vpop.f32.mrf.mxu0
        %v1670 = vadd.f32 0.0, %v1669
        %1671 = vmatmul.bf16.gmra.mxu0 %v1000
        %v1672 = vpop.f32.mrf.mxu0
        %v1673 = vadd.f32 0.0, %v1672
        %v1674 = vpop.f32.mrf.mxu0
        %v1675 = vadd.f32 0.0, %v1674
        %1676 = vmatmul.bf16.gmra.mxu0 %v1001
        %v1677 = vpop.f32.mrf.mxu0
        %v1678 = vadd.f32 0.0, %v1677
        %v1679 = vpop.f32.mrf.mxu0
        %1680 = vdwg.mxu0
        %vm1746 = vcmask 1046528
        %v1747 = vrot.slane %v1345, 1
        %v1748 = vrot.slane %v1347, 1
        %v1749 = vsel %vm1746, %v1747, %v1748
        %v1750 = vrot.slane %v1350, 1
        %v1751 = vsel %vm1746, %v1748, %v1750
        %v1752 = vrot.slane %v1352, 1
        %v1753 = vsel %vm1746, %v1750, %v1752
        %v1754 = vrot.slane %v1355, 1
        %v1755 = vsel %vm1746, %v1752, %v1754
        %v1756 = vrot.slane %v1357, 1
        %v1757 = vsel %vm1746, %v1754, %v1756
        %v1758 = vrot.slane %v1360, 1
        %v1759 = vsel %vm1746, %v1756, %v1758
        %v1760 = vrot.slane %v1362, 1
        %v1761 = vsel %vm1746, %v1758, %v1760
        %v1762 = vrot.slane %v1365, 1
        %v1763 = vsel %vm1746, %v1760, %v1762
        %v1764 = vrot.slane %v1367, 1
        %v1765 = vsel %vm1746, %v1762, %v1764
        %v1766 = vrot.slane %v1370, 1
        %v1767 = vsel %vm1746, %v1764, %v1766
        %v1768 = vrot.slane %v1372, 1
        %v1769 = vsel %vm1746, %v1766, %v1768
        %v1770 = vrot.slane %v1375, 1
        %v1771 = vsel %vm1746, %v1768, %v1770
        %v1772 = vrot.slane %v1377, 1
        %v1773 = vsel %vm1746, %v1770, %v1772
        %v1774 = vrot.slane %v1380, 1
        %v1775 = vsel %vm1746, %v1772, %v1774
        %v1776 = vrot.slane %v1382, 1
        %v1777 = vsel %vm1746, %v1774, %v1776
        %v1778 = vrot.slane %v1385, 1
        %v1779 = vsel %vm1746, %v1776, %v1778
        %v1780 = vrot.slane %v1387, 1
        %v1781 = vsel %vm1746, %v1778, %v1780
        %v1782 = vrot.slane %v1390, 1
        %v1783 = vsel %vm1746, %v1780, %v1782
        %v1784 = vrot.slane %v1392, 1
        %v1785 = vsel %vm1746, %v1782, %v1784
        %v1786 = vrot.slane %v1395, 1
        %v1787 = vsel %vm1746, %v1784, %v1786
        %v1788 = vrot.slane %v1397, 1
        %v1789 = vsel %vm1746, %v1786, %v1788
        %v1790 = vrot.slane %v1400, 1
        %v1791 = vsel %vm1746, %v1788, %v1790
        %v1792 = vrot.slane %v1402, 1
        %v1793 = vsel %vm1746, %v1790, %v1792
        %v1794 = vrot.slane %v1405, 1
        %v1795 = vsel %vm1746, %v1792, %v1794
        %v1796 = vrot.slane %v1407, 1
        %v1797 = vsel %vm1746, %v1794, %v1796
        %v1798 = vrot.slane %v1410, 1
        %v1799 = vsel %vm1746, %v1796, %v1798
        %v1800 = vrot.slane %v1412, 1
        %v1801 = vsel %vm1746, %v1798, %v1800
        %v1802 = vrot.slane %v1415, 1
        %v1803 = vsel %vm1746, %v1800, %v1802
        %v1804 = vrot.slane %v1417, 1
        %v1805 = vsel %vm1746, %v1802, %v1804
        %v1806 = vrot.slane %v1420, 1
        %v1807 = vsel %vm1746, %v1804, %v1806
        %v1808 = vrot.slane %v1422, 1
        %v1809 = vsel %vm1746, %v1806, %v1808
        %v1810 = vrot.slane %v1425, 1
        %v1811 = vsel %vm1746, %v1808, %v1810
        %v1812 = vrot.slane %v1427, 1
        %v1813 = vsel %vm1746, %v1810, %v1812
        %v1814 = vrot.slane %v1430, 1
        %v1815 = vsel %vm1746, %v1812, %v1814
        %v1816 = vrot.slane %v1432, 1
        %v1817 = vsel %vm1746, %v1814, %v1816
        %v1818 = vrot.slane %v1435, 1
        %v1819 = vsel %vm1746, %v1816, %v1818
        %v1820 = vrot.slane %v1437, 1
        %v1821 = vsel %vm1746, %v1818, %v1820
        %v1822 = vrot.slane %v1440, 1
        %v1823 = vsel %vm1746, %v1820, %v1822
        %v1824 = vrot.slane %v1442, 1
        %v1825 = vsel %vm1746, %v1822, %v1824
        %v1826 = vrot.slane %v1445, 1
        %v1827 = vsel %vm1746, %v1824, %v1826
        %v1828 = vrot.slane %v1447, 1
        %v1829 = vsel %vm1746, %v1826, %v1828
        %v1830 = vrot.slane %v1450, 1
        %v1831 = vsel %vm1746, %v1828, %v1830
        %v1832 = vrot.slane %v1452, 1
        %v1833 = vsel %vm1746, %v1830, %v1832
        %v1834 = vrot.slane %v1455, 1
        %v1835 = vsel %vm1746, %v1832, %v1834
        %v1836 = vrot.slane %v1457, 1
        %v1837 = vsel %vm1746, %v1834, %v1836
        %v1838 = vrot.slane %v1460, 1
        %v1839 = vsel %vm1746, %v1836, %v1838
        %v1840 = vrot.slane %v1462, 1
        %v1841 = vsel %vm1746, %v1838, %v1840
        %v1842 = vrot.slane %v1465, 1
        %v1843 = vsel %vm1746, %v1840, %v1842
        %v1844 = vrot.slane %v1467, 1
        %v1845 = vsel %vm1746, %v1842, %v1844
        %v1846 = vrot.slane %v1470, 1
        %v1847 = vsel %vm1746, %v1844, %v1846
        %v1848 = vrot.slane %v1472, 1
        %v1849 = vsel %vm1746, %v1846, %v1848
        %v1850 = vrot.slane %v1475, 1
        %v1851 = vsel %vm1746, %v1848, %v1850
        %v1852 = vrot.slane %v1477, 1
        %v1853 = vsel %vm1746, %v1850, %v1852
        %v1854 = vrot.slane %v1480, 1
        %v1855 = vsel %vm1746, %v1852, %v1854
        %v1856 = vrot.slane %v1482, 1
        %v1857 = vsel %vm1746, %v1854, %v1856
        %v1858 = vrot.slane %v1485, 1
        %v1859 = vsel %vm1746, %v1856, %v1858
        %v1860 = vrot.slane %v1487, 1
        %v1861 = vsel %vm1746, %v1858, %v1860
        %v1862 = vrot.slane %v1490, 1
        %v1863 = vsel %vm1746, %v1860, %v1862
        %v1864 = vrot.slane %v1492, 1
        %v1865 = vsel %vm1746, %v1862, %v1864
        %v1866 = vrot.slane %v1495, 1
        %v1867 = vsel %vm1746, %v1864, %v1866
        %v1868 = vrot.slane %v1497, 1
        %v1869 = vsel %vm1746, %v1866, %v1868
        %v1870 = vrot.slane %v1500, 1
        %v1871 = vsel %vm1746, %v1868, %v1870
        %v1872 = vrot.slane %v1502, 1
        %v1873 = vsel %vm1746, %v1870, %v1872
        %v1874 = vrot.slane %v1505, 1
        %v1875 = vsel %vm1746, %v1872, %v1874
        %v1940 = vadd.f32 %v1173, %v1749
        %v1941 = vadd.f32 %v1175, %v1751
        %v1942 = vadd.f32 %v1178, %v1753
        %v1943 = vadd.f32 %v1180, %v1755
        %v1944 = vadd.f32 %v1183, %v1757
        %v1945 = vadd.f32 %v1185, %v1759
        %v1946 = vadd.f32 %v1188, %v1761
        %v1947 = vadd.f32 %v1190, %v1763
        %v1948 = vadd.f32 %v1193, %v1765
        %v1949 = vadd.f32 %v1195, %v1767
        %v1950 = vadd.f32 %v1198, %v1769
        %v1951 = vadd.f32 %v1200, %v1771
        %v1952 = vadd.f32 %v1203, %v1773
        %v1953 = vadd.f32 %v1205, %v1775
        %v1954 = vadd.f32 %v1208, %v1777
        %v1955 = vadd.f32 %v1210, %v1779
        %v1956 = vadd.f32 %v1213, %v1781
        %v1957 = vadd.f32 %v1215, %v1783
        %v1958 = vadd.f32 %v1218, %v1785
        %v1959 = vadd.f32 %v1220, %v1787
        %v1960 = vadd.f32 %v1223, %v1789
        %v1961 = vadd.f32 %v1225, %v1791
        %v1962 = vadd.f32 %v1228, %v1793
        %v1963 = vadd.f32 %v1230, %v1795
        %v1964 = vadd.f32 %v1233, %v1797
        %v1965 = vadd.f32 %v1235, %v1799
        %v1966 = vadd.f32 %v1238, %v1801
        %v1967 = vadd.f32 %v1240, %v1803
        %v1968 = vadd.f32 %v1243, %v1805
        %v1969 = vadd.f32 %v1245, %v1807
        %v1970 = vadd.f32 %v1248, %v1809
        %v1971 = vadd.f32 %v1250, %v1811
        %v1972 = vadd.f32 %v1253, %v1813
        %v1973 = vadd.f32 %v1255, %v1815
        %v1974 = vadd.f32 %v1258, %v1817
        %v1975 = vadd.f32 %v1260, %v1819
        %v1976 = vadd.f32 %v1263, %v1821
        %v1977 = vadd.f32 %v1265, %v1823
        %v1978 = vadd.f32 %v1268, %v1825
        %v1979 = vadd.f32 %v1270, %v1827
        %v1980 = vadd.f32 %v1273, %v1829
        %v1981 = vadd.f32 %v1275, %v1831
        %v1982 = vadd.f32 %v1278, %v1833
        %v1983 = vadd.f32 %v1280, %v1835
        %v1984 = vadd.f32 %v1283, %v1837
        %v1985 = vadd.f32 %v1285, %v1839
        %v1986 = vadd.f32 %v1288, %v1841
        %v1987 = vadd.f32 %v1290, %v1843
        %v1988 = vadd.f32 %v1293, %v1845
        %v1989 = vadd.f32 %v1295, %v1847
        %v1990 = vadd.f32 %v1298, %v1849
        %v1991 = vadd.f32 %v1300, %v1851
        %v1992 = vadd.f32 %v1303, %v1853
        %v1993 = vadd.f32 %v1305, %v1855
        %v1994 = vadd.f32 %v1308, %v1857
        %v1995 = vadd.f32 %v1310, %v1859
        %v1996 = vadd.f32 %v1313, %v1861
        %v1997 = vadd.f32 %v1315, %v1863
        %v1998 = vadd.f32 %v1318, %v1865
        %v1999 = vadd.f32 %v1320, %v1867
        %v2000 = vadd.f32 %v1323, %v1869
        %v2001 = vadd.f32 %v1325, %v1871
        %v2002 = vadd.f32 %v1328, %v1873
        %v2003 = vadd.f32 %v1330, %v1875
        %vm2069 = vcmask 1045504
        %v2070 = vrot.slane %v1518, 2
        %v2071 = vrot.slane %v1520, 2
        %v2072 = vsel %vm2069, %v2070, %v2071
        %v2073 = vrot.slane %v1523, 2
        %v2074 = vsel %vm2069, %v2071, %v2073
        %v2075 = vrot.slane %v1525, 2
        %v2076 = vsel %vm2069, %v2073, %v2075
        %v2077 = vrot.slane %v1528, 2
        %v2078 = vsel %vm2069, %v2075, %v2077
        %v2079 = vrot.slane %v1530, 2
        %v2080 = vsel %vm2069, %v2077, %v2079
        %v2081 = vrot.slane %v1533, 2
        %v2082 = vsel %vm2069, %v2079, %v2081
        %v2083 = vrot.slane %v1535, 2
        %v2084 = vsel %vm2069, %v2081, %v2083
        %v2085 = vrot.slane %v1538, 2
        %v2086 = vsel %vm2069, %v2083, %v2085
        %v2087 = vrot.slane %v1540, 2
        %v2088 = vsel %vm2069, %v2085, %v2087
        %v2089 = vrot.slane %v1543, 2
        %v2090 = vsel %vm2069, %v2087, %v2089
        %v2091 = vrot.slane %v1545, 2
        %v2092 = vsel %vm2069, %v2089, %v2091
        %v2093 = vrot.slane %v1548, 2
        %v2094 = vsel %vm2069, %v2091, %v2093
        %v2095 = vrot.slane %v1550, 2
        %v2096 = vsel %vm2069, %v2093, %v2095
        %v2097 = vrot.slane %v1553, 2
        %v2098 = vsel %vm2069, %v2095, %v2097
        %v2099 = vrot.slane %v1555, 2
        %v2100 = vsel %vm2069, %v2097, %v2099
        %v2101 = vrot.slane %v1558, 2
        %v2102 = vsel %vm2069, %v2099, %v2101
        %v2103 = vrot.slane %v1560, 2
        %v2104 = vsel %vm2069, %v2101, %v2103
        %v2105 = vrot.slane %v1563, 2
        %v2106 = vsel %vm2069, %v2103, %v2105
        %v2107 = vrot.slane %v1565, 2
        %v2108 = vsel %vm2069, %v2105, %v2107
        %v2109 = vrot.slane %v1568, 2
        %v2110 = vsel %vm2069, %v2107, %v2109
        %v2111 = vrot.slane %v1570, 2
        %v2112 = vsel %vm2069, %v2109, %v2111
        %v2113 = vrot.slane %v1573, 2
        %v2114 = vsel %vm2069, %v2111, %v2113
        %v2115 = vrot.slane %v1575, 2
        %v2116 = vsel %vm2069, %v2113, %v2115
        %v2117 = vrot.slane %v1578, 2
        %v2118 = vsel %vm2069, %v2115, %v2117
        %v2119 = vrot.slane %v1580, 2
        %v2120 = vsel %vm2069, %v2117, %v2119
        %v2121 = vrot.slane %v1583, 2
        %v2122 = vsel %vm2069, %v2119, %v2121
        %v2123 = vrot.slane %v1585, 2
        %v2124 = vsel %vm2069, %v2121, %v2123
        %v2125 = vrot.slane %v1588, 2
        %v2126 = vsel %vm2069, %v2123, %v2125
        %v2127 = vrot.slane %v1590, 2
        %v2128 = vsel %vm2069, %v2125, %v2127
        %v2129 = vrot.slane %v1593, 2
        %v2130 = vsel %vm2069, %v2127, %v2129
        %v2131 = vrot.slane %v1595, 2
        %v2132 = vsel %vm2069, %v2129, %v2131
        %v2133 = vrot.slane %v1598, 2
        %v2134 = vsel %vm2069, %v2131, %v2133
        %v2135 = vrot.slane %v1600, 2
        %v2136 = vsel %vm2069, %v2133, %v2135
        %v2137 = vrot.slane %v1603, 2
        %v2138 = vsel %vm2069, %v2135, %v2137
        %v2139 = vrot.slane %v1605, 2
        %v2140 = vsel %vm2069, %v2137, %v2139
        %v2141 = vrot.slane %v1608, 2
        %v2142 = vsel %vm2069, %v2139, %v2141
        %v2143 = vrot.slane %v1610, 2
        %v2144 = vsel %vm2069, %v2141, %v2143
        %v2145 = vrot.slane %v1613, 2
        %v2146 = vsel %vm2069, %v2143, %v2145
        %v2147 = vrot.slane %v1615, 2
        %v2148 = vsel %vm2069, %v2145, %v2147
        %v2149 = vrot.slane %v1618, 2
        %v2150 = vsel %vm2069, %v2147, %v2149
        %v2151 = vrot.slane %v1620, 2
        %v2152 = vsel %vm2069, %v2149, %v2151
        %v2153 = vrot.slane %v1623, 2
        %v2154 = vsel %vm2069, %v2151, %v2153
        %v2155 = vrot.slane %v1625, 2
        %v2156 = vsel %vm2069, %v2153, %v2155
        %v2157 = vrot.slane %v1628, 2
        %v2158 = vsel %vm2069, %v2155, %v2157
        %v2159 = vrot.slane %v1630, 2
        %v2160 = vsel %vm2069, %v2157, %v2159
        %v2161 = vrot.slane %v1633, 2
        %v2162 = vsel %vm2069, %v2159, %v2161
        %v2163 = vrot.slane %v1635, 2
        %v2164 = vsel %vm2069, %v2161, %v2163
        %v2165 = vrot.slane %v1638, 2
        %v2166 = vsel %vm2069, %v2163, %v2165
        %v2167 = vrot.slane %v1640, 2
        %v2168 = vsel %vm2069, %v2165, %v2167
        %v2169 = vrot.slane %v1643, 2
        %v2170 = vsel %vm2069, %v2167, %v2169
        %v2171 = vrot.slane %v1645, 2
        %v2172 = vsel %vm2069, %v2169, %v2171
        %v2173 = vrot.slane %v1648, 2
        %v2174 = vsel %vm2069, %v2171, %v2173
        %v2175 = vrot.slane %v1650, 2
        %v2176 = vsel %vm2069, %v2173, %v2175
        %v2177 = vrot.slane %v1653, 2
        %v2178 = vsel %vm2069, %v2175, %v2177
        %v2179 = vrot.slane %v1655, 2
        %v2180 = vsel %vm2069, %v2177, %v2179
        %v2181 = vrot.slane %v1658, 2
        %v2182 = vsel %vm2069, %v2179, %v2181
        %v2183 = vrot.slane %v1660, 2
        %v2184 = vsel %vm2069, %v2181, %v2183
        %v2185 = vrot.slane %v1663, 2
        %v2186 = vsel %vm2069, %v2183, %v2185
        %v2187 = vrot.slane %v1665, 2
        %v2188 = vsel %vm2069, %v2185, %v2187
        %v2189 = vrot.slane %v1668, 2
        %v2190 = vsel %vm2069, %v2187, %v2189
        %v2191 = vrot.slane %v1670, 2
        %v2192 = vsel %vm2069, %v2189, %v2191
        %v2193 = vrot.slane %v1673, 2
        %v2194 = vsel %vm2069, %v2191, %v2193
        %v2195 = vrot.slane %v1675, 2
        %v2196 = vsel %vm2069, %v2193, %v2195
        %v2197 = vrot.slane %v1678, 2
        %v2198 = vsel %vm2069, %v2195, %v2197
        %v2263 = vadd.f32 %v1940, %v2072
        %v2264 = vadd.f32 %v1941, %v2074
        %v2265 = vadd.f32 %v1942, %v2076
        %v2266 = vadd.f32 %v1943, %v2078
        %v2267 = vadd.f32 %v1944, %v2080
        %v2268 = vadd.f32 %v1945, %v2082
        %v2269 = vadd.f32 %v1946, %v2084
        %v2270 = vadd.f32 %v1947, %v2086
        %v2271 = vadd.f32 %v1948, %v2088
        %v2272 = vadd.f32 %v1949, %v2090
        %v2273 = vadd.f32 %v1950, %v2092
        %v2274 = vadd.f32 %v1951, %v2094
        %v2275 = vadd.f32 %v1952, %v2096
        %v2276 = vadd.f32 %v1953, %v2098
        %v2277 = vadd.f32 %v1954, %v2100
        %v2278 = vadd.f32 %v1955, %v2102
        %v2279 = vadd.f32 %v1956, %v2104
        %v2280 = vadd.f32 %v1957, %v2106
        %v2281 = vadd.f32 %v1958, %v2108
        %v2282 = vadd.f32 %v1959, %v2110
        %v2283 = vadd.f32 %v1960, %v2112
        %v2284 = vadd.f32 %v1961, %v2114
        %v2285 = vadd.f32 %v1962, %v2116
        %v2286 = vadd.f32 %v1963, %v2118
        %v2287 = vadd.f32 %v1964, %v2120
        %v2288 = vadd.f32 %v1965, %v2122
        %v2289 = vadd.f32 %v1966, %v2124
        %v2290 = vadd.f32 %v1967, %v2126
        %v2291 = vadd.f32 %v1968, %v2128
        %v2292 = vadd.f32 %v1969, %v2130
        %v2293 = vadd.f32 %v1970, %v2132
        %v2294 = vadd.f32 %v1971, %v2134
        %v2295 = vadd.f32 %v1972, %v2136
        %v2296 = vadd.f32 %v1973, %v2138
        %v2297 = vadd.f32 %v1974, %v2140
        %v2298 = vadd.f32 %v1975, %v2142
        %v2299 = vadd.f32 %v1976, %v2144
        %v2300 = vadd.f32 %v1977, %v2146
        %v2301 = vadd.f32 %v1978, %v2148
        %v2302 = vadd.f32 %v1979, %v2150
        %v2303 = vadd.f32 %v1980, %v2152
        %v2304 = vadd.f32 %v1981, %v2154
        %v2305 = vadd.f32 %v1982, %v2156
        %v2306 = vadd.f32 %v1983, %v2158
        %v2307 = vadd.f32 %v1984, %v2160
        %v2308 = vadd.f32 %v1985, %v2162
        %v2309 = vadd.f32 %v1986, %v2164
        %v2310 = vadd.f32 %v1987, %v2166
        %v2311 = vadd.f32 %v1988, %v2168
        %v2312 = vadd.f32 %v1989, %v2170
        %v2313 = vadd.f32 %v1990, %v2172
        %v2314 = vadd.f32 %v1991, %v2174
        %v2315 = vadd.f32 %v1992, %v2176
        %v2316 = vadd.f32 %v1993, %v2178
        %v2317 = vadd.f32 %v1994, %v2180
        %v2318 = vadd.f32 %v1995, %v2182
        %v2319 = vadd.f32 %v1996, %v2184
        %v2320 = vadd.f32 %v1997, %v2186
        %v2321 = vadd.f32 %v1998, %v2188
        %v2322 = vadd.f32 %v1999, %v2190
        %v2323 = vadd.f32 %v2000, %v2192
        %v2324 = vadd.f32 %v2001, %v2194
        %v2325 = vadd.f32 %v2002, %v2196
        %v2326 = vadd.f32 %v2003, %v2198
        %v2327 = vld [vmem:[%s665] sm:$0xff]
        %v2328 = vld [vmem:[%s665 + $0x8] sm:$0xff]
        %v2329 = vld [vmem:[%s665 + $0x10] sm:$0xff]
        %v2330 = vld [vmem:[%s665 + $0x18] sm:$0xff]
        %v2331 = vld [vmem:[%s665 + $0x20] sm:$0xff]
        %v2332 = vld [vmem:[%s665 + $0x28] sm:$0xff]
        %v2333 = vld [vmem:[%s665 + $0x30] sm:$0xff]
        %v2334 = vld [vmem:[%s665 + $0x38] sm:$0xff]
        %v2335 = vld [vmem:[%s665 + $0x40] sm:$0xff]
        %v2336 = vld [vmem:[%s665 + $0x48] sm:$0xff]
        %v2337 = vld [vmem:[%s665 + $0x50] sm:$0xff]
        %v2338 = vld [vmem:[%s665 + $0x58] sm:$0xff]
        %v2339 = vld [vmem:[%s665 + $0x60] sm:$0xff]
        %v2340 = vld [vmem:[%s665 + $0x68] sm:$0xff]
        %v2341 = vld [vmem:[%s665 + $0x70] sm:$0xff]
        %v2342 = vld [vmem:[%s665 + $0x78] sm:$0xff]
        %v2343 = vld [vmem:[%s665 + $0x80] sm:$0xff]
        %v2344 = vld [vmem:[%s665 + $0x88] sm:$0xff]
        %v2345 = vld [vmem:[%s665 + $0x90] sm:$0xff]
        %v2346 = vld [vmem:[%s665 + $0x98] sm:$0xff]
        %v2347 = vld [vmem:[%s665 + $0xa0] sm:$0xff]
        %v2348 = vld [vmem:[%s665 + $0xa8] sm:$0xff]
        %v2349 = vld [vmem:[%s665 + $0xb0] sm:$0xff]
        %v2350 = vld [vmem:[%s665 + $0xb8] sm:$0xff]
        %v2351 = vld [vmem:[%s665 + $0xc0] sm:$0xff]
        %v2352 = vld [vmem:[%s665 + $0xc8] sm:$0xff]
        %v2353 = vld [vmem:[%s665 + $0xd0] sm:$0xff]
        %v2354 = vld [vmem:[%s665 + $0xd8] sm:$0xff]
        %v2355 = vld [vmem:[%s665 + $0xe0] sm:$0xff]
        %v2356 = vld [vmem:[%s665 + $0xe8] sm:$0xff]
        %v2357 = vld [vmem:[%s665 + $0xf0] sm:$0xff]
        %v2358 = vld [vmem:[%s665 + $0xf8] sm:$0xff]
        %v2359 = vld [vmem:[%s665 + $0x100] sm:$0xff]
        %v2360 = vld [vmem:[%s665 + $0x108] sm:$0xff]
        %v2361 = vld [vmem:[%s665 + $0x110] sm:$0xff]
        %v2362 = vld [vmem:[%s665 + $0x118] sm:$0xff]
        %v2363 = vld [vmem:[%s665 + $0x120] sm:$0xff]
        %v2364 = vld [vmem:[%s665 + $0x128] sm:$0xff]
        %v2365 = vld [vmem:[%s665 + $0x130] sm:$0xff]
        %v2366 = vld [vmem:[%s665 + $0x138] sm:$0xff]
        %v2367 = vld [vmem:[%s665 + $0x140] sm:$0xff]
        %v2368 = vld [vmem:[%s665 + $0x148] sm:$0xff]
        %v2369 = vld [vmem:[%s665 + $0x150] sm:$0xff]
        %v2370 = vld [vmem:[%s665 + $0x158] sm:$0xff]
        %v2371 = vld [vmem:[%s665 + $0x160] sm:$0xff]
        %v2372 = vld [vmem:[%s665 + $0x168] sm:$0xff]
        %v2373 = vld [vmem:[%s665 + $0x170] sm:$0xff]
        %v2374 = vld [vmem:[%s665 + $0x178] sm:$0xff]
        %v2375 = vld [vmem:[%s665 + $0x180] sm:$0xff]
        %v2376 = vld [vmem:[%s665 + $0x188] sm:$0xff]
        %v2377 = vld [vmem:[%s665 + $0x190] sm:$0xff]
        %v2378 = vld [vmem:[%s665 + $0x198] sm:$0xff]
        %v2379 = vld [vmem:[%s665 + $0x1a0] sm:$0xff]
        %v2380 = vld [vmem:[%s665 + $0x1a8] sm:$0xff]
        %v2381 = vld [vmem:[%s665 + $0x1b0] sm:$0xff]
        %v2382 = vld [vmem:[%s665 + $0x1b8] sm:$0xff]
        %v2383 = vld [vmem:[%s665 + $0x1c0] sm:$0xff]
        %v2384 = vld [vmem:[%s665 + $0x1c8] sm:$0xff]
        %v2385 = vld [vmem:[%s665 + $0x1d0] sm:$0xff]
        %v2386 = vld [vmem:[%s665 + $0x1d8] sm:$0xff]
        %v2387 = vld [vmem:[%s665 + $0x1e0] sm:$0xff]
        %v2388 = vld [vmem:[%s665 + $0x1e8] sm:$0xff]
        %v2389 = vld [vmem:[%s665 + $0x1f0] sm:$0xff]
        %v2390 = vld [vmem:[%s665 + $0x1f8] sm:$0xff]
        %v2391 = vadd.f32 %v2327, %v2263
        %v2392 = vadd.f32 %v2328, %v2264
        %v2393 = vadd.f32 %v2329, %v2265
        %v2394 = vadd.f32 %v2330, %v2266
        %v2395 = vadd.f32 %v2331, %v2267
        %v2396 = vadd.f32 %v2332, %v2268
        %v2397 = vadd.f32 %v2333, %v2269
        %v2398 = vadd.f32 %v2334, %v2270
        %v2399 = vadd.f32 %v2335, %v2271
        %v2400 = vadd.f32 %v2336, %v2272
        %v2401 = vadd.f32 %v2337, %v2273
        %v2402 = vadd.f32 %v2338, %v2274
        %v2403 = vadd.f32 %v2339, %v2275
        %v2404 = vadd.f32 %v2340, %v2276
        %v2405 = vadd.f32 %v2341, %v2277
        %v2406 = vadd.f32 %v2342, %v2278
        %v2407 = vadd.f32 %v2343, %v2279
        %v2408 = vadd.f32 %v2344, %v2280
        %v2409 = vadd.f32 %v2345, %v2281
        %v2410 = vadd.f32 %v2346, %v2282
        %v2411 = vadd.f32 %v2347, %v2283
        %v2412 = vadd.f32 %v2348, %v2284
        %v2413 = vadd.f32 %v2349, %v2285
        %v2414 = vadd.f32 %v2350, %v2286
        %v2415 = vadd.f32 %v2351, %v2287
        %v2416 = vadd.f32 %v2352, %v2288
        %v2417 = vadd.f32 %v2353, %v2289
        %v2418 = vadd.f32 %v2354, %v2290
        %v2419 = vadd.f32 %v2355, %v2291
        %v2420 = vadd.f32 %v2356, %v2292
        %v2421 = vadd.f32 %v2357, %v2293
        %v2422 = vadd.f32 %v2358, %v2294
        %v2423 = vadd.f32 %v2359, %v2295
        %v2424 = vadd.f32 %v2360, %v2296
        %v2425 = vadd.f32 %v2361, %v2297
        %v2426 = vadd.f32 %v2362, %v2298
        %v2427 = vadd.f32 %v2363, %v2299
        %v2428 = vadd.f32 %v2364, %v2300
        %v2429 = vadd.f32 %v2365, %v2301
        %v2430 = vadd.f32 %v2366, %v2302
        %v2431 = vadd.f32 %v2367, %v2303
        %v2432 = vadd.f32 %v2368, %v2304
        %v2433 = vadd.f32 %v2369, %v2305
        %v2434 = vadd.f32 %v2370, %v2306
        %v2435 = vadd.f32 %v2371, %v2307
        %v2436 = vadd.f32 %v2372, %v2308
        %v2437 = vadd.f32 %v2373, %v2309
        %v2438 = vadd.f32 %v2374, %v2310
        %v2439 = vadd.f32 %v2375, %v2311
        %v2440 = vadd.f32 %v2376, %v2312
        %v2441 = vadd.f32 %v2377, %v2313
        %v2442 = vadd.f32 %v2378, %v2314
        %v2443 = vadd.f32 %v2379, %v2315
        %v2444 = vadd.f32 %v2380, %v2316
        %v2445 = vadd.f32 %v2381, %v2317
        %v2446 = vadd.f32 %v2382, %v2318
        %v2447 = vadd.f32 %v2383, %v2319
        %v2448 = vadd.f32 %v2384, %v2320
        %v2449 = vadd.f32 %v2385, %v2321
        %v2450 = vadd.f32 %v2386, %v2322
        %v2451 = vadd.f32 %v2387, %v2323
        %v2452 = vadd.f32 %v2388, %v2324
        %v2453 = vadd.f32 %v2389, %v2325
        %v2454 = vadd.f32 %v2390, %v2326
        %2455 = vst [vmem:[%s665] sm:$0xff] %v2391
        %2456 = vst [vmem:[%s665 + $0x8] sm:$0xff] %v2392
        %2457 = vst [vmem:[%s665 + $0x10] sm:$0xff] %v2393
        %2458 = vst [vmem:[%s665 + $0x18] sm:$0xff] %v2394
        %2459 = vst [vmem:[%s665 + $0x20] sm:$0xff] %v2395
        %2460 = vst [vmem:[%s665 + $0x28] sm:$0xff] %v2396
        %2461 = vst [vmem:[%s665 + $0x30] sm:$0xff] %v2397
        %2462 = vst [vmem:[%s665 + $0x38] sm:$0xff] %v2398
        %2463 = vst [vmem:[%s665 + $0x40] sm:$0xff] %v2399
        %2464 = vst [vmem:[%s665 + $0x48] sm:$0xff] %v2400
        %2465 = vst [vmem:[%s665 + $0x50] sm:$0xff] %v2401
        %2466 = vst [vmem:[%s665 + $0x58] sm:$0xff] %v2402
        %2467 = vst [vmem:[%s665 + $0x60] sm:$0xff] %v2403
        %2468 = vst [vmem:[%s665 + $0x68] sm:$0xff] %v2404
        %2469 = vst [vmem:[%s665 + $0x70] sm:$0xff] %v2405
        %2470 = vst [vmem:[%s665 + $0x78] sm:$0xff] %v2406
        %2471 = vst [vmem:[%s665 + $0x80] sm:$0xff] %v2407
        %2472 = vst [vmem:[%s665 + $0x88] sm:$0xff] %v2408
        %2473 = vst [vmem:[%s665 + $0x90] sm:$0xff] %v2409
        %2474 = vst [vmem:[%s665 + $0x98] sm:$0xff] %v2410
        %2475 = vst [vmem:[%s665 + $0xa0] sm:$0xff] %v2411
        %2476 = vst [vmem:[%s665 + $0xa8] sm:$0xff] %v2412
        %2477 = vst [vmem:[%s665 + $0xb0] sm:$0xff] %v2413
        %2478 = vst [vmem:[%s665 + $0xb8] sm:$0xff] %v2414
        %2479 = vst [vmem:[%s665 + $0xc0] sm:$0xff] %v2415
        %2480 = vst [vmem:[%s665 + $0xc8] sm:$0xff] %v2416
        %2481 = vst [vmem:[%s665 + $0xd0] sm:$0xff] %v2417
        %2482 = vst [vmem:[%s665 + $0xd8] sm:$0xff] %v2418
        %2483 = vst [vmem:[%s665 + $0xe0] sm:$0xff] %v2419
        %2484 = vst [vmem:[%s665 + $0xe8] sm:$0xff] %v2420
        %2485 = vst [vmem:[%s665 + $0xf0] sm:$0xff] %v2421
        %2486 = vst [vmem:[%s665 + $0xf8] sm:$0xff] %v2422
        %2487 = vst [vmem:[%s665 + $0x100] sm:$0xff] %v2423
        %2488 = vst [vmem:[%s665 + $0x108] sm:$0xff] %v2424
        %2489 = vst [vmem:[%s665 + $0x110] sm:$0xff] %v2425
        %2490 = vst [vmem:[%s665 + $0x118] sm:$0xff] %v2426
        %2491 = vst [vmem:[%s665 + $0x120] sm:$0xff] %v2427
        %2492 = vst [vmem:[%s665 + $0x128] sm:$0xff] %v2428
        %2493 = vst [vmem:[%s665 + $0x130] sm:$0xff] %v2429
        %2494 = vst [vmem:[%s665 + $0x138] sm:$0xff] %v2430
        %2495 = vst [vmem:[%s665 + $0x140] sm:$0xff] %v2431
        %2496 = vst [vmem:[%s665 + $0x148] sm:$0xff] %v2432
        %2497 = vst [vmem:[%s665 + $0x150] sm:$0xff] %v2433
        %2498 = vst [vmem:[%s665 + $0x158] sm:$0xff] %v2434
        %2499 = vst [vmem:[%s665 + $0x160] sm:$0xff] %v2435
        %2500 = vst [vmem:[%s665 + $0x168] sm:$0xff] %v2436
        %2501 = vst [vmem:[%s665 + $0x170] sm:$0xff] %v2437
        %2502 = vst [vmem:[%s665 + $0x178] sm:$0xff] %v2438
        %2503 = vst [vmem:[%s665 + $0x180] sm:$0xff] %v2439
        %2504 = vst [vmem:[%s665 + $0x188] sm:$0xff] %v2440
        %2505 = vst [vmem:[%s665 + $0x190] sm:$0xff] %v2441
        %2506 = vst [vmem:[%s665 + $0x198] sm:$0xff] %v2442
        %2507 = vst [vmem:[%s665 + $0x1a0] sm:$0xff] %v2443
        %2508 = vst [vmem:[%s665 + $0x1a8] sm:$0xff] %v2444
        %2509 = vst [vmem:[%s665 + $0x1b0] sm:$0xff] %v2445
        %2510 = vst [vmem:[%s665 + $0x1b8] sm:$0xff] %v2446
        %2511 = vst [vmem:[%s665 + $0x1c0] sm:$0xff] %v2447
        %2512 = vst [vmem:[%s665 + $0x1c8] sm:$0xff] %v2448
        %2513 = vst [vmem:[%s665 + $0x1d0] sm:$0xff] %v2449
        %2514 = vst [vmem:[%s665 + $0x1d8] sm:$0xff] %v2450
        %2515 = vst [vmem:[%s665 + $0x1e0] sm:$0xff] %v2451
        %2516 = vst [vmem:[%s665 + $0x1e8] sm:$0xff] %v2452
        %2517 = vst [vmem:[%s665 + $0x1f0] sm:$0xff] %v2453
        %2518 = vst [vmem:[%s665 + $0x1f8] sm:$0xff] %v2454
        %v2519 = vld [vmem:[%s617 + $0x10] sm:$0xf]
        %v2520 = vld [vmem:[%s617 + $0x14] sm:$0xf]
        %v2521 = vld [vmem:[%s617 + $0x18] sm:$0xf]
        %v2522 = vld [vmem:[%s617 + $0x1c] sm:$0xf]
        %v2523 = vld [vmem:[%s617 + $0x20] sm:$0xf]
        %v2524 = vld [vmem:[%s617 + $0x24] sm:$0xf]
        %v2525 = vld [vmem:[%s617 + $0x28] sm:$0xf]
        %v2526 = vld [vmem:[%s617 + $0x2c] sm:$0xf]
        %v2527 = vld [vmem:[%s617 + $0x30] sm:$0xf]
        %v2528 = vld [vmem:[%s617 + $0x34] sm:$0xf]
        %v2529 = vld [vmem:[%s617 + $0x38] sm:$0xf]
        %v2530 = vld [vmem:[%s617 + $0x3c] sm:$0xf]
        %v2531 = vld [vmem:[%s617 + $0x40] sm:$0xf]
        %v2532 = vld [vmem:[%s617 + $0x44] sm:$0xf]
        %v2533 = vld [vmem:[%s617 + $0x48] sm:$0xf]
        %v2534 = vld [vmem:[%s617 + $0x4c] sm:$0xf]
        %v2535 = vld [vmem:[%s617 + $0x50] sm:$0xf]
        %v2536 = vld [vmem:[%s617 + $0x54] sm:$0xf]
        %v2537 = vld [vmem:[%s617 + $0x58] sm:$0xf]
        %v2538 = vld [vmem:[%s617 + $0x5c] sm:$0xf]
        %v2539 = vld [vmem:[%s617 + $0x60] sm:$0xf]
        %v2540 = vld [vmem:[%s617 + $0x64] sm:$0xf]
        %v2541 = vld [vmem:[%s617 + $0x68] sm:$0xf]
        %v2542 = vld [vmem:[%s617 + $0x6c] sm:$0xf]
        %v2543 = vld [vmem:[%s617 + $0x70] sm:$0xf]
        %v2544 = vld [vmem:[%s617 + $0x74] sm:$0xf]
        %v2545 = vld [vmem:[%s617 + $0x78] sm:$0xf]
        %v2546 = vld [vmem:[%s617 + $0x7c] sm:$0xf]
        %v2547 = vld [vmem:[%s617 + $0x80] sm:$0xf]
        %v2548 = vld [vmem:[%s617 + $0x84] sm:$0xf]
        %v2549 = vld [vmem:[%s617 + $0x88] sm:$0xf]
        %v2550 = vld [vmem:[%s617 + $0x8c] sm:$0xf]
        %v2551 = vld [vmem:[%s617 + $0x90] sm:$0xf]
        %v2552 = vld [vmem:[%s617 + $0x94] sm:$0xf]
        %v2553 = vld [vmem:[%s617 + $0x98] sm:$0xf]
        %v2554 = vld [vmem:[%s617 + $0x9c] sm:$0xf]
        %v2555 = vld [vmem:[%s617 + $0xa0] sm:$0xf]
        %v2556 = vld [vmem:[%s617 + $0xa4] sm:$0xf]
        %v2557 = vld [vmem:[%s617 + $0xa8] sm:$0xf]
        %v2558 = vld [vmem:[%s617 + $0xac] sm:$0xf]
        %v2559 = vld [vmem:[%s617 + $0xb0] sm:$0xf]
        %v2560 = vld [vmem:[%s617 + $0xb4] sm:$0xf]
        %v2561 = vld [vmem:[%s617 + $0xb8] sm:$0xf]
        %v2562 = vld [vmem:[%s617 + $0xbc] sm:$0xf]
        %v2563 = vld [vmem:[%s617 + $0xc0] sm:$0xf]
        %v2564 = vld [vmem:[%s617 + $0xc4] sm:$0xf]
        %v2565 = vld [vmem:[%s617 + $0xc8] sm:$0xf]
        %v2566 = vld [vmem:[%s617 + $0xcc] sm:$0xf]
        %v2567 = vld [vmem:[%s617 + $0xd0] sm:$0xf]
        %v2568 = vld [vmem:[%s617 + $0xd4] sm:$0xf]
        %v2569 = vld [vmem:[%s617 + $0xd8] sm:$0xf]
        %v2570 = vld [vmem:[%s617 + $0xdc] sm:$0xf]
        %v2571 = vld [vmem:[%s617 + $0xe0] sm:$0xf]
        %v2572 = vld [vmem:[%s617 + $0xe4] sm:$0xf]
        %v2573 = vld [vmem:[%s617 + $0xe8] sm:$0xf]
        %v2574 = vld [vmem:[%s617 + $0xec] sm:$0xf]
        %v2575 = vld [vmem:[%s617 + $0xf0] sm:$0xf]
        %v2576 = vld [vmem:[%s617 + $0xf4] sm:$0xf]
        %v2577 = vld [vmem:[%s617 + $0xf8] sm:$0xf]
        %v2578 = vld [vmem:[%s617 + $0xfc] sm:$0xf]
        %v2579 = vld [vmem:[%s617 + $0x100] sm:$0xf]
        %v2580 = vld [vmem:[%s617 + $0x104] sm:$0xf]
        %v2581 = vld [vmem:[%s617 + $0x108] sm:$0xf]
        %v2582 = vld [vmem:[%s617 + $0x10c] sm:$0xf]
        %v2583 = vld [vmem:[%s617 + $0x110] sm:$0xf]
        %v2584 = vld [vmem:[%s617 + $0x114] sm:$0xf]
        %s2585 = scalar_lea.vmem %s660, 192
        %v2586 = vld [vmem:[%s2585] sm:$0xff]
        %v2587 = vld [vmem:[%s2585 + $0x8] sm:$0xf]
        %v2588 = vld [vmem:[%s2585 + $0xc] sm:$0xff]
        %v2589 = vld [vmem:[%s2585 + $0x14] sm:$0xf]
        %v2590 = vld [vmem:[%s2585 + $0x18] sm:$0xff]
        %v2591 = vld [vmem:[%s2585 + $0x20] sm:$0xf]
        %v2592 = vld [vmem:[%s2585 + $0x24] sm:$0xff]
        %v2593 = vld [vmem:[%s2585 + $0x2c] sm:$0xf]
        %v2594 = vld [vmem:[%s2585 + $0x30] sm:$0xff]
        %v2595 = vld [vmem:[%s2585 + $0x38] sm:$0xf]
        %v2596 = vld [vmem:[%s2585 + $0x3c] sm:$0xff]
        %v2597 = vld [vmem:[%s2585 + $0x44] sm:$0xf]
        %v2598 = vld [vmem:[%s2585 + $0x48] sm:$0xff]
        %v2599 = vld [vmem:[%s2585 + $0x50] sm:$0xf]
        %v2600 = vld [vmem:[%s2585 + $0x54] sm:$0xff]
        %v2601 = vld [vmem:[%s2585 + $0x5c] sm:$0xf]
        %v2602 = vld [vmem:[%s2585 + $0x60] sm:$0xff]
        %v2603 = vld [vmem:[%s2585 + $0x68] sm:$0xf]
        %v2604 = vld [vmem:[%s2585 + $0x6c] sm:$0xff]
        %v2605 = vld [vmem:[%s2585 + $0x74] sm:$0xf]
        %v2606 = vld [vmem:[%s2585 + $0x78] sm:$0xff]
        %v2607 = vld [vmem:[%s2585 + $0x80] sm:$0xf]
        %v2608 = vld [vmem:[%s2585 + $0x84] sm:$0xff]
        %v2609 = vld [vmem:[%s2585 + $0x8c] sm:$0xf]
        %v2610 = vld [vmem:[%s2585 + $0x90] sm:$0xff]
        %v2611 = vld [vmem:[%s2585 + $0x98] sm:$0xf]
        %v2612 = vld [vmem:[%s2585 + $0x9c] sm:$0xff]
        %v2613 = vld [vmem:[%s2585 + $0xa4] sm:$0xf]
        %v2614 = vld [vmem:[%s2585 + $0xa8] sm:$0xff]
        %v2615 = vld [vmem:[%s2585 + $0xb0] sm:$0xf]
        %v2616 = vld [vmem:[%s2585 + $0xb4] sm:$0xff]
        %v2617 = vld [vmem:[%s2585 + $0xbc] sm:$0xf]
        %v2684 = vunpack.c.l.b16 %v2519
        %v2685 = vunpack.c.l.b16 %v2520
        %v2686 = vunpack.c.l.b16 %v2521
        %v2687 = vunpack.c.l.b16 %v2522
        %v2688 = vunpack.c.l.b16 %v2523
        %v2689 = vunpack.c.l.b16 %v2524
        %v2690 = vunpack.c.l.b16 %v2525
        %v2691 = vunpack.c.l.b16 %v2526
        %v2692 = vunpack.c.l.b16 %v2527
        %v2693 = vunpack.c.l.b16 %v2528
        %v2694 = vunpack.c.l.b16 %v2529
        %v2695 = vunpack.c.l.b16 %v2530
        %v2696 = vunpack.c.l.b16 %v2531
        %v2697 = vunpack.c.l.b16 %v2532
        %v2698 = vunpack.c.l.b16 %v2533
        %v2699 = vunpack.c.l.b16 %v2534
        %v2700 = vunpack.c.l.b16 %v2535
        %v2701 = vunpack.c.l.b16 %v2536
        %v2702 = vunpack.c.l.b16 %v2537
        %v2703 = vunpack.c.l.b16 %v2538
        %v2704 = vunpack.c.l.b16 %v2539
        %v2705 = vunpack.c.l.b16 %v2540
        %v2706 = vunpack.c.l.b16 %v2541
        %v2707 = vunpack.c.l.b16 %v2542
        %v2708 = vunpack.c.l.b16 %v2543
        %v2709 = vunpack.c.l.b16 %v2544
        %v2710 = vunpack.c.l.b16 %v2545
        %v2711 = vunpack.c.l.b16 %v2546
        %v2712 = vunpack.c.l.b16 %v2547
        %v2713 = vunpack.c.l.b16 %v2548
        %v2714 = vunpack.c.l.b16 %v2549
        %v2715 = vunpack.c.l.b16 %v2550
        %v2716 = vunpack.c.l.b16 %v2551
        %v2717 = vunpack.c.l.b16 %v2552
        %v2718 = vunpack.c.l.b16 %v2553
        %v2719 = vunpack.c.l.b16 %v2554
        %v2720 = vunpack.c.l.b16 %v2555
        %v2721 = vunpack.c.l.b16 %v2556
        %v2722 = vunpack.c.l.b16 %v2557
        %v2723 = vunpack.c.l.b16 %v2558
        %v2724 = vunpack.c.l.b16 %v2559
        %v2725 = vunpack.c.l.b16 %v2560
        %v2726 = vunpack.c.l.b16 %v2561
        %v2727 = vunpack.c.l.b16 %v2562
        %v2728 = vunpack.c.l.b16 %v2563
        %v2729 = vunpack.c.l.b16 %v2564
        %v2730 = vunpack.c.l.b16 %v2565
        %v2731 = vunpack.c.l.b16 %v2566
        %v2732 = vunpack.c.l.b16 %v2567
        %v2733 = vunpack.c.l.b16 %v2568
        %v2734 = vunpack.c.l.b16 %v2569
        %v2735 = vunpack.c.l.b16 %v2570
        %v2736 = vunpack.c.l.b16 %v2571
        %v2737 = vunpack.c.l.b16 %v2572
        %v2738 = vunpack.c.l.b16 %v2573
        %v2739 = vunpack.c.l.b16 %v2574
        %v2740 = vunpack.c.l.b16 %v2575
        %v2741 = vunpack.c.l.b16 %v2576
        %v2742 = vunpack.c.l.b16 %v2577
        %v2743 = vunpack.c.l.b16 %v2578
        %v2744 = vunpack.c.l.b16 %v2579
        %v2745 = vunpack.c.l.b16 %v2580
        %v2746 = vunpack.c.l.b16 %v2581
        %v2747 = vunpack.c.l.b16 %v2582
        %v2748 = vunpack.c.l.b16 %v2583
        %v2749 = vunpack.c.l.b16 %v2584
        %v2750 = vpack.c.b16 %v2685, %v2684
        %v2751 = vpack.c.b16 %v2687, %v2686
        %v2752 = vpack.c.b16 %v2689, %v2688
        %v2753 = vpack.c.b16 %v2691, %v2690
        %v2754 = vpack.c.b16 %v2693, %v2692
        %v2755 = vpack.c.b16 %v2695, %v2694
        %v2756 = vpack.c.b16 %v2697, %v2696
        %v2757 = vpack.c.b16 %v2699, %v2698
        %v2758 = vpack.c.b16 %v2701, %v2700
        %v2759 = vpack.c.b16 %v2703, %v2702
        %v2760 = vpack.c.b16 %v2705, %v2704
        %v2761 = vpack.c.b16 %v2707, %v2706
        %v2762 = vpack.c.b16 %v2709, %v2708
        %v2763 = vpack.c.b16 %v2711, %v2710
        %v2764 = vpack.c.b16 %v2713, %v2712
        %v2765 = vpack.c.b16 %v2715, %v2714
        %v2766 = vpack.c.b16 %v2717, %v2716
        %v2767 = vpack.c.b16 %v2719, %v2718
        %v2768 = vpack.c.b16 %v2721, %v2720
        %v2769 = vpack.c.b16 %v2723, %v2722
        %v2770 = vpack.c.b16 %v2725, %v2724
        %v2771 = vpack.c.b16 %v2727, %v2726
        %v2772 = vpack.c.b16 %v2729, %v2728
        %v2773 = vpack.c.b16 %v2731, %v2730
        %v2774 = vpack.c.b16 %v2733, %v2732
        %v2775 = vpack.c.b16 %v2735, %v2734
        %v2776 = vpack.c.b16 %v2737, %v2736
        %v2777 = vpack.c.b16 %v2739, %v2738
        %v2778 = vpack.c.b16 %v2741, %v2740
        %v2779 = vpack.c.b16 %v2743, %v2742
        %v2780 = vpack.c.b16 %v2745, %v2744
        %v2781 = vpack.c.b16 %v2747, %v2746
        %v2782 = vpack.c.b16 %v2749, %v2748
        %v2848 = vunpack.c.l.b16 %v2586
        %v2849 = vunpack.c.h.b16 %v2586
        %v2850 = vunpack.c.l.b16 %v2587
        %v2851 = vunpack.c.l.b16 %v2588
        %v2852 = vunpack.c.h.b16 %v2588
        %v2853 = vunpack.c.l.b16 %v2589
        %v2854 = vunpack.c.l.b16 %v2590
        %v2855 = vunpack.c.h.b16 %v2590
        %v2856 = vunpack.c.l.b16 %v2591
        %v2857 = vunpack.c.l.b16 %v2592
        %v2858 = vunpack.c.h.b16 %v2592
        %v2859 = vunpack.c.l.b16 %v2593
        %v2860 = vunpack.c.l.b16 %v2594
        %v2861 = vunpack.c.h.b16 %v2594
        %v2862 = vunpack.c.l.b16 %v2595
        %v2863 = vunpack.c.l.b16 %v2596
        %v2864 = vunpack.c.h.b16 %v2596
        %v2865 = vunpack.c.l.b16 %v2597
        %v2866 = vunpack.c.l.b16 %v2598
        %v2867 = vunpack.c.h.b16 %v2598
        %v2868 = vunpack.c.l.b16 %v2599
        %v2869 = vunpack.c.l.b16 %v2600
        %v2870 = vunpack.c.h.b16 %v2600
        %v2871 = vunpack.c.l.b16 %v2601
        %v2872 = vunpack.c.l.b16 %v2602
        %v2873 = vunpack.c.h.b16 %v2602
        %v2874 = vunpack.c.l.b16 %v2603
        %v2875 = vunpack.c.l.b16 %v2604
        %v2876 = vunpack.c.h.b16 %v2604
        %v2877 = vunpack.c.l.b16 %v2605
        %v2878 = vunpack.c.l.b16 %v2606
        %v2879 = vunpack.c.h.b16 %v2606
        %v2880 = vunpack.c.l.b16 %v2607
        %v2881 = vunpack.c.l.b16 %v2608
        %v2882 = vunpack.c.h.b16 %v2608
        %v2883 = vunpack.c.l.b16 %v2609
        %v2884 = vunpack.c.l.b16 %v2610
        %v2885 = vunpack.c.h.b16 %v2610
        %v2886 = vunpack.c.l.b16 %v2611
        %v2887 = vunpack.c.l.b16 %v2612
        %v2888 = vunpack.c.h.b16 %v2612
        %v2889 = vunpack.c.l.b16 %v2613
        %v2890 = vunpack.c.l.b16 %v2614
        %v2891 = vunpack.c.h.b16 %v2614
        %v2892 = vunpack.c.l.b16 %v2615
        %v2893 = vunpack.c.l.b16 %v2616
        %v2894 = vunpack.c.h.b16 %v2616
        %v2895 = vunpack.c.l.b16 %v2617
        %v2896 = vpack.c.b16 %v2851, %v2848
        %v2897 = vpack.c.b16 %v2852, %v2849
        %v2898 = vpack.c.b16 %v2853, %v2850
        %v2899 = vpack.c.b16 %v2857, %v2854
        %v2900 = vpack.c.b16 %v2858, %v2855
        %v2901 = vpack.c.b16 %v2859, %v2856
        %v2902 = vpack.c.b16 %v2863, %v2860
        %v2903 = vpack.c.b16 %v2864, %v2861
        %v2904 = vpack.c.b16 %v2865, %v2862
        %v2905 = vpack.c.b16 %v2869, %v2866
        %v2906 = vpack.c.b16 %v2870, %v2867
        %v2907 = vpack.c.b16 %v2871, %v2868
        %v2908 = vpack.c.b16 %v2875, %v2872
        %v2909 = vpack.c.b16 %v2876, %v2873
        %v2910 = vpack.c.b16 %v2877, %v2874
        %v2911 = vpack.c.b16 %v2881, %v2878
        %v2912 = vpack.c.b16 %v2882, %v2879
        %v2913 = vpack.c.b16 %v2883, %v2880
        %v2914 = vpack.c.b16 %v2887, %v2884
        %v2915 = vpack.c.b16 %v2888, %v2885
        %v2916 = vpack.c.b16 %v2889, %v2886
        %v2917 = vpack.c.b16 %v2893, %v2890
        %v2918 = vpack.c.b16 %v2894, %v2891
        %v2919 = vpack.c.b16 %v2895, %v2892
        %2944 = vmatpush.bf16.msra.mxu0 %v2917
        %2945 = vmatpush.bf16.msra.mxu0 %v2914
        %2946 = vmatpush.bf16.msra.mxu0 %v2911
        %2947 = vmatpush.bf16.msra.mxu0 %v2908
        %2948 = vmatpush.bf16.msra.mxu0 %v2905
        %2949 = vmatpush.bf16.msra.mxu0 %v2902
        %2950 = vmatpush.bf16.msra.mxu0 %v2899
        %2951 = vmatpush.bf16.msra.mxu0 %v2896
        %2952 = vmatmul.bf16.gmra.mxu0 %v2750
        %v2953 = vpop.f32.mrf.mxu0
        %v2954 = vadd.f32 0.0, %v2953
        %v2955 = vpop.f32.mrf.mxu0
        %v2956 = vadd.f32 0.0, %v2955
        %2957 = vmatmul.bf16.gmra.mxu0 %v2751
        %v2958 = vpop.f32.mrf.mxu0
        %v2959 = vadd.f32 0.0, %v2958
        %v2960 = vpop.f32.mrf.mxu0
        %v2961 = vadd.f32 0.0, %v2960
        %2962 = vmatmul.bf16.gmra.mxu0 %v2752
        %v2963 = vpop.f32.mrf.mxu0
        %v2964 = vadd.f32 0.0, %v2963
        %v2965 = vpop.f32.mrf.mxu0
        %v2966 = vadd.f32 0.0, %v2965
        %2967 = vmatmul.bf16.gmra.mxu0 %v2753
        %v2968 = vpop.f32.mrf.mxu0
        %v2969 = vadd.f32 0.0, %v2968
        %v2970 = vpop.f32.mrf.mxu0
        %v2971 = vadd.f32 0.0, %v2970
        %2972 = vmatmul.bf16.gmra.mxu0 %v2754
        %v2973 = vpop.f32.mrf.mxu0
        %v2974 = vadd.f32 0.0, %v2973
        %v2975 = vpop.f32.mrf.mxu0
        %v2976 = vadd.f32 0.0, %v2975
        %2977 = vmatmul.bf16.gmra.mxu0 %v2755
        %v2978 = vpop.f32.mrf.mxu0
        %v2979 = vadd.f32 0.0, %v2978
        %v2980 = vpop.f32.mrf.mxu0
        %v2981 = vadd.f32 0.0, %v2980
        %2982 = vmatmul.bf16.gmra.mxu0 %v2756
        %v2983 = vpop.f32.mrf.mxu0
        %v2984 = vadd.f32 0.0, %v2983
        %v2985 = vpop.f32.mrf.mxu0
        %v2986 = vadd.f32 0.0, %v2985
        %2987 = vmatmul.bf16.gmra.mxu0 %v2757
        %v2988 = vpop.f32.mrf.mxu0
        %v2989 = vadd.f32 0.0, %v2988
        %v2990 = vpop.f32.mrf.mxu0
        %v2991 = vadd.f32 0.0, %v2990
        %2992 = vmatmul.bf16.gmra.mxu0 %v2758
        %v2993 = vpop.f32.mrf.mxu0
        %v2994 = vadd.f32 0.0, %v2993
        %v2995 = vpop.f32.mrf.mxu0
        %v2996 = vadd.f32 0.0, %v2995
        %2997 = vmatmul.bf16.gmra.mxu0 %v2759
        %v2998 = vpop.f32.mrf.mxu0
        %v2999 = vadd.f32 0.0, %v2998
        %v3000 = vpop.f32.mrf.mxu0
        %v3001 = vadd.f32 0.0, %v3000
        %3002 = vmatmul.bf16.gmra.mxu0 %v2760
        %v3003 = vpop.f32.mrf.mxu0
        %v3004 = vadd.f32 0.0, %v3003
        %v3005 = vpop.f32.mrf.mxu0
        %v3006 = vadd.f32 0.0, %v3005
        %3007 = vmatmul.bf16.gmra.mxu0 %v2761
        %v3008 = vpop.f32.mrf.mxu0
        %v3009 = vadd.f32 0.0, %v3008
        %v3010 = vpop.f32.mrf.mxu0
        %v3011 = vadd.f32 0.0, %v3010
        %3012 = vmatmul.bf16.gmra.mxu0 %v2762
        %v3013 = vpop.f32.mrf.mxu0
        %v3014 = vadd.f32 0.0, %v3013
        %v3015 = vpop.f32.mrf.mxu0
        %v3016 = vadd.f32 0.0, %v3015
        %3017 = vmatmul.bf16.gmra.mxu0 %v2763
        %v3018 = vpop.f32.mrf.mxu0
        %v3019 = vadd.f32 0.0, %v3018
        %v3020 = vpop.f32.mrf.mxu0
        %v3021 = vadd.f32 0.0, %v3020
        %3022 = vmatmul.bf16.gmra.mxu0 %v2764
        %v3023 = vpop.f32.mrf.mxu0
        %v3024 = vadd.f32 0.0, %v3023
        %v3025 = vpop.f32.mrf.mxu0
        %v3026 = vadd.f32 0.0, %v3025
        %3027 = vmatmul.bf16.gmra.mxu0 %v2765
        %v3028 = vpop.f32.mrf.mxu0
        %v3029 = vadd.f32 0.0, %v3028
        %v3030 = vpop.f32.mrf.mxu0
        %v3031 = vadd.f32 0.0, %v3030
        %3032 = vmatmul.bf16.gmra.mxu0 %v2766
        %v3033 = vpop.f32.mrf.mxu0
        %v3034 = vadd.f32 0.0, %v3033
        %v3035 = vpop.f32.mrf.mxu0
        %v3036 = vadd.f32 0.0, %v3035
        %3037 = vmatmul.bf16.gmra.mxu0 %v2767
        %v3038 = vpop.f32.mrf.mxu0
        %v3039 = vadd.f32 0.0, %v3038
        %v3040 = vpop.f32.mrf.mxu0
        %v3041 = vadd.f32 0.0, %v3040
        %3042 = vmatmul.bf16.gmra.mxu0 %v2768
        %v3043 = vpop.f32.mrf.mxu0
        %v3044 = vadd.f32 0.0, %v3043
        %v3045 = vpop.f32.mrf.mxu0
        %v3046 = vadd.f32 0.0, %v3045
        %3047 = vmatmul.bf16.gmra.mxu0 %v2769
        %v3048 = vpop.f32.mrf.mxu0
        %v3049 = vadd.f32 0.0, %v3048
        %v3050 = vpop.f32.mrf.mxu0
        %v3051 = vadd.f32 0.0, %v3050
        %3052 = vmatmul.bf16.gmra.mxu0 %v2770
        %v3053 = vpop.f32.mrf.mxu0
        %v3054 = vadd.f32 0.0, %v3053
        %v3055 = vpop.f32.mrf.mxu0
        %v3056 = vadd.f32 0.0, %v3055
        %3057 = vmatmul.bf16.gmra.mxu0 %v2771
        %v3058 = vpop.f32.mrf.mxu0
        %v3059 = vadd.f32 0.0, %v3058
        %v3060 = vpop.f32.mrf.mxu0
        %v3061 = vadd.f32 0.0, %v3060
        %3062 = vmatmul.bf16.gmra.mxu0 %v2772
        %v3063 = vpop.f32.mrf.mxu0
        %v3064 = vadd.f32 0.0, %v3063
        %v3065 = vpop.f32.mrf.mxu0
        %v3066 = vadd.f32 0.0, %v3065
        %3067 = vmatmul.bf16.gmra.mxu0 %v2773
        %v3068 = vpop.f32.mrf.mxu0
        %v3069 = vadd.f32 0.0, %v3068
        %v3070 = vpop.f32.mrf.mxu0
        %v3071 = vadd.f32 0.0, %v3070
        %3072 = vmatmul.bf16.gmra.mxu0 %v2774
        %v3073 = vpop.f32.mrf.mxu0
        %v3074 = vadd.f32 0.0, %v3073
        %v3075 = vpop.f32.mrf.mxu0
        %v3076 = vadd.f32 0.0, %v3075
        %3077 = vmatmul.bf16.gmra.mxu0 %v2775
        %v3078 = vpop.f32.mrf.mxu0
        %v3079 = vadd.f32 0.0, %v3078
        %v3080 = vpop.f32.mrf.mxu0
        %v3081 = vadd.f32 0.0, %v3080
        %3082 = vmatmul.bf16.gmra.mxu0 %v2776
        %v3083 = vpop.f32.mrf.mxu0
        %v3084 = vadd.f32 0.0, %v3083
        %v3085 = vpop.f32.mrf.mxu0
        %v3086 = vadd.f32 0.0, %v3085
        %3087 = vmatmul.bf16.gmra.mxu0 %v2777
        %v3088 = vpop.f32.mrf.mxu0
        %v3089 = vadd.f32 0.0, %v3088
        %v3090 = vpop.f32.mrf.mxu0
        %v3091 = vadd.f32 0.0, %v3090
        %3092 = vmatmul.bf16.gmra.mxu0 %v2778
        %v3093 = vpop.f32.mrf.mxu0
        %v3094 = vadd.f32 0.0, %v3093
        %v3095 = vpop.f32.mrf.mxu0
        %v3096 = vadd.f32 0.0, %v3095
        %3097 = vmatmul.bf16.gmra.mxu0 %v2779
        %v3098 = vpop.f32.mrf.mxu0
        %v3099 = vadd.f32 0.0, %v3098
        %v3100 = vpop.f32.mrf.mxu0
        %v3101 = vadd.f32 0.0, %v3100
        %3102 = vmatmul.bf16.gmra.mxu0 %v2780
        %v3103 = vpop.f32.mrf.mxu0
        %v3104 = vadd.f32 0.0, %v3103
        %v3105 = vpop.f32.mrf.mxu0
        %v3106 = vadd.f32 0.0, %v3105
        %3107 = vmatmul.bf16.gmra.mxu0 %v2781
        %v3108 = vpop.f32.mrf.mxu0
        %v3109 = vadd.f32 0.0, %v3108
        %v3110 = vpop.f32.mrf.mxu0
        %v3111 = vadd.f32 0.0, %v3110
        %3112 = vmatmul.bf16.gmra.mxu0 %v2782
        %v3113 = vpop.f32.mrf.mxu0
        %v3114 = vpop.f32.mrf.mxu0
        %3115 = vdwg.mxu0
        %3116 = vmatpush.bf16.msra.mxu0 %v2918
        %3117 = vmatpush.bf16.msra.mxu0 %v2915
        %3118 = vmatpush.bf16.msra.mxu0 %v2912
        %3119 = vmatpush.bf16.msra.mxu0 %v2909
        %3120 = vmatpush.bf16.msra.mxu0 %v2906
        %3121 = vmatpush.bf16.msra.mxu0 %v2903
        %3122 = vmatpush.bf16.msra.mxu0 %v2900
        %3123 = vmatpush.bf16.msra.mxu0 %v2897
        %3124 = vmatmul.bf16.gmra.mxu0 %v2750
        %v3125 = vpop.f32.mrf.mxu0
        %v3126 = vadd.f32 0.0, %v3125
        %v3127 = vpop.f32.mrf.mxu0
        %v3128 = vadd.f32 0.0, %v3127
        %3129 = vmatmul.bf16.gmra.mxu0 %v2751
        %v3130 = vpop.f32.mrf.mxu0
        %v3131 = vadd.f32 0.0, %v3130
        %v3132 = vpop.f32.mrf.mxu0
        %v3133 = vadd.f32 0.0, %v3132
        %3134 = vmatmul.bf16.gmra.mxu0 %v2752
        %v3135 = vpop.f32.mrf.mxu0
        %v3136 = vadd.f32 0.0, %v3135
        %v3137 = vpop.f32.mrf.mxu0
        %v3138 = vadd.f32 0.0, %v3137
        %3139 = vmatmul.bf16.gmra.mxu0 %v2753
        %v3140 = vpop.f32.mrf.mxu0
        %v3141 = vadd.f32 0.0, %v3140
        %v3142 = vpop.f32.mrf.mxu0
        %v3143 = vadd.f32 0.0, %v3142
        %3144 = vmatmul.bf16.gmra.mxu0 %v2754
        %v3145 = vpop.f32.mrf.mxu0
        %v3146 = vadd.f32 0.0, %v3145
        %v3147 = vpop.f32.mrf.mxu0
        %v3148 = vadd.f32 0.0, %v3147
        %3149 = vmatmul.bf16.gmra.mxu0 %v2755
        %v3150 = vpop.f32.mrf.mxu0
        %v3151 = vadd.f32 0.0, %v3150
        %v3152 = vpop.f32.mrf.mxu0
        %v3153 = vadd.f32 0.0, %v3152
        %3154 = vmatmul.bf16.gmra.mxu0 %v2756
        %v3155 = vpop.f32.mrf.mxu0
        %v3156 = vadd.f32 0.0, %v3155
        %v3157 = vpop.f32.mrf.mxu0
        %v3158 = vadd.f32 0.0, %v3157
        %3159 = vmatmul.bf16.gmra.mxu0 %v2757
        %v3160 = vpop.f32.mrf.mxu0
        %v3161 = vadd.f32 0.0, %v3160
        %v3162 = vpop.f32.mrf.mxu0
        %v3163 = vadd.f32 0.0, %v3162
        %3164 = vmatmul.bf16.gmra.mxu0 %v2758
        %v3165 = vpop.f32.mrf.mxu0
        %v3166 = vadd.f32 0.0, %v3165
        %v3167 = vpop.f32.mrf.mxu0
        %v3168 = vadd.f32 0.0, %v3167
        %3169 = vmatmul.bf16.gmra.mxu0 %v2759
        %v3170 = vpop.f32.mrf.mxu0
        %v3171 = vadd.f32 0.0, %v3170
        %v3172 = vpop.f32.mrf.mxu0
        %v3173 = vadd.f32 0.0, %v3172
        %3174 = vmatmul.bf16.gmra.mxu0 %v2760
        %v3175 = vpop.f32.mrf.mxu0
        %v3176 = vadd.f32 0.0, %v3175
        %v3177 = vpop.f32.mrf.mxu0
        %v3178 = vadd.f32 0.0, %v3177
        %3179 = vmatmul.bf16.gmra.mxu0 %v2761
        %v3180 = vpop.f32.mrf.mxu0
        %v3181 = vadd.f32 0.0, %v3180
        %v3182 = vpop.f32.mrf.mxu0
        %v3183 = vadd.f32 0.0, %v3182
        %3184 = vmatmul.bf16.gmra.mxu0 %v2762
        %v3185 = vpop.f32.mrf.mxu0
        %v3186 = vadd.f32 0.0, %v3185
        %v3187 = vpop.f32.mrf.mxu0
        %v3188 = vadd.f32 0.0, %v3187
        %3189 = vmatmul.bf16.gmra.mxu0 %v2763
        %v3190 = vpop.f32.mrf.mxu0
        %v3191 = vadd.f32 0.0, %v3190
        %v3192 = vpop.f32.mrf.mxu0
        %v3193 = vadd.f32 0.0, %v3192
        %3194 = vmatmul.bf16.gmra.mxu0 %v2764
        %v3195 = vpop.f32.mrf.mxu0
        %v3196 = vadd.f32 0.0, %v3195
        %v3197 = vpop.f32.mrf.mxu0
        %v3198 = vadd.f32 0.0, %v3197
        %3199 = vmatmul.bf16.gmra.mxu0 %v2765
        %v3200 = vpop.f32.mrf.mxu0
        %v3201 = vadd.f32 0.0, %v3200
        %v3202 = vpop.f32.mrf.mxu0
        %v3203 = vadd.f32 0.0, %v3202
        %3204 = vmatmul.bf16.gmra.mxu0 %v2766
        %v3205 = vpop.f32.mrf.mxu0
        %v3206 = vadd.f32 0.0, %v3205
        %v3207 = vpop.f32.mrf.mxu0
        %v3208 = vadd.f32 0.0, %v3207
        %3209 = vmatmul.bf16.gmra.mxu0 %v2767
        %v3210 = vpop.f32.mrf.mxu0
        %v3211 = vadd.f32 0.0, %v3210
        %v3212 = vpop.f32.mrf.mxu0
        %v3213 = vadd.f32 0.0, %v3212
        %3214 = vmatmul.bf16.gmra.mxu0 %v2768
        %v3215 = vpop.f32.mrf.mxu0
        %v3216 = vadd.f32 0.0, %v3215
        %v3217 = vpop.f32.mrf.mxu0
        %v3218 = vadd.f32 0.0, %v3217
        %3219 = vmatmul.bf16.gmra.mxu0 %v2769
        %v3220 = vpop.f32.mrf.mxu0
        %v3221 = vadd.f32 0.0, %v3220
        %v3222 = vpop.f32.mrf.mxu0
        %v3223 = vadd.f32 0.0, %v3222
        %3224 = vmatmul.bf16.gmra.mxu0 %v2770
        %v3225 = vpop.f32.mrf.mxu0
        %v3226 = vadd.f32 0.0, %v3225
        %v3227 = vpop.f32.mrf.mxu0
        %v3228 = vadd.f32 0.0, %v3227
        %3229 = vmatmul.bf16.gmra.mxu0 %v2771
        %v3230 = vpop.f32.mrf.mxu0
        %v3231 = vadd.f32 0.0, %v3230
        %v3232 = vpop.f32.mrf.mxu0
        %v3233 = vadd.f32 0.0, %v3232
        %3234 = vmatmul.bf16.gmra.mxu0 %v2772
        %v3235 = vpop.f32.mrf.mxu0
        %v3236 = vadd.f32 0.0, %v3235
        %v3237 = vpop.f32.mrf.mxu0
        %v3238 = vadd.f32 0.0, %v3237
        %3239 = vmatmul.bf16.gmra.mxu0 %v2773
        %v3240 = vpop.f32.mrf.mxu0
        %v3241 = vadd.f32 0.0, %v3240
        %v3242 = vpop.f32.mrf.mxu0
        %v3243 = vadd.f32 0.0, %v3242
        %3244 = vmatmul.bf16.gmra.mxu0 %v2774
        %v3245 = vpop.f32.mrf.mxu0
        %v3246 = vadd.f32 0.0, %v3245
        %v3247 = vpop.f32.mrf.mxu0
        %v3248 = vadd.f32 0.0, %v3247
        %3249 = vmatmul.bf16.gmra.mxu0 %v2775
        %v3250 = vpop.f32.mrf.mxu0
        %v3251 = vadd.f32 0.0, %v3250
        %v3252 = vpop.f32.mrf.mxu0
        %v3253 = vadd.f32 0.0, %v3252
        %3254 = vmatmul.bf16.gmra.mxu0 %v2776
        %v3255 = vpop.f32.mrf.mxu0
        %v3256 = vadd.f32 0.0, %v3255
        %v3257 = vpop.f32.mrf.mxu0
        %v3258 = vadd.f32 0.0, %v3257
        %3259 = vmatmul.bf16.gmra.mxu0 %v2777
        %v3260 = vpop.f32.mrf.mxu0
        %v3261 = vadd.f32 0.0, %v3260
        %v3262 = vpop.f32.mrf.mxu0
        %v3263 = vadd.f32 0.0, %v3262
        %3264 = vmatmul.bf16.gmra.mxu0 %v2778
        %v3265 = vpop.f32.mrf.mxu0
        %v3266 = vadd.f32 0.0, %v3265
        %v3267 = vpop.f32.mrf.mxu0
        %v3268 = vadd.f32 0.0, %v3267
        %3269 = vmatmul.bf16.gmra.mxu0 %v2779
        %v3270 = vpop.f32.mrf.mxu0
        %v3271 = vadd.f32 0.0, %v3270
        %v3272 = vpop.f32.mrf.mxu0
        %v3273 = vadd.f32 0.0, %v3272
        %3274 = vmatmul.bf16.gmra.mxu0 %v2780
        %v3275 = vpop.f32.mrf.mxu0
        %v3276 = vadd.f32 0.0, %v3275
        %v3277 = vpop.f32.mrf.mxu0
        %v3278 = vadd.f32 0.0, %v3277
        %3279 = vmatmul.bf16.gmra.mxu0 %v2781
        %v3280 = vpop.f32.mrf.mxu0
        %v3281 = vadd.f32 0.0, %v3280
        %v3282 = vpop.f32.mrf.mxu0
        %v3283 = vadd.f32 0.0, %v3282
        %3284 = vmatmul.bf16.gmra.mxu0 %v2782
        %v3285 = vpop.f32.mrf.mxu0
        %v3286 = vadd.f32 0.0, %v3285
        %v3287 = vpop.f32.mrf.mxu0
        %3288 = vdwg.mxu0
        %3289 = vmatpush.bf16.msra.mxu0 %v2919
        %3290 = vmatpush.bf16.msra.mxu0 %v2916
        %3291 = vmatpush.bf16.msra.mxu0 %v2913
        %3292 = vmatpush.bf16.msra.mxu0 %v2910
        %3293 = vmatpush.bf16.msra.mxu0 %v2907
        %3294 = vmatpush.bf16.msra.mxu0 %v2904
        %3295 = vmatpush.bf16.msra.mxu0 %v2901
        %3296 = vmatpush.bf16.msra.mxu0 %v2898
        %3297 = vmatmul.bf16.gmra.mxu0 %v2750
        %v3298 = vpop.f32.mrf.mxu0
        %v3299 = vadd.f32 0.0, %v3298
        %v3300 = vpop.f32.mrf.mxu0
        %v3301 = vadd.f32 0.0, %v3300
        %3302 = vmatmul.bf16.gmra.mxu0 %v2751
        %v3303 = vpop.f32.mrf.mxu0
        %v3304 = vadd.f32 0.0, %v3303
        %v3305 = vpop.f32.mrf.mxu0
        %v3306 = vadd.f32 0.0, %v3305
        %3307 = vmatmul.bf16.gmra.mxu0 %v2752
        %v3308 = vpop.f32.mrf.mxu0
        %v3309 = vadd.f32 0.0, %v3308
        %v3310 = vpop.f32.mrf.mxu0
        %v3311 = vadd.f32 0.0, %v3310
        %3312 = vmatmul.bf16.gmra.mxu0 %v2753
        %v3313 = vpop.f32.mrf.mxu0
        %v3314 = vadd.f32 0.0, %v3313
        %v3315 = vpop.f32.mrf.mxu0
        %v3316 = vadd.f32 0.0, %v3315
        %3317 = vmatmul.bf16.gmra.mxu0 %v2754
        %v3318 = vpop.f32.mrf.mxu0
        %v3319 = vadd.f32 0.0, %v3318
        %v3320 = vpop.f32.mrf.mxu0
        %v3321 = vadd.f32 0.0, %v3320
        %3322 = vmatmul.bf16.gmra.mxu0 %v2755
        %v3323 = vpop.f32.mrf.mxu0
        %v3324 = vadd.f32 0.0, %v3323
        %v3325 = vpop.f32.mrf.mxu0
        %v3326 = vadd.f32 0.0, %v3325
        %3327 = vmatmul.bf16.gmra.mxu0 %v2756
        %v3328 = vpop.f32.mrf.mxu0
        %v3329 = vadd.f32 0.0, %v3328
        %v3330 = vpop.f32.mrf.mxu0
        %v3331 = vadd.f32 0.0, %v3330
        %3332 = vmatmul.bf16.gmra.mxu0 %v2757
        %v3333 = vpop.f32.mrf.mxu0
        %v3334 = vadd.f32 0.0, %v3333
        %v3335 = vpop.f32.mrf.mxu0
        %v3336 = vadd.f32 0.0, %v3335
        %3337 = vmatmul.bf16.gmra.mxu0 %v2758
        %v3338 = vpop.f32.mrf.mxu0
        %v3339 = vadd.f32 0.0, %v3338
        %v3340 = vpop.f32.mrf.mxu0
        %v3341 = vadd.f32 0.0, %v3340
        %3342 = vmatmul.bf16.gmra.mxu0 %v2759
        %v3343 = vpop.f32.mrf.mxu0
        %v3344 = vadd.f32 0.0, %v3343
        %v3345 = vpop.f32.mrf.mxu0
        %v3346 = vadd.f32 0.0, %v3345
        %3347 = vmatmul.bf16.gmra.mxu0 %v2760
        %v3348 = vpop.f32.mrf.mxu0
        %v3349 = vadd.f32 0.0, %v3348
        %v3350 = vpop.f32.mrf.mxu0
        %v3351 = vadd.f32 0.0, %v3350
        %3352 = vmatmul.bf16.gmra.mxu0 %v2761
        %v3353 = vpop.f32.mrf.mxu0
        %v3354 = vadd.f32 0.0, %v3353
        %v3355 = vpop.f32.mrf.mxu0
        %v3356 = vadd.f32 0.0, %v3355
        %3357 = vmatmul.bf16.gmra.mxu0 %v2762
        %v3358 = vpop.f32.mrf.mxu0
        %v3359 = vadd.f32 0.0, %v3358
        %v3360 = vpop.f32.mrf.mxu0
        %v3361 = vadd.f32 0.0, %v3360
        %3362 = vmatmul.bf16.gmra.mxu0 %v2763
        %v3363 = vpop.f32.mrf.mxu0
        %v3364 = vadd.f32 0.0, %v3363
        %v3365 = vpop.f32.mrf.mxu0
        %v3366 = vadd.f32 0.0, %v3365
        %3367 = vmatmul.bf16.gmra.mxu0 %v2764
        %v3368 = vpop.f32.mrf.mxu0
        %v3369 = vadd.f32 0.0, %v3368
        %v3370 = vpop.f32.mrf.mxu0
        %v3371 = vadd.f32 0.0, %v3370
        %3372 = vmatmul.bf16.gmra.mxu0 %v2765
        %v3373 = vpop.f32.mrf.mxu0
        %v3374 = vadd.f32 0.0, %v3373
        %v3375 = vpop.f32.mrf.mxu0
        %v3376 = vadd.f32 0.0, %v3375
        %3377 = vmatmul.bf16.gmra.mxu0 %v2766
        %v3378 = vpop.f32.mrf.mxu0
        %v3379 = vadd.f32 0.0, %v3378
        %v3380 = vpop.f32.mrf.mxu0
        %v3381 = vadd.f32 0.0, %v3380
        %3382 = vmatmul.bf16.gmra.mxu0 %v2767
        %v3383 = vpop.f32.mrf.mxu0
        %v3384 = vadd.f32 0.0, %v3383
        %v3385 = vpop.f32.mrf.mxu0
        %v3386 = vadd.f32 0.0, %v3385
        %3387 = vmatmul.bf16.gmra.mxu0 %v2768
        %v3388 = vpop.f32.mrf.mxu0
        %v3389 = vadd.f32 0.0, %v3388
        %v3390 = vpop.f32.mrf.mxu0
        %v3391 = vadd.f32 0.0, %v3390
        %3392 = vmatmul.bf16.gmra.mxu0 %v2769
        %v3393 = vpop.f32.mrf.mxu0
        %v3394 = vadd.f32 0.0, %v3393
        %v3395 = vpop.f32.mrf.mxu0
        %v3396 = vadd.f32 0.0, %v3395
        %3397 = vmatmul.bf16.gmra.mxu0 %v2770
        %v3398 = vpop.f32.mrf.mxu0
        %v3399 = vadd.f32 0.0, %v3398
        %v3400 = vpop.f32.mrf.mxu0
        %v3401 = vadd.f32 0.0, %v3400
        %3402 = vmatmul.bf16.gmra.mxu0 %v2771
        %v3403 = vpop.f32.mrf.mxu0
        %v3404 = vadd.f32 0.0, %v3403
        %v3405 = vpop.f32.mrf.mxu0
        %v3406 = vadd.f32 0.0, %v3405
        %3407 = vmatmul.bf16.gmra.mxu0 %v2772
        %v3408 = vpop.f32.mrf.mxu0
        %v3409 = vadd.f32 0.0, %v3408
        %v3410 = vpop.f32.mrf.mxu0
        %v3411 = vadd.f32 0.0, %v3410
        %3412 = vmatmul.bf16.gmra.mxu0 %v2773
        %v3413 = vpop.f32.mrf.mxu0
        %v3414 = vadd.f32 0.0, %v3413
        %v3415 = vpop.f32.mrf.mxu0
        %v3416 = vadd.f32 0.0, %v3415
        %3417 = vmatmul.bf16.gmra.mxu0 %v2774
        %v3418 = vpop.f32.mrf.mxu0
        %v3419 = vadd.f32 0.0, %v3418
        %v3420 = vpop.f32.mrf.mxu0
        %v3421 = vadd.f32 0.0, %v3420
        %3422 = vmatmul.bf16.gmra.mxu0 %v2775
        %v3423 = vpop.f32.mrf.mxu0
        %v3424 = vadd.f32 0.0, %v3423
        %v3425 = vpop.f32.mrf.mxu0
        %v3426 = vadd.f32 0.0, %v3425
        %3427 = vmatmul.bf16.gmra.mxu0 %v2776
        %v3428 = vpop.f32.mrf.mxu0
        %v3429 = vadd.f32 0.0, %v3428
        %v3430 = vpop.f32.mrf.mxu0
        %v3431 = vadd.f32 0.0, %v3430
        %3432 = vmatmul.bf16.gmra.mxu0 %v2777
        %v3433 = vpop.f32.mrf.mxu0
        %v3434 = vadd.f32 0.0, %v3433
        %v3435 = vpop.f32.mrf.mxu0
        %v3436 = vadd.f32 0.0, %v3435
        %3437 = vmatmul.bf16.gmra.mxu0 %v2778
        %v3438 = vpop.f32.mrf.mxu0
        %v3439 = vadd.f32 0.0, %v3438
        %v3440 = vpop.f32.mrf.mxu0
        %v3441 = vadd.f32 0.0, %v3440
        %3442 = vmatmul.bf16.gmra.mxu0 %v2779
        %v3443 = vpop.f32.mrf.mxu0
        %v3444 = vadd.f32 0.0, %v3443
        %v3445 = vpop.f32.mrf.mxu0
        %v3446 = vadd.f32 0.0, %v3445
        %3447 = vmatmul.bf16.gmra.mxu0 %v2780
        %v3448 = vpop.f32.mrf.mxu0
        %v3449 = vadd.f32 0.0, %v3448
        %v3450 = vpop.f32.mrf.mxu0
        %v3451 = vadd.f32 0.0, %v3450
        %3452 = vmatmul.bf16.gmra.mxu0 %v2781
        %v3453 = vpop.f32.mrf.mxu0
        %v3454 = vadd.f32 0.0, %v3453
        %v3455 = vpop.f32.mrf.mxu0
        %v3456 = vadd.f32 0.0, %v3455
        %3457 = vmatmul.bf16.gmra.mxu0 %v2782
        %v3458 = vpop.f32.mrf.mxu0
        %v3459 = vadd.f32 0.0, %v3458
        %v3460 = vpop.f32.mrf.mxu0
        %3461 = vdwg.mxu0
        %v3527 = vrot.slane %v3126, 1
        %v3528 = vrot.slane %v3128, 1
        %v3529 = vsel %vm1746, %v3527, %v3528
        %v3530 = vrot.slane %v3131, 1
        %v3531 = vsel %vm1746, %v3528, %v3530
        %v3532 = vrot.slane %v3133, 1
        %v3533 = vsel %vm1746, %v3530, %v3532
        %v3534 = vrot.slane %v3136, 1
        %v3535 = vsel %vm1746, %v3532, %v3534
        %v3536 = vrot.slane %v3138, 1
        %v3537 = vsel %vm1746, %v3534, %v3536
        %v3538 = vrot.slane %v3141, 1
        %v3539 = vsel %vm1746, %v3536, %v3538
        %v3540 = vrot.slane %v3143, 1
        %v3541 = vsel %vm1746, %v3538, %v3540
        %v3542 = vrot.slane %v3146, 1
        %v3543 = vsel %vm1746, %v3540, %v3542
        %v3544 = vrot.slane %v3148, 1
        %v3545 = vsel %vm1746, %v3542, %v3544
        %v3546 = vrot.slane %v3151, 1
        %v3547 = vsel %vm1746, %v3544, %v3546
        %v3548 = vrot.slane %v3153, 1
        %v3549 = vsel %vm1746, %v3546, %v3548
        %v3550 = vrot.slane %v3156, 1
        %v3551 = vsel %vm1746, %v3548, %v3550
        %v3552 = vrot.slane %v3158, 1
        %v3553 = vsel %vm1746, %v3550, %v3552
        %v3554 = vrot.slane %v3161, 1
        %v3555 = vsel %vm1746, %v3552, %v3554
        %v3556 = vrot.slane %v3163, 1
        %v3557 = vsel %vm1746, %v3554, %v3556
        %v3558 = vrot.slane %v3166, 1
        %v3559 = vsel %vm1746, %v3556, %v3558
        %v3560 = vrot.slane %v3168, 1
        %v3561 = vsel %vm1746, %v3558, %v3560
        %v3562 = vrot.slane %v3171, 1
        %v3563 = vsel %vm1746, %v3560, %v3562
        %v3564 = vrot.slane %v3173, 1
        %v3565 = vsel %vm1746, %v3562, %v3564
        %v3566 = vrot.slane %v3176, 1
        %v3567 = vsel %vm1746, %v3564, %v3566
        %v3568 = vrot.slane %v3178, 1
        %v3569 = vsel %vm1746, %v3566, %v3568
        %v3570 = vrot.slane %v3181, 1
        %v3571 = vsel %vm1746, %v3568, %v3570
        %v3572 = vrot.slane %v3183, 1
        %v3573 = vsel %vm1746, %v3570, %v3572
        %v3574 = vrot.slane %v3186, 1
        %v3575 = vsel %vm1746, %v3572, %v3574
        %v3576 = vrot.slane %v3188, 1
        %v3577 = vsel %vm1746, %v3574, %v3576
        %v3578 = vrot.slane %v3191, 1
        %v3579 = vsel %vm1746, %v3576, %v3578
        %v3580 = vrot.slane %v3193, 1
        %v3581 = vsel %vm1746, %v3578, %v3580
        %v3582 = vrot.slane %v3196, 1
        %v3583 = vsel %vm1746, %v3580, %v3582
        %v3584 = vrot.slane %v3198, 1
        %v3585 = vsel %vm1746, %v3582, %v3584
        %v3586 = vrot.slane %v3201, 1
        %v3587 = vsel %vm1746, %v3584, %v3586
        %v3588 = vrot.slane %v3203, 1
        %v3589 = vsel %vm1746, %v3586, %v3588
        %v3590 = vrot.slane %v3206, 1
        %v3591 = vsel %vm1746, %v3588, %v3590
        %v3592 = vrot.slane %v3208, 1
        %v3593 = vsel %vm1746, %v3590, %v3592
        %v3594 = vrot.slane %v3211, 1
        %v3595 = vsel %vm1746, %v3592, %v3594
        %v3596 = vrot.slane %v3213, 1
        %v3597 = vsel %vm1746, %v3594, %v3596
        %v3598 = vrot.slane %v3216, 1
        %v3599 = vsel %vm1746, %v3596, %v3598
        %v3600 = vrot.slane %v3218, 1
        %v3601 = vsel %vm1746, %v3598, %v3600
        %v3602 = vrot.slane %v3221, 1
        %v3603 = vsel %vm1746, %v3600, %v3602
        %v3604 = vrot.slane %v3223, 1
        %v3605 = vsel %vm1746, %v3602, %v3604
        %v3606 = vrot.slane %v3226, 1
        %v3607 = vsel %vm1746, %v3604, %v3606
        %v3608 = vrot.slane %v3228, 1
        %v3609 = vsel %vm1746, %v3606, %v3608
        %v3610 = vrot.slane %v3231, 1
        %v3611 = vsel %vm1746, %v3608, %v3610
        %v3612 = vrot.slane %v3233, 1
        %v3613 = vsel %vm1746, %v3610, %v3612
        %v3614 = vrot.slane %v3236, 1
        %v3615 = vsel %vm1746, %v3612, %v3614
        %v3616 = vrot.slane %v3238, 1
        %v3617 = vsel %vm1746, %v3614, %v3616
        %v3618 = vrot.slane %v3241, 1
        %v3619 = vsel %vm1746, %v3616, %v3618
        %v3620 = vrot.slane %v3243, 1
        %v3621 = vsel %vm1746, %v3618, %v3620
        %v3622 = vrot.slane %v3246, 1
        %v3623 = vsel %vm1746, %v3620, %v3622
        %v3624 = vrot.slane %v3248, 1
        %v3625 = vsel %vm1746, %v3622, %v3624
        %v3626 = vrot.slane %v3251, 1
        %v3627 = vsel %vm1746, %v3624, %v3626
        %v3628 = vrot.slane %v3253, 1
        %v3629 = vsel %vm1746, %v3626, %v3628
        %v3630 = vrot.slane %v3256, 1
        %v3631 = vsel %vm1746, %v3628, %v3630
        %v3632 = vrot.slane %v3258, 1
        %v3633 = vsel %vm1746, %v3630, %v3632
        %v3634 = vrot.slane %v3261, 1
        %v3635 = vsel %vm1746, %v3632, %v3634
        %v3636 = vrot.slane %v3263, 1
        %v3637 = vsel %vm1746, %v3634, %v3636
        %v3638 = vrot.slane %v3266, 1
        %v3639 = vsel %vm1746, %v3636, %v3638
        %v3640 = vrot.slane %v3268, 1
        %v3641 = vsel %vm1746, %v3638, %v3640
        %v3642 = vrot.slane %v3271, 1
        %v3643 = vsel %vm1746, %v3640, %v3642
        %v3644 = vrot.slane %v3273, 1
        %v3645 = vsel %vm1746, %v3642, %v3644
        %v3646 = vrot.slane %v3276, 1
        %v3647 = vsel %vm1746, %v3644, %v3646
        %v3648 = vrot.slane %v3278, 1
        %v3649 = vsel %vm1746, %v3646, %v3648
        %v3650 = vrot.slane %v3281, 1
        %v3651 = vsel %vm1746, %v3648, %v3650
        %v3652 = vrot.slane %v3283, 1
        %v3653 = vsel %vm1746, %v3650, %v3652
        %v3654 = vrot.slane %v3286, 1
        %v3655 = vsel %vm1746, %v3652, %v3654
        %v3720 = vadd.f32 %v2954, %v3529
        %v3721 = vadd.f32 %v2956, %v3531
        %v3722 = vadd.f32 %v2959, %v3533
        %v3723 = vadd.f32 %v2961, %v3535
        %v3724 = vadd.f32 %v2964, %v3537
        %v3725 = vadd.f32 %v2966, %v3539
        %v3726 = vadd.f32 %v2969, %v3541
        %v3727 = vadd.f32 %v2971, %v3543
        %v3728 = vadd.f32 %v2974, %v3545
        %v3729 = vadd.f32 %v2976, %v3547
        %v3730 = vadd.f32 %v2979, %v3549
        %v3731 = vadd.f32 %v2981, %v3551
        %v3732 = vadd.f32 %v2984, %v3553
        %v3733 = vadd.f32 %v2986, %v3555
        %v3734 = vadd.f32 %v2989, %v3557
        %v3735 = vadd.f32 %v2991, %v3559
        %v3736 = vadd.f32 %v2994, %v3561
        %v3737 = vadd.f32 %v2996, %v3563
        %v3738 = vadd.f32 %v2999, %v3565
        %v3739 = vadd.f32 %v3001, %v3567
        %v3740 = vadd.f32 %v3004, %v3569
        %v3741 = vadd.f32 %v3006, %v3571
        %v3742 = vadd.f32 %v3009, %v3573
        %v3743 = vadd.f32 %v3011, %v3575
        %v3744 = vadd.f32 %v3014, %v3577
        %v3745 = vadd.f32 %v3016, %v3579
        %v3746 = vadd.f32 %v3019, %v3581
        %v3747 = vadd.f32 %v3021, %v3583
        %v3748 = vadd.f32 %v3024, %v3585
        %v3749 = vadd.f32 %v3026, %v3587
        %v3750 = vadd.f32 %v3029, %v3589
        %v3751 = vadd.f32 %v3031, %v3591
        %v3752 = vadd.f32 %v3034, %v3593
        %v3753 = vadd.f32 %v3036, %v3595
        %v3754 = vadd.f32 %v3039, %v3597
        %v3755 = vadd.f32 %v3041, %v3599
        %v3756 = vadd.f32 %v3044, %v3601
        %v3757 = vadd.f32 %v3046, %v3603
        %v3758 = vadd.f32 %v3049, %v3605
        %v3759 = vadd.f32 %v3051, %v3607
        %v3760 = vadd.f32 %v3054, %v3609
        %v3761 = vadd.f32 %v3056, %v3611
        %v3762 = vadd.f32 %v3059, %v3613
        %v3763 = vadd.f32 %v3061, %v3615
        %v3764 = vadd.f32 %v3064, %v3617
        %v3765 = vadd.f32 %v3066, %v3619
        %v3766 = vadd.f32 %v3069, %v3621
        %v3767 = vadd.f32 %v3071, %v3623
        %v3768 = vadd.f32 %v3074, %v3625
        %v3769 = vadd.f32 %v3076, %v3627
        %v3770 = vadd.f32 %v3079, %v3629
        %v3771 = vadd.f32 %v3081, %v3631
        %v3772 = vadd.f32 %v3084, %v3633
        %v3773 = vadd.f32 %v3086, %v3635
        %v3774 = vadd.f32 %v3089, %v3637
        %v3775 = vadd.f32 %v3091, %v3639
        %v3776 = vadd.f32 %v3094, %v3641
        %v3777 = vadd.f32 %v3096, %v3643
        %v3778 = vadd.f32 %v3099, %v3645
        %v3779 = vadd.f32 %v3101, %v3647
        %v3780 = vadd.f32 %v3104, %v3649
        %v3781 = vadd.f32 %v3106, %v3651
        %v3782 = vadd.f32 %v3109, %v3653
        %v3783 = vadd.f32 %v3111, %v3655
        %v3849 = vrot.slane %v3299, 2
        %v3850 = vrot.slane %v3301, 2
        %v3851 = vsel %vm2069, %v3849, %v3850
        %v3852 = vrot.slane %v3304, 2
        %v3853 = vsel %vm2069, %v3850, %v3852
        %v3854 = vrot.slane %v3306, 2
        %v3855 = vsel %vm2069, %v3852, %v3854
        %v3856 = vrot.slane %v3309, 2
        %v3857 = vsel %vm2069, %v3854, %v3856
        %v3858 = vrot.slane %v3311, 2
        %v3859 = vsel %vm2069, %v3856, %v3858
        %v3860 = vrot.slane %v3314, 2
        %v3861 = vsel %vm2069, %v3858, %v3860
        %v3862 = vrot.slane %v3316, 2
        %v3863 = vsel %vm2069, %v3860, %v3862
        %v3864 = vrot.slane %v3319, 2
        %v3865 = vsel %vm2069, %v3862, %v3864
        %v3866 = vrot.slane %v3321, 2
        %v3867 = vsel %vm2069, %v3864, %v3866
        %v3868 = vrot.slane %v3324, 2
        %v3869 = vsel %vm2069, %v3866, %v3868
        %v3870 = vrot.slane %v3326, 2
        %v3871 = vsel %vm2069, %v3868, %v3870
        %v3872 = vrot.slane %v3329, 2
        %v3873 = vsel %vm2069, %v3870, %v3872
        %v3874 = vrot.slane %v3331, 2
        %v3875 = vsel %vm2069, %v3872, %v3874
        %v3876 = vrot.slane %v3334, 2
        %v3877 = vsel %vm2069, %v3874, %v3876
        %v3878 = vrot.slane %v3336, 2
        %v3879 = vsel %vm2069, %v3876, %v3878
        %v3880 = vrot.slane %v3339, 2
        %v3881 = vsel %vm2069, %v3878, %v3880
        %v3882 = vrot.slane %v3341, 2
        %v3883 = vsel %vm2069, %v3880, %v3882
        %v3884 = vrot.slane %v3344, 2
        %v3885 = vsel %vm2069, %v3882, %v3884
        %v3886 = vrot.slane %v3346, 2
        %v3887 = vsel %vm2069, %v3884, %v3886
        %v3888 = vrot.slane %v3349, 2
        %v3889 = vsel %vm2069, %v3886, %v3888
        %v3890 = vrot.slane %v3351, 2
        %v3891 = vsel %vm2069, %v3888, %v3890
        %v3892 = vrot.slane %v3354, 2
        %v3893 = vsel %vm2069, %v3890, %v3892
        %v3894 = vrot.slane %v3356, 2
        %v3895 = vsel %vm2069, %v3892, %v3894
        %v3896 = vrot.slane %v3359, 2
        %v3897 = vsel %vm2069, %v3894, %v3896
        %v3898 = vrot.slane %v3361, 2
        %v3899 = vsel %vm2069, %v3896, %v3898
        %v3900 = vrot.slane %v3364, 2
        %v3901 = vsel %vm2069, %v3898, %v3900
        %v3902 = vrot.slane %v3366, 2
        %v3903 = vsel %vm2069, %v3900, %v3902
        %v3904 = vrot.slane %v3369, 2
        %v3905 = vsel %vm2069, %v3902, %v3904
        %v3906 = vrot.slane %v3371, 2
        %v3907 = vsel %vm2069, %v3904, %v3906
        %v3908 = vrot.slane %v3374, 2
        %v3909 = vsel %vm2069, %v3906, %v3908
        %v3910 = vrot.slane %v3376, 2
        %v3911 = vsel %vm2069, %v3908, %v3910
        %v3912 = vrot.slane %v3379, 2
        %v3913 = vsel %vm2069, %v3910, %v3912
        %v3914 = vrot.slane %v3381, 2
        %v3915 = vsel %vm2069, %v3912, %v3914
        %v3916 = vrot.slane %v3384, 2
        %v3917 = vsel %vm2069, %v3914, %v3916
        %v3918 = vrot.slane %v3386, 2
        %v3919 = vsel %vm2069, %v3916, %v3918
        %v3920 = vrot.slane %v3389, 2
        %v3921 = vsel %vm2069, %v3918, %v3920
        %v3922 = vrot.slane %v3391, 2
        %v3923 = vsel %vm2069, %v3920, %v3922
        %v3924 = vrot.slane %v3394, 2
        %v3925 = vsel %vm2069, %v3922, %v3924
        %v3926 = vrot.slane %v3396, 2
        %v3927 = vsel %vm2069, %v3924, %v3926
        %v3928 = vrot.slane %v3399, 2
        %v3929 = vsel %vm2069, %v3926, %v3928
        %v3930 = vrot.slane %v3401, 2
        %v3931 = vsel %vm2069, %v3928, %v3930
        %v3932 = vrot.slane %v3404, 2
        %v3933 = vsel %vm2069, %v3930, %v3932
        %v3934 = vrot.slane %v3406, 2
        %v3935 = vsel %vm2069, %v3932, %v3934
        %v3936 = vrot.slane %v3409, 2
        %v3937 = vsel %vm2069, %v3934, %v3936
        %v3938 = vrot.slane %v3411, 2
        %v3939 = vsel %vm2069, %v3936, %v3938
        %v3940 = vrot.slane %v3414, 2
        %v3941 = vsel %vm2069, %v3938, %v3940
        %v3942 = vrot.slane %v3416, 2
        %v3943 = vsel %vm2069, %v3940, %v3942
        %v3944 = vrot.slane %v3419, 2
        %v3945 = vsel %vm2069, %v3942, %v3944
        %v3946 = vrot.slane %v3421, 2
        %v3947 = vsel %vm2069, %v3944, %v3946
        %v3948 = vrot.slane %v3424, 2
        %v3949 = vsel %vm2069, %v3946, %v3948
        %v3950 = vrot.slane %v3426, 2
        %v3951 = vsel %vm2069, %v3948, %v3950
        %v3952 = vrot.slane %v3429, 2
        %v3953 = vsel %vm2069, %v3950, %v3952
        %v3954 = vrot.slane %v3431, 2
        %v3955 = vsel %vm2069, %v3952, %v3954
        %v3956 = vrot.slane %v3434, 2
        %v3957 = vsel %vm2069, %v3954, %v3956
        %v3958 = vrot.slane %v3436, 2
        %v3959 = vsel %vm2069, %v3956, %v3958
        %v3960 = vrot.slane %v3439, 2
        %v3961 = vsel %vm2069, %v3958, %v3960
        %v3962 = vrot.slane %v3441, 2
        %v3963 = vsel %vm2069, %v3960, %v3962
        %v3964 = vrot.slane %v3444, 2
        %v3965 = vsel %vm2069, %v3962, %v3964
        %v3966 = vrot.slane %v3446, 2
        %v3967 = vsel %vm2069, %v3964, %v3966
        %v3968 = vrot.slane %v3449, 2
        %v3969 = vsel %vm2069, %v3966, %v3968
        %v3970 = vrot.slane %v3451, 2
        %v3971 = vsel %vm2069, %v3968, %v3970
        %v3972 = vrot.slane %v3454, 2
        %v3973 = vsel %vm2069, %v3970, %v3972
        %v3974 = vrot.slane %v3456, 2
        %v3975 = vsel %vm2069, %v3972, %v3974
        %v3976 = vrot.slane %v3459, 2
        %v3977 = vsel %vm2069, %v3974, %v3976
        %v4042 = vadd.f32 %v3720, %v3851
        %v4043 = vadd.f32 %v3721, %v3853
        %v4044 = vadd.f32 %v3722, %v3855
        %v4045 = vadd.f32 %v3723, %v3857
        %v4046 = vadd.f32 %v3724, %v3859
        %v4047 = vadd.f32 %v3725, %v3861
        %v4048 = vadd.f32 %v3726, %v3863
        %v4049 = vadd.f32 %v3727, %v3865
        %v4050 = vadd.f32 %v3728, %v3867
        %v4051 = vadd.f32 %v3729, %v3869
        %v4052 = vadd.f32 %v3730, %v3871
        %v4053 = vadd.f32 %v3731, %v3873
        %v4054 = vadd.f32 %v3732, %v3875
        %v4055 = vadd.f32 %v3733, %v3877
        %v4056 = vadd.f32 %v3734, %v3879
        %v4057 = vadd.f32 %v3735, %v3881
        %v4058 = vadd.f32 %v3736, %v3883
        %v4059 = vadd.f32 %v3737, %v3885
        %v4060 = vadd.f32 %v3738, %v3887
        %v4061 = vadd.f32 %v3739, %v3889
        %v4062 = vadd.f32 %v3740, %v3891
        %v4063 = vadd.f32 %v3741, %v3893
        %v4064 = vadd.f32 %v3742, %v3895
        %v4065 = vadd.f32 %v3743, %v3897
        %v4066 = vadd.f32 %v3744, %v3899
        %v4067 = vadd.f32 %v3745, %v3901
        %v4068 = vadd.f32 %v3746, %v3903
        %v4069 = vadd.f32 %v3747, %v3905
        %v4070 = vadd.f32 %v3748, %v3907
        %v4071 = vadd.f32 %v3749, %v3909
        %v4072 = vadd.f32 %v3750, %v3911
        %v4073 = vadd.f32 %v3751, %v3913
        %v4074 = vadd.f32 %v3752, %v3915
        %v4075 = vadd.f32 %v3753, %v3917
        %v4076 = vadd.f32 %v3754, %v3919
        %v4077 = vadd.f32 %v3755, %v3921
        %v4078 = vadd.f32 %v3756, %v3923
        %v4079 = vadd.f32 %v3757, %v3925
        %v4080 = vadd.f32 %v3758, %v3927
        %v4081 = vadd.f32 %v3759, %v3929
        %v4082 = vadd.f32 %v3760, %v3931
        %v4083 = vadd.f32 %v3761, %v3933
        %v4084 = vadd.f32 %v3762, %v3935
        %v4085 = vadd.f32 %v3763, %v3937
        %v4086 = vadd.f32 %v3764, %v3939
        %v4087 = vadd.f32 %v3765, %v3941
        %v4088 = vadd.f32 %v3766, %v3943
        %v4089 = vadd.f32 %v3767, %v3945
        %v4090 = vadd.f32 %v3768, %v3947
        %v4091 = vadd.f32 %v3769, %v3949
        %v4092 = vadd.f32 %v3770, %v3951
        %v4093 = vadd.f32 %v3771, %v3953
        %v4094 = vadd.f32 %v3772, %v3955
        %v4095 = vadd.f32 %v3773, %v3957
        %v4096 = vadd.f32 %v3774, %v3959
        %v4097 = vadd.f32 %v3775, %v3961
        %v4098 = vadd.f32 %v3776, %v3963
        %v4099 = vadd.f32 %v3777, %v3965
        %v4100 = vadd.f32 %v3778, %v3967
        %v4101 = vadd.f32 %v3779, %v3969
        %v4102 = vadd.f32 %v3780, %v3971
        %v4103 = vadd.f32 %v3781, %v3973
        %v4104 = vadd.f32 %v3782, %v3975
        %v4105 = vadd.f32 %v3783, %v3977
        %v4106 = vld [vmem:[%s665] sm:$0xff]
        %v4107 = vld [vmem:[%s665 + $0x8] sm:$0xff]
        %v4108 = vld [vmem:[%s665 + $0x10] sm:$0xff]
        %v4109 = vld [vmem:[%s665 + $0x18] sm:$0xff]
        %v4110 = vld [vmem:[%s665 + $0x20] sm:$0xff]
        %v4111 = vld [vmem:[%s665 + $0x28] sm:$0xff]
        %v4112 = vld [vmem:[%s665 + $0x30] sm:$0xff]
        %v4113 = vld [vmem:[%s665 + $0x38] sm:$0xff]
        %v4114 = vld [vmem:[%s665 + $0x40] sm:$0xff]
        %v4115 = vld [vmem:[%s665 + $0x48] sm:$0xff]
        %v4116 = vld [vmem:[%s665 + $0x50] sm:$0xff]
        %v4117 = vld [vmem:[%s665 + $0x58] sm:$0xff]
        %v4118 = vld [vmem:[%s665 + $0x60] sm:$0xff]
        %v4119 = vld [vmem:[%s665 + $0x68] sm:$0xff]
        %v4120 = vld [vmem:[%s665 + $0x70] sm:$0xff]
        %v4121 = vld [vmem:[%s665 + $0x78] sm:$0xff]
        %v4122 = vld [vmem:[%s665 + $0x80] sm:$0xff]
        %v4123 = vld [vmem:[%s665 + $0x88] sm:$0xff]
        %v4124 = vld [vmem:[%s665 + $0x90] sm:$0xff]
        %v4125 = vld [vmem:[%s665 + $0x98] sm:$0xff]
        %v4126 = vld [vmem:[%s665 + $0xa0] sm:$0xff]
        %v4127 = vld [vmem:[%s665 + $0xa8] sm:$0xff]
        %v4128 = vld [vmem:[%s665 + $0xb0] sm:$0xff]
        %v4129 = vld [vmem:[%s665 + $0xb8] sm:$0xff]
        %v4130 = vld [vmem:[%s665 + $0xc0] sm:$0xff]
        %v4131 = vld [vmem:[%s665 + $0xc8] sm:$0xff]
        %v4132 = vld [vmem:[%s665 + $0xd0] sm:$0xff]
        %v4133 = vld [vmem:[%s665 + $0xd8] sm:$0xff]
        %v4134 = vld [vmem:[%s665 + $0xe0] sm:$0xff]
        %v4135 = vld [vmem:[%s665 + $0xe8] sm:$0xff]
        %v4136 = vld [vmem:[%s665 + $0xf0] sm:$0xff]
        %v4137 = vld [vmem:[%s665 + $0xf8] sm:$0xff]
        %v4138 = vld [vmem:[%s665 + $0x100] sm:$0xff]
        %v4139 = vld [vmem:[%s665 + $0x108] sm:$0xff]
        %v4140 = vld [vmem:[%s665 + $0x110] sm:$0xff]
        %v4141 = vld [vmem:[%s665 + $0x118] sm:$0xff]
        %v4142 = vld [vmem:[%s665 + $0x120] sm:$0xff]
        %v4143 = vld [vmem:[%s665 + $0x128] sm:$0xff]
        %v4144 = vld [vmem:[%s665 + $0x130] sm:$0xff]
        %v4145 = vld [vmem:[%s665 + $0x138] sm:$0xff]
        %v4146 = vld [vmem:[%s665 + $0x140] sm:$0xff]
        %v4147 = vld [vmem:[%s665 + $0x148] sm:$0xff]
        %v4148 = vld [vmem:[%s665 + $0x150] sm:$0xff]
        %v4149 = vld [vmem:[%s665 + $0x158] sm:$0xff]
        %v4150 = vld [vmem:[%s665 + $0x160] sm:$0xff]
        %v4151 = vld [vmem:[%s665 + $0x168] sm:$0xff]
        %v4152 = vld [vmem:[%s665 + $0x170] sm:$0xff]
        %v4153 = vld [vmem:[%s665 + $0x178] sm:$0xff]
        %v4154 = vld [vmem:[%s665 + $0x180] sm:$0xff]
        %v4155 = vld [vmem:[%s665 + $0x188] sm:$0xff]
        %v4156 = vld [vmem:[%s665 + $0x190] sm:$0xff]
        %v4157 = vld [vmem:[%s665 + $0x198] sm:$0xff]
        %v4158 = vld [vmem:[%s665 + $0x1a0] sm:$0xff]
        %v4159 = vld [vmem:[%s665 + $0x1a8] sm:$0xff]
        %v4160 = vld [vmem:[%s665 + $0x1b0] sm:$0xff]
        %v4161 = vld [vmem:[%s665 + $0x1b8] sm:$0xff]
        %v4162 = vld [vmem:[%s665 + $0x1c0] sm:$0xff]
        %v4163 = vld [vmem:[%s665 + $0x1c8] sm:$0xff]
        %v4164 = vld [vmem:[%s665 + $0x1d0] sm:$0xff]
        %v4165 = vld [vmem:[%s665 + $0x1d8] sm:$0xff]
        %v4166 = vld [vmem:[%s665 + $0x1e0] sm:$0xff]
        %v4167 = vld [vmem:[%s665 + $0x1e8] sm:$0xff]
        %v4168 = vld [vmem:[%s665 + $0x1f0] sm:$0xff]
        %v4169 = vld [vmem:[%s665 + $0x1f8] sm:$0xff]
        %v4170 = vadd.f32 %v4106, %v4042
        %v4171 = vadd.f32 %v4107, %v4043
        %v4172 = vadd.f32 %v4108, %v4044
        %v4173 = vadd.f32 %v4109, %v4045
        %v4174 = vadd.f32 %v4110, %v4046
        %v4175 = vadd.f32 %v4111, %v4047
        %v4176 = vadd.f32 %v4112, %v4048
        %v4177 = vadd.f32 %v4113, %v4049
        %v4178 = vadd.f32 %v4114, %v4050
        %v4179 = vadd.f32 %v4115, %v4051
        %v4180 = vadd.f32 %v4116, %v4052
        %v4181 = vadd.f32 %v4117, %v4053
        %v4182 = vadd.f32 %v4118, %v4054
        %v4183 = vadd.f32 %v4119, %v4055
        %v4184 = vadd.f32 %v4120, %v4056
        %v4185 = vadd.f32 %v4121, %v4057
        %v4186 = vadd.f32 %v4122, %v4058
        %v4187 = vadd.f32 %v4123, %v4059
        %v4188 = vadd.f32 %v4124, %v4060
        %v4189 = vadd.f32 %v4125, %v4061
        %v4190 = vadd.f32 %v4126, %v4062
        %v4191 = vadd.f32 %v4127, %v4063
        %v4192 = vadd.f32 %v4128, %v4064
        %v4193 = vadd.f32 %v4129, %v4065
        %v4194 = vadd.f32 %v4130, %v4066
        %v4195 = vadd.f32 %v4131, %v4067
        %v4196 = vadd.f32 %v4132, %v4068
        %v4197 = vadd.f32 %v4133, %v4069
        %v4198 = vadd.f32 %v4134, %v4070
        %v4199 = vadd.f32 %v4135, %v4071
        %v4200 = vadd.f32 %v4136, %v4072
        %v4201 = vadd.f32 %v4137, %v4073
        %v4202 = vadd.f32 %v4138, %v4074
        %v4203 = vadd.f32 %v4139, %v4075
        %v4204 = vadd.f32 %v4140, %v4076
        %v4205 = vadd.f32 %v4141, %v4077
        %v4206 = vadd.f32 %v4142, %v4078
        %v4207 = vadd.f32 %v4143, %v4079
        %v4208 = vadd.f32 %v4144, %v4080
        %v4209 = vadd.f32 %v4145, %v4081
        %v4210 = vadd.f32 %v4146, %v4082
        %v4211 = vadd.f32 %v4147, %v4083
        %v4212 = vadd.f32 %v4148, %v4084
        %v4213 = vadd.f32 %v4149, %v4085
        %v4214 = vadd.f32 %v4150, %v4086
        %v4215 = vadd.f32 %v4151, %v4087
        %v4216 = vadd.f32 %v4152, %v4088
        %v4217 = vadd.f32 %v4153, %v4089
        %v4218 = vadd.f32 %v4154, %v4090
        %v4219 = vadd.f32 %v4155, %v4091
        %v4220 = vadd.f32 %v4156, %v4092
        %v4221 = vadd.f32 %v4157, %v4093
        %v4222 = vadd.f32 %v4158, %v4094
        %v4223 = vadd.f32 %v4159, %v4095
        %v4224 = vadd.f32 %v4160, %v4096
        %v4225 = vadd.f32 %v4161, %v4097
        %v4226 = vadd.f32 %v4162, %v4098
        %v4227 = vadd.f32 %v4163, %v4099
        %v4228 = vadd.f32 %v4164, %v4100
        %v4229 = vadd.f32 %v4165, %v4101
        %v4230 = vadd.f32 %v4166, %v4102
        %v4231 = vadd.f32 %v4167, %v4103
        %v4232 = vadd.f32 %v4168, %v4104
        %v4233 = vadd.f32 %v4169, %v4105
        %4234 = vst [vmem:[%s665] sm:$0xff] %v4170
        %4235 = vst [vmem:[%s665 + $0x8] sm:$0xff] %v4171
        %4236 = vst [vmem:[%s665 + $0x10] sm:$0xff] %v4172
        %4237 = vst [vmem:[%s665 + $0x18] sm:$0xff] %v4173
        %4238 = vst [vmem:[%s665 + $0x20] sm:$0xff] %v4174
        %4239 = vst [vmem:[%s665 + $0x28] sm:$0xff] %v4175
        %4240 = vst [vmem:[%s665 + $0x30] sm:$0xff] %v4176
        %4241 = vst [vmem:[%s665 + $0x38] sm:$0xff] %v4177
        %4242 = vst [vmem:[%s665 + $0x40] sm:$0xff] %v4178
        %4243 = vst [vmem:[%s665 + $0x48] sm:$0xff] %v4179
        %4244 = vst [vmem:[%s665 + $0x50] sm:$0xff] %v4180
        %4245 = vst [vmem:[%s665 + $0x58] sm:$0xff] %v4181
        %4246 = vst [vmem:[%s665 + $0x60] sm:$0xff] %v4182
        %4247 = vst [vmem:[%s665 + $0x68] sm:$0xff] %v4183
        %4248 = vst [vmem:[%s665 + $0x70] sm:$0xff] %v4184
        %4249 = vst [vmem:[%s665 + $0x78] sm:$0xff] %v4185
        %4250 = vst [vmem:[%s665 + $0x80] sm:$0xff] %v4186
        %4251 = vst [vmem:[%s665 + $0x88] sm:$0xff] %v4187
        %4252 = vst [vmem:[%s665 + $0x90] sm:$0xff] %v4188
        %4253 = vst [vmem:[%s665 + $0x98] sm:$0xff] %v4189
        %4254 = vst [vmem:[%s665 + $0xa0] sm:$0xff] %v4190
        %4255 = vst [vmem:[%s665 + $0xa8] sm:$0xff] %v4191
        %4256 = vst [vmem:[%s665 + $0xb0] sm:$0xff] %v4192
        %4257 = vst [vmem:[%s665 + $0xb8] sm:$0xff] %v4193
        %4258 = vst [vmem:[%s665 + $0xc0] sm:$0xff] %v4194
        %4259 = vst [vmem:[%s665 + $0xc8] sm:$0xff] %v4195
        %4260 = vst [vmem:[%s665 + $0xd0] sm:$0xff] %v4196
        %4261 = vst [vmem:[%s665 + $0xd8] sm:$0xff] %v4197
        %4262 = vst [vmem:[%s665 + $0xe0] sm:$0xff] %v4198
        %4263 = vst [vmem:[%s665 + $0xe8] sm:$0xff] %v4199
        %4264 = vst [vmem:[%s665 + $0xf0] sm:$0xff] %v4200
        %4265 = vst [vmem:[%s665 + $0xf8] sm:$0xff] %v4201
        %4266 = vst [vmem:[%s665 + $0x100] sm:$0xff] %v4202
        %4267 = vst [vmem:[%s665 + $0x108] sm:$0xff] %v4203
        %4268 = vst [vmem:[%s665 + $0x110] sm:$0xff] %v4204
        %4269 = vst [vmem:[%s665 + $0x118] sm:$0xff] %v4205
        %4270 = vst [vmem:[%s665 + $0x120] sm:$0xff] %v4206
        %4271 = vst [vmem:[%s665 + $0x128] sm:$0xff] %v4207
        %4272 = vst [vmem:[%s665 + $0x130] sm:$0xff] %v4208
        %4273 = vst [vmem:[%s665 + $0x138] sm:$0xff] %v4209
        %4274 = vst [vmem:[%s665 + $0x140] sm:$0xff] %v4210
        %4275 = vst [vmem:[%s665 + $0x148] sm:$0xff] %v4211
        %4276 = vst [vmem:[%s665 + $0x150] sm:$0xff] %v4212
        %4277 = vst [vmem:[%s665 + $0x158] sm:$0xff] %v4213
        %4278 = vst [vmem:[%s665 + $0x160] sm:$0xff] %v4214
        %4279 = vst [vmem:[%s665 + $0x168] sm:$0xff] %v4215
        %4280 = vst [vmem:[%s665 + $0x170] sm:$0xff] %v4216
        %4281 = vst [vmem:[%s665 + $0x178] sm:$0xff] %v4217
        %4282 = vst [vmem:[%s665 + $0x180] sm:$0xff] %v4218
        %4283 = vst [vmem:[%s665 + $0x188] sm:$0xff] %v4219
        %4284 = vst [vmem:[%s665 + $0x190] sm:$0xff] %v4220
        %4285 = vst [vmem:[%s665 + $0x198] sm:$0xff] %v4221
        %4286 = vst [vmem:[%s665 + $0x1a0] sm:$0xff] %v4222
        %4287 = vst [vmem:[%s665 + $0x1a8] sm:$0xff] %v4223
        %4288 = vst [vmem:[%s665 + $0x1b0] sm:$0xff] %v4224
        %4289 = vst [vmem:[%s665 + $0x1b8] sm:$0xff] %v4225
        %4290 = vst [vmem:[%s665 + $0x1c0] sm:$0xff] %v4226
        %4291 = vst [vmem:[%s665 + $0x1c8] sm:$0xff] %v4227
        %4292 = vst [vmem:[%s665 + $0x1d0] sm:$0xff] %v4228
        %4293 = vst [vmem:[%s665 + $0x1d8] sm:$0xff] %v4229
        %4294 = vst [vmem:[%s665 + $0x1e0] sm:$0xff] %v4230
        %4295 = vst [vmem:[%s665 + $0x1e8] sm:$0xff] %v4231
        %4296 = vst [vmem:[%s665 + $0x1f0] sm:$0xff] %v4232
        %4297 = vst [vmem:[%s665 + $0x1f8] sm:$0xff] %v4233
        %v4298 = vld [vmem:[%s617 + $0x20] sm:$0xf]
        %v4299 = vld [vmem:[%s617 + $0x24] sm:$0xf]
        %v4300 = vld [vmem:[%s617 + $0x28] sm:$0xf]
        %v4301 = vld [vmem:[%s617 + $0x2c] sm:$0xf]
        %v4302 = vld [vmem:[%s617 + $0x30] sm:$0xf]
        %v4303 = vld [vmem:[%s617 + $0x34] sm:$0xf]
        %v4304 = vld [vmem:[%s617 + $0x38] sm:$0xf]
        %v4305 = vld [vmem:[%s617 + $0x3c] sm:$0xf]
        %v4306 = vld [vmem:[%s617 + $0x40] sm:$0xf]
        %v4307 = vld [vmem:[%s617 + $0x44] sm:$0xf]
        %v4308 = vld [vmem:[%s617 + $0x48] sm:$0xf]
        %v4309 = vld [vmem:[%s617 + $0x4c] sm:$0xf]
        %v4310 = vld [vmem:[%s617 + $0x50] sm:$0xf]
        %v4311 = vld [vmem:[%s617 + $0x54] sm:$0xf]
        %v4312 = vld [vmem:[%s617 + $0x58] sm:$0xf]
        %v4313 = vld [vmem:[%s617 + $0x5c] sm:$0xf]
        %v4314 = vld [vmem:[%s617 + $0x60] sm:$0xf]
        %v4315 = vld [vmem:[%s617 + $0x64] sm:$0xf]
        %v4316 = vld [vmem:[%s617 + $0x68] sm:$0xf]
        %v4317 = vld [vmem:[%s617 + $0x6c] sm:$0xf]
        %v4318 = vld [vmem:[%s617 + $0x70] sm:$0xf]
        %v4319 = vld [vmem:[%s617 + $0x74] sm:$0xf]
        %v4320 = vld [vmem:[%s617 + $0x78] sm:$0xf]
        %v4321 = vld [vmem:[%s617 + $0x7c] sm:$0xf]
        %v4322 = vld [vmem:[%s617 + $0x80] sm:$0xf]
        %v4323 = vld [vmem:[%s617 + $0x84] sm:$0xf]
        %v4324 = vld [vmem:[%s617 + $0x88] sm:$0xf]
        %v4325 = vld [vmem:[%s617 + $0x8c] sm:$0xf]
        %v4326 = vld [vmem:[%s617 + $0x90] sm:$0xf]
        %v4327 = vld [vmem:[%s617 + $0x94] sm:$0xf]
        %v4328 = vld [vmem:[%s617 + $0x98] sm:$0xf]
        %v4329 = vld [vmem:[%s617 + $0x9c] sm:$0xf]
        %v4330 = vld [vmem:[%s617 + $0xa0] sm:$0xf]
        %v4331 = vld [vmem:[%s617 + $0xa4] sm:$0xf]
        %v4332 = vld [vmem:[%s617 + $0xa8] sm:$0xf]
        %v4333 = vld [vmem:[%s617 + $0xac] sm:$0xf]
        %v4334 = vld [vmem:[%s617 + $0xb0] sm:$0xf]
        %v4335 = vld [vmem:[%s617 + $0xb4] sm:$0xf]
        %v4336 = vld [vmem:[%s617 + $0xb8] sm:$0xf]
        %v4337 = vld [vmem:[%s617 + $0xbc] sm:$0xf]
        %v4338 = vld [vmem:[%s617 + $0xc0] sm:$0xf]
        %v4339 = vld [vmem:[%s617 + $0xc4] sm:$0xf]
        %v4340 = vld [vmem:[%s617 + $0xc8] sm:$0xf]
        %v4341 = vld [vmem:[%s617 + $0xcc] sm:$0xf]
        %v4342 = vld [vmem:[%s617 + $0xd0] sm:$0xf]
        %v4343 = vld [vmem:[%s617 + $0xd4] sm:$0xf]
        %v4344 = vld [vmem:[%s617 + $0xd8] sm:$0xf]
        %v4345 = vld [vmem:[%s617 + $0xdc] sm:$0xf]
        %v4346 = vld [vmem:[%s617 + $0xe0] sm:$0xf]
        %v4347 = vld [vmem:[%s617 + $0xe4] sm:$0xf]
        %v4348 = vld [vmem:[%s617 + $0xe8] sm:$0xf]
        %v4349 = vld [vmem:[%s617 + $0xec] sm:$0xf]
        %v4350 = vld [vmem:[%s617 + $0xf0] sm:$0xf]
        %v4351 = vld [vmem:[%s617 + $0xf4] sm:$0xf]
        %v4352 = vld [vmem:[%s617 + $0xf8] sm:$0xf]
        %v4353 = vld [vmem:[%s617 + $0xfc] sm:$0xf]
        %v4354 = vld [vmem:[%s617 + $0x100] sm:$0xf]
        %v4355 = vld [vmem:[%s617 + $0x104] sm:$0xf]
        %v4356 = vld [vmem:[%s617 + $0x108] sm:$0xf]
        %v4357 = vld [vmem:[%s617 + $0x10c] sm:$0xf]
        %v4358 = vld [vmem:[%s617 + $0x110] sm:$0xf]
        %v4359 = vld [vmem:[%s617 + $0x114] sm:$0xf]
        %v4360 = vld [vmem:[%s617 + $0x118] sm:$0xf]
        %v4361 = vld [vmem:[%s617 + $0x11c] sm:$0xf]
        %v4362 = vld [vmem:[%s617 + $0x120] sm:$0xf]
        %v4363 = vld [vmem:[%s617 + $0x124] sm:$0xf]
        %s4364 = scalar_lea.vmem %s660, 384
        %v4365 = vld [vmem:[%s4364] sm:$0xff]
        %v4366 = vld [vmem:[%s4364 + $0x8] sm:$0xf]
        %v4367 = vld [vmem:[%s4364 + $0xc] sm:$0xff]
        %v4368 = vld [vmem:[%s4364 + $0x14] sm:$0xf]
        %v4369 = vld [vmem:[%s4364 + $0x18] sm:$0xff]
        %v4370 = vld [vmem:[%s4364 + $0x20] sm:$0xf]
        %v4371 = vld [vmem:[%s4364 + $0x24] sm:$0xff]
        %v4372 = vld [vmem:[%s4364 + $0x2c] sm:$0xf]
        %v4373 = vld [vmem:[%s4364 + $0x30] sm:$0xff]
        %v4374 = vld [vmem:[%s4364 + $0x38] sm:$0xf]
        %v4375 = vld [vmem:[%s4364 + $0x3c] sm:$0xff]
        %v4376 = vld [vmem:[%s4364 + $0x44] sm:$0xf]
        %v4377 = vld [vmem:[%s4364 + $0x48] sm:$0xff]
        %v4378 = vld [vmem:[%s4364 + $0x50] sm:$0xf]
        %v4379 = vld [vmem:[%s4364 + $0x54] sm:$0xff]
        %v4380 = vld [vmem:[%s4364 + $0x5c] sm:$0xf]
        %v4381 = vld [vmem:[%s4364 + $0x60] sm:$0xff]
        %v4382 = vld [vmem:[%s4364 + $0x68] sm:$0xf]
        %v4383 = vld [vmem:[%s4364 + $0x6c] sm:$0xff]
        %v4384 = vld [vmem:[%s4364 + $0x74] sm:$0xf]
        %v4385 = vld [vmem:[%s4364 + $0x78] sm:$0xff]
        %v4386 = vld [vmem:[%s4364 + $0x80] sm:$0xf]
        %v4387 = vld [vmem:[%s4364 + $0x84] sm:$0xff]
        %v4388 = vld [vmem:[%s4364 + $0x8c] sm:$0xf]
        %v4389 = vld [vmem:[%s4364 + $0x90] sm:$0xff]
        %v4390 = vld [vmem:[%s4364 + $0x98] sm:$0xf]
        %v4391 = vld [vmem:[%s4364 + $0x9c] sm:$0xff]
        %v4392 = vld [vmem:[%s4364 + $0xa4] sm:$0xf]
        %v4393 = vld [vmem:[%s4364 + $0xa8] sm:$0xff]
        %v4394 = vld [vmem:[%s4364 + $0xb0] sm:$0xf]
        %v4395 = vld [vmem:[%s4364 + $0xb4] sm:$0xff]
        %v4396 = vld [vmem:[%s4364 + $0xbc] sm:$0xf]
        %v4463 = vunpack.c.l.b16 %v4298
        %v4464 = vunpack.c.l.b16 %v4299
        %v4465 = vunpack.c.l.b16 %v4300
        %v4466 = vunpack.c.l.b16 %v4301
        %v4467 = vunpack.c.l.b16 %v4302
        %v4468 = vunpack.c.l.b16 %v4303
        %v4469 = vunpack.c.l.b16 %v4304
        %v4470 = vunpack.c.l.b16 %v4305
        %v4471 = vunpack.c.l.b16 %v4306
        %v4472 = vunpack.c.l.b16 %v4307
        %v4473 = vunpack.c.l.b16 %v4308
        %v4474 = vunpack.c.l.b16 %v4309
        %v4475 = vunpack.c.l.b16 %v4310
        %v4476 = vunpack.c.l.b16 %v4311
        %v4477 = vunpack.c.l.b16 %v4312
        %v4478 = vunpack.c.l.b16 %v4313
        %v4479 = vunpack.c.l.b16 %v4314
        %v4480 = vunpack.c.l.b16 %v4315
        %v4481 = vunpack.c.l.b16 %v4316
        %v4482 = vunpack.c.l.b16 %v4317
        %v4483 = vunpack.c.l.b16 %v4318
        %v4484 = vunpack.c.l.b16 %v4319
        %v4485 = vunpack.c.l.b16 %v4320
        %v4486 = vunpack.c.l.b16 %v4321
        %v4487 = vunpack.c.l.b16 %v4322
        %v4488 = vunpack.c.l.b16 %v4323
        %v4489 = vunpack.c.l.b16 %v4324
        %v4490 = vunpack.c.l.b16 %v4325
        %v4491 = vunpack.c.l.b16 %v4326
        %v4492 = vunpack.c.l.b16 %v4327
        %v4493 = vunpack.c.l.b16 %v4328
        %v4494 = vunpack.c.l.b16 %v4329
        %v4495 = vunpack.c.l.b16 %v4330
        %v4496 = vunpack.c.l.b16 %v4331
        %v4497 = vunpack.c.l.b16 %v4332
        %v4498 = vunpack.c.l.b16 %v4333
        %v4499 = vunpack.c.l.b16 %v4334
        %v4500 = vunpack.c.l.b16 %v4335
        %v4501 = vunpack.c.l.b16 %v4336
        %v4502 = vunpack.c.l.b16 %v4337
        %v4503 = vunpack.c.l.b16 %v4338
        %v4504 = vunpack.c.l.b16 %v4339
        %v4505 = vunpack.c.l.b16 %v4340
        %v4506 = vunpack.c.l.b16 %v4341
        %v4507 = vunpack.c.l.b16 %v4342
        %v4508 = vunpack.c.l.b16 %v4343
        %v4509 = vunpack.c.l.b16 %v4344
        %v4510 = vunpack.c.l.b16 %v4345
        %v4511 = vunpack.c.l.b16 %v4346
        %v4512 = vunpack.c.l.b16 %v4347
        %v4513 = vunpack.c.l.b16 %v4348
        %v4514 = vunpack.c.l.b16 %v4349
        %v4515 = vunpack.c.l.b16 %v4350
        %v4516 = vunpack.c.l.b16 %v4351
        %v4517 = vunpack.c.l.b16 %v4352
        %v4518 = vunpack.c.l.b16 %v4353
        %v4519 = vunpack.c.l.b16 %v4354
        %v4520 = vunpack.c.l.b16 %v4355
        %v4521 = vunpack.c.l.b16 %v4356
        %v4522 = vunpack.c.l.b16 %v4357
        %v4523 = vunpack.c.l.b16 %v4358
        %v4524 = vunpack.c.l.b16 %v4359
        %v4525 = vunpack.c.l.b16 %v4360
        %v4526 = vunpack.c.l.b16 %v4361
        %v4527 = vunpack.c.l.b16 %v4362
        %v4528 = vunpack.c.l.b16 %v4363
        %v4529 = vpack.c.b16 %v4464, %v4463
        %v4530 = vpack.c.b16 %v4466, %v4465
        %v4531 = vpack.c.b16 %v4468, %v4467
        %v4532 = vpack.c.b16 %v4470, %v4469
        %v4533 = vpack.c.b16 %v4472, %v4471
        %v4534 = vpack.c.b16 %v4474, %v4473
        %v4535 = vpack.c.b16 %v4476, %v4475
        %v4536 = vpack.c.b16 %v4478, %v4477
        %v4537 = vpack.c.b16 %v4480, %v4479
        %v4538 = vpack.c.b16 %v4482, %v4481
        %v4539 = vpack.c.b16 %v4484, %v4483
        %v4540 = vpack.c.b16 %v4486, %v4485
        %v4541 = vpack.c.b16 %v4488, %v4487
        %v4542 = vpack.c.b16 %v4490, %v4489
        %v4543 = vpack.c.b16 %v4492, %v4491
        %v4544 = vpack.c.b16 %v4494, %v4493
        %v4545 = vpack.c.b16 %v4496, %v4495
        %v4546 = vpack.c.b16 %v4498, %v4497
        %v4547 = vpack.c.b16 %v4500, %v4499
        %v4548 = vpack.c.b16 %v4502, %v4501
        %v4549 = vpack.c.b16 %v4504, %v4503
        %v4550 = vpack.c.b16 %v4506, %v4505
        %v4551 = vpack.c.b16 %v4508, %v4507
        %v4552 = vpack.c.b16 %v4510, %v4509
        %v4553 = vpack.c.b16 %v4512, %v4511
        %v4554 = vpack.c.b16 %v4514, %v4513
        %v4555 = vpack.c.b16 %v4516, %v4515
        %v4556 = vpack.c.b16 %v4518, %v4517
        %v4557 = vpack.c.b16 %v4520, %v4519
        %v4558 = vpack.c.b16 %v4522, %v4521
        %v4559 = vpack.c.b16 %v4524, %v4523
        %v4560 = vpack.c.b16 %v4526, %v4525
        %v4561 = vpack.c.b16 %v4528, %v4527
        %v4627 = vunpack.c.l.b16 %v4365
        %v4628 = vunpack.c.h.b16 %v4365
        %v4629 = vunpack.c.l.b16 %v4366
        %v4630 = vunpack.c.l.b16 %v4367
        %v4631 = vunpack.c.h.b16 %v4367
        %v4632 = vunpack.c.l.b16 %v4368
        %v4633 = vunpack.c.l.b16 %v4369
        %v4634 = vunpack.c.h.b16 %v4369
        %v4635 = vunpack.c.l.b16 %v4370
        %v4636 = vunpack.c.l.b16 %v4371
        %v4637 = vunpack.c.h.b16 %v4371
        %v4638 = vunpack.c.l.b16 %v4372
        %v4639 = vunpack.c.l.b16 %v4373
        %v4640 = vunpack.c.h.b16 %v4373
        %v4641 = vunpack.c.l.b16 %v4374
        %v4642 = vunpack.c.l.b16 %v4375
        %v4643 = vunpack.c.h.b16 %v4375
        %v4644 = vunpack.c.l.b16 %v4376
        %v4645 = vunpack.c.l.b16 %v4377
        %v4646 = vunpack.c.h.b16 %v4377
        %v4647 = vunpack.c.l.b16 %v4378
        %v4648 = vunpack.c.l.b16 %v4379
        %v4649 = vunpack.c.h.b16 %v4379
        %v4650 = vunpack.c.l.b16 %v4380
        %v4651 = vunpack.c.l.b16 %v4381
        %v4652 = vunpack.c.h.b16 %v4381
        %v4653 = vunpack.c.l.b16 %v4382
        %v4654 = vunpack.c.l.b16 %v4383
        %v4655 = vunpack.c.h.b16 %v4383
        %v4656 = vunpack.c.l.b16 %v4384
        %v4657 = vunpack.c.l.b16 %v4385
        %v4658 = vunpack.c.h.b16 %v4385
        %v4659 = vunpack.c.l.b16 %v4386
        %v4660 = vunpack.c.l.b16 %v4387
        %v4661 = vunpack.c.h.b16 %v4387
        %v4662 = vunpack.c.l.b16 %v4388
        %v4663 = vunpack.c.l.b16 %v4389
        %v4664 = vunpack.c.h.b16 %v4389
        %v4665 = vunpack.c.l.b16 %v4390
        %v4666 = vunpack.c.l.b16 %v4391
        %v4667 = vunpack.c.h.b16 %v4391
        %v4668 = vunpack.c.l.b16 %v4392
        %v4669 = vunpack.c.l.b16 %v4393
        %v4670 = vunpack.c.h.b16 %v4393
        %v4671 = vunpack.c.l.b16 %v4394
        %v4672 = vunpack.c.l.b16 %v4395
        %v4673 = vunpack.c.h.b16 %v4395
        %v4674 = vunpack.c.l.b16 %v4396
        %v4675 = vpack.c.b16 %v4630, %v4627
        %v4676 = vpack.c.b16 %v4631, %v4628
        %v4677 = vpack.c.b16 %v4632, %v4629
        %v4678 = vpack.c.b16 %v4636, %v4633
        %v4679 = vpack.c.b16 %v4637, %v4634
        %v4680 = vpack.c.b16 %v4638, %v4635
        %v4681 = vpack.c.b16 %v4642, %v4639
        %v4682 = vpack.c.b16 %v4643, %v4640
        %v4683 = vpack.c.b16 %v4644, %v4641
        %v4684 = vpack.c.b16 %v4648, %v4645
        %v4685 = vpack.c.b16 %v4649, %v4646
        %v4686 = vpack.c.b16 %v4650, %v4647
        %v4687 = vpack.c.b16 %v4654, %v4651
        %v4688 = vpack.c.b16 %v4655, %v4652
        %v4689 = vpack.c.b16 %v4656, %v4653
        %v4690 = vpack.c.b16 %v4660, %v4657
        %v4691 = vpack.c.b16 %v4661, %v4658
        %v4692 = vpack.c.b16 %v4662, %v4659
        %v4693 = vpack.c.b16 %v4666, %v4663
        %v4694 = vpack.c.b16 %v4667, %v4664
        %v4695 = vpack.c.b16 %v4668, %v4665
        %v4696 = vpack.c.b16 %v4672, %v4669
        %v4697 = vpack.c.b16 %v4673, %v4670
        %v4698 = vpack.c.b16 %v4674, %v4671
        %4723 = vmatpush.bf16.msra.mxu0 %v4696
        %4724 = vmatpush.bf16.msra.mxu0 %v4693
        %4725 = vmatpush.bf16.msra.mxu0 %v4690
        %4726 = vmatpush.bf16.msra.mxu0 %v4687
        %4727 = vmatpush.bf16.msra.mxu0 %v4684
        %4728 = vmatpush.bf16.msra.mxu0 %v4681
        %4729 = vmatpush.bf16.msra.mxu0 %v4678
        %4730 = vmatpush.bf16.msra.mxu0 %v4675
        %4731 = vmatmul.bf16.gmra.mxu0 %v4529
        %v4732 = vpop.f32.mrf.mxu0
        %v4733 = vadd.f32 0.0, %v4732
        %v4734 = vpop.f32.mrf.mxu0
        %v4735 = vadd.f32 0.0, %v4734
        %4736 = vmatmul.bf16.gmra.mxu0 %v4530
        %v4737 = vpop.f32.mrf.mxu0
        %v4738 = vadd.f32 0.0, %v4737
        %v4739 = vpop.f32.mrf.mxu0
        %v4740 = vadd.f32 0.0, %v4739
        %4741 = vmatmul.bf16.gmra.mxu0 %v4531
        %v4742 = vpop.f32.mrf.mxu0
        %v4743 = vadd.f32 0.0, %v4742
        %v4744 = vpop.f32.mrf.mxu0
        %v4745 = vadd.f32 0.0, %v4744
        %4746 = vmatmul.bf16.gmra.mxu0 %v4532
        %v4747 = vpop.f32.mrf.mxu0
        %v4748 = vadd.f32 0.0, %v4747
        %v4749 = vpop.f32.mrf.mxu0
        %v4750 = vadd.f32 0.0, %v4749
        %4751 = vmatmul.bf16.gmra.mxu0 %v4533
        %v4752 = vpop.f32.mrf.mxu0
        %v4753 = vadd.f32 0.0, %v4752
        %v4754 = vpop.f32.mrf.mxu0
        %v4755 = vadd.f32 0.0, %v4754
        %4756 = vmatmul.bf16.gmra.mxu0 %v4534
        %v4757 = vpop.f32.mrf.mxu0
        %v4758 = vadd.f32 0.0, %v4757
        %v4759 = vpop.f32.mrf.mxu0
        %v4760 = vadd.f32 0.0, %v4759
        %4761 = vmatmul.bf16.gmra.mxu0 %v4535
        %v4762 = vpop.f32.mrf.mxu0
        %v4763 = vadd.f32 0.0, %v4762
        %v4764 = vpop.f32.mrf.mxu0
        %v4765 = vadd.f32 0.0, %v4764
        %4766 = vmatmul.bf16.gmra.mxu0 %v4536
        %v4767 = vpop.f32.mrf.mxu0
        %v4768 = vadd.f32 0.0, %v4767
        %v4769 = vpop.f32.mrf.mxu0
        %v4770 = vadd.f32 0.0, %v4769
        %4771 = vmatmul.bf16.gmra.mxu0 %v4537
        %v4772 = vpop.f32.mrf.mxu0
        %v4773 = vadd.f32 0.0, %v4772
        %v4774 = vpop.f32.mrf.mxu0
        %v4775 = vadd.f32 0.0, %v4774
        %4776 = vmatmul.bf16.gmra.mxu0 %v4538
        %v4777 = vpop.f32.mrf.mxu0
        %v4778 = vadd.f32 0.0, %v4777
        %v4779 = vpop.f32.mrf.mxu0
        %v4780 = vadd.f32 0.0, %v4779
        %4781 = vmatmul.bf16.gmra.mxu0 %v4539
        %v4782 = vpop.f32.mrf.mxu0
        %v4783 = vadd.f32 0.0, %v4782
        %v4784 = vpop.f32.mrf.mxu0
        %v4785 = vadd.f32 0.0, %v4784
        %4786 = vmatmul.bf16.gmra.mxu0 %v4540
        %v4787 = vpop.f32.mrf.mxu0
        %v4788 = vadd.f32 0.0, %v4787
        %v4789 = vpop.f32.mrf.mxu0
        %v4790 = vadd.f32 0.0, %v4789
        %4791 = vmatmul.bf16.gmra.mxu0 %v4541
        %v4792 = vpop.f32.mrf.mxu0
        %v4793 = vadd.f32 0.0, %v4792
        %v4794 = vpop.f32.mrf.mxu0
        %v4795 = vadd.f32 0.0, %v4794
        %4796 = vmatmul.bf16.gmra.mxu0 %v4542
        %v4797 = vpop.f32.mrf.mxu0
        %v4798 = vadd.f32 0.0, %v4797
        %v4799 = vpop.f32.mrf.mxu0
        %v4800 = vadd.f32 0.0, %v4799
        %4801 = vmatmul.bf16.gmra.mxu0 %v4543
        %v4802 = vpop.f32.mrf.mxu0
        %v4803 = vadd.f32 0.0, %v4802
        %v4804 = vpop.f32.mrf.mxu0
        %v4805 = vadd.f32 0.0, %v4804
        %4806 = vmatmul.bf16.gmra.mxu0 %v4544
        %v4807 = vpop.f32.mrf.mxu0
        %v4808 = vadd.f32 0.0, %v4807
        %v4809 = vpop.f32.mrf.mxu0
        %v4810 = vadd.f32 0.0, %v4809
        %4811 = vmatmul.bf16.gmra.mxu0 %v4545
        %v4812 = vpop.f32.mrf.mxu0
        %v4813 = vadd.f32 0.0, %v4812
        %v4814 = vpop.f32.mrf.mxu0
        %v4815 = vadd.f32 0.0, %v4814
        %4816 = vmatmul.bf16.gmra.mxu0 %v4546
        %v4817 = vpop.f32.mrf.mxu0
        %v4818 = vadd.f32 0.0, %v4817
        %v4819 = vpop.f32.mrf.mxu0
        %v4820 = vadd.f32 0.0, %v4819
        %4821 = vmatmul.bf16.gmra.mxu0 %v4547
        %v4822 = vpop.f32.mrf.mxu0
        %v4823 = vadd.f32 0.0, %v4822
        %v4824 = vpop.f32.mrf.mxu0
        %v4825 = vadd.f32 0.0, %v4824
        %4826 = vmatmul.bf16.gmra.mxu0 %v4548
        %v4827 = vpop.f32.mrf.mxu0
        %v4828 = vadd.f32 0.0, %v4827
        %v4829 = vpop.f32.mrf.mxu0
        %v4830 = vadd.f32 0.0, %v4829
        %4831 = vmatmul.bf16.gmra.mxu0 %v4549
        %v4832 = vpop.f32.mrf.mxu0
        %v4833 = vadd.f32 0.0, %v4832
        %v4834 = vpop.f32.mrf.mxu0
        %v4835 = vadd.f32 0.0, %v4834
        %4836 = vmatmul.bf16.gmra.mxu0 %v4550
        %v4837 = vpop.f32.mrf.mxu0
        %v4838 = vadd.f32 0.0, %v4837
        %v4839 = vpop.f32.mrf.mxu0
        %v4840 = vadd.f32 0.0, %v4839
        %4841 = vmatmul.bf16.gmra.mxu0 %v4551
        %v4842 = vpop.f32.mrf.mxu0
        %v4843 = vadd.f32 0.0, %v4842
        %v4844 = vpop.f32.mrf.mxu0
        %v4845 = vadd.f32 0.0, %v4844
        %4846 = vmatmul.bf16.gmra.mxu0 %v4552
        %v4847 = vpop.f32.mrf.mxu0
        %v4848 = vadd.f32 0.0, %v4847
        %v4849 = vpop.f32.mrf.mxu0
        %v4850 = vadd.f32 0.0, %v4849
        %4851 = vmatmul.bf16.gmra.mxu0 %v4553
        %v4852 = vpop.f32.mrf.mxu0
        %v4853 = vadd.f32 0.0, %v4852
        %v4854 = vpop.f32.mrf.mxu0
        %v4855 = vadd.f32 0.0, %v4854
        %4856 = vmatmul.bf16.gmra.mxu0 %v4554
        %v4857 = vpop.f32.mrf.mxu0
        %v4858 = vadd.f32 0.0, %v4857
        %v4859 = vpop.f32.mrf.mxu0
        %v4860 = vadd.f32 0.0, %v4859
        %4861 = vmatmul.bf16.gmra.mxu0 %v4555
        %v4862 = vpop.f32.mrf.mxu0
        %v4863 = vadd.f32 0.0, %v4862
        %v4864 = vpop.f32.mrf.mxu0
        %v4865 = vadd.f32 0.0, %v4864
        %4866 = vmatmul.bf16.gmra.mxu0 %v4556
        %v4867 = vpop.f32.mrf.mxu0
        %v4868 = vadd.f32 0.0, %v4867
        %v4869 = vpop.f32.mrf.mxu0
        %v4870 = vadd.f32 0.0, %v4869
        %4871 = vmatmul.bf16.gmra.mxu0 %v4557
        %v4872 = vpop.f32.mrf.mxu0
        %v4873 = vadd.f32 0.0, %v4872
        %v4874 = vpop.f32.mrf.mxu0
        %v4875 = vadd.f32 0.0, %v4874
        %4876 = vmatmul.bf16.gmra.mxu0 %v4558
        %v4877 = vpop.f32.mrf.mxu0
        %v4878 = vadd.f32 0.0, %v4877
        %v4879 = vpop.f32.mrf.mxu0
        %v4880 = vadd.f32 0.0, %v4879
        %4881 = vmatmul.bf16.gmra.mxu0 %v4559
        %v4882 = vpop.f32.mrf.mxu0
        %v4883 = vadd.f32 0.0, %v4882
        %v4884 = vpop.f32.mrf.mxu0
        %v4885 = vadd.f32 0.0, %v4884
        %4886 = vmatmul.bf16.gmra.mxu0 %v4560
        %v4887 = vpop.f32.mrf.mxu0
        %v4888 = vadd.f32 0.0, %v4887
        %v4889 = vpop.f32.mrf.mxu0
        %v4890 = vadd.f32 0.0, %v4889
        %4891 = vmatmul.bf16.gmra.mxu0 %v4561
        %v4892 = vpop.f32.mrf.mxu0
        %v4893 = vpop.f32.mrf.mxu0
        %4894 = vdwg.mxu0
        %4895 = vmatpush.bf16.msra.mxu0 %v4697
        %4896 = vmatpush.bf16.msra.mxu0 %v4694
        %4897 = vmatpush.bf16.msra.mxu0 %v4691
        %4898 = vmatpush.bf16.msra.mxu0 %v4688
        %4899 = vmatpush.bf16.msra.mxu0 %v4685
        %4900 = vmatpush.bf16.msra.mxu0 %v4682
        %4901 = vmatpush.bf16.msra.mxu0 %v4679
        %4902 = vmatpush.bf16.msra.mxu0 %v4676
        %4903 = vmatmul.bf16.gmra.mxu0 %v4529
        %v4904 = vpop.f32.mrf.mxu0
        %v4905 = vadd.f32 0.0, %v4904
        %v4906 = vpop.f32.mrf.mxu0
        %v4907 = vadd.f32 0.0, %v4906
        %4908 = vmatmul.bf16.gmra.mxu0 %v4530
        %v4909 = vpop.f32.mrf.mxu0
        %v4910 = vadd.f32 0.0, %v4909
        %v4911 = vpop.f32.mrf.mxu0
        %v4912 = vadd.f32 0.0, %v4911
        %4913 = vmatmul.bf16.gmra.mxu0 %v4531
        %v4914 = vpop.f32.mrf.mxu0
        %v4915 = vadd.f32 0.0, %v4914
        %v4916 = vpop.f32.mrf.mxu0
        %v4917 = vadd.f32 0.0, %v4916
        %4918 = vmatmul.bf16.gmra.mxu0 %v4532
        %v4919 = vpop.f32.mrf.mxu0
        %v4920 = vadd.f32 0.0, %v4919
        %v4921 = vpop.f32.mrf.mxu0
        %v4922 = vadd.f32 0.0, %v4921
        %4923 = vmatmul.bf16.gmra.mxu0 %v4533
        %v4924 = vpop.f32.mrf.mxu0
        %v4925 = vadd.f32 0.0, %v4924
        %v4926 = vpop.f32.mrf.mxu0
        %v4927 = vadd.f32 0.0, %v4926
        %4928 = vmatmul.bf16.gmra.mxu0 %v4534
        %v4929 = vpop.f32.mrf.mxu0
        %v4930 = vadd.f32 0.0, %v4929
        %v4931 = vpop.f32.mrf.mxu0
        %v4932 = vadd.f32 0.0, %v4931
        %4933 = vmatmul.bf16.gmra.mxu0 %v4535
        %v4934 = vpop.f32.mrf.mxu0
        %v4935 = vadd.f32 0.0, %v4934
        %v4936 = vpop.f32.mrf.mxu0
        %v4937 = vadd.f32 0.0, %v4936
        %4938 = vmatmul.bf16.gmra.mxu0 %v4536
        %v4939 = vpop.f32.mrf.mxu0
        %v4940 = vadd.f32 0.0, %v4939
        %v4941 = vpop.f32.mrf.mxu0
        %v4942 = vadd.f32 0.0, %v4941
        %4943 = vmatmul.bf16.gmra.mxu0 %v4537
        %v4944 = vpop.f32.mrf.mxu0
        %v4945 = vadd.f32 0.0, %v4944
        %v4946 = vpop.f32.mrf.mxu0
        %v4947 = vadd.f32 0.0, %v4946
        %4948 = vmatmul.bf16.gmra.mxu0 %v4538
        %v4949 = vpop.f32.mrf.mxu0
        %v4950 = vadd.f32 0.0, %v4949
        %v4951 = vpop.f32.mrf.mxu0
        %v4952 = vadd.f32 0.0, %v4951
        %4953 = vmatmul.bf16.gmra.mxu0 %v4539
        %v4954 = vpop.f32.mrf.mxu0
        %v4955 = vadd.f32 0.0, %v4954
        %v4956 = vpop.f32.mrf.mxu0
        %v4957 = vadd.f32 0.0, %v4956
        %4958 = vmatmul.bf16.gmra.mxu0 %v4540
        %v4959 = vpop.f32.mrf.mxu0
        %v4960 = vadd.f32 0.0, %v4959
        %v4961 = vpop.f32.mrf.mxu0
        %v4962 = vadd.f32 0.0, %v4961
        %4963 = vmatmul.bf16.gmra.mxu0 %v4541
        %v4964 = vpop.f32.mrf.mxu0
        %v4965 = vadd.f32 0.0, %v4964
        %v4966 = vpop.f32.mrf.mxu0
        %v4967 = vadd.f32 0.0, %v4966
        %4968 = vmatmul.bf16.gmra.mxu0 %v4542
        %v4969 = vpop.f32.mrf.mxu0
        %v4970 = vadd.f32 0.0, %v4969
        %v4971 = vpop.f32.mrf.mxu0
        %v4972 = vadd.f32 0.0, %v4971
        %4973 = vmatmul.bf16.gmra.mxu0 %v4543
        %v4974 = vpop.f32.mrf.mxu0
        %v4975 = vadd.f32 0.0, %v4974
        %v4976 = vpop.f32.mrf.mxu0
        %v4977 = vadd.f32 0.0, %v4976
        %4978 = vmatmul.bf16.gmra.mxu0 %v4544
        %v4979 = vpop.f32.mrf.mxu0
        %v4980 = vadd.f32 0.0, %v4979
        %v4981 = vpop.f32.mrf.mxu0
        %v4982 = vadd.f32 0.0, %v4981
        %4983 = vmatmul.bf16.gmra.mxu0 %v4545
        %v4984 = vpop.f32.mrf.mxu0
        %v4985 = vadd.f32 0.0, %v4984
        %v4986 = vpop.f32.mrf.mxu0
        %v4987 = vadd.f32 0.0, %v4986
        %4988 = vmatmul.bf16.gmra.mxu0 %v4546
        %v4989 = vpop.f32.mrf.mxu0
        %v4990 = vadd.f32 0.0, %v4989
        %v4991 = vpop.f32.mrf.mxu0
        %v4992 = vadd.f32 0.0, %v4991
        %4993 = vmatmul.bf16.gmra.mxu0 %v4547
        %v4994 = vpop.f32.mrf.mxu0
        %v4995 = vadd.f32 0.0, %v4994
        %v4996 = vpop.f32.mrf.mxu0
        %v4997 = vadd.f32 0.0, %v4996
        %4998 = vmatmul.bf16.gmra.mxu0 %v4548
        %v4999 = vpop.f32.mrf.mxu0
        %v5000 = vadd.f32 0.0, %v4999
        %v5001 = vpop.f32.mrf.mxu0
        %v5002 = vadd.f32 0.0, %v5001
        %5003 = vmatmul.bf16.gmra.mxu0 %v4549
        %v5004 = vpop.f32.mrf.mxu0
        %v5005 = vadd.f32 0.0, %v5004
        %v5006 = vpop.f32.mrf.mxu0
        %v5007 = vadd.f32 0.0, %v5006
        %5008 = vmatmul.bf16.gmra.mxu0 %v4550
        %v5009 = vpop.f32.mrf.mxu0
        %v5010 = vadd.f32 0.0, %v5009
        %v5011 = vpop.f32.mrf.mxu0
        %v5012 = vadd.f32 0.0, %v5011
        %5013 = vmatmul.bf16.gmra.mxu0 %v4551
        %v5014 = vpop.f32.mrf.mxu0
        %v5015 = vadd.f32 0.0, %v5014
        %v5016 = vpop.f32.mrf.mxu0
        %v5017 = vadd.f32 0.0, %v5016
        %5018 = vmatmul.bf16.gmra.mxu0 %v4552
        %v5019 = vpop.f32.mrf.mxu0
        %v5020 = vadd.f32 0.0, %v5019
        %v5021 = vpop.f32.mrf.mxu0
        %v5022 = vadd.f32 0.0, %v5021
        %5023 = vmatmul.bf16.gmra.mxu0 %v4553
        %v5024 = vpop.f32.mrf.mxu0
        %v5025 = vadd.f32 0.0, %v5024
        %v5026 = vpop.f32.mrf.mxu0
        %v5027 = vadd.f32 0.0, %v5026
        %5028 = vmatmul.bf16.gmra.mxu0 %v4554
        %v5029 = vpop.f32.mrf.mxu0
        %v5030 = vadd.f32 0.0, %v5029
        %v5031 = vpop.f32.mrf.mxu0
        %v5032 = vadd.f32 0.0, %v5031
        %5033 = vmatmul.bf16.gmra.mxu0 %v4555
        %v5034 = vpop.f32.mrf.mxu0
        %v5035 = vadd.f32 0.0, %v5034
        %v5036 = vpop.f32.mrf.mxu0
        %v5037 = vadd.f32 0.0, %v5036
        %5038 = vmatmul.bf16.gmra.mxu0 %v4556
        %v5039 = vpop.f32.mrf.mxu0
        %v5040 = vadd.f32 0.0, %v5039
        %v5041 = vpop.f32.mrf.mxu0
        %v5042 = vadd.f32 0.0, %v5041
        %5043 = vmatmul.bf16.gmra.mxu0 %v4557
        %v5044 = vpop.f32.mrf.mxu0
        %v5045 = vadd.f32 0.0, %v5044
        %v5046 = vpop.f32.mrf.mxu0
        %v5047 = vadd.f32 0.0, %v5046
        %5048 = vmatmul.bf16.gmra.mxu0 %v4558
        %v5049 = vpop.f32.mrf.mxu0
        %v5050 = vadd.f32 0.0, %v5049
        %v5051 = vpop.f32.mrf.mxu0
        %v5052 = vadd.f32 0.0, %v5051
        %5053 = vmatmul.bf16.gmra.mxu0 %v4559
        %v5054 = vpop.f32.mrf.mxu0
        %v5055 = vadd.f32 0.0, %v5054
        %v5056 = vpop.f32.mrf.mxu0
        %v5057 = vadd.f32 0.0, %v5056
        %5058 = vmatmul.bf16.gmra.mxu0 %v4560
        %v5059 = vpop.f32.mrf.mxu0
        %v5060 = vadd.f32 0.0, %v5059
        %v5061 = vpop.f32.mrf.mxu0
        %v5062 = vadd.f32 0.0, %v5061
        %5063 = vmatmul.bf16.gmra.mxu0 %v4561
        %v5064 = vpop.f32.mrf.mxu0
        %v5065 = vadd.f32 0.0, %v5064
        %v5066 = vpop.f32.mrf.mxu0
        %5067 = vdwg.mxu0
        %5068 = vmatpush.bf16.msra.mxu0 %v4698
        %5069 = vmatpush.bf16.msra.mxu0 %v4695
        %5070 = vmatpush.bf16.msra.mxu0 %v4692
        %5071 = vmatpush.bf16.msra.mxu0 %v4689
        %5072 = vmatpush.bf16.msra.mxu0 %v4686
        %5073 = vmatpush.bf16.msra.mxu0 %v4683
        %5074 = vmatpush.bf16.msra.mxu0 %v4680
        %5075 = vmatpush.bf16.msra.mxu0 %v4677
        %5076 = vmatmul.bf16.gmra.mxu0 %v4529
        %v5077 = vpop.f32.mrf.mxu0
        %v5078 = vadd.f32 0.0, %v5077
        %v5079 = vpop.f32.mrf.mxu0
        %v5080 = vadd.f32 0.0, %v5079
        %5081 = vmatmul.bf16.gmra.mxu0 %v4530
        %v5082 = vpop.f32.mrf.mxu0
        %v5083 = vadd.f32 0.0, %v5082
        %v5084 = vpop.f32.mrf.mxu0
        %v5085 = vadd.f32 0.0, %v5084
        %5086 = vmatmul.bf16.gmra.mxu0 %v4531
        %v5087 = vpop.f32.mrf.mxu0
        %v5088 = vadd.f32 0.0, %v5087
        %v5089 = vpop.f32.mrf.mxu0
        %v5090 = vadd.f32 0.0, %v5089
        %5091 = vmatmul.bf16.gmra.mxu0 %v4532
        %v5092 = vpop.f32.mrf.mxu0
        %v5093 = vadd.f32 0.0, %v5092
        %v5094 = vpop.f32.mrf.mxu0
        %v5095 = vadd.f32 0.0, %v5094
        %5096 = vmatmul.bf16.gmra.mxu0 %v4533
        %v5097 = vpop.f32.mrf.mxu0
        %v5098 = vadd.f32 0.0, %v5097
        %v5099 = vpop.f32.mrf.mxu0
        %v5100 = vadd.f32 0.0, %v5099
        %5101 = vmatmul.bf16.gmra.mxu0 %v4534
        %v5102 = vpop.f32.mrf.mxu0
        %v5103 = vadd.f32 0.0, %v5102
        %v5104 = vpop.f32.mrf.mxu0
        %v5105 = vadd.f32 0.0, %v5104
        %5106 = vmatmul.bf16.gmra.mxu0 %v4535
        %v5107 = vpop.f32.mrf.mxu0
        %v5108 = vadd.f32 0.0, %v5107
        %v5109 = vpop.f32.mrf.mxu0
        %v5110 = vadd.f32 0.0, %v5109
        %5111 = vmatmul.bf16.gmra.mxu0 %v4536
        %v5112 = vpop.f32.mrf.mxu0
        %v5113 = vadd.f32 0.0, %v5112
        %v5114 = vpop.f32.mrf.mxu0
        %v5115 = vadd.f32 0.0, %v5114
        %5116 = vmatmul.bf16.gmra.mxu0 %v4537
        %v5117 = vpop.f32.mrf.mxu0
        %v5118 = vadd.f32 0.0, %v5117
        %v5119 = vpop.f32.mrf.mxu0
        %v5120 = vadd.f32 0.0, %v5119
        %5121 = vmatmul.bf16.gmra.mxu0 %v4538
        %v5122 = vpop.f32.mrf.mxu0
        %v5123 = vadd.f32 0.0, %v5122
        %v5124 = vpop.f32.mrf.mxu0
        %v5125 = vadd.f32 0.0, %v5124
        %5126 = vmatmul.bf16.gmra.mxu0 %v4539
        %v5127 = vpop.f32.mrf.mxu0
        %v5128 = vadd.f32 0.0, %v5127
        %v5129 = vpop.f32.mrf.mxu0
        %v5130 = vadd.f32 0.0, %v5129
        %5131 = vmatmul.bf16.gmra.mxu0 %v4540
        %v5132 = vpop.f32.mrf.mxu0
        %v5133 = vadd.f32 0.0, %v5132
        %v5134 = vpop.f32.mrf.mxu0
        %v5135 = vadd.f32 0.0, %v5134
        %5136 = vmatmul.bf16.gmra.mxu0 %v4541
        %v5137 = vpop.f32.mrf.mxu0
        %v5138 = vadd.f32 0.0, %v5137
        %v5139 = vpop.f32.mrf.mxu0
        %v5140 = vadd.f32 0.0, %v5139
        %5141 = vmatmul.bf16.gmra.mxu0 %v4542
        %v5142 = vpop.f32.mrf.mxu0
        %v5143 = vadd.f32 0.0, %v5142
        %v5144 = vpop.f32.mrf.mxu0
        %v5145 = vadd.f32 0.0, %v5144
        %5146 = vmatmul.bf16.gmra.mxu0 %v4543
        %v5147 = vpop.f32.mrf.mxu0
        %v5148 = vadd.f32 0.0, %v5147
        %v5149 = vpop.f32.mrf.mxu0
        %v5150 = vadd.f32 0.0, %v5149
        %5151 = vmatmul.bf16.gmra.mxu0 %v4544
        %v5152 = vpop.f32.mrf.mxu0
        %v5153 = vadd.f32 0.0, %v5152
        %v5154 = vpop.f32.mrf.mxu0
        %v5155 = vadd.f32 0.0, %v5154
        %5156 = vmatmul.bf16.gmra.mxu0 %v4545
        %v5157 = vpop.f32.mrf.mxu0
        %v5158 = vadd.f32 0.0, %v5157
        %v5159 = vpop.f32.mrf.mxu0
        %v5160 = vadd.f32 0.0, %v5159
        %5161 = vmatmul.bf16.gmra.mxu0 %v4546
        %v5162 = vpop.f32.mrf.mxu0
        %v5163 = vadd.f32 0.0, %v5162
        %v5164 = vpop.f32.mrf.mxu0
        %v5165 = vadd.f32 0.0, %v5164
        %5166 = vmatmul.bf16.gmra.mxu0 %v4547
        %v5167 = vpop.f32.mrf.mxu0
        %v5168 = vadd.f32 0.0, %v5167
        %v5169 = vpop.f32.mrf.mxu0
        %v5170 = vadd.f32 0.0, %v5169
        %5171 = vmatmul.bf16.gmra.mxu0 %v4548
        %v5172 = vpop.f32.mrf.mxu0
        %v5173 = vadd.f32 0.0, %v5172
        %v5174 = vpop.f32.mrf.mxu0
        %v5175 = vadd.f32 0.0, %v5174
        %5176 = vmatmul.bf16.gmra.mxu0 %v4549
        %v5177 = vpop.f32.mrf.mxu0
        %v5178 = vadd.f32 0.0, %v5177
        %v5179 = vpop.f32.mrf.mxu0
        %v5180 = vadd.f32 0.0, %v5179
        %5181 = vmatmul.bf16.gmra.mxu0 %v4550
        %v5182 = vpop.f32.mrf.mxu0
        %v5183 = vadd.f32 0.0, %v5182
        %v5184 = vpop.f32.mrf.mxu0
        %v5185 = vadd.f32 0.0, %v5184
        %5186 = vmatmul.bf16.gmra.mxu0 %v4551
        %v5187 = vpop.f32.mrf.mxu0
        %v5188 = vadd.f32 0.0, %v5187
        %v5189 = vpop.f32.mrf.mxu0
        %v5190 = vadd.f32 0.0, %v5189
        %5191 = vmatmul.bf16.gmra.mxu0 %v4552
        %v5192 = vpop.f32.mrf.mxu0
        %v5193 = vadd.f32 0.0, %v5192
        %v5194 = vpop.f32.mrf.mxu0
        %v5195 = vadd.f32 0.0, %v5194
        %5196 = vmatmul.bf16.gmra.mxu0 %v4553
        %v5197 = vpop.f32.mrf.mxu0
        %v5198 = vadd.f32 0.0, %v5197
        %v5199 = vpop.f32.mrf.mxu0
        %v5200 = vadd.f32 0.0, %v5199
        %5201 = vmatmul.bf16.gmra.mxu0 %v4554
        %v5202 = vpop.f32.mrf.mxu0
        %v5203 = vadd.f32 0.0, %v5202
        %v5204 = vpop.f32.mrf.mxu0
        %v5205 = vadd.f32 0.0, %v5204
        %5206 = vmatmul.bf16.gmra.mxu0 %v4555
        %v5207 = vpop.f32.mrf.mxu0
        %v5208 = vadd.f32 0.0, %v5207
        %v5209 = vpop.f32.mrf.mxu0
        %v5210 = vadd.f32 0.0, %v5209
        %5211 = vmatmul.bf16.gmra.mxu0 %v4556
        %v5212 = vpop.f32.mrf.mxu0
        %v5213 = vadd.f32 0.0, %v5212
        %v5214 = vpop.f32.mrf.mxu0
        %v5215 = vadd.f32 0.0, %v5214
        %5216 = vmatmul.bf16.gmra.mxu0 %v4557
        %v5217 = vpop.f32.mrf.mxu0
        %v5218 = vadd.f32 0.0, %v5217
        %v5219 = vpop.f32.mrf.mxu0
        %v5220 = vadd.f32 0.0, %v5219
        %5221 = vmatmul.bf16.gmra.mxu0 %v4558
        %v5222 = vpop.f32.mrf.mxu0
        %v5223 = vadd.f32 0.0, %v5222
        %v5224 = vpop.f32.mrf.mxu0
        %v5225 = vadd.f32 0.0, %v5224
        %5226 = vmatmul.bf16.gmra.mxu0 %v4559
        %v5227 = vpop.f32.mrf.mxu0
        %v5228 = vadd.f32 0.0, %v5227
        %v5229 = vpop.f32.mrf.mxu0
        %v5230 = vadd.f32 0.0, %v5229
        %5231 = vmatmul.bf16.gmra.mxu0 %v4560
        %v5232 = vpop.f32.mrf.mxu0
        %v5233 = vadd.f32 0.0, %v5232
        %v5234 = vpop.f32.mrf.mxu0
        %v5235 = vadd.f32 0.0, %v5234
        %5236 = vmatmul.bf16.gmra.mxu0 %v4561
        %v5237 = vpop.f32.mrf.mxu0
        %v5238 = vadd.f32 0.0, %v5237
        %v5239 = vpop.f32.mrf.mxu0
        %5240 = vdwg.mxu0
        %v5306 = vrot.slane %v4905, 1
        %v5307 = vrot.slane %v4907, 1
        %v5308 = vsel %vm1746, %v5306, %v5307
        %v5309 = vrot.slane %v4910, 1
        %v5310 = vsel %vm1746, %v5307, %v5309
        %v5311 = vrot.slane %v4912, 1
        %v5312 = vsel %vm1746, %v5309, %v5311
        %v5313 = vrot.slane %v4915, 1
        %v5314 = vsel %vm1746, %v5311, %v5313
        %v5315 = vrot.slane %v4917, 1
        %v5316 = vsel %vm1746, %v5313, %v5315
        %v5317 = vrot.slane %v4920, 1
        %v5318 = vsel %vm1746, %v5315, %v5317
        %v5319 = vrot.slane %v4922, 1
        %v5320 = vsel %vm1746, %v5317, %v5319
        %v5321 = vrot.slane %v4925, 1
        %v5322 = vsel %vm1746, %v5319, %v5321
        %v5323 = vrot.slane %v4927, 1
        %v5324 = vsel %vm1746, %v5321, %v5323
        %v5325 = vrot.slane %v4930, 1
        %v5326 = vsel %vm1746, %v5323, %v5325
        %v5327 = vrot.slane %v4932, 1
        %v5328 = vsel %vm1746, %v5325, %v5327
        %v5329 = vrot.slane %v4935, 1
        %v5330 = vsel %vm1746, %v5327, %v5329
        %v5331 = vrot.slane %v4937, 1
        %v5332 = vsel %vm1746, %v5329, %v5331
        %v5333 = vrot.slane %v4940, 1
        %v5334 = vsel %vm1746, %v5331, %v5333
        %v5335 = vrot.slane %v4942, 1
        %v5336 = vsel %vm1746, %v5333, %v5335
        %v5337 = vrot.slane %v4945, 1
        %v5338 = vsel %vm1746, %v5335, %v5337
        %v5339 = vrot.slane %v4947, 1
        %v5340 = vsel %vm1746, %v5337, %v5339
        %v5341 = vrot.slane %v4950, 1
        %v5342 = vsel %vm1746, %v5339, %v5341
        %v5343 = vrot.slane %v4952, 1
        %v5344 = vsel %vm1746, %v5341, %v5343
        %v5345 = vrot.slane %v4955, 1
        %v5346 = vsel %vm1746, %v5343, %v5345
        %v5347 = vrot.slane %v4957, 1
        %v5348 = vsel %vm1746, %v5345, %v5347
        %v5349 = vrot.slane %v4960, 1
        %v5350 = vsel %vm1746, %v5347, %v5349
        %v5351 = vrot.slane %v4962, 1
        %v5352 = vsel %vm1746, %v5349, %v5351
        %v5353 = vrot.slane %v4965, 1
        %v5354 = vsel %vm1746, %v5351, %v5353
        %v5355 = vrot.slane %v4967, 1
        %v5356 = vsel %vm1746, %v5353, %v5355
        %v5357 = vrot.slane %v4970, 1
        %v5358 = vsel %vm1746, %v5355, %v5357
        %v5359 = vrot.slane %v4972, 1
        %v5360 = vsel %vm1746, %v5357, %v5359
        %v5361 = vrot.slane %v4975, 1
        %v5362 = vsel %vm1746, %v5359, %v5361
        %v5363 = vrot.slane %v4977, 1
        %v5364 = vsel %vm1746, %v5361, %v5363
        %v5365 = vrot.slane %v4980, 1
        %v5366 = vsel %vm1746, %v5363, %v5365
        %v5367 = vrot.slane %v4982, 1
        %v5368 = vsel %vm1746, %v5365, %v5367
        %v5369 = vrot.slane %v4985, 1
        %v5370 = vsel %vm1746, %v5367, %v5369
        %v5371 = vrot.slane %v4987, 1
        %v5372 = vsel %vm1746, %v5369, %v5371
        %v5373 = vrot.slane %v4990, 1
        %v5374 = vsel %vm1746, %v5371, %v5373
        %v5375 = vrot.slane %v4992, 1
        %v5376 = vsel %vm1746, %v5373, %v5375
        %v5377 = vrot.slane %v4995, 1
        %v5378 = vsel %vm1746, %v5375, %v5377
        %v5379 = vrot.slane %v4997, 1
        %v5380 = vsel %vm1746, %v5377, %v5379
        %v5381 = vrot.slane %v5000, 1
        %v5382 = vsel %vm1746, %v5379, %v5381
        %v5383 = vrot.slane %v5002, 1
        %v5384 = vsel %vm1746, %v5381, %v5383
        %v5385 = vrot.slane %v5005, 1
        %v5386 = vsel %vm1746, %v5383, %v5385
        %v5387 = vrot.slane %v5007, 1
        %v5388 = vsel %vm1746, %v5385, %v5387
        %v5389 = vrot.slane %v5010, 1
        %v5390 = vsel %vm1746, %v5387, %v5389
        %v5391 = vrot.slane %v5012, 1
        %v5392 = vsel %vm1746, %v5389, %v5391
        %v5393 = vrot.slane %v5015, 1
        %v5394 = vsel %vm1746, %v5391, %v5393
        %v5395 = vrot.slane %v5017, 1
        %v5396 = vsel %vm1746, %v5393, %v5395
        %v5397 = vrot.slane %v5020, 1
        %v5398 = vsel %vm1746, %v5395, %v5397
        %v5399 = vrot.slane %v5022, 1
        %v5400 = vsel %vm1746, %v5397, %v5399
        %v5401 = vrot.slane %v5025, 1
        %v5402 = vsel %vm1746, %v5399, %v5401
        %v5403 = vrot.slane %v5027, 1
        %v5404 = vsel %vm1746, %v5401, %v5403
        %v5405 = vrot.slane %v5030, 1
        %v5406 = vsel %vm1746, %v5403, %v5405
        %v5407 = vrot.slane %v5032, 1
        %v5408 = vsel %vm1746, %v5405, %v5407
        %v5409 = vrot.slane %v5035, 1
        %v5410 = vsel %vm1746, %v5407, %v5409
        %v5411 = vrot.slane %v5037, 1
        %v5412 = vsel %vm1746, %v5409, %v5411
        %v5413 = vrot.slane %v5040, 1
        %v5414 = vsel %vm1746, %v5411, %v5413
        %v5415 = vrot.slane %v5042, 1
        %v5416 = vsel %vm1746, %v5413, %v5415
        %v5417 = vrot.slane %v5045, 1
        %v5418 = vsel %vm1746, %v5415, %v5417
        %v5419 = vrot.slane %v5047, 1
        %v5420 = vsel %vm1746, %v5417, %v5419
        %v5421 = vrot.slane %v5050, 1
        %v5422 = vsel %vm1746, %v5419, %v5421
        %v5423 = vrot.slane %v5052, 1
        %v5424 = vsel %vm1746, %v5421, %v5423
        %v5425 = vrot.slane %v5055, 1
        %v5426 = vsel %vm1746, %v5423, %v5425
        %v5427 = vrot.slane %v5057, 1
        %v5428 = vsel %vm1746, %v5425, %v5427
        %v5429 = vrot.slane %v5060, 1
        %v5430 = vsel %vm1746, %v5427, %v5429
        %v5431 = vrot.slane %v5062, 1
        %v5432 = vsel %vm1746, %v5429, %v5431
        %v5433 = vrot.slane %v5065, 1
        %v5434 = vsel %vm1746, %v5431, %v5433
        %v5499 = vadd.f32 %v4733, %v5308
        %v5500 = vadd.f32 %v4735, %v5310
        %v5501 = vadd.f32 %v4738, %v5312
        %v5502 = vadd.f32 %v4740, %v5314
        %v5503 = vadd.f32 %v4743, %v5316
        %v5504 = vadd.f32 %v4745, %v5318
        %v5505 = vadd.f32 %v4748, %v5320
        %v5506 = vadd.f32 %v4750, %v5322
        %v5507 = vadd.f32 %v4753, %v5324
        %v5508 = vadd.f32 %v4755, %v5326
        %v5509 = vadd.f32 %v4758, %v5328
        %v5510 = vadd.f32 %v4760, %v5330
        %v5511 = vadd.f32 %v4763, %v5332
        %v5512 = vadd.f32 %v4765, %v5334
        %v5513 = vadd.f32 %v4768, %v5336
        %v5514 = vadd.f32 %v4770, %v5338
        %v5515 = vadd.f32 %v4773, %v5340
        %v5516 = vadd.f32 %v4775, %v5342
        %v5517 = vadd.f32 %v4778, %v5344
        %v5518 = vadd.f32 %v4780, %v5346
        %v5519 = vadd.f32 %v4783, %v5348
        %v5520 = vadd.f32 %v4785, %v5350
        %v5521 = vadd.f32 %v4788, %v5352
        %v5522 = vadd.f32 %v4790, %v5354
        %v5523 = vadd.f32 %v4793, %v5356
        %v5524 = vadd.f32 %v4795, %v5358
        %v5525 = vadd.f32 %v4798, %v5360
        %v5526 = vadd.f32 %v4800, %v5362
        %v5527 = vadd.f32 %v4803, %v5364
        %v5528 = vadd.f32 %v4805, %v5366
        %v5529 = vadd.f32 %v4808, %v5368
        %v5530 = vadd.f32 %v4810, %v5370
        %v5531 = vadd.f32 %v4813, %v5372
        %v5532 = vadd.f32 %v4815, %v5374
        %v5533 = vadd.f32 %v4818, %v5376
        %v5534 = vadd.f32 %v4820, %v5378
        %v5535 = vadd.f32 %v4823, %v5380
        %v5536 = vadd.f32 %v4825, %v5382
        %v5537 = vadd.f32 %v4828, %v5384
        %v5538 = vadd.f32 %v4830, %v5386
        %v5539 = vadd.f32 %v4833, %v5388
        %v5540 = vadd.f32 %v4835, %v5390
        %v5541 = vadd.f32 %v4838, %v5392
        %v5542 = vadd.f32 %v4840, %v5394
        %v5543 = vadd.f32 %v4843, %v5396
        %v5544 = vadd.f32 %v4845, %v5398
        %v5545 = vadd.f32 %v4848, %v5400
        %v5546 = vadd.f32 %v4850, %v5402
        %v5547 = vadd.f32 %v4853, %v5404
        %v5548 = vadd.f32 %v4855, %v5406
        %v5549 = vadd.f32 %v4858, %v5408
        %v5550 = vadd.f32 %v4860, %v5410
        %v5551 = vadd.f32 %v4863, %v5412
        %v5552 = vadd.f32 %v4865, %v5414
        %v5553 = vadd.f32 %v4868, %v5416
        %v5554 = vadd.f32 %v4870, %v5418
        %v5555 = vadd.f32 %v4873, %v5420
        %v5556 = vadd.f32 %v4875, %v5422
        %v5557 = vadd.f32 %v4878, %v5424
        %v5558 = vadd.f32 %v4880, %v5426
        %v5559 = vadd.f32 %v4883, %v5428
        %v5560 = vadd.f32 %v4885, %v5430
        %v5561 = vadd.f32 %v4888, %v5432
        %v5562 = vadd.f32 %v4890, %v5434
        %v5628 = vrot.slane %v5078, 2
        %v5629 = vrot.slane %v5080, 2
        %v5630 = vsel %vm2069, %v5628, %v5629
        %v5631 = vrot.slane %v5083, 2
        %v5632 = vsel %vm2069, %v5629, %v5631
        %v5633 = vrot.slane %v5085, 2
        %v5634 = vsel %vm2069, %v5631, %v5633
        %v5635 = vrot.slane %v5088, 2
        %v5636 = vsel %vm2069, %v5633, %v5635
        %v5637 = vrot.slane %v5090, 2
        %v5638 = vsel %vm2069, %v5635, %v5637
        %v5639 = vrot.slane %v5093, 2
        %v5640 = vsel %vm2069, %v5637, %v5639
        %v5641 = vrot.slane %v5095, 2
        %v5642 = vsel %vm2069, %v5639, %v5641
        %v5643 = vrot.slane %v5098, 2
        %v5644 = vsel %vm2069, %v5641, %v5643
        %v5645 = vrot.slane %v5100, 2
        %v5646 = vsel %vm2069, %v5643, %v5645
        %v5647 = vrot.slane %v5103, 2
        %v5648 = vsel %vm2069, %v5645, %v5647
        %v5649 = vrot.slane %v5105, 2
        %v5650 = vsel %vm2069, %v5647, %v5649
        %v5651 = vrot.slane %v5108, 2
        %v5652 = vsel %vm2069, %v5649, %v5651
        %v5653 = vrot.slane %v5110, 2
        %v5654 = vsel %vm2069, %v5651, %v5653
        %v5655 = vrot.slane %v5113, 2
        %v5656 = vsel %vm2069, %v5653, %v5655
        %v5657 = vrot.slane %v5115, 2
        %v5658 = vsel %vm2069, %v5655, %v5657
        %v5659 = vrot.slane %v5118, 2
        %v5660 = vsel %vm2069, %v5657, %v5659
        %v5661 = vrot.slane %v5120, 2
        %v5662 = vsel %vm2069, %v5659, %v5661
        %v5663 = vrot.slane %v5123, 2
        %v5664 = vsel %vm2069, %v5661, %v5663
        %v5665 = vrot.slane %v5125, 2
        %v5666 = vsel %vm2069, %v5663, %v5665
        %v5667 = vrot.slane %v5128, 2
        %v5668 = vsel %vm2069, %v5665, %v5667
        %v5669 = vrot.slane %v5130, 2
        %v5670 = vsel %vm2069, %v5667, %v5669
        %v5671 = vrot.slane %v5133, 2
        %v5672 = vsel %vm2069, %v5669, %v5671
        %v5673 = vrot.slane %v5135, 2
        %v5674 = vsel %vm2069, %v5671, %v5673
        %v5675 = vrot.slane %v5138, 2
        %v5676 = vsel %vm2069, %v5673, %v5675
        %v5677 = vrot.slane %v5140, 2
        %v5678 = vsel %vm2069, %v5675, %v5677
        %v5679 = vrot.slane %v5143, 2
        %v5680 = vsel %vm2069, %v5677, %v5679
        %v5681 = vrot.slane %v5145, 2
        %v5682 = vsel %vm2069, %v5679, %v5681
        %v5683 = vrot.slane %v5148, 2
        %v5684 = vsel %vm2069, %v5681, %v5683
        %v5685 = vrot.slane %v5150, 2
        %v5686 = vsel %vm2069, %v5683, %v5685
        %v5687 = vrot.slane %v5153, 2
        %v5688 = vsel %vm2069, %v5685, %v5687
        %v5689 = vrot.slane %v5155, 2
        %v5690 = vsel %vm2069, %v5687, %v5689
        %v5691 = vrot.slane %v5158, 2
        %v5692 = vsel %vm2069, %v5689, %v5691
        %v5693 = vrot.slane %v5160, 2
        %v5694 = vsel %vm2069, %v5691, %v5693
        %v5695 = vrot.slane %v5163, 2
        %v5696 = vsel %vm2069, %v5693, %v5695
        %v5697 = vrot.slane %v5165, 2
        %v5698 = vsel %vm2069, %v5695, %v5697
        %v5699 = vrot.slane %v5168, 2
        %v5700 = vsel %vm2069, %v5697, %v5699
        %v5701 = vrot.slane %v5170, 2
        %v5702 = vsel %vm2069, %v5699, %v5701
        %v5703 = vrot.slane %v5173, 2
        %v5704 = vsel %vm2069, %v5701, %v5703
        %v5705 = vrot.slane %v5175, 2
        %v5706 = vsel %vm2069, %v5703, %v5705
        %v5707 = vrot.slane %v5178, 2
        %v5708 = vsel %vm2069, %v5705, %v5707
        %v5709 = vrot.slane %v5180, 2
        %v5710 = vsel %vm2069, %v5707, %v5709
        %v5711 = vrot.slane %v5183, 2
        %v5712 = vsel %vm2069, %v5709, %v5711
        %v5713 = vrot.slane %v5185, 2
        %v5714 = vsel %vm2069, %v5711, %v5713
        %v5715 = vrot.slane %v5188, 2
        %v5716 = vsel %vm2069, %v5713, %v5715
        %v5717 = vrot.slane %v5190, 2
        %v5718 = vsel %vm2069, %v5715, %v5717
        %v5719 = vrot.slane %v5193, 2
        %v5720 = vsel %vm2069, %v5717, %v5719
        %v5721 = vrot.slane %v5195, 2
        %v5722 = vsel %vm2069, %v5719, %v5721
        %v5723 = vrot.slane %v5198, 2
        %v5724 = vsel %vm2069, %v5721, %v5723
        %v5725 = vrot.slane %v5200, 2
        %v5726 = vsel %vm2069, %v5723, %v5725
        %v5727 = vrot.slane %v5203, 2
        %v5728 = vsel %vm2069, %v5725, %v5727
        %v5729 = vrot.slane %v5205, 2
        %v5730 = vsel %vm2069, %v5727, %v5729
        %v5731 = vrot.slane %v5208, 2
        %v5732 = vsel %vm2069, %v5729, %v5731
        %v5733 = vrot.slane %v5210, 2
        %v5734 = vsel %vm2069, %v5731, %v5733
        %v5735 = vrot.slane %v5213, 2
        %v5736 = vsel %vm2069, %v5733, %v5735
        %v5737 = vrot.slane %v5215, 2
        %v5738 = vsel %vm2069, %v5735, %v5737
        %v5739 = vrot.slane %v5218, 2
        %v5740 = vsel %vm2069, %v5737, %v5739
        %v5741 = vrot.slane %v5220, 2
        %v5742 = vsel %vm2069, %v5739, %v5741
        %v5743 = vrot.slane %v5223, 2
        %v5744 = vsel %vm2069, %v5741, %v5743
        %v5745 = vrot.slane %v5225, 2
        %v5746 = vsel %vm2069, %v5743, %v5745
        %v5747 = vrot.slane %v5228, 2
        %v5748 = vsel %vm2069, %v5745, %v5747
        %v5749 = vrot.slane %v5230, 2
        %v5750 = vsel %vm2069, %v5747, %v5749
        %v5751 = vrot.slane %v5233, 2
        %v5752 = vsel %vm2069, %v5749, %v5751
        %v5753 = vrot.slane %v5235, 2
        %v5754 = vsel %vm2069, %v5751, %v5753
        %v5755 = vrot.slane %v5238, 2
        %v5756 = vsel %vm2069, %v5753, %v5755
        %v5821 = vadd.f32 %v5499, %v5630
        %v5822 = vadd.f32 %v5500, %v5632
        %v5823 = vadd.f32 %v5501, %v5634
        %v5824 = vadd.f32 %v5502, %v5636
        %v5825 = vadd.f32 %v5503, %v5638
        %v5826 = vadd.f32 %v5504, %v5640
        %v5827 = vadd.f32 %v5505, %v5642
        %v5828 = vadd.f32 %v5506, %v5644
        %v5829 = vadd.f32 %v5507, %v5646
        %v5830 = vadd.f32 %v5508, %v5648
        %v5831 = vadd.f32 %v5509, %v5650
        %v5832 = vadd.f32 %v5510, %v5652
        %v5833 = vadd.f32 %v5511, %v5654
        %v5834 = vadd.f32 %v5512, %v5656
        %v5835 = vadd.f32 %v5513, %v5658
        %v5836 = vadd.f32 %v5514, %v5660
        %v5837 = vadd.f32 %v5515, %v5662
        %v5838 = vadd.f32 %v5516, %v5664
        %v5839 = vadd.f32 %v5517, %v5666
        %v5840 = vadd.f32 %v5518, %v5668
        %v5841 = vadd.f32 %v5519, %v5670
        %v5842 = vadd.f32 %v5520, %v5672
        %v5843 = vadd.f32 %v5521, %v5674
        %v5844 = vadd.f32 %v5522, %v5676
        %v5845 = vadd.f32 %v5523, %v5678
        %v5846 = vadd.f32 %v5524, %v5680
        %v5847 = vadd.f32 %v5525, %v5682
        %v5848 = vadd.f32 %v5526, %v5684
        %v5849 = vadd.f32 %v5527, %v5686
        %v5850 = vadd.f32 %v5528, %v5688
        %v5851 = vadd.f32 %v5529, %v5690
        %v5852 = vadd.f32 %v5530, %v5692
        %v5853 = vadd.f32 %v5531, %v5694
        %v5854 = vadd.f32 %v5532, %v5696
        %v5855 = vadd.f32 %v5533, %v5698
        %v5856 = vadd.f32 %v5534, %v5700
        %v5857 = vadd.f32 %v5535, %v5702
        %v5858 = vadd.f32 %v5536, %v5704
        %v5859 = vadd.f32 %v5537, %v5706
        %v5860 = vadd.f32 %v5538, %v5708
        %v5861 = vadd.f32 %v5539, %v5710
        %v5862 = vadd.f32 %v5540, %v5712
        %v5863 = vadd.f32 %v5541, %v5714
        %v5864 = vadd.f32 %v5542, %v5716
        %v5865 = vadd.f32 %v5543, %v5718
        %v5866 = vadd.f32 %v5544, %v5720
        %v5867 = vadd.f32 %v5545, %v5722
        %v5868 = vadd.f32 %v5546, %v5724
        %v5869 = vadd.f32 %v5547, %v5726
        %v5870 = vadd.f32 %v5548, %v5728
        %v5871 = vadd.f32 %v5549, %v5730
        %v5872 = vadd.f32 %v5550, %v5732
        %v5873 = vadd.f32 %v5551, %v5734
        %v5874 = vadd.f32 %v5552, %v5736
        %v5875 = vadd.f32 %v5553, %v5738
        %v5876 = vadd.f32 %v5554, %v5740
        %v5877 = vadd.f32 %v5555, %v5742
        %v5878 = vadd.f32 %v5556, %v5744
        %v5879 = vadd.f32 %v5557, %v5746
        %v5880 = vadd.f32 %v5558, %v5748
        %v5881 = vadd.f32 %v5559, %v5750
        %v5882 = vadd.f32 %v5560, %v5752
        %v5883 = vadd.f32 %v5561, %v5754
        %v5884 = vadd.f32 %v5562, %v5756
        %v5885 = vld [vmem:[%s665] sm:$0xff]
        %v5886 = vld [vmem:[%s665 + $0x8] sm:$0xff]
        %v5887 = vld [vmem:[%s665 + $0x10] sm:$0xff]
        %v5888 = vld [vmem:[%s665 + $0x18] sm:$0xff]
        %v5889 = vld [vmem:[%s665 + $0x20] sm:$0xff]
        %v5890 = vld [vmem:[%s665 + $0x28] sm:$0xff]
        %v5891 = vld [vmem:[%s665 + $0x30] sm:$0xff]
        %v5892 = vld [vmem:[%s665 + $0x38] sm:$0xff]
        %v5893 = vld [vmem:[%s665 + $0x40] sm:$0xff]
        %v5894 = vld [vmem:[%s665 + $0x48] sm:$0xff]
        %v5895 = vld [vmem:[%s665 + $0x50] sm:$0xff]
        %v5896 = vld [vmem:[%s665 + $0x58] sm:$0xff]
        %v5897 = vld [vmem:[%s665 + $0x60] sm:$0xff]
        %v5898 = vld [vmem:[%s665 + $0x68] sm:$0xff]
        %v5899 = vld [vmem:[%s665 + $0x70] sm:$0xff]
        %v5900 = vld [vmem:[%s665 + $0x78] sm:$0xff]
        %v5901 = vld [vmem:[%s665 + $0x80] sm:$0xff]
        %v5902 = vld [vmem:[%s665 + $0x88] sm:$0xff]
        %v5903 = vld [vmem:[%s665 + $0x90] sm:$0xff]
        %v5904 = vld [vmem:[%s665 + $0x98] sm:$0xff]
        %v5905 = vld [vmem:[%s665 + $0xa0] sm:$0xff]
        %v5906 = vld [vmem:[%s665 + $0xa8] sm:$0xff]
        %v5907 = vld [vmem:[%s665 + $0xb0] sm:$0xff]
        %v5908 = vld [vmem:[%s665 + $0xb8] sm:$0xff]
        %v5909 = vld [vmem:[%s665 + $0xc0] sm:$0xff]
        %v5910 = vld [vmem:[%s665 + $0xc8] sm:$0xff]
        %v5911 = vld [vmem:[%s665 + $0xd0] sm:$0xff]
        %v5912 = vld [vmem:[%s665 + $0xd8] sm:$0xff]
        %v5913 = vld [vmem:[%s665 + $0xe0] sm:$0xff]
        %v5914 = vld [vmem:[%s665 + $0xe8] sm:$0xff]
        %v5915 = vld [vmem:[%s665 + $0xf0] sm:$0xff]
        %v5916 = vld [vmem:[%s665 + $0xf8] sm:$0xff]
        %v5917 = vld [vmem:[%s665 + $0x100] sm:$0xff]
        %v5918 = vld [vmem:[%s665 + $0x108] sm:$0xff]
        %v5919 = vld [vmem:[%s665 + $0x110] sm:$0xff]
        %v5920 = vld [vmem:[%s665 + $0x118] sm:$0xff]
        %v5921 = vld [vmem:[%s665 + $0x120] sm:$0xff]
        %v5922 = vld [vmem:[%s665 + $0x128] sm:$0xff]
        %v5923 = vld [vmem:[%s665 + $0x130] sm:$0xff]
        %v5924 = vld [vmem:[%s665 + $0x138] sm:$0xff]
        %v5925 = vld [vmem:[%s665 + $0x140] sm:$0xff]
        %v5926 = vld [vmem:[%s665 + $0x148] sm:$0xff]
        %v5927 = vld [vmem:[%s665 + $0x150] sm:$0xff]
        %v5928 = vld [vmem:[%s665 + $0x158] sm:$0xff]
        %v5929 = vld [vmem:[%s665 + $0x160] sm:$0xff]
        %v5930 = vld [vmem:[%s665 + $0x168] sm:$0xff]
        %v5931 = vld [vmem:[%s665 + $0x170] sm:$0xff]
        %v5932 = vld [vmem:[%s665 + $0x178] sm:$0xff]
        %v5933 = vld [vmem:[%s665 + $0x180] sm:$0xff]
        %v5934 = vld [vmem:[%s665 + $0x188] sm:$0xff]
        %v5935 = vld [vmem:[%s665 + $0x190] sm:$0xff]
        %v5936 = vld [vmem:[%s665 + $0x198] sm:$0xff]
        %v5937 = vld [vmem:[%s665 + $0x1a0] sm:$0xff]
        %v5938 = vld [vmem:[%s665 + $0x1a8] sm:$0xff]
        %v5939 = vld [vmem:[%s665 + $0x1b0] sm:$0xff]
        %v5940 = vld [vmem:[%s665 + $0x1b8] sm:$0xff]
        %v5941 = vld [vmem:[%s665 + $0x1c0] sm:$0xff]
        %v5942 = vld [vmem:[%s665 + $0x1c8] sm:$0xff]
        %v5943 = vld [vmem:[%s665 + $0x1d0] sm:$0xff]
        %v5944 = vld [vmem:[%s665 + $0x1d8] sm:$0xff]
        %v5945 = vld [vmem:[%s665 + $0x1e0] sm:$0xff]
        %v5946 = vld [vmem:[%s665 + $0x1e8] sm:$0xff]
        %v5947 = vld [vmem:[%s665 + $0x1f0] sm:$0xff]
        %v5948 = vld [vmem:[%s665 + $0x1f8] sm:$0xff]
        %v5949 = vadd.f32 %v5885, %v5821
        %v5950 = vadd.f32 %v5886, %v5822
        %v5951 = vadd.f32 %v5887, %v5823
        %v5952 = vadd.f32 %v5888, %v5824
        %v5953 = vadd.f32 %v5889, %v5825
        %v5954 = vadd.f32 %v5890, %v5826
        %v5955 = vadd.f32 %v5891, %v5827
        %v5956 = vadd.f32 %v5892, %v5828
        %v5957 = vadd.f32 %v5893, %v5829
        %v5958 = vadd.f32 %v5894, %v5830
        %v5959 = vadd.f32 %v5895, %v5831
        %v5960 = vadd.f32 %v5896, %v5832
        %v5961 = vadd.f32 %v5897, %v5833
        %v5962 = vadd.f32 %v5898, %v5834
        %v5963 = vadd.f32 %v5899, %v5835
        %v5964 = vadd.f32 %v5900, %v5836
        %v5965 = vadd.f32 %v5901, %v5837
        %v5966 = vadd.f32 %v5902, %v5838
        %v5967 = vadd.f32 %v5903, %v5839
        %v5968 = vadd.f32 %v5904, %v5840
        %v5969 = vadd.f32 %v5905, %v5841
        %v5970 = vadd.f32 %v5906, %v5842
        %v5971 = vadd.f32 %v5907, %v5843
        %v5972 = vadd.f32 %v5908, %v5844
        %v5973 = vadd.f32 %v5909, %v5845
        %v5974 = vadd.f32 %v5910, %v5846
        %v5975 = vadd.f32 %v5911, %v5847
        %v5976 = vadd.f32 %v5912, %v5848
        %v5977 = vadd.f32 %v5913, %v5849
        %v5978 = vadd.f32 %v5914, %v5850
        %v5979 = vadd.f32 %v5915, %v5851
        %v5980 = vadd.f32 %v5916, %v5852
        %v5981 = vadd.f32 %v5917, %v5853
        %v5982 = vadd.f32 %v5918, %v5854
        %v5983 = vadd.f32 %v5919, %v5855
        %v5984 = vadd.f32 %v5920, %v5856
        %v5985 = vadd.f32 %v5921, %v5857
        %v5986 = vadd.f32 %v5922, %v5858
        %v5987 = vadd.f32 %v5923, %v5859
        %v5988 = vadd.f32 %v5924, %v5860
        %v5989 = vadd.f32 %v5925, %v5861
        %v5990 = vadd.f32 %v5926, %v5862
        %v5991 = vadd.f32 %v5927, %v5863
        %v5992 = vadd.f32 %v5928, %v5864
        %v5993 = vadd.f32 %v5929, %v5865
        %v5994 = vadd.f32 %v5930, %v5866
        %v5995 = vadd.f32 %v5931, %v5867
        %v5996 = vadd.f32 %v5932, %v5868
        %v5997 = vadd.f32 %v5933, %v5869
        %v5998 = vadd.f32 %v5934, %v5870
        %v5999 = vadd.f32 %v5935, %v5871
        %v6000 = vadd.f32 %v5936, %v5872
        %v6001 = vadd.f32 %v5937, %v5873
        %v6002 = vadd.f32 %v5938, %v5874
        %v6003 = vadd.f32 %v5939, %v5875
        %v6004 = vadd.f32 %v5940, %v5876
        %v6005 = vadd.f32 %v5941, %v5877
        %v6006 = vadd.f32 %v5942, %v5878
        %v6007 = vadd.f32 %v5943, %v5879
        %v6008 = vadd.f32 %v5944, %v5880
        %v6009 = vadd.f32 %v5945, %v5881
        %v6010 = vadd.f32 %v5946, %v5882
        %v6011 = vadd.f32 %v5947, %v5883
        %v6012 = vadd.f32 %v5948, %v5884
        %6013 = vst [vmem:[%s665] sm:$0xff] %v5949
        %6014 = vst [vmem:[%s665 + $0x8] sm:$0xff] %v5950
        %6015 = vst [vmem:[%s665 + $0x10] sm:$0xff] %v5951
        %6016 = vst [vmem:[%s665 + $0x18] sm:$0xff] %v5952
        %6017 = vst [vmem:[%s665 + $0x20] sm:$0xff] %v5953
        %6018 = vst [vmem:[%s665 + $0x28] sm:$0xff] %v5954
        %6019 = vst [vmem:[%s665 + $0x30] sm:$0xff] %v5955
        %6020 = vst [vmem:[%s665 + $0x38] sm:$0xff] %v5956
        %6021 = vst [vmem:[%s665 + $0x40] sm:$0xff] %v5957
        %6022 = vst [vmem:[%s665 + $0x48] sm:$0xff] %v5958
        %6023 = vst [vmem:[%s665 + $0x50] sm:$0xff] %v5959
        %6024 = vst [vmem:[%s665 + $0x58] sm:$0xff] %v5960
        %6025 = vst [vmem:[%s665 + $0x60] sm:$0xff] %v5961
        %6026 = vst [vmem:[%s665 + $0x68] sm:$0xff] %v5962
        %6027 = vst [vmem:[%s665 + $0x70] sm:$0xff] %v5963
        %6028 = vst [vmem:[%s665 + $0x78] sm:$0xff] %v5964
        %6029 = vst [vmem:[%s665 + $0x80] sm:$0xff] %v5965
        %6030 = vst [vmem:[%s665 + $0x88] sm:$0xff] %v5966
        %6031 = vst [vmem:[%s665 + $0x90] sm:$0xff] %v5967
        %6032 = vst [vmem:[%s665 + $0x98] sm:$0xff] %v5968
        %6033 = vst [vmem:[%s665 + $0xa0] sm:$0xff] %v5969
        %6034 = vst [vmem:[%s665 + $0xa8] sm:$0xff] %v5970
        %6035 = vst [vmem:[%s665 + $0xb0] sm:$0xff] %v5971
        %6036 = vst [vmem:[%s665 + $0xb8] sm:$0xff] %v5972
        %6037 = vst [vmem:[%s665 + $0xc0] sm:$0xff] %v5973
        %6038 = vst [vmem:[%s665 + $0xc8] sm:$0xff] %v5974
        %6039 = vst [vmem:[%s665 + $0xd0] sm:$0xff] %v5975
        %6040 = vst [vmem:[%s665 + $0xd8] sm:$0xff] %v5976
        %6041 = vst [vmem:[%s665 + $0xe0] sm:$0xff] %v5977
        %6042 = vst [vmem:[%s665 + $0xe8] sm:$0xff] %v5978
        %6043 = vst [vmem:[%s665 + $0xf0] sm:$0xff] %v5979
        %6044 = vst [vmem:[%s665 + $0xf8] sm:$0xff] %v5980
        %6045 = vst [vmem:[%s665 + $0x100] sm:$0xff] %v5981
        %6046 = vst [vmem:[%s665 + $0x108] sm:$0xff] %v5982
        %6047 = vst [vmem:[%s665 + $0x110] sm:$0xff] %v5983
        %6048 = vst [vmem:[%s665 + $0x118] sm:$0xff] %v5984
        %6049 = vst [vmem:[%s665 + $0x120] sm:$0xff] %v5985
        %6050 = vst [vmem:[%s665 + $0x128] sm:$0xff] %v5986
        %6051 = vst [vmem:[%s665 + $0x130] sm:$0xff] %v5987
        %6052 = vst [vmem:[%s665 + $0x138] sm:$0xff] %v5988
        %6053 = vst [vmem:[%s665 + $0x140] sm:$0xff] %v5989
        %6054 = vst [vmem:[%s665 + $0x148] sm:$0xff] %v5990
        %6055 = vst [vmem:[%s665 + $0x150] sm:$0xff] %v5991
        %6056 = vst [vmem:[%s665 + $0x158] sm:$0xff] %v5992
        %6057 = vst [vmem:[%s665 + $0x160] sm:$0xff] %v5993
        %6058 = vst [vmem:[%s665 + $0x168] sm:$0xff] %v5994
        %6059 = vst [vmem:[%s665 + $0x170] sm:$0xff] %v5995
        %6060 = vst [vmem:[%s665 + $0x178] sm:$0xff] %v5996
        %6061 = vst [vmem:[%s665 + $0x180] sm:$0xff] %v5997
        %6062 = vst [vmem:[%s665 + $0x188] sm:$0xff] %v5998
        %6063 = vst [vmem:[%s665 + $0x190] sm:$0xff] %v5999
        %6064 = vst [vmem:[%s665 + $0x198] sm:$0xff] %v6000
        %6065 = vst [vmem:[%s665 + $0x1a0] sm:$0xff] %v6001
        %6066 = vst [vmem:[%s665 + $0x1a8] sm:$0xff] %v6002
        %6067 = vst [vmem:[%s665 + $0x1b0] sm:$0xff] %v6003
        %6068 = vst [vmem:[%s665 + $0x1b8] sm:$0xff] %v6004
        %6069 = vst [vmem:[%s665 + $0x1c0] sm:$0xff] %v6005
        %6070 = vst [vmem:[%s665 + $0x1c8] sm:$0xff] %v6006
        %6071 = vst [vmem:[%s665 + $0x1d0] sm:$0xff] %v6007
        %6072 = vst [vmem:[%s665 + $0x1d8] sm:$0xff] %v6008
        %6073 = vst [vmem:[%s665 + $0x1e0] sm:$0xff] %v6009
        %6074 = vst [vmem:[%s665 + $0x1e8] sm:$0xff] %v6010
        %6075 = vst [vmem:[%s665 + $0x1f0] sm:$0xff] %v6011
        %6076 = vst [vmem:[%s665 + $0x1f8] sm:$0xff] %v6012
        %p6077 = scmp.eq.s32.totalorder %s24, 4
        // Predicated region
        $region90: #{_lambda_.1} parent=80 // pred_check
          %p6078 = pneg %p6077
        $region91: #{_lambda_.1} parent=80 // pred_check_branch
          %6080 = sbr.rel (%p6078) target = $region93
        $region92: #{_lambda_.1} parent=80 // pred_region
          %v6081 = vld [vmem:[%s665] sm:$0xff]
          %v6082 = vld [vmem:[%s665 + $0x8] sm:$0xff]
          %v6083 = vld [vmem:[%s665 + $0x10] sm:$0xff]
          %v6084 = vld [vmem:[%s665 + $0x18] sm:$0xff]
          %v6085 = vld [vmem:[%s665 + $0x20] sm:$0xff]
          %v6086 = vld [vmem:[%s665 + $0x28] sm:$0xff]
          %v6087 = vld [vmem:[%s665 + $0x30] sm:$0xff]
          %v6088 = vld [vmem:[%s665 + $0x38] sm:$0xff]
          %v6089 = vld [vmem:[%s665 + $0x40] sm:$0xff]
          %v6090 = vld [vmem:[%s665 + $0x48] sm:$0xff]
          %v6091 = vld [vmem:[%s665 + $0x50] sm:$0xff]
          %v6092 = vld [vmem:[%s665 + $0x58] sm:$0xff]
          %v6093 = vld [vmem:[%s665 + $0x60] sm:$0xff]
          %v6094 = vld [vmem:[%s665 + $0x68] sm:$0xff]
          %v6095 = vld [vmem:[%s665 + $0x70] sm:$0xff]
          %v6096 = vld [vmem:[%s665 + $0x78] sm:$0xff]
          %v6097 = vld [vmem:[%s665 + $0x80] sm:$0xff]
          %v6098 = vld [vmem:[%s665 + $0x88] sm:$0xff]
          %v6099 = vld [vmem:[%s665 + $0x90] sm:$0xff]
          %v6100 = vld [vmem:[%s665 + $0x98] sm:$0xff]
          %v6101 = vld [vmem:[%s665 + $0xa0] sm:$0xff]
          %v6102 = vld [vmem:[%s665 + $0xa8] sm:$0xff]
          %v6103 = vld [vmem:[%s665 + $0xb0] sm:$0xff]
          %v6104 = vld [vmem:[%s665 + $0xb8] sm:$0xff]
          %v6105 = vld [vmem:[%s665 + $0xc0] sm:$0xff]
          %v6106 = vld [vmem:[%s665 + $0xc8] sm:$0xff]
          %v6107 = vld [vmem:[%s665 + $0xd0] sm:$0xff]
          %v6108 = vld [vmem:[%s665 + $0xd8] sm:$0xff]
          %v6109 = vld [vmem:[%s665 + $0xe0] sm:$0xff]
          %v6110 = vld [vmem:[%s665 + $0xe8] sm:$0xff]
          %v6111 = vld [vmem:[%s665 + $0xf0] sm:$0xff]
          %v6112 = vld [vmem:[%s665 + $0xf8] sm:$0xff]
          %v6113 = vld [vmem:[%s665 + $0x100] sm:$0xff]
          %v6114 = vld [vmem:[%s665 + $0x108] sm:$0xff]
          %v6115 = vld [vmem:[%s665 + $0x110] sm:$0xff]
          %v6116 = vld [vmem:[%s665 + $0x118] sm:$0xff]
          %v6117 = vld [vmem:[%s665 + $0x120] sm:$0xff]
          %v6118 = vld [vmem:[%s665 + $0x128] sm:$0xff]
          %v6119 = vld [vmem:[%s665 + $0x130] sm:$0xff]
          %v6120 = vld [vmem:[%s665 + $0x138] sm:$0xff]
          %v6121 = vld [vmem:[%s665 + $0x140] sm:$0xff]
          %v6122 = vld [vmem:[%s665 + $0x148] sm:$0xff]
          %v6123 = vld [vmem:[%s665 + $0x150] sm:$0xff]
          %v6124 = vld [vmem:[%s665 + $0x158] sm:$0xff]
          %v6125 = vld [vmem:[%s665 + $0x160] sm:$0xff]
          %v6126 = vld [vmem:[%s665 + $0x168] sm:$0xff]
          %v6127 = vld [vmem:[%s665 + $0x170] sm:$0xff]
          %v6128 = vld [vmem:[%s665 + $0x178] sm:$0xff]
          %v6129 = vld [vmem:[%s665 + $0x180] sm:$0xff]
          %v6130 = vld [vmem:[%s665 + $0x188] sm:$0xff]
          %v6131 = vld [vmem:[%s665 + $0x190] sm:$0xff]
          %v6132 = vld [vmem:[%s665 + $0x198] sm:$0xff]
          %v6133 = vld [vmem:[%s665 + $0x1a0] sm:$0xff]
          %v6134 = vld [vmem:[%s665 + $0x1a8] sm:$0xff]
          %v6135 = vld [vmem:[%s665 + $0x1b0] sm:$0xff]
          %v6136 = vld [vmem:[%s665 + $0x1b8] sm:$0xff]
          %v6137 = vld [vmem:[%s665 + $0x1c0] sm:$0xff]
          %v6138 = vld [vmem:[%s665 + $0x1c8] sm:$0xff]
          %v6139 = vld [vmem:[%s665 + $0x1d0] sm:$0xff]
          %v6140 = vld [vmem:[%s665 + $0x1d8] sm:$0xff]
          %v6141 = vld [vmem:[%s665 + $0x1e0] sm:$0xff]
          %v6142 = vld [vmem:[%s665 + $0x1e8] sm:$0xff]
          %v6143 = vld [vmem:[%s665 + $0x1f0] sm:$0xff]
          %v6144 = vld [vmem:[%s665 + $0x1f8] sm:$0xff]
          %v6145 = vld [vmem:[%s2] sm:$0x1]
          %v6147 = vperm.slane %v6145, 0
          %v6149 = vmul.f32 %v6081, %v6147
          %v6150 = vmul.f32 %v6082, %v6147
          %v6151 = vmul.f32 %v6083, %v6147
          %v6152 = vmul.f32 %v6084, %v6147
          %v6153 = vmul.f32 %v6085, %v6147
          %v6154 = vmul.f32 %v6086, %v6147
          %v6155 = vmul.f32 %v6087, %v6147
          %v6156 = vmul.f32 %v6088, %v6147
          %v6157 = vmul.f32 %v6089, %v6147
          %v6158 = vmul.f32 %v6090, %v6147
          %v6159 = vmul.f32 %v6091, %v6147
          %v6160 = vmul.f32 %v6092, %v6147
          %v6161 = vmul.f32 %v6093, %v6147
          %v6162 = vmul.f32 %v6094, %v6147
          %v6163 = vmul.f32 %v6095, %v6147
          %v6164 = vmul.f32 %v6096, %v6147
          %v6165 = vmul.f32 %v6097, %v6147
          %v6166 = vmul.f32 %v6098, %v6147
          %v6167 = vmul.f32 %v6099, %v6147
          %v6168 = vmul.f32 %v6100, %v6147
          %v6169 = vmul.f32 %v6101, %v6147
          %v6170 = vmul.f32 %v6102, %v6147
          %v6171 = vmul.f32 %v6103, %v6147
          %v6172 = vmul.f32 %v6104, %v6147
          %v6173 = vmul.f32 %v6105, %v6147
          %v6174 = vmul.f32 %v6106, %v6147
          %v6175 = vmul.f32 %v6107, %v6147
          %v6176 = vmul.f32 %v6108, %v6147
          %v6177 = vmul.f32 %v6109, %v6147
          %v6178 = vmul.f32 %v6110, %v6147
          %v6179 = vmul.f32 %v6111, %v6147
          %v6180 = vmul.f32 %v6112, %v6147
          %v6181 = vmul.f32 %v6113, %v6147
          %v6182 = vmul.f32 %v6114, %v6147
          %v6183 = vmul.f32 %v6115, %v6147
          %v6184 = vmul.f32 %v6116, %v6147
          %v6185 = vmul.f32 %v6117, %v6147
          %v6186 = vmul.f32 %v6118, %v6147
          %v6187 = vmul.f32 %v6119, %v6147
          %v6188 = vmul.f32 %v6120, %v6147
          %v6189 = vmul.f32 %v6121, %v6147
          %v6190 = vmul.f32 %v6122, %v6147
          %v6191 = vmul.f32 %v6123, %v6147
          %v6192 = vmul.f32 %v6124, %v6147
          %v6193 = vmul.f32 %v6125, %v6147
          %v6194 = vmul.f32 %v6126, %v6147
          %v6195 = vmul.f32 %v6127, %v6147
          %v6196 = vmul.f32 %v6128, %v6147
          %v6197 = vmul.f32 %v6129, %v6147
          %v6198 = vmul.f32 %v6130, %v6147
          %v6199 = vmul.f32 %v6131, %v6147
          %v6200 = vmul.f32 %v6132, %v6147
          %v6201 = vmul.f32 %v6133, %v6147
          %v6202 = vmul.f32 %v6134, %v6147
          %v6203 = vmul.f32 %v6135, %v6147
          %v6204 = vmul.f32 %v6136, %v6147
          %v6205 = vmul.f32 %v6137, %v6147
          %v6206 = vmul.f32 %v6138, %v6147
          %v6207 = vmul.f32 %v6139, %v6147
          %v6208 = vmul.f32 %v6140, %v6147
          %v6209 = vmul.f32 %v6141, %v6147
          %v6210 = vmul.f32 %v6142, %v6147
          %v6211 = vmul.f32 %v6143, %v6147
          %v6212 = vmul.f32 %v6144, %v6147
          %v6213 = vld [vmem:[%s3] sm:$0x1]
          %v6215 = vperm.slane %v6213, 0
          %v6217 = vadd.f32 %v6149, %v6215
          %v6218 = vadd.f32 %v6150, %v6215
          %v6219 = vadd.f32 %v6151, %v6215
          %v6220 = vadd.f32 %v6152, %v6215
          %v6221 = vadd.f32 %v6153, %v6215
          %v6222 = vadd.f32 %v6154, %v6215
          %v6223 = vadd.f32 %v6155, %v6215
          %v6224 = vadd.f32 %v6156, %v6215
          %v6225 = vadd.f32 %v6157, %v6215
          %v6226 = vadd.f32 %v6158, %v6215
          %v6227 = vadd.f32 %v6159, %v6215
          %v6228 = vadd.f32 %v6160, %v6215
          %v6229 = vadd.f32 %v6161, %v6215
          %v6230 = vadd.f32 %v6162, %v6215
          %v6231 = vadd.f32 %v6163, %v6215
          %v6232 = vadd.f32 %v6164, %v6215
          %v6233 = vadd.f32 %v6165, %v6215
          %v6234 = vadd.f32 %v6166, %v6215
          %v6235 = vadd.f32 %v6167, %v6215
          %v6236 = vadd.f32 %v6168, %v6215
          %v6237 = vadd.f32 %v6169, %v6215
          %v6238 = vadd.f32 %v6170, %v6215
          %v6239 = vadd.f32 %v6171, %v6215
          %v6240 = vadd.f32 %v6172, %v6215
          %v6241 = vadd.f32 %v6173, %v6215
          %v6242 = vadd.f32 %v6174, %v6215
          %v6243 = vadd.f32 %v6175, %v6215
          %v6244 = vadd.f32 %v6176, %v6215
          %v6245 = vadd.f32 %v6177, %v6215
          %v6246 = vadd.f32 %v6178, %v6215
          %v6247 = vadd.f32 %v6179, %v6215
          %v6248 = vadd.f32 %v6180, %v6215
          %v6249 = vadd.f32 %v6181, %v6215
          %v6250 = vadd.f32 %v6182, %v6215
          %v6251 = vadd.f32 %v6183, %v6215
          %v6252 = vadd.f32 %v6184, %v6215
          %v6253 = vadd.f32 %v6185, %v6215
          %v6254 = vadd.f32 %v6186, %v6215
          %v6255 = vadd.f32 %v6187, %v6215
          %v6256 = vadd.f32 %v6188, %v6215
          %v6257 = vadd.f32 %v6189, %v6215
          %v6258 = vadd.f32 %v6190, %v6215
          %v6259 = vadd.f32 %v6191, %v6215
          %v6260 = vadd.f32 %v6192, %v6215
          %v6261 = vadd.f32 %v6193, %v6215
          %v6262 = vadd.f32 %v6194, %v6215
          %v6263 = vadd.f32 %v6195, %v6215
          %v6264 = vadd.f32 %v6196, %v6215
          %v6265 = vadd.f32 %v6197, %v6215
          %v6266 = vadd.f32 %v6198, %v6215
          %v6267 = vadd.f32 %v6199, %v6215
          %v6268 = vadd.f32 %v6200, %v6215
          %v6269 = vadd.f32 %v6201, %v6215
          %v6270 = vadd.f32 %v6202, %v6215
          %v6271 = vadd.f32 %v6203, %v6215
          %v6272 = vadd.f32 %v6204, %v6215
          %v6273 = vadd.f32 %v6205, %v6215
          %v6274 = vadd.f32 %v6206, %v6215
          %v6275 = vadd.f32 %v6207, %v6215
          %v6276 = vadd.f32 %v6208, %v6215
          %v6277 = vadd.f32 %v6209, %v6215
          %v6278 = vadd.f32 %v6210, %v6215
          %v6279 = vadd.f32 %v6211, %v6215
          %v6280 = vadd.f32 %v6212, %v6215
          %v6281 = vmax.f32 %v6217, 0.0
          %v6282 = vmax.f32 %v6218, 0.0
          %v6283 = vmax.f32 %v6219, 0.0
          %v6284 = vmax.f32 %v6220, 0.0
          %v6285 = vmax.f32 %v6221, 0.0
          %v6286 = vmax.f32 %v6222, 0.0
          %v6287 = vmax.f32 %v6223, 0.0
          %v6288 = vmax.f32 %v6224, 0.0
          %v6289 = vmax.f32 %v6225, 0.0
          %v6290 = vmax.f32 %v6226, 0.0
          %v6291 = vmax.f32 %v6227, 0.0
          %v6292 = vmax.f32 %v6228, 0.0
          %v6293 = vmax.f32 %v6229, 0.0
          %v6294 = vmax.f32 %v6230, 0.0
          %v6295 = vmax.f32 %v6231, 0.0
          %v6296 = vmax.f32 %v6232, 0.0
          %v6297 = vmax.f32 %v6233, 0.0
          %v6298 = vmax.f32 %v6234, 0.0
          %v6299 = vmax.f32 %v6235, 0.0
          %v6300 = vmax.f32 %v6236, 0.0
          %v6301 = vmax.f32 %v6237, 0.0
          %v6302 = vmax.f32 %v6238, 0.0
          %v6303 = vmax.f32 %v6239, 0.0
          %v6304 = vmax.f32 %v6240, 0.0
          %v6305 = vmax.f32 %v6241, 0.0
          %v6306 = vmax.f32 %v6242, 0.0
          %v6307 = vmax.f32 %v6243, 0.0
          %v6308 = vmax.f32 %v6244, 0.0
          %v6309 = vmax.f32 %v6245, 0.0
          %v6310 = vmax.f32 %v6246, 0.0
          %v6311 = vmax.f32 %v6247, 0.0
          %v6312 = vmax.f32 %v6248, 0.0
          %v6313 = vmax.f32 %v6249, 0.0
          %v6314 = vmax.f32 %v6250, 0.0
          %v6315 = vmax.f32 %v6251, 0.0
          %v6316 = vmax.f32 %v6252, 0.0
          %v6317 = vmax.f32 %v6253, 0.0
          %v6318 = vmax.f32 %v6254, 0.0
          %v6319 = vmax.f32 %v6255, 0.0
          %v6320 = vmax.f32 %v6256, 0.0
          %v6321 = vmax.f32 %v6257, 0.0
          %v6322 = vmax.f32 %v6258, 0.0
          %v6323 = vmax.f32 %v6259, 0.0
          %v6324 = vmax.f32 %v6260, 0.0
          %v6325 = vmax.f32 %v6261, 0.0
          %v6326 = vmax.f32 %v6262, 0.0
          %v6327 = vmax.f32 %v6263, 0.0
          %v6328 = vmax.f32 %v6264, 0.0
          %v6329 = vmax.f32 %v6265, 0.0
          %v6330 = vmax.f32 %v6266, 0.0
          %v6331 = vmax.f32 %v6267, 0.0
          %v6332 = vmax.f32 %v6268, 0.0
          %v6333 = vmax.f32 %v6269, 0.0
          %v6334 = vmax.f32 %v6270, 0.0
          %v6335 = vmax.f32 %v6271, 0.0
          %v6336 = vmax.f32 %v6272, 0.0
          %v6337 = vmax.f32 %v6273, 0.0
          %v6338 = vmax.f32 %v6274, 0.0
          %v6339 = vmax.f32 %v6275, 0.0
          %v6340 = vmax.f32 %v6276, 0.0
          %v6341 = vmax.f32 %v6277, 0.0
          %v6342 = vmax.f32 %v6278, 0.0
          %v6343 = vmax.f32 %v6279, 0.0
          %v6344 = vmax.f32 %v6280, 0.0
          %6345 = vst [vmem:[%s665] sm:$0xff] %v6281
          %6346 = vst [vmem:[%s665 + $0x8] sm:$0xff] %v6282
          %6347 = vst [vmem:[%s665 + $0x10] sm:$0xff] %v6283
          %6348 = vst [vmem:[%s665 + $0x18] sm:$0xff] %v6284
          %6349 = vst [vmem:[%s665 + $0x20] sm:$0xff] %v6285
          %6350 = vst [vmem:[%s665 + $0x28] sm:$0xff] %v6286
          %6351 = vst [vmem:[%s665 + $0x30] sm:$0xff] %v6287
          %6352 = vst [vmem:[%s665 + $0x38] sm:$0xff] %v6288
          %6353 = vst [vmem:[%s665 + $0x40] sm:$0xff] %v6289
          %6354 = vst [vmem:[%s665 + $0x48] sm:$0xff] %v6290
          %6355 = vst [vmem:[%s665 + $0x50] sm:$0xff] %v6291
          %6356 = vst [vmem:[%s665 + $0x58] sm:$0xff] %v6292
          %6357 = vst [vmem:[%s665 + $0x60] sm:$0xff] %v6293
          %6358 = vst [vmem:[%s665 + $0x68] sm:$0xff] %v6294
          %6359 = vst [vmem:[%s665 + $0x70] sm:$0xff] %v6295
          %6360 = vst [vmem:[%s665 + $0x78] sm:$0xff] %v6296
          %6361 = vst [vmem:[%s665 + $0x80] sm:$0xff] %v6297
          %6362 = vst [vmem:[%s665 + $0x88] sm:$0xff] %v6298
          %6363 = vst [vmem:[%s665 + $0x90] sm:$0xff] %v6299
          %6364 = vst [vmem:[%s665 + $0x98] sm:$0xff] %v6300
          %6365 = vst [vmem:[%s665 + $0xa0] sm:$0xff] %v6301
          %6366 = vst [vmem:[%s665 + $0xa8] sm:$0xff] %v6302
          %6367 = vst [vmem:[%s665 + $0xb0] sm:$0xff] %v6303
          %6368 = vst [vmem:[%s665 + $0xb8] sm:$0xff] %v6304
          %6369 = vst [vmem:[%s665 + $0xc0] sm:$0xff] %v6305
          %6370 = vst [vmem:[%s665 + $0xc8] sm:$0xff] %v6306
          %6371 = vst [vmem:[%s665 + $0xd0] sm:$0xff] %v6307
          %6372 = vst [vmem:[%s665 + $0xd8] sm:$0xff] %v6308
          %6373 = vst [vmem:[%s665 + $0xe0] sm:$0xff] %v6309
          %6374 = vst [vmem:[%s665 + $0xe8] sm:$0xff] %v6310
          %6375 = vst [vmem:[%s665 + $0xf0] sm:$0xff] %v6311
          %6376 = vst [vmem:[%s665 + $0xf8] sm:$0xff] %v6312
          %6377 = vst [vmem:[%s665 + $0x100] sm:$0xff] %v6313
          %6378 = vst [vmem:[%s665 + $0x108] sm:$0xff] %v6314
          %6379 = vst [vmem:[%s665 + $0x110] sm:$0xff] %v6315
          %6380 = vst [vmem:[%s665 + $0x118] sm:$0xff] %v6316
          %6381 = vst [vmem:[%s665 + $0x120] sm:$0xff] %v6317
          %6382 = vst [vmem:[%s665 + $0x128] sm:$0xff] %v6318
          %6383 = vst [vmem:[%s665 + $0x130] sm:$0xff] %v6319
          %6384 = vst [vmem:[%s665 + $0x138] sm:$0xff] %v6320
          %6385 = vst [vmem:[%s665 + $0x140] sm:$0xff] %v6321
          %6386 = vst [vmem:[%s665 + $0x148] sm:$0xff] %v6322
          %6387 = vst [vmem:[%s665 + $0x150] sm:$0xff] %v6323
          %6388 = vst [vmem:[%s665 + $0x158] sm:$0xff] %v6324
          %6389 = vst [vmem:[%s665 + $0x160] sm:$0xff] %v6325
          %6390 = vst [vmem:[%s665 + $0x168] sm:$0xff] %v6326
          %6391 = vst [vmem:[%s665 + $0x170] sm:$0xff] %v6327
          %6392 = vst [vmem:[%s665 + $0x178] sm:$0xff] %v6328
          %6393 = vst [vmem:[%s665 + $0x180] sm:$0xff] %v6329
          %6394 = vst [vmem:[%s665 + $0x188] sm:$0xff] %v6330
          %6395 = vst [vmem:[%s665 + $0x190] sm:$0xff] %v6331
          %6396 = vst [vmem:[%s665 + $0x198] sm:$0xff] %v6332
          %6397 = vst [vmem:[%s665 + $0x1a0] sm:$0xff] %v6333
          %6398 = vst [vmem:[%s665 + $0x1a8] sm:$0xff] %v6334
          %6399 = vst [vmem:[%s665 + $0x1b0] sm:$0xff] %v6335
          %6400 = vst [vmem:[%s665 + $0x1b8] sm:$0xff] %v6336
          %6401 = vst [vmem:[%s665 + $0x1c0] sm:$0xff] %v6337
          %6402 = vst [vmem:[%s665 + $0x1c8] sm:$0xff] %v6338
          %6403 = vst [vmem:[%s665 + $0x1d0] sm:$0xff] %v6339
          %6404 = vst [vmem:[%s665 + $0x1d8] sm:$0xff] %v6340
          %6405 = vst [vmem:[%s665 + $0x1e0] sm:$0xff] %v6341
          %6406 = vst [vmem:[%s665 + $0x1e8] sm:$0xff] %v6342
          %6407 = vst [vmem:[%s665 + $0x1f0] sm:$0xff] %v6343
          %6408 = vst [vmem:[%s665 + $0x1f8] sm:$0xff] %v6344
          %v6409 = vpack.c.bf16 %v6282, %v6281
          %v6410 = vpack.c.bf16 %v6284, %v6283
          %v6411 = vpack.c.bf16 %v6286, %v6285
          %v6412 = vpack.c.bf16 %v6288, %v6287
          %v6413 = vpack.c.bf16 %v6290, %v6289
          %v6414 = vpack.c.bf16 %v6292, %v6291
          %v6415 = vpack.c.bf16 %v6294, %v6293
          %v6416 = vpack.c.bf16 %v6296, %v6295
          %v6417 = vpack.c.bf16 %v6298, %v6297
          %v6418 = vpack.c.bf16 %v6300, %v6299
          %v6419 = vpack.c.bf16 %v6302, %v6301
          %v6420 = vpack.c.bf16 %v6304, %v6303
          %v6421 = vpack.c.bf16 %v6306, %v6305
          %v6422 = vpack.c.bf16 %v6308, %v6307
          %v6423 = vpack.c.bf16 %v6310, %v6309
          %v6424 = vpack.c.bf16 %v6312, %v6311
          %v6425 = vpack.c.bf16 %v6314, %v6313
          %v6426 = vpack.c.bf16 %v6316, %v6315
          %v6427 = vpack.c.bf16 %v6318, %v6317
          %v6428 = vpack.c.bf16 %v6320, %v6319
          %v6429 = vpack.c.bf16 %v6322, %v6321
          %v6430 = vpack.c.bf16 %v6324, %v6323
          %v6431 = vpack.c.bf16 %v6326, %v6325
          %v6432 = vpack.c.bf16 %v6328, %v6327
          %v6433 = vpack.c.bf16 %v6330, %v6329
          %v6434 = vpack.c.bf16 %v6332, %v6331
          %v6435 = vpack.c.bf16 %v6334, %v6333
          %v6436 = vpack.c.bf16 %v6336, %v6335
          %v6437 = vpack.c.bf16 %v6338, %v6337
          %v6438 = vpack.c.bf16 %v6340, %v6339
          %v6439 = vpack.c.bf16 %v6342, %v6341
          %v6440 = vpack.c.bf16 %v6344, %v6343
          %v6441 = vld [vmem:[%s4] sm:$0xf]
          %v6442 = vld [vmem:[%s4 + $0x4] sm:$0xf]
          %v6443 = vld [vmem:[%s4 + $0x8] sm:$0xf]
          %v6444 = vld [vmem:[%s4 + $0xc] sm:$0xf]
          %v6445 = vld [vmem:[%s4 + $0x10] sm:$0xf]
          %v6446 = vld [vmem:[%s4 + $0x14] sm:$0xf]
          %v6447 = vld [vmem:[%s4 + $0x18] sm:$0xf]
          %v6448 = vld [vmem:[%s4 + $0x1c] sm:$0xf]
          %v6449 = vld [vmem:[%s4 + $0x20] sm:$0xf]
          %v6450 = vld [vmem:[%s4 + $0x24] sm:$0xf]
          %v6451 = vld [vmem:[%s4 + $0x28] sm:$0xf]
          %v6452 = vld [vmem:[%s4 + $0x2c] sm:$0xf]
          %v6453 = vld [vmem:[%s4 + $0x30] sm:$0xf]
          %v6454 = vld [vmem:[%s4 + $0x34] sm:$0xf]
          %v6455 = vld [vmem:[%s4 + $0x38] sm:$0xf]
          %v6456 = vld [vmem:[%s4 + $0x3c] sm:$0xf]
          %v6457 = vld [vmem:[%s5] sm:$0x1]
          %v6459 = vperm.slane %v6457, 0
          %v6477 = vunpack.c.l.b16 %v6441
          %v6478 = vunpack.c.l.b16 %v6442
          %v6479 = vunpack.c.l.b16 %v6443
          %v6480 = vunpack.c.l.b16 %v6444
          %v6481 = vunpack.c.l.b16 %v6445
          %v6482 = vunpack.c.l.b16 %v6446
          %v6483 = vunpack.c.l.b16 %v6447
          %v6484 = vunpack.c.l.b16 %v6448
          %v6485 = vunpack.c.l.b16 %v6449
          %v6486 = vunpack.c.l.b16 %v6450
          %v6487 = vunpack.c.l.b16 %v6451
          %v6488 = vunpack.c.l.b16 %v6452
          %v6489 = vunpack.c.l.b16 %v6453
          %v6490 = vunpack.c.l.b16 %v6454
          %v6491 = vunpack.c.l.b16 %v6455
          %v6492 = vunpack.c.l.b16 %v6456
          %v6493 = vpack.c.b16 %v6478, %v6477
          %v6494 = vpack.c.b16 %v6480, %v6479
          %v6495 = vpack.c.b16 %v6482, %v6481
          %v6496 = vpack.c.b16 %v6484, %v6483
          %v6497 = vpack.c.b16 %v6486, %v6485
          %v6498 = vpack.c.b16 %v6488, %v6487
          %v6499 = vpack.c.b16 %v6490, %v6489
          %v6500 = vpack.c.b16 %v6492, %v6491
          %6509 = vmatpush.bf16.msra.mxu0 %v6500
          %6510 = vmatpush.bf16.msra.mxu0 %v6499
          %6511 = vmatpush.bf16.msra.mxu0 %v6498
          %6512 = vmatpush.bf16.msra.mxu0 %v6497
          %6513 = vmatpush.bf16.msra.mxu0 %v6496
          %6514 = vmatpush.bf16.msra.mxu0 %v6495
          %6515 = vmatpush.bf16.msra.mxu0 %v6494
          %6516 = vmatpush.bf16.msra.mxu0 %v6493
          %6517 = vmatmul.bf16.gmra.mxu0 %v6409
          %v6518 = vpop.f32.mrf.mxu0
          %v6519 = vadd.f32 %v6459, %v6518
          %v6520 = vpop.f32.mrf.mxu0
          %v6521 = vadd.f32 %v6459, %v6520
          %6522 = vmatmul.bf16.gmra.mxu0 %v6410
          %v6523 = vpop.f32.mrf.mxu0
          %v6524 = vadd.f32 %v6459, %v6523
          %v6525 = vpop.f32.mrf.mxu0
          %v6526 = vadd.f32 %v6459, %v6525
          %6527 = vmatmul.bf16.gmra.mxu0 %v6411
          %v6528 = vpop.f32.mrf.mxu0
          %v6529 = vadd.f32 %v6459, %v6528
          %v6530 = vpop.f32.mrf.mxu0
          %v6531 = vadd.f32 %v6459, %v6530
          %6532 = vmatmul.bf16.gmra.mxu0 %v6412
          %v6533 = vpop.f32.mrf.mxu0
          %v6534 = vadd.f32 %v6459, %v6533
          %v6535 = vpop.f32.mrf.mxu0
          %v6536 = vadd.f32 %v6459, %v6535
          %6537 = vmatmul.bf16.gmra.mxu0 %v6413
          %v6538 = vpop.f32.mrf.mxu0
          %v6539 = vadd.f32 %v6459, %v6538
          %v6540 = vpop.f32.mrf.mxu0
          %v6541 = vadd.f32 %v6459, %v6540
          %6542 = vmatmul.bf16.gmra.mxu0 %v6414
          %v6543 = vpop.f32.mrf.mxu0
          %v6544 = vadd.f32 %v6459, %v6543
          %v6545 = vpop.f32.mrf.mxu0
          %v6546 = vadd.f32 %v6459, %v6545
          %6547 = vmatmul.bf16.gmra.mxu0 %v6415
          %v6548 = vpop.f32.mrf.mxu0
          %v6549 = vadd.f32 %v6459, %v6548
          %v6550 = vpop.f32.mrf.mxu0
          %v6551 = vadd.f32 %v6459, %v6550
          %6552 = vmatmul.bf16.gmra.mxu0 %v6416
          %v6553 = vpop.f32.mrf.mxu0
          %v6554 = vadd.f32 %v6459, %v6553
          %v6555 = vpop.f32.mrf.mxu0
          %v6556 = vadd.f32 %v6459, %v6555
          %6557 = vmatmul.bf16.gmra.mxu0 %v6417
          %v6558 = vpop.f32.mrf.mxu0
          %v6559 = vadd.f32 %v6459, %v6558
          %v6560 = vpop.f32.mrf.mxu0
          %v6561 = vadd.f32 %v6459, %v6560
          %6562 = vmatmul.bf16.gmra.mxu0 %v6418
          %v6563 = vpop.f32.mrf.mxu0
          %v6564 = vadd.f32 %v6459, %v6563
          %v6565 = vpop.f32.mrf.mxu0
          %v6566 = vadd.f32 %v6459, %v6565
          %6567 = vmatmul.bf16.gmra.mxu0 %v6419
          %v6568 = vpop.f32.mrf.mxu0
          %v6569 = vadd.f32 %v6459, %v6568
          %v6570 = vpop.f32.mrf.mxu0
          %v6571 = vadd.f32 %v6459, %v6570
          %6572 = vmatmul.bf16.gmra.mxu0 %v6420
          %v6573 = vpop.f32.mrf.mxu0
          %v6574 = vadd.f32 %v6459, %v6573
          %v6575 = vpop.f32.mrf.mxu0
          %v6576 = vadd.f32 %v6459, %v6575
          %6577 = vmatmul.bf16.gmra.mxu0 %v6421
          %v6578 = vpop.f32.mrf.mxu0
          %v6579 = vadd.f32 %v6459, %v6578
          %v6580 = vpop.f32.mrf.mxu0
          %v6581 = vadd.f32 %v6459, %v6580
          %6582 = vmatmul.bf16.gmra.mxu0 %v6422
          %v6583 = vpop.f32.mrf.mxu0
          %v6584 = vadd.f32 %v6459, %v6583
          %v6585 = vpop.f32.mrf.mxu0
          %v6586 = vadd.f32 %v6459, %v6585
          %6587 = vmatmul.bf16.gmra.mxu0 %v6423
          %v6588 = vpop.f32.mrf.mxu0
          %v6589 = vadd.f32 %v6459, %v6588
          %v6590 = vpop.f32.mrf.mxu0
          %v6591 = vadd.f32 %v6459, %v6590
          %6592 = vmatmul.bf16.gmra.mxu0 %v6424
          %v6593 = vpop.f32.mrf.mxu0
          %v6594 = vadd.f32 %v6459, %v6593
          %v6595 = vpop.f32.mrf.mxu0
          %v6596 = vadd.f32 %v6459, %v6595
          %6597 = vmatmul.bf16.gmra.mxu0 %v6425
          %v6598 = vpop.f32.mrf.mxu0
          %v6599 = vadd.f32 %v6459, %v6598
          %v6600 = vpop.f32.mrf.mxu0
          %v6601 = vadd.f32 %v6459, %v6600
          %6602 = vmatmul.bf16.gmra.mxu0 %v6426
          %v6603 = vpop.f32.mrf.mxu0
          %v6604 = vadd.f32 %v6459, %v6603
          %v6605 = vpop.f32.mrf.mxu0
          %v6606 = vadd.f32 %v6459, %v6605
          %6607 = vmatmul.bf16.gmra.mxu0 %v6427
          %v6608 = vpop.f32.mrf.mxu0
          %v6609 = vadd.f32 %v6459, %v6608
          %v6610 = vpop.f32.mrf.mxu0
          %v6611 = vadd.f32 %v6459, %v6610
          %6612 = vmatmul.bf16.gmra.mxu0 %v6428
          %v6613 = vpop.f32.mrf.mxu0
          %v6614 = vadd.f32 %v6459, %v6613
          %v6615 = vpop.f32.mrf.mxu0
          %v6616 = vadd.f32 %v6459, %v6615
          %6617 = vmatmul.bf16.gmra.mxu0 %v6429
          %v6618 = vpop.f32.mrf.mxu0
          %v6619 = vadd.f32 %v6459, %v6618
          %v6620 = vpop.f32.mrf.mxu0
          %v6621 = vadd.f32 %v6459, %v6620
          %6622 = vmatmul.bf16.gmra.mxu0 %v6430
          %v6623 = vpop.f32.mrf.mxu0
          %v6624 = vadd.f32 %v6459, %v6623
          %v6625 = vpop.f32.mrf.mxu0
          %v6626 = vadd.f32 %v6459, %v6625
          %6627 = vmatmul.bf16.gmra.mxu0 %v6431
          %v6628 = vpop.f32.mrf.mxu0
          %v6629 = vadd.f32 %v6459, %v6628
          %v6630 = vpop.f32.mrf.mxu0
          %v6631 = vadd.f32 %v6459, %v6630
          %6632 = vmatmul.bf16.gmra.mxu0 %v6432
          %v6633 = vpop.f32.mrf.mxu0
          %v6634 = vadd.f32 %v6459, %v6633
          %v6635 = vpop.f32.mrf.mxu0
          %v6636 = vadd.f32 %v6459, %v6635
          %6637 = vmatmul.bf16.gmra.mxu0 %v6433
          %v6638 = vpop.f32.mrf.mxu0
          %v6639 = vadd.f32 %v6459, %v6638
          %v6640 = vpop.f32.mrf.mxu0
          %v6641 = vadd.f32 %v6459, %v6640
          %6642 = vmatmul.bf16.gmra.mxu0 %v6434
          %v6643 = vpop.f32.mrf.mxu0
          %v6644 = vadd.f32 %v6459, %v6643
          %v6645 = vpop.f32.mrf.mxu0
          %v6646 = vadd.f32 %v6459, %v6645
          %6647 = vmatmul.bf16.gmra.mxu0 %v6435
          %v6648 = vpop.f32.mrf.mxu0
          %v6649 = vadd.f32 %v6459, %v6648
          %v6650 = vpop.f32.mrf.mxu0
          %v6651 = vadd.f32 %v6459, %v6650
          %6652 = vmatmul.bf16.gmra.mxu0 %v6436
          %v6653 = vpop.f32.mrf.mxu0
          %v6654 = vadd.f32 %v6459, %v6653
          %v6655 = vpop.f32.mrf.mxu0
          %v6656 = vadd.f32 %v6459, %v6655
          %6657 = vmatmul.bf16.gmra.mxu0 %v6437
          %v6658 = vpop.f32.mrf.mxu0
          %v6659 = vadd.f32 %v6459, %v6658
          %v6660 = vpop.f32.mrf.mxu0
          %v6661 = vadd.f32 %v6459, %v6660
          %6662 = vmatmul.bf16.gmra.mxu0 %v6438
          %v6663 = vpop.f32.mrf.mxu0
          %v6664 = vadd.f32 %v6459, %v6663
          %v6665 = vpop.f32.mrf.mxu0
          %v6666 = vadd.f32 %v6459, %v6665
          %6667 = vmatmul.bf16.gmra.mxu0 %v6439
          %v6668 = vpop.f32.mrf.mxu0
          %v6669 = vadd.f32 %v6459, %v6668
          %v6670 = vpop.f32.mrf.mxu0
          %v6671 = vadd.f32 %v6459, %v6670
          %6672 = vmatmul.bf16.gmra.mxu0 %v6440
          %v6673 = vpop.f32.mrf.mxu0
          %v6674 = vadd.f32 %v6459, %v6673
          %v6675 = vpop.f32.mrf.mxu0
          %v6676 = vadd.f32 %v6459, %v6675
          %6677 = vdwg.mxu0
          %6678 = vst [vmem:[%s670] sm:$0xff] %v6519
          %6679 = vst [vmem:[%s670 + $0x8] sm:$0xff] %v6521
          %6680 = vst [vmem:[%s670 + $0x10] sm:$0xff] %v6524
          %6681 = vst [vmem:[%s670 + $0x18] sm:$0xff] %v6526
          %6682 = vst [vmem:[%s670 + $0x20] sm:$0xff] %v6529
          %6683 = vst [vmem:[%s670 + $0x28] sm:$0xff] %v6531
          %6684 = vst [vmem:[%s670 + $0x30] sm:$0xff] %v6534
          %6685 = vst [vmem:[%s670 + $0x38] sm:$0xff] %v6536
          %6686 = vst [vmem:[%s670 + $0x40] sm:$0xff] %v6539
          %6687 = vst [vmem:[%s670 + $0x48] sm:$0xff] %v6541
          %6688 = vst [vmem:[%s670 + $0x50] sm:$0xff] %v6544
          %6689 = vst [vmem:[%s670 + $0x58] sm:$0xff] %v6546
          %6690 = vst [vmem:[%s670 + $0x60] sm:$0xff] %v6549
          %6691 = vst [vmem:[%s670 + $0x68] sm:$0xff] %v6551
          %6692 = vst [vmem:[%s670 + $0x70] sm:$0xff] %v6554
          %6693 = vst [vmem:[%s670 + $0x78] sm:$0xff] %v6556
          %6694 = vst [vmem:[%s670 + $0x80] sm:$0xff] %v6559
          %6695 = vst [vmem:[%s670 + $0x88] sm:$0xff] %v6561
          %6696 = vst [vmem:[%s670 + $0x90] sm:$0xff] %v6564
          %6697 = vst [vmem:[%s670 + $0x98] sm:$0xff] %v6566
          %6698 = vst [vmem:[%s670 + $0xa0] sm:$0xff] %v6569
          %6699 = vst [vmem:[%s670 + $0xa8] sm:$0xff] %v6571
          %6700 = vst [vmem:[%s670 + $0xb0] sm:$0xff] %v6574
          %6701 = vst [vmem:[%s670 + $0xb8] sm:$0xff] %v6576
          %6702 = vst [vmem:[%s670 + $0xc0] sm:$0xff] %v6579
          %6703 = vst [vmem:[%s670 + $0xc8] sm:$0xff] %v6581
          %6704 = vst [vmem:[%s670 + $0xd0] sm:$0xff] %v6584
          %6705 = vst [vmem:[%s670 + $0xd8] sm:$0xff] %v6586
          %6706 = vst [vmem:[%s670 + $0xe0] sm:$0xff] %v6589
          %6707 = vst [vmem:[%s670 + $0xe8] sm:$0xff] %v6591
          %6708 = vst [vmem:[%s670 + $0xf0] sm:$0xff] %v6594
          %6709 = vst [vmem:[%s670 + $0xf8] sm:$0xff] %v6596
          %6710 = vst [vmem:[%s670 + $0x100] sm:$0xff] %v6599
          %6711 = vst [vmem:[%s670 + $0x108] sm:$0xff] %v6601
          %6712 = vst [vmem:[%s670 + $0x110] sm:$0xff] %v6604
          %6713 = vst [vmem:[%s670 + $0x118] sm:$0xff] %v6606
          %6714 = vst [vmem:[%s670 + $0x120] sm:$0xff] %v6609
          %6715 = vst [vmem:[%s670 + $0x128] sm:$0xff] %v6611
          %6716 = vst [vmem:[%s670 + $0x130] sm:$0xff] %v6614
          %6717 = vst [vmem:[%s670 + $0x138] sm:$0xff] %v6616
          %6718 = vst [vmem:[%s670 + $0x140] sm:$0xff] %v6619
          %6719 = vst [vmem:[%s670 + $0x148] sm:$0xff] %v6621
          %6720 = vst [vmem:[%s670 + $0x150] sm:$0xff] %v6624
          %6721 = vst [vmem:[%s670 + $0x158] sm:$0xff] %v6626
          %6722 = vst [vmem:[%s670 + $0x160] sm:$0xff] %v6629
          %6723 = vst [vmem:[%s670 + $0x168] sm:$0xff] %v6631
          %6724 = vst [vmem:[%s670 + $0x170] sm:$0xff] %v6634
          %6725 = vst [vmem:[%s670 + $0x178] sm:$0xff] %v6636
          %6726 = vst [vmem:[%s670 + $0x180] sm:$0xff] %v6639
          %6727 = vst [vmem:[%s670 + $0x188] sm:$0xff] %v6641
          %6728 = vst [vmem:[%s670 + $0x190] sm:$0xff] %v6644
          %6729 = vst [vmem:[%s670 + $0x198] sm:$0xff] %v6646
          %6730 = vst [vmem:[%s670 + $0x1a0] sm:$0xff] %v6649
          %6731 = vst [vmem:[%s670 + $0x1a8] sm:$0xff] %v6651
          %6732 = vst [vmem:[%s670 + $0x1b0] sm:$0xff] %v6654
          %6733 = vst [vmem:[%s670 + $0x1b8] sm:$0xff] %v6656
          %6734 = vst [vmem:[%s670 + $0x1c0] sm:$0xff] %v6659
          %6735 = vst [vmem:[%s670 + $0x1c8] sm:$0xff] %v6661
          %6736 = vst [vmem:[%s670 + $0x1d0] sm:$0xff] %v6664
          %6737 = vst [vmem:[%s670 + $0x1d8] sm:$0xff] %v6666
          %6738 = vst [vmem:[%s670 + $0x1e0] sm:$0xff] %v6669
          %6739 = vst [vmem:[%s670 + $0x1e8] sm:$0xff] %v6671
          %6740 = vst [vmem:[%s670 + $0x1f0] sm:$0xff] %v6674
          %6741 = vst [vmem:[%s670 + $0x1f8] sm:$0xff] %v6676
        $region93: #{_lambda_.1} parent=80 // pred_fallthru
          _
        %p6742 = scmp.lt.s32.totalorder %s23, 1
        %s6743 = scalar_select %p6742, %s23, 1
        %s6744 = smul.addr %s6743, 64
        %s6745 = smul.addr %s6744, 8
        %s6746 = scalar_lea.vmem %s6, %s6745
        %p6747 = scmp.lt.s32.totalorder %s23, 1
        %s6748 = scalar_select %p6747, %s23, 1
        %s6749 = smul.addr %s6748, 64
        %s6750 = smul.addr %s6749, 8
        %s6751 = scalar_lea.vmem %s7, %s6750
        // Predicated region
        $region94: #{_lambda_.1} parent=80 // pred_check
          %p6752 = pneg %p187
        $region95: #{_lambda_.1} parent=80 // pred_check_branch
          %6754 = sbr.rel (%p6752) target = $region97
        $region96: #{_lambda_.1} parent=80 // pred_region
          _
        $region97: #{_lambda_.1} parent=80 // pred_fallthru
          _
        // Predicated region
        $region98: #{_lambda_.1} parent=80 // pred_check
          %p6755 = pneg %p213
        $region99: #{_lambda_.1} parent=80 // pred_check_branch
          %6757 = sbr.rel (%p6755) target = $region101
        $region100: #{_lambda_.1} parent=80 // pred_region
          _
        $region101: #{_lambda_.1} parent=80 // pred_fallthru
          _
      $region81: #{_lambda_.1} parent=5 // pred_fallthru
        _
      %p6758 = scmp.le.s32.totalorder 2, %s14
      // Predicated region
      $region102: #{_lambda_.1} parent=5 // pred_check
        %p6759 = pneg %p6758
      $region103: #{_lambda_.1} parent=5 // pred_check_branch
        %6761 = sbr.rel (%p6759) target = $region105
      $region104: #{_lambda_.1} parent=5 // pred_region
        %s6762 = ssub.s32 %s14, 2
        // Predicated region
        $region106: #{_lambda_.1} parent=104 // pred_check
          %p6763 = pneg %p193
        $region107: #{_lambda_.1} parent=104 // pred_check_branch
          %6765 = sbr.rel (%p6763) target = $region109
        $region108: #{_lambda_.1} parent=104 // pred_region
          %p6766 = scmp.lt.s32.totalorder %s25, 1
          %s6767 = scalar_select %p6766, %s25, 1
          %s6768 = smul.addr %s6767, 64
          %s6769 = smul.addr %s6768, 8
          %s6770 = scalar_lea.vmem %s6, %s6769
        $region109: #{_lambda_.1} parent=104 // pred_fallthru
          _
        // Predicated region
        $region110: #{_lambda_.1} parent=104 // pred_check
          %p6771 = pneg %p219
        $region111: #{_lambda_.1} parent=104 // pred_check_branch
          %6773 = sbr.rel (%p6771) target = $region113
        $region112: #{_lambda_.1} parent=104 // pred_region
          %p6774 = scmp.lt.s32.totalorder %s25, 1
          %s6775 = scalar_select %p6774, %s25, 1
          %s6776 = smul.addr %s6775, 64
          %s6777 = smul.addr %s6776, 8
          %s6778 = scalar_lea.vmem %s7, %s6777
        $region113: #{_lambda_.1} parent=104 // pred_fallthru
          _
      $region105: #{_lambda_.1} parent=5 // pred_fallthru
        _
    $region6: #{_lambda_.1} parent=1 // loop_footer
      %s18 = sadd.s32 1, %s14
    $region7: #{_lambda_.1} parent=1 // loop_footer_branch
      %13 = sbr.rel target = $region3
    $region8: #{_lambda_.1} parent=1 // loop_exit
      _

</llo_original>
